<compile_context>
chip_gen: v5e
topology: v5e:2x2
jax: 0.10.0
libtpu: 0.0.40
codegen_flags: <defaults>
</compile_context>

<pallas_src>
import math

import jax
import jax.numpy as jnp
from jax import lax
from jax.experimental import pallas as pl
from jax.experimental.pallas import tpu as pltpu

# --- small, self-consistent config (shrunk from n_embed=384 / 6 heads / 6 layers) ---
VOCAB      = 65                 # "vocab_size = len(chars)" — synthetic value
VOCAB_PAD  = 128                # LM head padded to a lane multiple
N_EMBED    = 128
N_HEADS    = 4
HEAD_DIM   = N_EMBED // N_HEADS
BLOCK_SIZE = 128                # sequence length T
N_LAYERS   = 2
LN_EPS     = 1e-5               # torch.nn.LayerNorm default


# ---------------------------- fused forward kernel ----------------------------

def _fused_forward_kernel(idx_ref, tok_ref, pos_ref,
                          ln1_g_ref, ln1_b_ref, ln2_g_ref, ln2_b_ref,
                          w_attn_ref, w_proj_ref, w_fc_ref, b_fc_ref,
                          w_out_ref, b_out_ref,
                          lnf_g_ref, lnf_b_ref, w_head_ref, b_head_ref,
                          logits_ref):
    T, C = BLOCK_SIZE, N_EMBED
    f32, bf16 = jnp.float32, jnp.bfloat16

    def mm(a, b):
        # bf16 operands, f32 accumulation on the MXU.
        return jnp.dot(a.astype(bf16), b.astype(bf16), preferred_element_type=f32)

    def mm_t(a, b):
        # a @ b.T without materializing a transpose (contract last dims).
        return lax.dot_general(a.astype(bf16), b.astype(bf16),
                               (((1,), (1,)), ((), ())),
                               preferred_element_type=f32)

    def layer_norm(x, g, b):
        mu = jnp.mean(x, axis=-1, keepdims=True)
        var = jnp.mean((x - mu) ** 2, axis=-1, keepdims=True)
        return (x - mu) * lax.rsqrt(var + LN_EPS) * g + b

    # --- token + positional embedding (one-hot matmul gather, exact) ---
    idx_col = idx_ref[0]                                          # (T, 1) int32
    vocab_iota = lax.broadcasted_iota(jnp.int32, (T, VOCAB_PAD), 1)
    onehot = jnp.where(vocab_iota == idx_col, 1.0, 0.0)           # (T, VOCAB_PAD) f32
    x = mm(onehot, tok_ref[...]) + pos_ref[...].astype(f32)       # (T, C) f32

    # causal mask, hoisted once per kernel invocation
    row = lax.broadcasted_iota(jnp.int32, (T, T), 0)
    col = lax.broadcasted_iota(jnp.int32, (T, T), 1)
    causal = col <= row
    scale = 1.0 / math.sqrt(HEAD_DIM)

    for l in range(N_LAYERS):
        # --- self-attention sub-block: x = x + proj(attn(ln1(x))) ---
        h = layer_norm(x, ln1_g_ref[l], ln1_b_ref[l])
        qkv = mm(h, w_attn_ref[l])                                # (T, 3C), c_attn bias=False
        heads = []
        for hh in range(N_HEADS):
            o = hh * HEAD_DIM
            q = qkv[:, o:o + HEAD_DIM]
            k = qkv[:, C + o:C + o + HEAD_DIM]
            v = qkv[:, 2 * C + o:2 * C + o + HEAD_DIM]
            s = mm_t(q, k) * scale                                # (T, T) f32
            s = jnp.where(causal, s, -1e30)                       # finite mask (tiling-safe)
            m = jnp.max(s, axis=-1, keepdims=True)
            p = jnp.exp(s - m)
            lsum = jnp.sum(p, axis=-1, keepdims=True)
            pv = mm(p, v)                                         # (T, HEAD_DIM)
            heads.append(pv * pl.reciprocal(lsum, approx=True))   # EUP reciprocal
        y = jnp.concatenate(heads, axis=-1)                       # (T, C) lane-dense
        x = x + mm(y, w_proj_ref[l])                              # residual, in-kernel

        # --- feed-forward sub-block: x = x + W2(relu(W1(ln2(x)) + b1)) + b2 ---
        h = layer_norm(x, ln2_g_ref[l], ln2_b_ref[l])
        h = jnp.maximum(mm(h, w_fc_ref[l]) + b_fc_ref[l], 0.0)
        x = x + mm(h, w_out_ref[l]) + b_out_ref[l]

    # --- final LayerNorm + LM head (padded to 128 lanes -> unmasked stores) ---
    xf = layer_norm(x, lnf_g_ref[...], lnf_b_ref[...])
    logits = mm(xf, w_head_ref[...]) + b_head_ref[...]
    logits_ref[0] = logits.astype(logits_ref.dtype)


def bigram_lm_forward(params, idx, targets=None):
    """idx: (B, T) int32 token ids -> (logits (B, T, VOCAB), loss or None)."""
    B, T = idx.shape
    assert T == BLOCK_SIZE
    C, L = N_EMBED, N_LAYERS
    idx3 = idx.astype(jnp.int32).reshape(B, T, 1)

    def full(shape):
        return pl.BlockSpec(shape, lambda b, _s=len(shape): (0,) * _s)

    in_specs = [
        pl.BlockSpec((1, T, 1), lambda b: (b, 0, 0)),      # idx
        full((VOCAB_PAD, C)),                              # tok_emb (padded)
        full((BLOCK_SIZE, C)),                             # pos_emb
        full((L, 1, C)), full((L, 1, C)),                  # ln1 gamma/beta
        full((L, 1, C)), full((L, 1, C)),                  # ln2 gamma/beta
        full((L, C, 3 * C)),                               # w_attn (c_attn, bias=False)
        full((L, C, C)),                                   # w_proj (c_proj, bias=False)
        full((L, C, 4 * C)), full((L, 1, 4 * C)),          # w_fc, b_fc
        full((L, 4 * C, C)), full((L, 1, C)),              # w_out, b_out
        full((1, C)), full((1, C)),                        # lnf gamma/beta
        full((C, VOCAB_PAD)), full((1, VOCAB_PAD)),        # w_head, b_head (padded)
    ]

    logits_pad = pl.pallas_call(
        _fused_forward_kernel,
        out_shape=jax.ShapeDtypeStruct((B, T, VOCAB_PAD), jnp.float32),
        grid_spec=pltpu.PrefetchScalarGridSpec(
            num_scalar_prefetch=0,
            grid=(B,),
            in_specs=in_specs,
            out_specs=pl.BlockSpec((1, T, VOCAB_PAD), lambda b: (b, 0, 0))),
        compiler_params=pltpu.CompilerParams(
            dimension_semantics=("parallel",)),
    )(idx3, params["tok_emb"], params["pos_emb"],
      params["ln1_g"], params["ln1_b"], params["ln2_g"], params["ln2_b"],
      params["w_attn"], params["w_proj"], params["w_fc"], params["b_fc"],
      params["w_out"], params["b_out"],
      params["lnf_g"], params["lnf_b"], params["w_head"], params["b_head"])
    logits = logits_pad[..., :VOCAB]

    if targets is None:
        return logits, None
    # TODO(synk): cross_entropy stays a plain-JAX reduction over the kernel's logits
    # (not worth a dedicated Pallas kernel).
    logp = jax.nn.log_softmax(logits.reshape(B * T, VOCAB), axis=-1)
    loss = -jnp.mean(jnp.take_along_axis(
        logp, targets.reshape(B * T, 1).astype(jnp.int32), axis=-1))
    return logits, loss


# ---------------------------- parameters ----------------------------

def init_params(key):
    C, L = N_EMBED, N_LAYERS
    ks = jax.random.split(key, 16)

    def nrm(k, shape, scale=0.02):
        return (scale * jax.random.normal(k, shape, jnp.float32)).astype(jnp.bfloat16)

    def nrm32(k, shape, scale=0.02):
        return scale * jax.random.normal(k, shape, jnp.float32)

    tok = jnp.zeros((VOCAB_PAD, C), jnp.bfloat16).at[:VOCAB].set(nrm(ks[0], (VOCAB, C)))
    w_head = jnp.zeros((C, VOCAB_PAD), jnp.bfloat16).at[:, :VOCAB].set(nrm(ks[1], (C, VOCAB)))
    b_head = jnp.zeros((1, VOCAB_PAD), jnp.float32).at[:, :VOCAB].set(nrm32(ks[7], (1, VOCAB)))

    return {
        # bf16 MXU operands
        "tok_emb": tok,
        "pos_emb": nrm(ks[2], (BLOCK_SIZE, C)),
        "w_attn":  nrm(ks[3], (L, C, 3 * C)),
        "w_proj":  nrm(ks[4], (L, C, C)),
        "w_fc":    nrm(ks[5], (L, C, 4 * C)),
        "w_out":   nrm(ks[6], (L, 4 * C, C)),
        "w_head":  w_head,
        # f32 LayerNorm params / biases (VPU math stays f32) — non-trivial so the
        # correctness check exercises them.
        "ln1_g": 1.0 + nrm32(ks[8],  (L, 1, C), 0.1),
        "ln1_b": nrm32(ks[9],  (L, 1, C), 0.1),
        "ln2_g": 1.0 + nrm32(ks[10], (L, 1, C), 0.1),
        "ln2_b": nrm32(ks[11], (L, 1, C), 0.1),
        "b_fc":  nrm32(ks[12], (L, 1, 4 * C)),
        "b_out": nrm32(ks[13], (L, 1, C)),
        "lnf_g": 1.0 + nrm32(ks[14], (1, C), 0.1),
        "lnf_b": nrm32(ks[15], (1, C), 0.1),
        "b_head": b_head,
    }


# ---------------------------- pure-JAX reference (same precision policy) ----------------------------

def reference_forward(params, idx):
    B, T = idx.shape
    C, H, d = N_EMBED, N_HEADS, HEAD_DIM
    f32, bf16 = jnp.float32, jnp.bfloat16

    def mm(eq, a, b):
        return jnp.einsum(eq, a.astype(bf16), b.astype(bf16), preferred_element_type=f32)

    def ln(x, g, b):
        mu = x.mean(-1, keepdims=True)
        var = ((x - mu) ** 2).mean(-1, keepdims=True)
        return (x - mu) * lax.rsqrt(var + LN_EPS) * g + b

    x = params["tok_emb"][idx].astype(f32) + params["pos_emb"][:T].astype(f32)[None]
    causal = jnp.tril(jnp.ones((T, T), bool))
    for l in range(N_LAYERS):
        h = ln(x, params["ln1_g"][l, 0], params["ln1_b"][l, 0])
        qkv = mm('btc,cd->btd', h, params["w_attn"][l])
        q, k, v = jnp.split(qkv, 3, axis=-1)
        heads = lambda t: t.reshape(B, T, H, d).transpose(0, 2, 1, 3)
        q, k, v = heads(q), heads(k), heads(v)
        s = mm('bhqd,bhkd->bhqk', q, k) * (1.0 / math.sqrt(d))
        s = jnp.where(causal, s, -1e30)
        p = jnp.exp(s - s.max(-1, keepdims=True))
        pv = mm('bhqk,bhkd->bhqd', p, v)
        y = pv / p.sum(-1, keepdims=True)
        y = y.transpose(0, 2, 1, 3).reshape(B, T, C)
        x = x + mm('btc,cd->btd', y, params["w_proj"][l])
        h = ln(x, params["ln2_g"][l, 0], params["ln2_b"][l, 0])
        h = jnp.maximum(mm('btc,cd->btd', h, params["w_fc"][l]) + params["b_fc"][l, 0], 0.0)
        x = x + mm('btc,cd->btd', h, params["w_out"][l]) + params["b_out"][l, 0]
    x = ln(x, params["lnf_g"][0], params["lnf_b"][0])
    logits = mm('btc,cv->btv', x, params["w_head"]) + params["b_head"][0]
    return logits[..., :VOCAB]


if __name__ == "__main__":
    key = jax.random.PRNGKey(0)
    pkey, ikey = jax.random.split(key)
    params = init_params(pkey)

    B, T = 2, BLOCK_SIZE
    idx = jax.random.randint(ikey, (B, T), 0, VOCAB, dtype=jnp.int32)

    fwd = jax.jit(lambda p, i: bigram_lm_forward(p, i)[0])
    logits = jax.block_until_ready(fwd(params, idx))
    assert logits.shape == (B, T, VOCAB)

    ref = reference_forward(params, idx)
    max_err = float(jnp.max(jnp.abs(logits - ref)))
    assert jnp.allclose(logits, ref, atol=3e-2, rtol=3e-2), \
        f"mismatch vs reference (max abs err {max_err})"

    print("KERNEL_OK")
</pallas_src>

<mosaic_0001>
module attributes {stable_mosaic.version = 11 : i64} {
  func.func @_fused_forward_kernel(%arg0: i32, %arg1: memref<1x128x1xi32, #tpu.memory_space<vmem>>, %arg2: memref<128x128xbf16, #tpu.memory_space<vmem>>, %arg3: memref<128x128xbf16, #tpu.memory_space<vmem>>, %arg4: memref<2x1x128xf32, #tpu.memory_space<vmem>>, %arg5: memref<2x1x128xf32, #tpu.memory_space<vmem>>, %arg6: memref<2x1x128xf32, #tpu.memory_space<vmem>>, %arg7: memref<2x1x128xf32, #tpu.memory_space<vmem>>, %arg8: memref<2x128x384xbf16, #tpu.memory_space<vmem>>, %arg9: memref<2x128x128xbf16, #tpu.memory_space<vmem>>, %arg10: memref<2x128x512xbf16, #tpu.memory_space<vmem>>, %arg11: memref<2x1x512xf32, #tpu.memory_space<vmem>>, %arg12: memref<2x512x128xbf16, #tpu.memory_space<vmem>>, %arg13: memref<2x1x128xf32, #tpu.memory_space<vmem>>, %arg14: memref<1x128xf32, #tpu.memory_space<vmem>>, %arg15: memref<1x128xf32, #tpu.memory_space<vmem>>, %arg16: memref<128x128xbf16, #tpu.memory_space<vmem>>, %arg17: memref<1x128xf32, #tpu.memory_space<vmem>>, %arg18: memref<1x128x128xf32, #tpu.memory_space<vmem>>) attributes {dimension_semantics = [#tpu.dimension_semantics<parallel>], iteration_bounds = array<i64: 2>, scalar_prefetch = 0 : i64, scratch_operands = 0 : i64, tpu.core_type = #tpu.core_type<tc>, window_params = [{transform_indices = @transform_0, window_bounds = array<i64: 1, 128, 1>}, {pipeline_mode = #tpu.pipeline_mode<synchronous>, transform_indices = @transform_1, window_bounds = array<i64: 128, 128>}, {pipeline_mode = #tpu.pipeline_mode<synchronous>, transform_indices = @transform_2, window_bounds = array<i64: 128, 128>}, {pipeline_mode = #tpu.pipeline_mode<synchronous>, transform_indices = @transform_3, window_bounds = array<i64: 2, 1, 128>}, {pipeline_mode = #tpu.pipeline_mode<synchronous>, transform_indices = @transform_4, window_bounds = array<i64: 2, 1, 128>}, {pipeline_mode = #tpu.pipeline_mode<synchronous>, transform_indices = @transform_5, window_bounds = array<i64: 2, 1, 128>}, {pipeline_mode = #tpu.pipeline_mode<synchronous>, transform_indices = @transform_6, window_bounds = array<i64: 2, 1, 128>}, {pipeline_mode = #tpu.pipeline_mode<synchronous>, transform_indices = @transform_7, window_bounds = array<i64: 2, 128, 384>}, {pipeline_mode = #tpu.pipeline_mode<synchronous>, transform_indices = @transform_8, window_bounds = array<i64: 2, 128, 128>}, {pipeline_mode = #tpu.pipeline_mode<synchronous>, transform_indices = @transform_9, window_bounds = array<i64: 2, 128, 512>}, {pipeline_mode = #tpu.pipeline_mode<synchronous>, transform_indices = @transform_10, window_bounds = array<i64: 2, 1, 512>}, {pipeline_mode = #tpu.pipeline_mode<synchronous>, transform_indices = @transform_11, window_bounds = array<i64: 2, 512, 128>}, {pipeline_mode = #tpu.pipeline_mode<synchronous>, transform_indices = @transform_12, window_bounds = array<i64: 2, 1, 128>}, {pipeline_mode = #tpu.pipeline_mode<synchronous>, transform_indices = @transform_13, window_bounds = array<i64: 1, 128>}, {pipeline_mode = #tpu.pipeline_mode<synchronous>, transform_indices = @transform_14, window_bounds = array<i64: 1, 128>}, {pipeline_mode = #tpu.pipeline_mode<synchronous>, transform_indices = @transform_15, window_bounds = array<i64: 128, 128>}, {pipeline_mode = #tpu.pipeline_mode<synchronous>, transform_indices = @transform_16, window_bounds = array<i64: 1, 128>}, {transform_indices = @transform_17, window_bounds = array<i64: 1, 128, 128>}]} {
    %c0 = arith.constant 0 : index
    %c0_0 = arith.constant 0 : index
    %c0_1 = arith.constant 0 : index
    %0 = vector.load %arg1[%c0, %c0_0, %c0_1] : memref<1x128x1xi32, #tpu.memory_space<vmem>>, vector<1x128x1xi32>
    %1 = vector.shape_cast %0 : vector<1x128x1xi32> to vector<128x1xi32>
    %2 = tpu.iota {dimensions = array<i32: 1>} : vector<128x128xi32>
    %3 = vector.broadcast %1 : vector<128x1xi32> to vector<128x128xi32>
    %4 = arith.cmpi eq, %2, %3 : vector<128x128xi32>
    %cst = arith.constant 1.000000e+00 : f32
    %cst_2 = arith.constant 0.000000e+00 : f32
    %5 = vector.broadcast %cst : f32 to vector<128x128xf32>
    %6 = vector.broadcast %cst_2 : f32 to vector<128x128xf32>
    %7 = arith.select %4, %5, %6 : vector<128x128xi1>, vector<128x128xf32>
    %c0_3 = arith.constant 0 : index
    %c0_4 = arith.constant 0 : index
    %8 = vector.load %arg2[%c0_3, %c0_4] : memref<128x128xbf16, #tpu.memory_space<vmem>>, vector<128x128xbf16>
    %9 = arith.truncf %7 : vector<128x128xf32> to vector<128x128xbf16>
    %cst_5 = arith.constant dense<0.000000e+00> : vector<128x128xf32>
    %10 = tpu.matmul %9, %8, %cst_5 {dimension_numbers = #tpu.dot_dimension_numbers<[1], [0], [0], [1], [0, 0, 1, 1], [], []>} : vector<128x128xbf16>, vector<128x128xbf16>, vector<128x128xf32> -> vector<128x128xf32>
    %c0_6 = arith.constant 0 : index
    %c0_7 = arith.constant 0 : index
    %11 = vector.load %arg3[%c0_6, %c0_7] : memref<128x128xbf16, #tpu.memory_space<vmem>>, vector<128x128xbf16>
    %12 = arith.extf %11 : vector<128x128xbf16> to vector<128x128xf32>
    %13 = arith.addf %10, %12 : vector<128x128xf32>
    %14 = tpu.iota {dimensions = array<i32: 0>} : vector<128x128xi32>
    %15 = tpu.iota {dimensions = array<i32: 1>} : vector<128x128xi32>
    %16 = arith.cmpi sle, %15, %14 : vector<128x128xi32>
    %c0_8 = arith.constant 0 : index
    %c0_9 = arith.constant 0 : index
    %c0_10 = arith.constant 0 : index
    %17 = vector.load %arg4[%c0_8, %c0_9, %c0_10] : memref<2x1x128xf32, #tpu.memory_space<vmem>>, vector<1x1x128xf32>
    %18 = vector.shape_cast %17 : vector<1x1x128xf32> to vector<1x128xf32>
    %c0_11 = arith.constant 0 : index
    %c0_12 = arith.constant 0 : index
    %c0_13 = arith.constant 0 : index
    %19 = vector.load %arg5[%c0_11, %c0_12, %c0_13] : memref<2x1x128xf32, #tpu.memory_space<vmem>>, vector<1x1x128xf32>
    %20 = vector.shape_cast %19 : vector<1x1x128xf32> to vector<1x128xf32>
    %cst_14 = arith.constant dense<0.000000e+00> : vector<128xf32>
    %21 = vector.multi_reduction <add>, %13, %cst_14 [1] : vector<128x128xf32> to vector<128xf32>
    %22 = vector.shape_cast %21 : vector<128xf32> to vector<128x1xf32>
    %cst_15 = arith.constant 1.280000e+02 : f32
    %23 = vector.broadcast %cst_15 : f32 to vector<128x1xf32>
    %24 = arith.divf %22, %23 : vector<128x1xf32>
    %25 = vector.broadcast %24 : vector<128x1xf32> to vector<128x128xf32>
    %26 = arith.subf %13, %25 : vector<128x128xf32>
    %27 = arith.mulf %26, %26 : vector<128x128xf32>
    %cst_16 = arith.constant dense<0.000000e+00> : vector<128xf32>
    %28 = vector.multi_reduction <add>, %27, %cst_16 [1] : vector<128x128xf32> to vector<128xf32>
    %29 = vector.shape_cast %28 : vector<128xf32> to vector<128x1xf32>
    %cst_17 = arith.constant 1.280000e+02 : f32
    %30 = vector.broadcast %cst_17 : f32 to vector<128x1xf32>
    %31 = arith.divf %29, %30 : vector<128x1xf32>
    %32 = vector.broadcast %24 : vector<128x1xf32> to vector<128x128xf32>
    %33 = arith.subf %13, %32 : vector<128x128xf32>
    %cst_18 = arith.constant 9.99999974E-6 : f32
    %34 = vector.broadcast %cst_18 : f32 to vector<128x1xf32>
    %35 = arith.addf %31, %34 : vector<128x1xf32>
    %36 = math.rsqrt %35 : vector<128x1xf32>
    %37 = vector.broadcast %36 : vector<128x1xf32> to vector<128x128xf32>
    %38 = arith.mulf %33, %37 : vector<128x128xf32>
    %39 = vector.broadcast %18 : vector<1x128xf32> to vector<128x128xf32>
    %40 = arith.mulf %38, %39 : vector<128x128xf32>
    %41 = vector.broadcast %20 : vector<1x128xf32> to vector<128x128xf32>
    %42 = arith.addf %40, %41 : vector<128x128xf32>
    %c0_19 = arith.constant 0 : index
    %c0_20 = arith.constant 0 : index
    %c0_21 = arith.constant 0 : index
    %43 = vector.load %arg8[%c0_19, %c0_20, %c0_21] : memref<2x128x384xbf16, #tpu.memory_space<vmem>>, vector<1x128x384xbf16>
    %44 = vector.shape_cast %43 : vector<1x128x384xbf16> to vector<128x384xbf16>
    %45 = arith.truncf %42 : vector<128x128xf32> to vector<128x128xbf16>
    %cst_22 = arith.constant dense<0.000000e+00> : vector<128x384xf32>
    %46 = tpu.matmul %45, %44, %cst_22 {dimension_numbers = #tpu.dot_dimension_numbers<[1], [0], [0], [1], [0, 0, 1, 1], [], []>} : vector<128x128xbf16>, vector<128x384xbf16>, vector<128x384xf32> -> vector<128x384xf32>
    %47 = vector.extract_strided_slice %46 {offsets = [0, 0], sizes = [128, 32], strides = [1, 1]} : vector<128x384xf32> to vector<128x32xf32>
    %48 = vector.extract_strided_slice %46 {offsets = [0, 128], sizes = [128, 32], strides = [1, 1]} : vector<128x384xf32> to vector<128x32xf32>
    %49 = vector.extract_strided_slice %46 {offsets = [0, 256], sizes = [128, 32], strides = [1, 1]} : vector<128x384xf32> to vector<128x32xf32>
    %50 = arith.truncf %47 : vector<128x32xf32> to vector<128x32xbf16>
    %51 = arith.truncf %48 : vector<128x32xf32> to vector<128x32xbf16>
    %cst_23 = arith.constant dense<0.000000e+00> : vector<128x128xf32>
    %52 = tpu.matmul %50, %51, %cst_23 {dimension_numbers = #tpu.dot_dimension_numbers<[1], [1], [0], [0], [0, 0, 1, 0], [], []>} : vector<128x32xbf16>, vector<128x32xbf16>, vector<128x128xf32> -> vector<128x128xf32>
    %cst_24 = arith.constant 0.176776692 : f32
    %53 = vector.broadcast %cst_24 : f32 to vector<128x128xf32>
    %54 = arith.mulf %52, %53 : vector<128x128xf32>
    %cst_25 = arith.constant -1.000000e+30 : f32
    %55 = vector.broadcast %cst_25 : f32 to vector<128x128xf32>
    %56 = arith.select %16, %54, %55 : vector<128x128xi1>, vector<128x128xf32>
    %cst_26 = arith.constant dense<0xFF800000> : vector<128xf32>
    %57 = vector.multi_reduction <maximumf>, %56, %cst_26 [1] : vector<128x128xf32> to vector<128xf32>
    %58 = vector.shape_cast %57 : vector<128xf32> to vector<128x1xf32>
    %59 = vector.broadcast %58 : vector<128x1xf32> to vector<128x128xf32>
    %60 = arith.subf %56, %59 : vector<128x128xf32>
    %61 = math.exp %60 : vector<128x128xf32>
    %cst_27 = arith.constant dense<0.000000e+00> : vector<128xf32>
    %62 = vector.multi_reduction <add>, %61, %cst_27 [1] : vector<128x128xf32> to vector<128xf32>
    %63 = vector.shape_cast %62 : vector<128xf32> to vector<128x1xf32>
    %64 = arith.truncf %61 : vector<128x128xf32> to vector<128x128xbf16>
    %65 = arith.truncf %49 : vector<128x32xf32> to vector<128x32xbf16>
    %cst_28 = arith.constant dense<0.000000e+00> : vector<128x32xf32>
    %66 = tpu.matmul %64, %65, %cst_28 {dimension_numbers = #tpu.dot_dimension_numbers<[1], [0], [0], [1], [0, 0, 1, 1], [], []>} : vector<128x128xbf16>, vector<128x32xbf16>, vector<128x32xf32> -> vector<128x32xf32>
    %67 = tpu.reciprocal %63 {approx = true} : vector<128x1xf32> -> vector<128x1xf32>
    %68 = vector.broadcast %67 : vector<128x1xf32> to vector<128x32xf32>
    %69 = arith.mulf %66, %68 : vector<128x32xf32>
    %70 = vector.extract_strided_slice %46 {offsets = [0, 32], sizes = [128, 32], strides = [1, 1]} : vector<128x384xf32> to vector<128x32xf32>
    %71 = vector.extract_strided_slice %46 {offsets = [0, 160], sizes = [128, 32], strides = [1, 1]} : vector<128x384xf32> to vector<128x32xf32>
    %72 = vector.extract_strided_slice %46 {offsets = [0, 288], sizes = [128, 32], strides = [1, 1]} : vector<128x384xf32> to vector<128x32xf32>
    %73 = arith.truncf %70 : vector<128x32xf32> to vector<128x32xbf16>
    %74 = arith.truncf %71 : vector<128x32xf32> to vector<128x32xbf16>
    %cst_29 = arith.constant dense<0.000000e+00> : vector<128x128xf32>
    %75 = tpu.matmul %73, %74, %cst_29 {dimension_numbers = #tpu.dot_dimension_numbers<[1], [1], [0], [0], [0, 0, 1, 0], [], []>} : vector<128x32xbf16>, vector<128x32xbf16>, vector<128x128xf32> -> vector<128x128xf32>
    %cst_30 = arith.constant 0.176776692 : f32
    %76 = vector.broadcast %cst_30 : f32 to vector<128x128xf32>
    %77 = arith.mulf %75, %76 : vector<128x128xf32>
    %cst_31 = arith.constant -1.000000e+30 : f32
    %78 = vector.broadcast %cst_31 : f32 to vector<128x128xf32>
    %79 = arith.select %16, %77, %78 : vector<128x128xi1>, vector<128x128xf32>
    %cst_32 = arith.constant dense<0xFF800000> : vector<128xf32>
    %80 = vector.multi_reduction <maximumf>, %79, %cst_32 [1] : vector<128x128xf32> to vector<128xf32>
    %81 = vector.shape_cast %80 : vector<128xf32> to vector<128x1xf32>
    %82 = vector.broadcast %81 : vector<128x1xf32> to vector<128x128xf32>
    %83 = arith.subf %79, %82 : vector<128x128xf32>
    %84 = math.exp %83 : vector<128x128xf32>
    %cst_33 = arith.constant dense<0.000000e+00> : vector<128xf32>
    %85 = vector.multi_reduction <add>, %84, %cst_33 [1] : vector<128x128xf32> to vector<128xf32>
    %86 = vector.shape_cast %85 : vector<128xf32> to vector<128x1xf32>
    %87 = arith.truncf %84 : vector<128x128xf32> to vector<128x128xbf16>
    %88 = arith.truncf %72 : vector<128x32xf32> to vector<128x32xbf16>
    %cst_34 = arith.constant dense<0.000000e+00> : vector<128x32xf32>
    %89 = tpu.matmul %87, %88, %cst_34 {dimension_numbers = #tpu.dot_dimension_numbers<[1], [0], [0], [1], [0, 0, 1, 1], [], []>} : vector<128x128xbf16>, vector<128x32xbf16>, vector<128x32xf32> -> vector<128x32xf32>
    %90 = tpu.reciprocal %86 {approx = true} : vector<128x1xf32> -> vector<128x1xf32>
    %91 = vector.broadcast %90 : vector<128x1xf32> to vector<128x32xf32>
    %92 = arith.mulf %89, %91 : vector<128x32xf32>
    %93 = vector.extract_strided_slice %46 {offsets = [0, 64], sizes = [128, 32], strides = [1, 1]} : vector<128x384xf32> to vector<128x32xf32>
    %94 = vector.extract_strided_slice %46 {offsets = [0, 192], sizes = [128, 32], strides = [1, 1]} : vector<128x384xf32> to vector<128x32xf32>
    %95 = vector.extract_strided_slice %46 {offsets = [0, 320], sizes = [128, 32], strides = [1, 1]} : vector<128x384xf32> to vector<128x32xf32>
    %96 = arith.truncf %93 : vector<128x32xf32> to vector<128x32xbf16>
    %97 = arith.truncf %94 : vector<128x32xf32> to vector<128x32xbf16>
    %cst_35 = arith.constant dense<0.000000e+00> : vector<128x128xf32>
    %98 = tpu.matmul %96, %97, %cst_35 {dimension_numbers = #tpu.dot_dimension_numbers<[1], [1], [0], [0], [0, 0, 1, 0], [], []>} : vector<128x32xbf16>, vector<128x32xbf16>, vector<128x128xf32> -> vector<128x128xf32>
    %cst_36 = arith.constant 0.176776692 : f32
    %99 = vector.broadcast %cst_36 : f32 to vector<128x128xf32>
    %100 = arith.mulf %98, %99 : vector<128x128xf32>
    %cst_37 = arith.constant -1.000000e+30 : f32
    %101 = vector.broadcast %cst_37 : f32 to vector<128x128xf32>
    %102 = arith.select %16, %100, %101 : vector<128x128xi1>, vector<128x128xf32>
    %cst_38 = arith.constant dense<0xFF800000> : vector<128xf32>
    %103 = vector.multi_reduction <maximumf>, %102, %cst_38 [1] : vector<128x128xf32> to vector<128xf32>
    %104 = vector.shape_cast %103 : vector<128xf32> to vector<128x1xf32>
    %105 = vector.broadcast %104 : vector<128x1xf32> to vector<128x128xf32>
    %106 = arith.subf %102, %105 : vector<128x128xf32>
    %107 = math.exp %106 : vector<128x128xf32>
    %cst_39 = arith.constant dense<0.000000e+00> : vector<128xf32>
    %108 = vector.multi_reduction <add>, %107, %cst_39 [1] : vector<128x128xf32> to vector<128xf32>
    %109 = vector.shape_cast %108 : vector<128xf32> to vector<128x1xf32>
    %110 = arith.truncf %107 : vector<128x128xf32> to vector<128x128xbf16>
    %111 = arith.truncf %95 : vector<128x32xf32> to vector<128x32xbf16>
    %cst_40 = arith.constant dense<0.000000e+00> : vector<128x32xf32>
    %112 = tpu.matmul %110, %111, %cst_40 {dimension_numbers = #tpu.dot_dimension_numbers<[1], [0], [0], [1], [0, 0, 1, 1], [], []>} : vector<128x128xbf16>, vector<128x32xbf16>, vector<128x32xf32> -> vector<128x32xf32>
    %113 = tpu.reciprocal %109 {approx = true} : vector<128x1xf32> -> vector<128x1xf32>
    %114 = vector.broadcast %113 : vector<128x1xf32> to vector<128x32xf32>
    %115 = arith.mulf %112, %114 : vector<128x32xf32>
    %116 = vector.extract_strided_slice %46 {offsets = [0, 96], sizes = [128, 32], strides = [1, 1]} : vector<128x384xf32> to vector<128x32xf32>
    %117 = vector.extract_strided_slice %46 {offsets = [0, 224], sizes = [128, 32], strides = [1, 1]} : vector<128x384xf32> to vector<128x32xf32>
    %118 = vector.extract_strided_slice %46 {offsets = [0, 352], sizes = [128, 32], strides = [1, 1]} : vector<128x384xf32> to vector<128x32xf32>
    %119 = arith.truncf %116 : vector<128x32xf32> to vector<128x32xbf16>
    %120 = arith.truncf %117 : vector<128x32xf32> to vector<128x32xbf16>
    %cst_41 = arith.constant dense<0.000000e+00> : vector<128x128xf32>
    %121 = tpu.matmul %119, %120, %cst_41 {dimension_numbers = #tpu.dot_dimension_numbers<[1], [1], [0], [0], [0, 0, 1, 0], [], []>} : vector<128x32xbf16>, vector<128x32xbf16>, vector<128x128xf32> -> vector<128x128xf32>
    %cst_42 = arith.constant 0.176776692 : f32
    %122 = vector.broadcast %cst_42 : f32 to vector<128x128xf32>
    %123 = arith.mulf %121, %122 : vector<128x128xf32>
    %cst_43 = arith.constant -1.000000e+30 : f32
    %124 = vector.broadcast %cst_43 : f32 to vector<128x128xf32>
    %125 = arith.select %16, %123, %124 : vector<128x128xi1>, vector<128x128xf32>
    %cst_44 = arith.constant dense<0xFF800000> : vector<128xf32>
    %126 = vector.multi_reduction <maximumf>, %125, %cst_44 [1] : vector<128x128xf32> to vector<128xf32>
    %127 = vector.shape_cast %126 : vector<128xf32> to vector<128x1xf32>
    %128 = vector.broadcast %127 : vector<128x1xf32> to vector<128x128xf32>
    %129 = arith.subf %125, %128 : vector<128x128xf32>
    %130 = math.exp %129 : vector<128x128xf32>
    %cst_45 = arith.constant dense<0.000000e+00> : vector<128xf32>
    %131 = vector.multi_reduction <add>, %130, %cst_45 [1] : vector<128x128xf32> to vector<128xf32>
    %132 = vector.shape_cast %131 : vector<128xf32> to vector<128x1xf32>
    %133 = arith.truncf %130 : vector<128x128xf32> to vector<128x128xbf16>
    %134 = arith.truncf %118 : vector<128x32xf32> to vector<128x32xbf16>
    %cst_46 = arith.constant dense<0.000000e+00> : vector<128x32xf32>
    %135 = tpu.matmul %133, %134, %cst_46 {dimension_numbers = #tpu.dot_dimension_numbers<[1], [0], [0], [1], [0, 0, 1, 1], [], []>} : vector<128x128xbf16>, vector<128x32xbf16>, vector<128x32xf32> -> vector<128x32xf32>
    %136 = tpu.reciprocal %132 {approx = true} : vector<128x1xf32> -> vector<128x1xf32>
    %137 = vector.broadcast %136 : vector<128x1xf32> to vector<128x32xf32>
    %138 = arith.mulf %135, %137 : vector<128x32xf32>
    %139 = tpu.concatenate %69, %92, %115, %138 in 1 : vector<128x32xf32>, vector<128x32xf32>, vector<128x32xf32>, vector<128x32xf32> -> vector<128x128xf32>
    %c0_47 = arith.constant 0 : index
    %c0_48 = arith.constant 0 : index
    %c0_49 = arith.constant 0 : index
    %140 = vector.load %arg9[%c0_47, %c0_48, %c0_49] : memref<2x128x128xbf16, #tpu.memory_space<vmem>>, vector<1x128x128xbf16>
    %141 = vector.shape_cast %140 : vector<1x128x128xbf16> to vector<128x128xbf16>
    %142 = arith.truncf %139 : vector<128x128xf32> to vector<128x128xbf16>
    %cst_50 = arith.constant dense<0.000000e+00> : vector<128x128xf32>
    %143 = tpu.matmul %142, %141, %cst_50 {dimension_numbers = #tpu.dot_dimension_numbers<[1], [0], [0], [1], [0, 0, 1, 1], [], []>} : vector<128x128xbf16>, vector<128x128xbf16>, vector<128x128xf32> -> vector<128x128xf32>
    %144 = arith.addf %13, %143 : vector<128x128xf32>
    %c0_51 = arith.constant 0 : index
    %c0_52 = arith.constant 0 : index
    %c0_53 = arith.constant 0 : index
    %145 = vector.load %arg6[%c0_51, %c0_52, %c0_53] : memref<2x1x128xf32, #tpu.memory_space<vmem>>, vector<1x1x128xf32>
    %146 = vector.shape_cast %145 : vector<1x1x128xf32> to vector<1x128xf32>
    %c0_54 = arith.constant 0 : index
    %c0_55 = arith.constant 0 : index
    %c0_56 = arith.constant 0 : index
    %147 = vector.load %arg7[%c0_54, %c0_55, %c0_56] : memref<2x1x128xf32, #tpu.memory_space<vmem>>, vector<1x1x128xf32>
    %148 = vector.shape_cast %147 : vector<1x1x128xf32> to vector<1x128xf32>
    %cst_57 = arith.constant dense<0.000000e+00> : vector<128xf32>
    %149 = vector.multi_reduction <add>, %144, %cst_57 [1] : vector<128x128xf32> to vector<128xf32>
    %150 = vector.shape_cast %149 : vector<128xf32> to vector<128x1xf32>
    %cst_58 = arith.constant 1.280000e+02 : f32
    %151 = vector.broadcast %cst_58 : f32 to vector<128x1xf32>
    %152 = arith.divf %150, %151 : vector<128x1xf32>
    %153 = vector.broadcast %152 : vector<128x1xf32> to vector<128x128xf32>
    %154 = arith.subf %144, %153 : vector<128x128xf32>
    %155 = arith.mulf %154, %154 : vector<128x128xf32>
    %cst_59 = arith.constant dense<0.000000e+00> : vector<128xf32>
    %156 = vector.multi_reduction <add>, %155, %cst_59 [1] : vector<128x128xf32> to vector<128xf32>
    %157 = vector.shape_cast %156 : vector<128xf32> to vector<128x1xf32>
    %cst_60 = arith.constant 1.280000e+02 : f32
    %158 = vector.broadcast %cst_60 : f32 to vector<128x1xf32>
    %159 = arith.divf %157, %158 : vector<128x1xf32>
    %160 = vector.broadcast %152 : vector<128x1xf32> to vector<128x128xf32>
    %161 = arith.subf %144, %160 : vector<128x128xf32>
    %cst_61 = arith.constant 9.99999974E-6 : f32
    %162 = vector.broadcast %cst_61 : f32 to vector<128x1xf32>
    %163 = arith.addf %159, %162 : vector<128x1xf32>
    %164 = math.rsqrt %163 : vector<128x1xf32>
    %165 = vector.broadcast %164 : vector<128x1xf32> to vector<128x128xf32>
    %166 = arith.mulf %161, %165 : vector<128x128xf32>
    %167 = vector.broadcast %146 : vector<1x128xf32> to vector<128x128xf32>
    %168 = arith.mulf %166, %167 : vector<128x128xf32>
    %169 = vector.broadcast %148 : vector<1x128xf32> to vector<128x128xf32>
    %170 = arith.addf %168, %169 : vector<128x128xf32>
    %c0_62 = arith.constant 0 : index
    %c0_63 = arith.constant 0 : index
    %c0_64 = arith.constant 0 : index
    %171 = vector.load %arg10[%c0_62, %c0_63, %c0_64] : memref<2x128x512xbf16, #tpu.memory_space<vmem>>, vector<1x128x512xbf16>
    %172 = vector.shape_cast %171 : vector<1x128x512xbf16> to vector<128x512xbf16>
    %173 = arith.truncf %170 : vector<128x128xf32> to vector<128x128xbf16>
    %cst_65 = arith.constant dense<0.000000e+00> : vector<128x512xf32>
    %174 = tpu.matmul %173, %172, %cst_65 {dimension_numbers = #tpu.dot_dimension_numbers<[1], [0], [0], [1], [0, 0, 1, 1], [], []>} : vector<128x128xbf16>, vector<128x512xbf16>, vector<128x512xf32> -> vector<128x512xf32>
    %c0_66 = arith.constant 0 : index
    %c0_67 = arith.constant 0 : index
    %c0_68 = arith.constant 0 : index
    %175 = vector.load %arg11[%c0_66, %c0_67, %c0_68] : memref<2x1x512xf32, #tpu.memory_space<vmem>>, vector<1x1x512xf32>
    %176 = vector.shape_cast %175 : vector<1x1x512xf32> to vector<1x512xf32>
    %177 = vector.broadcast %176 : vector<1x512xf32> to vector<128x512xf32>
    %178 = arith.addf %174, %177 : vector<128x512xf32>
    %cst_69 = arith.constant 0.000000e+00 : f32
    %179 = vector.broadcast %cst_69 : f32 to vector<128x512xf32>
    %180 = arith.maximumf %178, %179 : vector<128x512xf32>
    %c0_70 = arith.constant 0 : index
    %c0_71 = arith.constant 0 : index
    %c0_72 = arith.constant 0 : index
    %181 = vector.load %arg12[%c0_70, %c0_71, %c0_72] : memref<2x512x128xbf16, #tpu.memory_space<vmem>>, vector<1x512x128xbf16>
    %182 = vector.shape_cast %181 : vector<1x512x128xbf16> to vector<512x128xbf16>
    %183 = arith.truncf %180 : vector<128x512xf32> to vector<128x512xbf16>
    %cst_73 = arith.constant dense<0.000000e+00> : vector<128x128xf32>
    %184 = tpu.matmul %183, %182, %cst_73 {dimension_numbers = #tpu.dot_dimension_numbers<[1], [0], [0], [1], [0, 0, 1, 1], [], []>} : vector<128x512xbf16>, vector<512x128xbf16>, vector<128x128xf32> -> vector<128x128xf32>
    %185 = arith.addf %144, %184 : vector<128x128xf32>
    %c0_74 = arith.constant 0 : index
    %c0_75 = arith.constant 0 : index
    %c0_76 = arith.constant 0 : index
    %186 = vector.load %arg13[%c0_74, %c0_75, %c0_76] : memref<2x1x128xf32, #tpu.memory_space<vmem>>, vector<1x1x128xf32>
    %187 = vector.shape_cast %186 : vector<1x1x128xf32> to vector<1x128xf32>
    %188 = vector.broadcast %187 : vector<1x128xf32> to vector<128x128xf32>
    %189 = arith.addf %185, %188 : vector<128x128xf32>
    %c1 = arith.constant 1 : index
    %c0_77 = arith.constant 0 : index
    %c0_78 = arith.constant 0 : index
    %190 = vector.load %arg4[%c1, %c0_77, %c0_78] : memref<2x1x128xf32, #tpu.memory_space<vmem>>, vector<1x1x128xf32>
    %191 = vector.shape_cast %190 : vector<1x1x128xf32> to vector<1x128xf32>
    %c1_79 = arith.constant 1 : index
    %c0_80 = arith.constant 0 : index
    %c0_81 = arith.constant 0 : index
    %192 = vector.load %arg5[%c1_79, %c0_80, %c0_81] : memref<2x1x128xf32, #tpu.memory_space<vmem>>, vector<1x1x128xf32>
    %193 = vector.shape_cast %192 : vector<1x1x128xf32> to vector<1x128xf32>
    %cst_82 = arith.constant dense<0.000000e+00> : vector<128xf32>
    %194 = vector.multi_reduction <add>, %189, %cst_82 [1] : vector<128x128xf32> to vector<128xf32>
    %195 = vector.shape_cast %194 : vector<128xf32> to vector<128x1xf32>
    %cst_83 = arith.constant 1.280000e+02 : f32
    %196 = vector.broadcast %cst_83 : f32 to vector<128x1xf32>
    %197 = arith.divf %195, %196 : vector<128x1xf32>
    %198 = vector.broadcast %197 : vector<128x1xf32> to vector<128x128xf32>
    %199 = arith.subf %189, %198 : vector<128x128xf32>
    %200 = arith.mulf %199, %199 : vector<128x128xf32>
    %cst_84 = arith.constant dense<0.000000e+00> : vector<128xf32>
    %201 = vector.multi_reduction <add>, %200, %cst_84 [1] : vector<128x128xf32> to vector<128xf32>
    %202 = vector.shape_cast %201 : vector<128xf32> to vector<128x1xf32>
    %cst_85 = arith.constant 1.280000e+02 : f32
    %203 = vector.broadcast %cst_85 : f32 to vector<128x1xf32>
    %204 = arith.divf %202, %203 : vector<128x1xf32>
    %205 = vector.broadcast %197 : vector<128x1xf32> to vector<128x128xf32>
    %206 = arith.subf %189, %205 : vector<128x128xf32>
    %cst_86 = arith.constant 9.99999974E-6 : f32
    %207 = vector.broadcast %cst_86 : f32 to vector<128x1xf32>
    %208 = arith.addf %204, %207 : vector<128x1xf32>
    %209 = math.rsqrt %208 : vector<128x1xf32>
    %210 = vector.broadcast %209 : vector<128x1xf32> to vector<128x128xf32>
    %211 = arith.mulf %206, %210 : vector<128x128xf32>
    %212 = vector.broadcast %191 : vector<1x128xf32> to vector<128x128xf32>
    %213 = arith.mulf %211, %212 : vector<128x128xf32>
    %214 = vector.broadcast %193 : vector<1x128xf32> to vector<128x128xf32>
    %215 = arith.addf %213, %214 : vector<128x128xf32>
    %c1_87 = arith.constant 1 : index
    %c0_88 = arith.constant 0 : index
    %c0_89 = arith.constant 0 : index
    %216 = vector.load %arg8[%c1_87, %c0_88, %c0_89] : memref<2x128x384xbf16, #tpu.memory_space<vmem>>, vector<1x128x384xbf16>
    %217 = vector.shape_cast %216 : vector<1x128x384xbf16> to vector<128x384xbf16>
    %218 = arith.truncf %215 : vector<128x128xf32> to vector<128x128xbf16>
    %cst_90 = arith.constant dense<0.000000e+00> : vector<128x384xf32>
    %219 = tpu.matmul %218, %217, %cst_90 {dimension_numbers = #tpu.dot_dimension_numbers<[1], [0], [0], [1], [0, 0, 1, 1], [], []>} : vector<128x128xbf16>, vector<128x384xbf16>, vector<128x384xf32> -> vector<128x384xf32>
    %220 = vector.extract_strided_slice %219 {offsets = [0, 0], sizes = [128, 32], strides = [1, 1]} : vector<128x384xf32> to vector<128x32xf32>
    %221 = vector.extract_strided_slice %219 {offsets = [0, 128], sizes = [128, 32], strides = [1, 1]} : vector<128x384xf32> to vector<128x32xf32>
    %222 = vector.extract_strided_slice %219 {offsets = [0, 256], sizes = [128, 32], strides = [1, 1]} : vector<128x384xf32> to vector<128x32xf32>
    %223 = arith.truncf %220 : vector<128x32xf32> to vector<128x32xbf16>
    %224 = arith.truncf %221 : vector<128x32xf32> to vector<128x32xbf16>
    %cst_91 = arith.constant dense<0.000000e+00> : vector<128x128xf32>
    %225 = tpu.matmul %223, %224, %cst_91 {dimension_numbers = #tpu.dot_dimension_numbers<[1], [1], [0], [0], [0, 0, 1, 0], [], []>} : vector<128x32xbf16>, vector<128x32xbf16>, vector<128x128xf32> -> vector<128x128xf32>
    %cst_92 = arith.constant 0.176776692 : f32
    %226 = vector.broadcast %cst_92 : f32 to vector<128x128xf32>
    %227 = arith.mulf %225, %226 : vector<128x128xf32>
    %cst_93 = arith.constant -1.000000e+30 : f32
    %228 = vector.broadcast %cst_93 : f32 to vector<128x128xf32>
    %229 = arith.select %16, %227, %228 : vector<128x128xi1>, vector<128x128xf32>
    %cst_94 = arith.constant dense<0xFF800000> : vector<128xf32>
    %230 = vector.multi_reduction <maximumf>, %229, %cst_94 [1] : vector<128x128xf32> to vector<128xf32>
    %231 = vector.shape_cast %230 : vector<128xf32> to vector<128x1xf32>
    %232 = vector.broadcast %231 : vector<128x1xf32> to vector<128x128xf32>
    %233 = arith.subf %229, %232 : vector<128x128xf32>
    %234 = math.exp %233 : vector<128x128xf32>
    %cst_95 = arith.constant dense<0.000000e+00> : vector<128xf32>
    %235 = vector.multi_reduction <add>, %234, %cst_95 [1] : vector<128x128xf32> to vector<128xf32>
    %236 = vector.shape_cast %235 : vector<128xf32> to vector<128x1xf32>
    %237 = arith.truncf %234 : vector<128x128xf32> to vector<128x128xbf16>
    %238 = arith.truncf %222 : vector<128x32xf32> to vector<128x32xbf16>
    %cst_96 = arith.constant dense<0.000000e+00> : vector<128x32xf32>
    %239 = tpu.matmul %237, %238, %cst_96 {dimension_numbers = #tpu.dot_dimension_numbers<[1], [0], [0], [1], [0, 0, 1, 1], [], []>} : vector<128x128xbf16>, vector<128x32xbf16>, vector<128x32xf32> -> vector<128x32xf32>
    %240 = tpu.reciprocal %236 {approx = true} : vector<128x1xf32> -> vector<128x1xf32>
    %241 = vector.broadcast %240 : vector<128x1xf32> to vector<128x32xf32>
    %242 = arith.mulf %239, %241 : vector<128x32xf32>
    %243 = vector.extract_strided_slice %219 {offsets = [0, 32], sizes = [128, 32], strides = [1, 1]} : vector<128x384xf32> to vector<128x32xf32>
    %244 = vector.extract_strided_slice %219 {offsets = [0, 160], sizes = [128, 32], strides = [1, 1]} : vector<128x384xf32> to vector<128x32xf32>
    %245 = vector.extract_strided_slice %219 {offsets = [0, 288], sizes = [128, 32], strides = [1, 1]} : vector<128x384xf32> to vector<128x32xf32>
    %246 = arith.truncf %243 : vector<128x32xf32> to vector<128x32xbf16>
    %247 = arith.truncf %244 : vector<128x32xf32> to vector<128x32xbf16>
    %cst_97 = arith.constant dense<0.000000e+00> : vector<128x128xf32>
    %248 = tpu.matmul %246, %247, %cst_97 {dimension_numbers = #tpu.dot_dimension_numbers<[1], [1], [0], [0], [0, 0, 1, 0], [], []>} : vector<128x32xbf16>, vector<128x32xbf16>, vector<128x128xf32> -> vector<128x128xf32>
    %cst_98 = arith.constant 0.176776692 : f32
    %249 = vector.broadcast %cst_98 : f32 to vector<128x128xf32>
    %250 = arith.mulf %248, %249 : vector<128x128xf32>
    %cst_99 = arith.constant -1.000000e+30 : f32
    %251 = vector.broadcast %cst_99 : f32 to vector<128x128xf32>
    %252 = arith.select %16, %250, %251 : vector<128x128xi1>, vector<128x128xf32>
    %cst_100 = arith.constant dense<0xFF800000> : vector<128xf32>
    %253 = vector.multi_reduction <maximumf>, %252, %cst_100 [1] : vector<128x128xf32> to vector<128xf32>
    %254 = vector.shape_cast %253 : vector<128xf32> to vector<128x1xf32>
    %255 = vector.broadcast %254 : vector<128x1xf32> to vector<128x128xf32>
    %256 = arith.subf %252, %255 : vector<128x128xf32>
    %257 = math.exp %256 : vector<128x128xf32>
    %cst_101 = arith.constant dense<0.000000e+00> : vector<128xf32>
    %258 = vector.multi_reduction <add>, %257, %cst_101 [1] : vector<128x128xf32> to vector<128xf32>
    %259 = vector.shape_cast %258 : vector<128xf32> to vector<128x1xf32>
    %260 = arith.truncf %257 : vector<128x128xf32> to vector<128x128xbf16>
    %261 = arith.truncf %245 : vector<128x32xf32> to vector<128x32xbf16>
    %cst_102 = arith.constant dense<0.000000e+00> : vector<128x32xf32>
    %262 = tpu.matmul %260, %261, %cst_102 {dimension_numbers = #tpu.dot_dimension_numbers<[1], [0], [0], [1], [0, 0, 1, 1], [], []>} : vector<128x128xbf16>, vector<128x32xbf16>, vector<128x32xf32> -> vector<128x32xf32>
    %263 = tpu.reciprocal %259 {approx = true} : vector<128x1xf32> -> vector<128x1xf32>
    %264 = vector.broadcast %263 : vector<128x1xf32> to vector<128x32xf32>
    %265 = arith.mulf %262, %264 : vector<128x32xf32>
    %266 = vector.extract_strided_slice %219 {offsets = [0, 64], sizes = [128, 32], strides = [1, 1]} : vector<128x384xf32> to vector<128x32xf32>
    %267 = vector.extract_strided_slice %219 {offsets = [0, 192], sizes = [128, 32], strides = [1, 1]} : vector<128x384xf32> to vector<128x32xf32>
    %268 = vector.extract_strided_slice %219 {offsets = [0, 320], sizes = [128, 32], strides = [1, 1]} : vector<128x384xf32> to vector<128x32xf32>
    %269 = arith.truncf %266 : vector<128x32xf32> to vector<128x32xbf16>
    %270 = arith.truncf %267 : vector<128x32xf32> to vector<128x32xbf16>
    %cst_103 = arith.constant dense<0.000000e+00> : vector<128x128xf32>
    %271 = tpu.matmul %269, %270, %cst_103 {dimension_numbers = #tpu.dot_dimension_numbers<[1], [1], [0], [0], [0, 0, 1, 0], [], []>} : vector<128x32xbf16>, vector<128x32xbf16>, vector<128x128xf32> -> vector<128x128xf32>
    %cst_104 = arith.constant 0.176776692 : f32
    %272 = vector.broadcast %cst_104 : f32 to vector<128x128xf32>
    %273 = arith.mulf %271, %272 : vector<128x128xf32>
    %cst_105 = arith.constant -1.000000e+30 : f32
    %274 = vector.broadcast %cst_105 : f32 to vector<128x128xf32>
    %275 = arith.select %16, %273, %274 : vector<128x128xi1>, vector<128x128xf32>
    %cst_106 = arith.constant dense<0xFF800000> : vector<128xf32>
    %276 = vector.multi_reduction <maximumf>, %275, %cst_106 [1] : vector<128x128xf32> to vector<128xf32>
    %277 = vector.shape_cast %276 : vector<128xf32> to vector<128x1xf32>
    %278 = vector.broadcast %277 : vector<128x1xf32> to vector<128x128xf32>
    %279 = arith.subf %275, %278 : vector<128x128xf32>
    %280 = math.exp %279 : vector<128x128xf32>
    %cst_107 = arith.constant dense<0.000000e+00> : vector<128xf32>
    %281 = vector.multi_reduction <add>, %280, %cst_107 [1] : vector<128x128xf32> to vector<128xf32>
    %282 = vector.shape_cast %281 : vector<128xf32> to vector<128x1xf32>
    %283 = arith.truncf %280 : vector<128x128xf32> to vector<128x128xbf16>
    %284 = arith.truncf %268 : vector<128x32xf32> to vector<128x32xbf16>
    %cst_108 = arith.constant dense<0.000000e+00> : vector<128x32xf32>
    %285 = tpu.matmul %283, %284, %cst_108 {dimension_numbers = #tpu.dot_dimension_numbers<[1], [0], [0], [1], [0, 0, 1, 1], [], []>} : vector<128x128xbf16>, vector<128x32xbf16>, vector<128x32xf32> -> vector<128x32xf32>
    %286 = tpu.reciprocal %282 {approx = true} : vector<128x1xf32> -> vector<128x1xf32>
    %287 = vector.broadcast %286 : vector<128x1xf32> to vector<128x32xf32>
    %288 = arith.mulf %285, %287 : vector<128x32xf32>
    %289 = vector.extract_strided_slice %219 {offsets = [0, 96], sizes = [128, 32], strides = [1, 1]} : vector<128x384xf32> to vector<128x32xf32>
    %290 = vector.extract_strided_slice %219 {offsets = [0, 224], sizes = [128, 32], strides = [1, 1]} : vector<128x384xf32> to vector<128x32xf32>
    %291 = vector.extract_strided_slice %219 {offsets = [0, 352], sizes = [128, 32], strides = [1, 1]} : vector<128x384xf32> to vector<128x32xf32>
    %292 = arith.truncf %289 : vector<128x32xf32> to vector<128x32xbf16>
    %293 = arith.truncf %290 : vector<128x32xf32> to vector<128x32xbf16>
    %cst_109 = arith.constant dense<0.000000e+00> : vector<128x128xf32>
    %294 = tpu.matmul %292, %293, %cst_109 {dimension_numbers = #tpu.dot_dimension_numbers<[1], [1], [0], [0], [0, 0, 1, 0], [], []>} : vector<128x32xbf16>, vector<128x32xbf16>, vector<128x128xf32> -> vector<128x128xf32>
    %cst_110 = arith.constant 0.176776692 : f32
    %295 = vector.broadcast %cst_110 : f32 to vector<128x128xf32>
    %296 = arith.mulf %294, %295 : vector<128x128xf32>
    %cst_111 = arith.constant -1.000000e+30 : f32
    %297 = vector.broadcast %cst_111 : f32 to vector<128x128xf32>
    %298 = arith.select %16, %296, %297 : vector<128x128xi1>, vector<128x128xf32>
    %cst_112 = arith.constant dense<0xFF800000> : vector<128xf32>
    %299 = vector.multi_reduction <maximumf>, %298, %cst_112 [1] : vector<128x128xf32> to vector<128xf32>
    %300 = vector.shape_cast %299 : vector<128xf32> to vector<128x1xf32>
    %301 = vector.broadcast %300 : vector<128x1xf32> to vector<128x128xf32>
    %302 = arith.subf %298, %301 : vector<128x128xf32>
    %303 = math.exp %302 : vector<128x128xf32>
    %cst_113 = arith.constant dense<0.000000e+00> : vector<128xf32>
    %304 = vector.multi_reduction <add>, %303, %cst_113 [1] : vector<128x128xf32> to vector<128xf32>
    %305 = vector.shape_cast %304 : vector<128xf32> to vector<128x1xf32>
    %306 = arith.truncf %303 : vector<128x128xf32> to vector<128x128xbf16>
    %307 = arith.truncf %291 : vector<128x32xf32> to vector<128x32xbf16>
    %cst_114 = arith.constant dense<0.000000e+00> : vector<128x32xf32>
    %308 = tpu.matmul %306, %307, %cst_114 {dimension_numbers = #tpu.dot_dimension_numbers<[1], [0], [0], [1], [0, 0, 1, 1], [], []>} : vector<128x128xbf16>, vector<128x32xbf16>, vector<128x32xf32> -> vector<128x32xf32>
    %309 = tpu.reciprocal %305 {approx = true} : vector<128x1xf32> -> vector<128x1xf32>
    %310 = vector.broadcast %309 : vector<128x1xf32> to vector<128x32xf32>
    %311 = arith.mulf %308, %310 : vector<128x32xf32>
    %312 = tpu.concatenate %242, %265, %288, %311 in 1 : vector<128x32xf32>, vector<128x32xf32>, vector<128x32xf32>, vector<128x32xf32> -> vector<128x128xf32>
    %c1_115 = arith.constant 1 : index
    %c0_116 = arith.constant 0 : index
    %c0_117 = arith.constant 0 : index
    %313 = vector.load %arg9[%c1_115, %c0_116, %c0_117] : memref<2x128x128xbf16, #tpu.memory_space<vmem>>, vector<1x128x128xbf16>
    %314 = vector.shape_cast %313 : vector<1x128x128xbf16> to vector<128x128xbf16>
    %315 = arith.truncf %312 : vector<128x128xf32> to vector<128x128xbf16>
    %cst_118 = arith.constant dense<0.000000e+00> : vector<128x128xf32>
    %316 = tpu.matmul %315, %314, %cst_118 {dimension_numbers = #tpu.dot_dimension_numbers<[1], [0], [0], [1], [0, 0, 1, 1], [], []>} : vector<128x128xbf16>, vector<128x128xbf16>, vector<128x128xf32> -> vector<128x128xf32>
    %317 = arith.addf %189, %316 : vector<128x128xf32>
    %c1_119 = arith.constant 1 : index
    %c0_120 = arith.constant 0 : index
    %c0_121 = arith.constant 0 : index
    %318 = vector.load %arg6[%c1_119, %c0_120, %c0_121] : memref<2x1x128xf32, #tpu.memory_space<vmem>>, vector<1x1x128xf32>
    %319 = vector.shape_cast %318 : vector<1x1x128xf32> to vector<1x128xf32>
    %c1_122 = arith.constant 1 : index
    %c0_123 = arith.constant 0 : index
    %c0_124 = arith.constant 0 : index
    %320 = vector.load %arg7[%c1_122, %c0_123, %c0_124] : memref<2x1x128xf32, #tpu.memory_space<vmem>>, vector<1x1x128xf32>
    %321 = vector.shape_cast %320 : vector<1x1x128xf32> to vector<1x128xf32>
    %cst_125 = arith.constant dense<0.000000e+00> : vector<128xf32>
    %322 = vector.multi_reduction <add>, %317, %cst_125 [1] : vector<128x128xf32> to vector<128xf32>
    %323 = vector.shape_cast %322 : vector<128xf32> to vector<128x1xf32>
    %cst_126 = arith.constant 1.280000e+02 : f32
    %324 = vector.broadcast %cst_126 : f32 to vector<128x1xf32>
    %325 = arith.divf %323, %324 : vector<128x1xf32>
    %326 = vector.broadcast %325 : vector<128x1xf32> to vector<128x128xf32>
    %327 = arith.subf %317, %326 : vector<128x128xf32>
    %328 = arith.mulf %327, %327 : vector<128x128xf32>
    %cst_127 = arith.constant dense<0.000000e+00> : vector<128xf32>
    %329 = vector.multi_reduction <add>, %328, %cst_127 [1] : vector<128x128xf32> to vector<128xf32>
    %330 = vector.shape_cast %329 : vector<128xf32> to vector<128x1xf32>
    %cst_128 = arith.constant 1.280000e+02 : f32
    %331 = vector.broadcast %cst_128 : f32 to vector<128x1xf32>
    %332 = arith.divf %330, %331 : vector<128x1xf32>
    %333 = vector.broadcast %325 : vector<128x1xf32> to vector<128x128xf32>
    %334 = arith.subf %317, %333 : vector<128x128xf32>
    %cst_129 = arith.constant 9.99999974E-6 : f32
    %335 = vector.broadcast %cst_129 : f32 to vector<128x1xf32>
    %336 = arith.addf %332, %335 : vector<128x1xf32>
    %337 = math.rsqrt %336 : vector<128x1xf32>
    %338 = vector.broadcast %337 : vector<128x1xf32> to vector<128x128xf32>
    %339 = arith.mulf %334, %338 : vector<128x128xf32>
    %340 = vector.broadcast %319 : vector<1x128xf32> to vector<128x128xf32>
    %341 = arith.mulf %339, %340 : vector<128x128xf32>
    %342 = vector.broadcast %321 : vector<1x128xf32> to vector<128x128xf32>
    %343 = arith.addf %341, %342 : vector<128x128xf32>
    %c1_130 = arith.constant 1 : index
    %c0_131 = arith.constant 0 : index
    %c0_132 = arith.constant 0 : index
    %344 = vector.load %arg10[%c1_130, %c0_131, %c0_132] : memref<2x128x512xbf16, #tpu.memory_space<vmem>>, vector<1x128x512xbf16>
    %345 = vector.shape_cast %344 : vector<1x128x512xbf16> to vector<128x512xbf16>
    %346 = arith.truncf %343 : vector<128x128xf32> to vector<128x128xbf16>
    %cst_133 = arith.constant dense<0.000000e+00> : vector<128x512xf32>
    %347 = tpu.matmul %346, %345, %cst_133 {dimension_numbers = #tpu.dot_dimension_numbers<[1], [0], [0], [1], [0, 0, 1, 1], [], []>} : vector<128x128xbf16>, vector<128x512xbf16>, vector<128x512xf32> -> vector<128x512xf32>
    %c1_134 = arith.constant 1 : index
    %c0_135 = arith.constant 0 : index
    %c0_136 = arith.constant 0 : index
    %348 = vector.load %arg11[%c1_134, %c0_135, %c0_136] : memref<2x1x512xf32, #tpu.memory_space<vmem>>, vector<1x1x512xf32>
    %349 = vector.shape_cast %348 : vector<1x1x512xf32> to vector<1x512xf32>
    %350 = vector.broadcast %349 : vector<1x512xf32> to vector<128x512xf32>
    %351 = arith.addf %347, %350 : vector<128x512xf32>
    %cst_137 = arith.constant 0.000000e+00 : f32
    %352 = vector.broadcast %cst_137 : f32 to vector<128x512xf32>
    %353 = arith.maximumf %351, %352 : vector<128x512xf32>
    %c1_138 = arith.constant 1 : index
    %c0_139 = arith.constant 0 : index
    %c0_140 = arith.constant 0 : index
    %354 = vector.load %arg12[%c1_138, %c0_139, %c0_140] : memref<2x512x128xbf16, #tpu.memory_space<vmem>>, vector<1x512x128xbf16>
    %355 = vector.shape_cast %354 : vector<1x512x128xbf16> to vector<512x128xbf16>
    %356 = arith.truncf %353 : vector<128x512xf32> to vector<128x512xbf16>
    %cst_141 = arith.constant dense<0.000000e+00> : vector<128x128xf32>
    %357 = tpu.matmul %356, %355, %cst_141 {dimension_numbers = #tpu.dot_dimension_numbers<[1], [0], [0], [1], [0, 0, 1, 1], [], []>} : vector<128x512xbf16>, vector<512x128xbf16>, vector<128x128xf32> -> vector<128x128xf32>
    %358 = arith.addf %317, %357 : vector<128x128xf32>
    %c1_142 = arith.constant 1 : index
    %c0_143 = arith.constant 0 : index
    %c0_144 = arith.constant 0 : index
    %359 = vector.load %arg13[%c1_142, %c0_143, %c0_144] : memref<2x1x128xf32, #tpu.memory_space<vmem>>, vector<1x1x128xf32>
    %360 = vector.shape_cast %359 : vector<1x1x128xf32> to vector<1x128xf32>
    %361 = vector.broadcast %360 : vector<1x128xf32> to vector<128x128xf32>
    %362 = arith.addf %358, %361 : vector<128x128xf32>
    %c0_145 = arith.constant 0 : index
    %c0_146 = arith.constant 0 : index
    %363 = vector.load %arg14[%c0_145, %c0_146] : memref<1x128xf32, #tpu.memory_space<vmem>>, vector<1x128xf32>
    %c0_147 = arith.constant 0 : index
    %c0_148 = arith.constant 0 : index
    %364 = vector.load %arg15[%c0_147, %c0_148] : memref<1x128xf32, #tpu.memory_space<vmem>>, vector<1x128xf32>
    %cst_149 = arith.constant dense<0.000000e+00> : vector<128xf32>
    %365 = vector.multi_reduction <add>, %362, %cst_149 [1] : vector<128x128xf32> to vector<128xf32>
    %366 = vector.shape_cast %365 : vector<128xf32> to vector<128x1xf32>
    %cst_150 = arith.constant 1.280000e+02 : f32
    %367 = vector.broadcast %cst_150 : f32 to vector<128x1xf32>
    %368 = arith.divf %366, %367 : vector<128x1xf32>
    %369 = vector.broadcast %368 : vector<128x1xf32> to vector<128x128xf32>
    %370 = arith.subf %362, %369 : vector<128x128xf32>
    %371 = arith.mulf %370, %370 : vector<128x128xf32>
    %cst_151 = arith.constant dense<0.000000e+00> : vector<128xf32>
    %372 = vector.multi_reduction <add>, %371, %cst_151 [1] : vector<128x128xf32> to vector<128xf32>
    %373 = vector.shape_cast %372 : vector<128xf32> to vector<128x1xf32>
    %cst_152 = arith.constant 1.280000e+02 : f32
    %374 = vector.broadcast %cst_152 : f32 to vector<128x1xf32>
    %375 = arith.divf %373, %374 : vector<128x1xf32>
    %376 = vector.broadcast %368 : vector<128x1xf32> to vector<128x128xf32>
    %377 = arith.subf %362, %376 : vector<128x128xf32>
    %cst_153 = arith.constant 9.99999974E-6 : f32
    %378 = vector.broadcast %cst_153 : f32 to vector<128x1xf32>
    %379 = arith.addf %375, %378 : vector<128x1xf32>
    %380 = math.rsqrt %379 : vector<128x1xf32>
    %381 = vector.broadcast %380 : vector<128x1xf32> to vector<128x128xf32>
    %382 = arith.mulf %377, %381 : vector<128x128xf32>
    %383 = vector.broadcast %363 : vector<1x128xf32> to vector<128x128xf32>
    %384 = arith.mulf %382, %383 : vector<128x128xf32>
    %385 = vector.broadcast %364 : vector<1x128xf32> to vector<128x128xf32>
    %386 = arith.addf %384, %385 : vector<128x128xf32>
    %c0_154 = arith.constant 0 : index
    %c0_155 = arith.constant 0 : index
    %387 = vector.load %arg16[%c0_154, %c0_155] : memref<128x128xbf16, #tpu.memory_space<vmem>>, vector<128x128xbf16>
    %388 = arith.truncf %386 : vector<128x128xf32> to vector<128x128xbf16>
    %cst_156 = arith.constant dense<0.000000e+00> : vector<128x128xf32>
    %389 = tpu.matmul %388, %387, %cst_156 {dimension_numbers = #tpu.dot_dimension_numbers<[1], [0], [0], [1], [0, 0, 1, 1], [], []>} : vector<128x128xbf16>, vector<128x128xbf16>, vector<128x128xf32> -> vector<128x128xf32>
    %c0_157 = arith.constant 0 : index
    %c0_158 = arith.constant 0 : index
    %390 = vector.load %arg17[%c0_157, %c0_158] : memref<1x128xf32, #tpu.memory_space<vmem>>, vector<1x128xf32>
    %391 = vector.broadcast %390 : vector<1x128xf32> to vector<128x128xf32>
    %392 = arith.addf %389, %391 : vector<128x128xf32>
    %c0_159 = arith.constant 0 : index
    %c0_160 = arith.constant 0 : index
    %c0_161 = arith.constant 0 : index
    %393 = vector.load %arg18[%c0_159, %c0_160, %c0_161] : memref<1x128x128xf32, #tpu.memory_space<vmem>>, vector<1x128x128xf32>
    %394 = vector.shape_cast %393 : vector<1x128x128xf32> to vector<128x128xf32>
    %395 = vector.shape_cast %392 : vector<128x128xf32> to vector<1x128x128xf32>
    tpu.vector_store %arg18[%c0_159, %c0_160, %c0_161], %395 {strides = array<i32>} : memref<1x128x128xf32, #tpu.memory_space<vmem>>, vector<1x128x128xf32>,
    return
  }
  func.func @transform_0(%arg0: i32) -> (i32, i32, i32) {
    %c0_i32 = arith.constant 0 : i32
    %c0_i32_0 = arith.constant 0 : i32
    %c0_i32_1 = arith.constant 0 : i32
    return %arg0, %c0_i32, %c0_i32_0 : i32, i32, i32
  }
  func.func @transform_1(%arg0: i32) -> (i32, i32) {
    %c0_i32 = arith.constant 0 : i32
    %c0_i32_0 = arith.constant 0 : i32
    %c0_i32_1 = arith.constant 0 : i32
    return %c0_i32, %c0_i32_0 : i32, i32
  }
  func.func @transform_2(%arg0: i32) -> (i32, i32) {
    %c0_i32 = arith.constant 0 : i32
    %c0_i32_0 = arith.constant 0 : i32
    %c0_i32_1 = arith.constant 0 : i32
    return %c0_i32, %c0_i32_0 : i32, i32
  }
  func.func @transform_3(%arg0: i32) -> (i32, i32, i32) {
    %c0_i32 = arith.constant 0 : i32
    %c0_i32_0 = arith.constant 0 : i32
    %c0_i32_1 = arith.constant 0 : i32
    %c0_i32_2 = arith.constant 0 : i32
    return %c0_i32, %c0_i32_0, %c0_i32_1 : i32, i32, i32
  }
  func.func @transform_4(%arg0: i32) -> (i32, i32, i32) {
    %c0_i32 = arith.constant 0 : i32
    %c0_i32_0 = arith.constant 0 : i32
    %c0_i32_1 = arith.constant 0 : i32
    %c0_i32_2 = arith.constant 0 : i32
    return %c0_i32, %c0_i32_0, %c0_i32_1 : i32, i32, i32
  }
  func.func @transform_5(%arg0: i32) -> (i32, i32, i32) {
    %c0_i32 = arith.constant 0 : i32
    %c0_i32_0 = arith.constant 0 : i32
    %c0_i32_1 = arith.constant 0 : i32
    %c0_i32_2 = arith.constant 0 : i32
    return %c0_i32, %c0_i32_0, %c0_i32_1 : i32, i32, i32
  }
  func.func @transform_6(%arg0: i32) -> (i32, i32, i32) {
    %c0_i32 = arith.constant 0 : i32
    %c0_i32_0 = arith.constant 0 : i32
    %c0_i32_1 = arith.constant 0 : i32
    %c0_i32_2 = arith.constant 0 : i32
    return %c0_i32, %c0_i32_0, %c0_i32_1 : i32, i32, i32
  }
  func.func @transform_7(%arg0: i32) -> (i32, i32, i32) {
    %c0_i32 = arith.constant 0 : i32
    %c0_i32_0 = arith.constant 0 : i32
    %c0_i32_1 = arith.constant 0 : i32
    %c0_i32_2 = arith.constant 0 : i32
    return %c0_i32, %c0_i32_0, %c0_i32_1 : i32, i32, i32
  }
  func.func @transform_8(%arg0: i32) -> (i32, i32, i32) {
    %c0_i32 = arith.constant 0 : i32
    %c0_i32_0 = arith.constant 0 : i32
    %c0_i32_1 = arith.constant 0 : i32
    %c0_i32_2 = arith.constant 0 : i32
    return %c0_i32, %c0_i32_0, %c0_i32_1 : i32, i32, i32
  }
  func.func @transform_9(%arg0: i32) -> (i32, i32, i32) {
    %c0_i32 = arith.constant 0 : i32
    %c0_i32_0 = arith.constant 0 : i32
    %c0_i32_1 = arith.constant 0 : i32
    %c0_i32_2 = arith.constant 0 : i32
    return %c0_i32, %c0_i32_0, %c0_i32_1 : i32, i32, i32
  }
  func.func @transform_10(%arg0: i32) -> (i32, i32, i32) {
    %c0_i32 = arith.constant 0 : i32
    %c0_i32_0 = arith.constant 0 : i32
    %c0_i32_1 = arith.constant 0 : i32
    %c0_i32_2 = arith.constant 0 : i32
    return %c0_i32, %c0_i32_0, %c0_i32_1 : i32, i32, i32
  }
  func.func @transform_11(%arg0: i32) -> (i32, i32, i32) {
    %c0_i32 = arith.constant 0 : i32
    %c0_i32_0 = arith.constant 0 : i32
    %c0_i32_1 = arith.constant 0 : i32
    %c0_i32_2 = arith.constant 0 : i32
    return %c0_i32, %c0_i32_0, %c0_i32_1 : i32, i32, i32
  }
  func.func @transform_12(%arg0: i32) -> (i32, i32, i32) {
    %c0_i32 = arith.constant 0 : i32
    %c0_i32_0 = arith.constant 0 : i32
    %c0_i32_1 = arith.constant 0 : i32
    %c0_i32_2 = arith.constant 0 : i32
    return %c0_i32, %c0_i32_0, %c0_i32_1 : i32, i32, i32
  }
  func.func @transform_13(%arg0: i32) -> (i32, i32) {
    %c0_i32 = arith.constant 0 : i32
    %c0_i32_0 = arith.constant 0 : i32
    %c0_i32_1 = arith.constant 0 : i32
    return %c0_i32, %c0_i32_0 : i32, i32
  }
  func.func @transform_14(%arg0: i32) -> (i32, i32) {
    %c0_i32 = arith.constant 0 : i32
    %c0_i32_0 = arith.constant 0 : i32
    %c0_i32_1 = arith.constant 0 : i32
    return %c0_i32, %c0_i32_0 : i32, i32
  }
  func.func @transform_15(%arg0: i32) -> (i32, i32) {
    %c0_i32 = arith.constant 0 : i32
    %c0_i32_0 = arith.constant 0 : i32
    %c0_i32_1 = arith.constant 0 : i32
    return %c0_i32, %c0_i32_0 : i32, i32
  }
  func.func @transform_16(%arg0: i32) -> (i32, i32) {
    %c0_i32 = arith.constant 0 : i32
    %c0_i32_0 = arith.constant 0 : i32
    %c0_i32_1 = arith.constant 0 : i32
    return %c0_i32, %c0_i32_0 : i32, i32
  }
  func.func @transform_17(%arg0: i32) -> (i32, i32, i32) {
    %c0_i32 = arith.constant 0 : i32
    %c0_i32_0 = arith.constant 0 : i32
    %c0_i32_1 = arith.constant 0 : i32
    return %arg0, %c0_i32, %c0_i32_0 : i32, i32, i32
  }
}

</mosaic_0001>

<llo_original>
// kernel: _lambda_.1
$region0: #{_lambda_.1}
  #allocation0 [shape = 'u32[]', space=smem, size = 0x4, offset = 0x4, fixed_abs, tag = 'smem constant byte address 0x4 - core index']
  #allocation1 [shape = 'u32[72,128]{1,0:T(1,128)}', space=vmem, size = 0x9000, scoped, tag = 'internal scratch']
  %s0 = inlined_call_operand.vmem [shape: s32[2,128,1], index: 0, kind: input, shape index: {}]
  %s1 = inlined_call_operand.vmem [shape: bf16[128,128], index: 1, kind: input, shape index: {}]
  %s2 = inlined_call_operand.vmem [shape: bf16[128,128], index: 2, kind: input, shape index: {}]
  %s3 = inlined_call_operand.vmem [shape: f32[2,1,128], index: 3, kind: input, shape index: {}]
  %s4 = inlined_call_operand.hbm [shape: f32[2,1,128], index: 4, kind: input, shape index: {}]
  %s5 = inlined_call_operand.vmem [shape: f32[2,1,128], index: 5, kind: input, shape index: {}]
  %s6 = inlined_call_operand.hbm [shape: f32[2,1,128], index: 6, kind: input, shape index: {}]
  %s7 = inlined_call_operand.hbm [shape: bf16[2,128,384], index: 7, kind: input, shape index: {}]
  %s8 = inlined_call_operand.vmem [shape: bf16[2,128,128], index: 8, kind: input, shape index: {}]
  %s9 = inlined_call_operand.hbm [shape: bf16[2,128,512], index: 9, kind: input, shape index: {}]
  %s10 = inlined_call_operand.hbm [shape: f32[2,1,512], index: 10, kind: input, shape index: {}]
  %s11 = inlined_call_operand.hbm [shape: bf16[2,512,128], index: 11, kind: input, shape index: {}]
  %s12 = inlined_call_operand.hbm [shape: f32[2,1,128], index: 12, kind: input, shape index: {}]
  %s13 = inlined_call_operand.vmem [shape: f32[1,128], index: 13, kind: input, shape index: {}]
  %s14 = inlined_call_operand.hbm [shape: f32[1,128], index: 14, kind: input, shape index: {}]
  %s15 = inlined_call_operand.hbm [shape: bf16[128,128], index: 15, kind: input, shape index: {}]
  %s16 = inlined_call_operand.hbm [shape: f32[1,128], index: 16, kind: input, shape index: {}]
  %s17 = inlined_call_operand.vmem [shape: f32[2,128,128], index: 17, kind: output, shape index: {}]
  %s18 = sld [smem:[#allocation0]]
  $region141: #{_lambda_.1} parent=0
    _
  %s20 = ssub.s32 1, %s18
  %s21 = scalar_select 0, %s20, %s18
  $region1: #{_lambda_.1} parent=0
    #allocation2 [shape = 'u8[1024]{0}', space=vmem, size = 0x400, scoped, tag = 'input window, operand 4, single buffered']
    #allocation3 [shape = 's32[2]{0}', space=sflag, size = 0x8, scoped, tag = 'scoped memory for _lambda_.1']
    #allocation4 [shape = 'u8[1024]{0}', space=vmem, size = 0x400, scoped, tag = 'input window, operand 6, single buffered']
    #allocation5 [shape = 's32[1]{0}', space=sflag, size = 0x4, scoped, tag = 'scoped memory for _lambda_.1']
    #allocation6 [shape = 'u8[196608]{0}', space=vmem, size = 0x30000, scoped, tag = 'input window, operand 7, single buffered']
    #allocation7 [shape = 'u8[262144]{0}', space=vmem, size = 0x40000, scoped, tag = 'input window, operand 9, single buffered']
    #allocation8 [shape = 's32[1]{0}', space=sflag, size = 0x4, scoped, tag = 'scoped memory for _lambda_.1']
    #allocation9 [shape = 'u8[4096]{0}', space=vmem, size = 0x1000, scoped, tag = 'input window, operand 10, single buffered']
    #allocation10 [shape = 'u8[262144]{0}', space=vmem, size = 0x40000, scoped, tag = 'input window, operand 11, single buffered']
    #allocation11 [shape = 's32[1]{0}', space=sflag, size = 0x4, scoped, tag = 'scoped memory for _lambda_.1']
    #allocation12 [shape = 'u8[1024]{0}', space=vmem, size = 0x400, scoped, tag = 'input window, operand 12, single buffered']
    #allocation13 [shape = 'u8[512]{0}', space=vmem, size = 0x400, scoped, tag = 'input window, operand 14, single buffered']
    #allocation14 [shape = 's32[1]{0}', space=sflag, size = 0x4, scoped, tag = 'scoped memory for _lambda_.1']
    #allocation15 [shape = 'u8[32768]{0}', space=vmem, size = 0x8000, scoped, tag = 'input window, operand 15, single buffered']
    #allocation16 [shape = 'u8[512]{0}', space=vmem, size = 0x400, scoped, tag = 'input window, operand 16, single buffered']
    #allocation17 [shape = 's32[1]{0}', space=sflag, size = 0x4, scoped, tag = 'scoped memory for _lambda_.1']
    %22 = vsyncpa [#allocation3], 0
    %23 = vsyncpa [#allocation5], 0
    %24 = vsyncpa [#allocation8], 0
    %25 = vsyncpa [#allocation11], 0
    %26 = vsyncpa [#allocation14], 0
    %27 = vsyncpa [#allocation17], 0
    loop: start=0, step=1, limit=4
    $region2: #{_lambda_.1} parent=1 // loop_pre_header
      _
    $region3: #{_lambda_.1} parent=1 // loop_header
      %s29 = sphi 0, %s33
      %p30 = scmp.ge.s32.totalorder %s29, 4
      %s39 = sphi 0, %s41
      %s42 = sphi 0, %s39
      %s43 = sphi 0, %s42
      %s59 = sphi 0, %s43
      %s63 = sphi 0, %s63
      %s65 = sphi 0, %s63
      %s66 = sphi 0, %s65
      %s80 = sphi 0, %s66
      %s84 = sphi 0, %s84
      %s86 = sphi 0, %s84
      %s87 = sphi 0, %s86
      %s101 = sphi 0, %s87
      %s105 = sphi 0, %s105
      %s107 = sphi 0, %s105
      %s108 = sphi 0, %s107
      %s122 = sphi 0, %s108
      %s126 = sphi 0, %s126
      %s128 = sphi 0, %s126
      %s129 = sphi 0, %s128
      %s143 = sphi 0, %s129
      %s147 = sphi 0, %s147
      %s149 = sphi 0, %s147
      %s150 = sphi 0, %s149
      %s164 = sphi 0, %s150
      %s168 = sphi 0, %s168
      %s170 = sphi 0, %s168
      %s171 = sphi 0, %s170
      %s185 = sphi 0, %s171
      %s189 = sphi 0, %s189
      %s191 = sphi 0, %s189
      %s192 = sphi 0, %s191
      %s206 = sphi 0, %s192
      %s210 = sphi 0, %s210
      %s212 = sphi 0, %s210
      %s213 = sphi 0, %s212
      %s227 = sphi 0, %s213
      %s231 = sphi 0, %s231
      %s233 = sphi 0, %s231
      %s234 = sphi 0, %s233
      %s248 = sphi 0, %s234
      %s252 = sphi 0, %s252
      %s254 = sphi 0, %s252
      %s255 = sphi 0, %s254
      %s269 = sphi 0, %s255
      %s273 = sphi 0, %s273
      %s275 = sphi 0, %s273
      %s276 = sphi 0, %s275
      %s290 = sphi 0, %s276
      %s294 = sphi 0, %s294
      %s296 = sphi 0, %s294
      %s297 = sphi 0, %s296
      %s311 = sphi 0, %s297
      %s315 = sphi 0, %s315
      %s317 = sphi 0, %s315
      %s318 = sphi 0, %s317
      %s332 = sphi 0, %s318
      %s336 = sphi 0, %s336
      %s338 = sphi 0, %s336
      %s339 = sphi 0, %s338
      %s353 = sphi 0, %s339
      %s357 = sphi 0, %s357
      %s359 = sphi 0, %s357
      %s360 = sphi 0, %s359
      %s374 = sphi 0, %s360
      %s378 = sphi 0, %s378
      %s380 = sphi 0, %s378
      %s381 = sphi 0, %s380
      %s395 = sphi 0, %s381
      %s401 = sphi 0, %s403
      %s404 = sphi 0, %s401
      %s405 = sphi 0, %s404
      %s421 = sphi 0, %s405
    $region4: #{_lambda_.1} parent=1 // loop_header_branch
      %32 = sbr.rel (%p30) target = $region8
    $region5: #{_lambda_.1} parent=1 // loop_body
      %s34 = ssub.s32 %s29, 1
      %s35 = ssub.s32 %s29, 2
      %s36 = sadd.s32 %s29, 1
      %s37 = ssub.s32 %s29, %s36
      %p38 = scmp.eq.s32.totalorder %s37, 0
      %s40 = sadd.s32 %s39, 1
      %s41 = scalar_select %p38, %s39, %s40
      %p44 = pneg %p38
      %p45 = scmp.eq.s32.totalorder %s29, 1
      %p46 = por %p44, %p45
      %p47 = scmp.ne.s32.totalorder %s39, %s42
      %p48 = scmp.eq.s32.totalorder %s29, 0
      %p49 = por %p47, %p48
      %p50 = scmp.ne.s32.totalorder %s39, %s42
      %p51 = scmp.eq.s32.totalorder %s34, 1
      %p52 = por %p50, %p51
      %p53 = scmp.ne.s32.totalorder %s42, %s43
      %p54 = scmp.eq.s32.totalorder %s34, 0
      %p55 = por %p53, %p54
      %p56 = scmp.ne.s32.totalorder %s42, %s43
      %p57 = scmp.eq.s32.totalorder %s35, 1
      %p58 = por %p56, %p57
      %p60 = scmp.ne.s32.totalorder %s43, %s59
      %p61 = scmp.eq.s32.totalorder %s35, 0
      %p62 = por %p60, %p61
      %s64 = sadd.s32 %s63, 1
      %p67 = scmp.eq.s32.totalorder %s29, 1
      %p68 = scmp.ne.s32.totalorder %s63, %s65
      %p69 = scmp.eq.s32.totalorder %s29, 0
      %p70 = por %p68, %p69
      %p71 = scmp.ne.s32.totalorder %s63, %s65
      %p72 = scmp.eq.s32.totalorder %s34, 1
      %p73 = por %p71, %p72
      %p74 = scmp.ne.s32.totalorder %s65, %s66
      %p75 = scmp.eq.s32.totalorder %s34, 0
      %p76 = por %p74, %p75
      %p77 = scmp.ne.s32.totalorder %s65, %s66
      %p78 = scmp.eq.s32.totalorder %s35, 1
      %p79 = por %p77, %p78
      %p81 = scmp.ne.s32.totalorder %s66, %s80
      %p82 = scmp.eq.s32.totalorder %s35, 0
      %p83 = por %p81, %p82
      %s85 = sadd.s32 %s84, 1
      %p88 = scmp.eq.s32.totalorder %s29, 1
      %p89 = scmp.ne.s32.totalorder %s84, %s86
      %p90 = scmp.eq.s32.totalorder %s29, 0
      %p91 = por %p89, %p90
      %p92 = scmp.ne.s32.totalorder %s84, %s86
      %p93 = scmp.eq.s32.totalorder %s34, 1
      %p94 = por %p92, %p93
      %p95 = scmp.ne.s32.totalorder %s86, %s87
      %p96 = scmp.eq.s32.totalorder %s34, 0
      %p97 = por %p95, %p96
      %p98 = scmp.ne.s32.totalorder %s86, %s87
      %p99 = scmp.eq.s32.totalorder %s35, 1
      %p100 = por %p98, %p99
      %p102 = scmp.ne.s32.totalorder %s87, %s101
      %p103 = scmp.eq.s32.totalorder %s35, 0
      %p104 = por %p102, %p103
      %s106 = sadd.s32 %s105, 1
      %p109 = scmp.eq.s32.totalorder %s29, 1
      %p110 = scmp.ne.s32.totalorder %s105, %s107
      %p111 = scmp.eq.s32.totalorder %s29, 0
      %p112 = por %p110, %p111
      %p113 = scmp.ne.s32.totalorder %s105, %s107
      %p114 = scmp.eq.s32.totalorder %s34, 1
      %p115 = por %p113, %p114
      %p116 = scmp.ne.s32.totalorder %s107, %s108
      %p117 = scmp.eq.s32.totalorder %s34, 0
      %p118 = por %p116, %p117
      %p119 = scmp.ne.s32.totalorder %s107, %s108
      %p120 = scmp.eq.s32.totalorder %s35, 1
      %p121 = por %p119, %p120
      %p123 = scmp.ne.s32.totalorder %s108, %s122
      %p124 = scmp.eq.s32.totalorder %s35, 0
      %p125 = por %p123, %p124
      %s127 = sadd.s32 %s126, 1
      %p130 = scmp.eq.s32.totalorder %s29, 1
      %p131 = scmp.ne.s32.totalorder %s126, %s128
      %p132 = scmp.eq.s32.totalorder %s29, 0
      %p133 = por %p131, %p132
      %p134 = scmp.ne.s32.totalorder %s126, %s128
      %p135 = scmp.eq.s32.totalorder %s34, 1
      %p136 = por %p134, %p135
      %p137 = scmp.ne.s32.totalorder %s128, %s129
      %p138 = scmp.eq.s32.totalorder %s34, 0
      %p139 = por %p137, %p138
      %p140 = scmp.ne.s32.totalorder %s128, %s129
      %p141 = scmp.eq.s32.totalorder %s35, 1
      %p142 = por %p140, %p141
      %p144 = scmp.ne.s32.totalorder %s129, %s143
      %p145 = scmp.eq.s32.totalorder %s35, 0
      %p146 = por %p144, %p145
      %s148 = sadd.s32 %s147, 1
      %p151 = scmp.eq.s32.totalorder %s29, 1
      %p152 = scmp.ne.s32.totalorder %s147, %s149
      %p153 = scmp.eq.s32.totalorder %s29, 0
      %p154 = por %p152, %p153
      %p155 = scmp.ne.s32.totalorder %s147, %s149
      %p156 = scmp.eq.s32.totalorder %s34, 1
      %p157 = por %p155, %p156
      %p158 = scmp.ne.s32.totalorder %s149, %s150
      %p159 = scmp.eq.s32.totalorder %s34, 0
      %p160 = por %p158, %p159
      %p161 = scmp.ne.s32.totalorder %s149, %s150
      %p162 = scmp.eq.s32.totalorder %s35, 1
      %p163 = por %p161, %p162
      %p165 = scmp.ne.s32.totalorder %s150, %s164
      %p166 = scmp.eq.s32.totalorder %s35, 0
      %p167 = por %p165, %p166
      %s169 = sadd.s32 %s168, 1
      %p172 = scmp.eq.s32.totalorder %s29, 1
      %p173 = scmp.ne.s32.totalorder %s168, %s170
      %p174 = scmp.eq.s32.totalorder %s29, 0
      %p175 = por %p173, %p174
      %p176 = scmp.ne.s32.totalorder %s168, %s170
      %p177 = scmp.eq.s32.totalorder %s34, 1
      %p178 = por %p176, %p177
      %p179 = scmp.ne.s32.totalorder %s170, %s171
      %p180 = scmp.eq.s32.totalorder %s34, 0
      %p181 = por %p179, %p180
      %p182 = scmp.ne.s32.totalorder %s170, %s171
      %p183 = scmp.eq.s32.totalorder %s35, 1
      %p184 = por %p182, %p183
      %p186 = scmp.ne.s32.totalorder %s171, %s185
      %p187 = scmp.eq.s32.totalorder %s35, 0
      %p188 = por %p186, %p187
      %s190 = sadd.s32 %s189, 1
      %p193 = scmp.eq.s32.totalorder %s29, 1
      %p194 = scmp.ne.s32.totalorder %s189, %s191
      %p195 = scmp.eq.s32.totalorder %s29, 0
      %p196 = por %p194, %p195
      %p197 = scmp.ne.s32.totalorder %s189, %s191
      %p198 = scmp.eq.s32.totalorder %s34, 1
      %p199 = por %p197, %p198
      %p200 = scmp.ne.s32.totalorder %s191, %s192
      %p201 = scmp.eq.s32.totalorder %s34, 0
      %p202 = por %p200, %p201
      %p203 = scmp.ne.s32.totalorder %s191, %s192
      %p204 = scmp.eq.s32.totalorder %s35, 1
      %p205 = por %p203, %p204
      %p207 = scmp.ne.s32.totalorder %s192, %s206
      %p208 = scmp.eq.s32.totalorder %s35, 0
      %p209 = por %p207, %p208
      %s211 = sadd.s32 %s210, 1
      %p214 = scmp.eq.s32.totalorder %s29, 1
      %p215 = scmp.ne.s32.totalorder %s210, %s212
      %p216 = scmp.eq.s32.totalorder %s29, 0
      %p217 = por %p215, %p216
      %p218 = scmp.ne.s32.totalorder %s210, %s212
      %p219 = scmp.eq.s32.totalorder %s34, 1
      %p220 = por %p218, %p219
      %p221 = scmp.ne.s32.totalorder %s212, %s213
      %p222 = scmp.eq.s32.totalorder %s34, 0
      %p223 = por %p221, %p222
      %p224 = scmp.ne.s32.totalorder %s212, %s213
      %p225 = scmp.eq.s32.totalorder %s35, 1
      %p226 = por %p224, %p225
      %p228 = scmp.ne.s32.totalorder %s213, %s227
      %p229 = scmp.eq.s32.totalorder %s35, 0
      %p230 = por %p228, %p229
      %s232 = sadd.s32 %s231, 1
      %p235 = scmp.eq.s32.totalorder %s29, 1
      %p236 = scmp.ne.s32.totalorder %s231, %s233
      %p237 = scmp.eq.s32.totalorder %s29, 0
      %p238 = por %p236, %p237
      %p239 = scmp.ne.s32.totalorder %s231, %s233
      %p240 = scmp.eq.s32.totalorder %s34, 1
      %p241 = por %p239, %p240
      %p242 = scmp.ne.s32.totalorder %s233, %s234
      %p243 = scmp.eq.s32.totalorder %s34, 0
      %p244 = por %p242, %p243
      %p245 = scmp.ne.s32.totalorder %s233, %s234
      %p246 = scmp.eq.s32.totalorder %s35, 1
      %p247 = por %p245, %p246
      %p249 = scmp.ne.s32.totalorder %s234, %s248
      %p250 = scmp.eq.s32.totalorder %s35, 0
      %p251 = por %p249, %p250
      %s253 = sadd.s32 %s252, 1
      %p256 = scmp.eq.s32.totalorder %s29, 1
      %p257 = scmp.ne.s32.totalorder %s252, %s254
      %p258 = scmp.eq.s32.totalorder %s29, 0
      %p259 = por %p257, %p258
      %p260 = scmp.ne.s32.totalorder %s252, %s254
      %p261 = scmp.eq.s32.totalorder %s34, 1
      %p262 = por %p260, %p261
      %p263 = scmp.ne.s32.totalorder %s254, %s255
      %p264 = scmp.eq.s32.totalorder %s34, 0
      %p265 = por %p263, %p264
      %p266 = scmp.ne.s32.totalorder %s254, %s255
      %p267 = scmp.eq.s32.totalorder %s35, 1
      %p268 = por %p266, %p267
      %p270 = scmp.ne.s32.totalorder %s255, %s269
      %p271 = scmp.eq.s32.totalorder %s35, 0
      %p272 = por %p270, %p271
      %s274 = sadd.s32 %s273, 1
      %p277 = scmp.eq.s32.totalorder %s29, 1
      %p278 = scmp.ne.s32.totalorder %s273, %s275
      %p279 = scmp.eq.s32.totalorder %s29, 0
      %p280 = por %p278, %p279
      %p281 = scmp.ne.s32.totalorder %s273, %s275
      %p282 = scmp.eq.s32.totalorder %s34, 1
      %p283 = por %p281, %p282
      %p284 = scmp.ne.s32.totalorder %s275, %s276
      %p285 = scmp.eq.s32.totalorder %s34, 0
      %p286 = por %p284, %p285
      %p287 = scmp.ne.s32.totalorder %s275, %s276
      %p288 = scmp.eq.s32.totalorder %s35, 1
      %p289 = por %p287, %p288
      %p291 = scmp.ne.s32.totalorder %s276, %s290
      %p292 = scmp.eq.s32.totalorder %s35, 0
      %p293 = por %p291, %p292
      %s295 = sadd.s32 %s294, 1
      %p298 = scmp.eq.s32.totalorder %s29, 1
      %p299 = scmp.ne.s32.totalorder %s294, %s296
      %p300 = scmp.eq.s32.totalorder %s29, 0
      %p301 = por %p299, %p300
      %p302 = scmp.ne.s32.totalorder %s294, %s296
      %p303 = scmp.eq.s32.totalorder %s34, 1
      %p304 = por %p302, %p303
      %p305 = scmp.ne.s32.totalorder %s296, %s297
      %p306 = scmp.eq.s32.totalorder %s34, 0
      %p307 = por %p305, %p306
      %p308 = scmp.ne.s32.totalorder %s296, %s297
      %p309 = scmp.eq.s32.totalorder %s35, 1
      %p310 = por %p308, %p309
      %p312 = scmp.ne.s32.totalorder %s297, %s311
      %p313 = scmp.eq.s32.totalorder %s35, 0
      %p314 = por %p312, %p313
      %s316 = sadd.s32 %s315, 1
      %p319 = scmp.eq.s32.totalorder %s29, 1
      %p320 = scmp.ne.s32.totalorder %s315, %s317
      %p321 = scmp.eq.s32.totalorder %s29, 0
      %p322 = por %p320, %p321
      %p323 = scmp.ne.s32.totalorder %s315, %s317
      %p324 = scmp.eq.s32.totalorder %s34, 1
      %p325 = por %p323, %p324
      %p326 = scmp.ne.s32.totalorder %s317, %s318
      %p327 = scmp.eq.s32.totalorder %s34, 0
      %p328 = por %p326, %p327
      %p329 = scmp.ne.s32.totalorder %s317, %s318
      %p330 = scmp.eq.s32.totalorder %s35, 1
      %p331 = por %p329, %p330
      %p333 = scmp.ne.s32.totalorder %s318, %s332
      %p334 = scmp.eq.s32.totalorder %s35, 0
      %p335 = por %p333, %p334
      %s337 = sadd.s32 %s336, 1
      %p340 = scmp.eq.s32.totalorder %s29, 1
      %p341 = scmp.ne.s32.totalorder %s336, %s338
      %p342 = scmp.eq.s32.totalorder %s29, 0
      %p343 = por %p341, %p342
      %p344 = scmp.ne.s32.totalorder %s336, %s338
      %p345 = scmp.eq.s32.totalorder %s34, 1
      %p346 = por %p344, %p345
      %p347 = scmp.ne.s32.totalorder %s338, %s339
      %p348 = scmp.eq.s32.totalorder %s34, 0
      %p349 = por %p347, %p348
      %p350 = scmp.ne.s32.totalorder %s338, %s339
      %p351 = scmp.eq.s32.totalorder %s35, 1
      %p352 = por %p350, %p351
      %p354 = scmp.ne.s32.totalorder %s339, %s353
      %p355 = scmp.eq.s32.totalorder %s35, 0
      %p356 = por %p354, %p355
      %s358 = sadd.s32 %s357, 1
      %p361 = scmp.eq.s32.totalorder %s29, 1
      %p362 = scmp.ne.s32.totalorder %s357, %s359
      %p363 = scmp.eq.s32.totalorder %s29, 0
      %p364 = por %p362, %p363
      %p365 = scmp.ne.s32.totalorder %s357, %s359
      %p366 = scmp.eq.s32.totalorder %s34, 1
      %p367 = por %p365, %p366
      %p368 = scmp.ne.s32.totalorder %s359, %s360
      %p369 = scmp.eq.s32.totalorder %s34, 0
      %p370 = por %p368, %p369
      %p371 = scmp.ne.s32.totalorder %s359, %s360
      %p372 = scmp.eq.s32.totalorder %s35, 1
      %p373 = por %p371, %p372
      %p375 = scmp.ne.s32.totalorder %s360, %s374
      %p376 = scmp.eq.s32.totalorder %s35, 0
      %p377 = por %p375, %p376
      %s379 = sadd.s32 %s378, 1
      %p382 = scmp.eq.s32.totalorder %s29, 1
      %p383 = scmp.ne.s32.totalorder %s378, %s380
      %p384 = scmp.eq.s32.totalorder %s29, 0
      %p385 = por %p383, %p384
      %p386 = scmp.ne.s32.totalorder %s378, %s380
      %p387 = scmp.eq.s32.totalorder %s34, 1
      %p388 = por %p386, %p387
      %p389 = scmp.ne.s32.totalorder %s380, %s381
      %p390 = scmp.eq.s32.totalorder %s34, 0
      %p391 = por %p389, %p390
      %p392 = scmp.ne.s32.totalorder %s380, %s381
      %p393 = scmp.eq.s32.totalorder %s35, 1
      %p394 = por %p392, %p393
      %p396 = scmp.ne.s32.totalorder %s381, %s395
      %p397 = scmp.eq.s32.totalorder %s35, 0
      %p398 = por %p396, %p397
      %s399 = ssub.s32 %s29, %s36
      %p400 = scmp.eq.s32.totalorder %s399, 0
      %s402 = sadd.s32 %s401, 1
      %s403 = scalar_select %p400, %s401, %s402
      %p406 = pneg %p400
      %p407 = scmp.eq.s32.totalorder %s29, 1
      %p408 = por %p406, %p407
      %p409 = scmp.ne.s32.totalorder %s401, %s404
      %p410 = scmp.eq.s32.totalorder %s29, 0
      %p411 = por %p409, %p410
      %p412 = scmp.ne.s32.totalorder %s401, %s404
      %p413 = scmp.eq.s32.totalorder %s34, 1
      %p414 = por %p412, %p413
      %p415 = scmp.ne.s32.totalorder %s404, %s405
      %p416 = scmp.eq.s32.totalorder %s34, 0
      %p417 = por %p415, %p416
      %p418 = scmp.ne.s32.totalorder %s404, %s405
      %p419 = scmp.eq.s32.totalorder %s35, 1
      %p420 = por %p418, %p419
      %p422 = scmp.ne.s32.totalorder %s405, %s421
      %p423 = scmp.eq.s32.totalorder %s35, 0
      %p424 = por %p422, %p423
      %p425 = scmp.le.s32.totalorder 1, %s29
      %p426 = scmp.lt.s32.totalorder %s29, 3
      %p427 = pnand %p425, %p426
      %p428 = pneg %p427
      // Predicated region
      $region9: #{_lambda_.1} parent=5 // pred_check
        _
      $region10: #{_lambda_.1} parent=5 // pred_check_branch
        %430 = sbr.rel (%p427) target = $region12
      $region11: #{_lambda_.1} parent=5 // pred_region
        %s431 = ssub.s32 %s29, 1
        // Predicated region
        $region13: #{_lambda_.1} parent=11 // pred_check
          %p432 = pneg %p76
        $region14: #{_lambda_.1} parent=11 // pred_check_branch
          %434 = sbr.rel (%p432) target = $region16
        $region15: #{_lambda_.1} parent=11 // pred_region
          _
        $region16: #{_lambda_.1} parent=11 // pred_fallthru
          _
        // Predicated region
        $region17: #{_lambda_.1} parent=11 // pred_check
          %p435 = pneg %p97
        $region18: #{_lambda_.1} parent=11 // pred_check_branch
          %437 = sbr.rel (%p435) target = $region20
        $region19: #{_lambda_.1} parent=11 // pred_region
          _
        $region20: #{_lambda_.1} parent=11 // pred_fallthru
          _
        // Predicated region
        $region21: #{_lambda_.1} parent=11 // pred_check
          %p438 = pneg %p118
        $region22: #{_lambda_.1} parent=11 // pred_check_branch
          %440 = sbr.rel (%p438) target = $region24
        $region23: #{_lambda_.1} parent=11 // pred_region
          _
        $region24: #{_lambda_.1} parent=11 // pred_fallthru
          _
        // Predicated region
        $region25: #{_lambda_.1} parent=11 // pred_check
          %p441 = pneg %p139
        $region26: #{_lambda_.1} parent=11 // pred_check_branch
          %443 = sbr.rel (%p441) target = $region28
        $region27: #{_lambda_.1} parent=11 // pred_region
          %445 = vsyncadd [#allocation3], 0
          %s446 = sshll.u32 %s4, 4
          %s447 = int_to_ptr.hbm [resolvable:$true] %s446
          %s448 = sshll.u32 [#allocation2], 4
          %s449 = int_to_ptr.vmem [resolvable:$true] %s448
          %454 = dma.hbm_to_vmem [thread:$0]  %s447, 32, %s449, [#allocation3], 16, 16, 1
        $region28: #{_lambda_.1} parent=11 // pred_fallthru
          _
        // Predicated region
        $region29: #{_lambda_.1} parent=11 // pred_check
          %p455 = pneg %p160
        $region30: #{_lambda_.1} parent=11 // pred_check_branch
          %457 = sbr.rel (%p455) target = $region32
        $region31: #{_lambda_.1} parent=11 // pred_region
          _
        $region32: #{_lambda_.1} parent=11 // pred_fallthru
          _
        // Predicated region
        $region33: #{_lambda_.1} parent=11 // pred_check
          %p458 = pneg %p181
        $region34: #{_lambda_.1} parent=11 // pred_check_branch
          %460 = sbr.rel (%p458) target = $region36
        $region35: #{_lambda_.1} parent=11 // pred_region
          %462 = vsyncadd [#allocation5], 0
          %s463 = sshll.u32 %s6, 4
          %s464 = int_to_ptr.hbm [resolvable:$true] %s463
          %s465 = sshll.u32 [#allocation4], 4
          %s466 = int_to_ptr.vmem [resolvable:$true] %s465
          %471 = dma.hbm_to_vmem [thread:$0]  %s464, 32, %s466, [#allocation5], 16, 16, 1
        $region36: #{_lambda_.1} parent=11 // pred_fallthru
          _
        // Predicated region
        $region37: #{_lambda_.1} parent=11 // pred_check
          %p472 = pneg %p202
        $region38: #{_lambda_.1} parent=11 // pred_check_branch
          %474 = sbr.rel (%p472) target = $region40
        $region39: #{_lambda_.1} parent=11 // pred_region
          %476 = vsyncadd [#allocation5], 0
          %s477 = sshll.u32 %s7, 4
          %s478 = int_to_ptr.hbm [resolvable:$true] %s477
          %s479 = sshll.u32 [#allocation6], 4
          %s480 = int_to_ptr.vmem [resolvable:$true] %s479
          %485 = dma.hbm_to_vmem [thread:$0]  %s478, 6144, %s480, [#allocation5], 192, 192, 12
        $region40: #{_lambda_.1} parent=11 // pred_fallthru
          _
        // Predicated region
        $region41: #{_lambda_.1} parent=11 // pred_check
          %p486 = pneg %p223
        $region42: #{_lambda_.1} parent=11 // pred_check_branch
          %488 = sbr.rel (%p486) target = $region44
        $region43: #{_lambda_.1} parent=11 // pred_region
          _
        $region44: #{_lambda_.1} parent=11 // pred_fallthru
          _
        // Predicated region
        $region45: #{_lambda_.1} parent=11 // pred_check
          %p489 = pneg %p244
        $region46: #{_lambda_.1} parent=11 // pred_check_branch
          %491 = sbr.rel (%p489) target = $region48
        $region47: #{_lambda_.1} parent=11 // pred_region
          %493 = vsyncadd [#allocation8], 0
          %s494 = sshll.u32 %s9, 4
          %s495 = int_to_ptr.hbm [resolvable:$true] %s494
          %s496 = sshll.u32 [#allocation7], 4
          %s497 = int_to_ptr.vmem [resolvable:$true] %s496
          %502 = dma.hbm_to_vmem [thread:$0]  %s495, 8192, %s497, [#allocation8], 256, 256, 16
        $region48: #{_lambda_.1} parent=11 // pred_fallthru
          _
        // Predicated region
        $region49: #{_lambda_.1} parent=11 // pred_check
          %p503 = pneg %p265
        $region50: #{_lambda_.1} parent=11 // pred_check_branch
          %505 = sbr.rel (%p503) target = $region52
        $region51: #{_lambda_.1} parent=11 // pred_region
          %507 = vsyncadd [#allocation8], 0
          %s508 = sshll.u32 %s10, 4
          %s509 = int_to_ptr.hbm [resolvable:$true] %s508
          %s510 = sshll.u32 [#allocation9], 4
          %s511 = int_to_ptr.vmem [resolvable:$true] %s510
          %516 = dma.hbm_to_vmem [thread:$0]  %s509, 128, %s511, [#allocation8], 64, 64, 4
        $region52: #{_lambda_.1} parent=11 // pred_fallthru
          _
        // Predicated region
        $region53: #{_lambda_.1} parent=11 // pred_check
          %p517 = pneg %p286
        $region54: #{_lambda_.1} parent=11 // pred_check_branch
          %519 = sbr.rel (%p517) target = $region56
        $region55: #{_lambda_.1} parent=11 // pred_region
          %521 = vsyncadd [#allocation11], 0
          %s522 = sshll.u32 %s11, 4
          %s523 = int_to_ptr.hbm [resolvable:$true] %s522
          %s524 = sshll.u32 [#allocation10], 4
          %s525 = int_to_ptr.vmem [resolvable:$true] %s524
          %530 = dma.hbm_to_vmem [thread:$0]  %s523, 8192, %s525, [#allocation11], 64, 64, 4
        $region56: #{_lambda_.1} parent=11 // pred_fallthru
          _
        // Predicated region
        $region57: #{_lambda_.1} parent=11 // pred_check
          %p531 = pneg %p307
        $region58: #{_lambda_.1} parent=11 // pred_check_branch
          %533 = sbr.rel (%p531) target = $region60
        $region59: #{_lambda_.1} parent=11 // pred_region
          %535 = vsyncadd [#allocation11], 0
          %s536 = sshll.u32 %s12, 4
          %s537 = int_to_ptr.hbm [resolvable:$true] %s536
          %s538 = sshll.u32 [#allocation12], 4
          %s539 = int_to_ptr.vmem [resolvable:$true] %s538
          %544 = dma.hbm_to_vmem [thread:$0]  %s537, 32, %s539, [#allocation11], 16, 16, 1
        $region60: #{_lambda_.1} parent=11 // pred_fallthru
          _
        // Predicated region
        $region61: #{_lambda_.1} parent=11 // pred_check
          %p545 = pneg %p328
        $region62: #{_lambda_.1} parent=11 // pred_check_branch
          %547 = sbr.rel (%p545) target = $region64
        $region63: #{_lambda_.1} parent=11 // pred_region
          _
        $region64: #{_lambda_.1} parent=11 // pred_fallthru
          _
        // Predicated region
        $region65: #{_lambda_.1} parent=11 // pred_check
          %p548 = pneg %p349
        $region66: #{_lambda_.1} parent=11 // pred_check_branch
          %550 = sbr.rel (%p548) target = $region68
        $region67: #{_lambda_.1} parent=11 // pred_region
          %552 = vsyncadd [#allocation14], 0
          %s554 = sshll.u32 %s14, 4
          %s555 = int_to_ptr.hbm [resolvable:$true] %s554
          %s556 = sshll.u32 [#allocation13], 4
          %s557 = int_to_ptr.vmem [resolvable:$true] %s556
          %559 = dma.hbm_to_vmem [thread:$0]  %s555, 16, %s557, [#allocation14]
        $region68: #{_lambda_.1} parent=11 // pred_fallthru
          _
        // Predicated region
        $region69: #{_lambda_.1} parent=11 // pred_check
          %p560 = pneg %p370
        $region70: #{_lambda_.1} parent=11 // pred_check_branch
          %562 = sbr.rel (%p560) target = $region72
        $region71: #{_lambda_.1} parent=11 // pred_region
          %564 = vsyncadd [#allocation14], 0
          %s565 = sshll.u32 %s15, 4
          %s566 = int_to_ptr.hbm [resolvable:$true] %s565
          %s567 = sshll.u32 [#allocation15], 4
          %s568 = int_to_ptr.vmem [resolvable:$true] %s567
          %573 = dma.hbm_to_vmem [thread:$0]  %s566, 1024, %s568, [#allocation14], 64, 64, 4
        $region72: #{_lambda_.1} parent=11 // pred_fallthru
          _
        // Predicated region
        $region73: #{_lambda_.1} parent=11 // pred_check
          %p574 = pneg %p391
        $region74: #{_lambda_.1} parent=11 // pred_check_branch
          %576 = sbr.rel (%p574) target = $region76
        $region75: #{_lambda_.1} parent=11 // pred_region
          %578 = vsyncadd [#allocation17], 0
          %s580 = sshll.u32 %s16, 4
          %s581 = int_to_ptr.hbm [resolvable:$true] %s580
          %s582 = sshll.u32 [#allocation16], 4
          %s583 = int_to_ptr.vmem [resolvable:$true] %s582
          %585 = dma.hbm_to_vmem [thread:$0]  %s581, 16, %s583, [#allocation17]
        $region76: #{_lambda_.1} parent=11 // pred_fallthru
          _
      $region12: #{_lambda_.1} parent=5 // pred_fallthru
        _
      %p586 = scmp.lt.s32.totalorder %s29, 2
      // Predicated region
      $region77: #{_lambda_.1} parent=5 // pred_check
        %p587 = pneg %p586
      $region78: #{_lambda_.1} parent=5 // pred_check_branch
        %589 = sbr.rel (%p587) target = $region80
      $region79: #{_lambda_.1} parent=5 // pred_region
        // Predicated region
        $region81: #{_lambda_.1} parent=79 // pred_check
          %p590 = pneg %p49
        $region82: #{_lambda_.1} parent=79 // pred_check_branch
          %592 = sbr.rel (%p590) target = $region84
        $region83: #{_lambda_.1} parent=79 // pred_region
          %p593 = scmp.lt.s32.totalorder %s29, 1
          %s594 = scalar_select %p593, %s29, 1
          %s595 = smul.addr %s594, 16
          %s596 = smul.addr %s595, 8
          %s597 = scalar_lea.vmem %s0, %s596
        $region84: #{_lambda_.1} parent=79 // pred_fallthru
          _
      $region80: #{_lambda_.1} parent=5 // pred_fallthru
        _
      %p598 = scmp.le.s32.totalorder 1, %s29
      %p599 = scmp.lt.s32.totalorder %s29, 3
      %p600 = pnand %p598, %p599
      %p601 = pneg %p600
      // Predicated region
      $region85: #{_lambda_.1} parent=5 // pred_check
        _
      $region86: #{_lambda_.1} parent=5 // pred_check_branch
        %603 = sbr.rel (%p600) target = $region88
      $region87: #{_lambda_.1} parent=5 // pred_region
        %s604 = ssub.s32 %s29, 1
        // Predicated region
        $region89: #{_lambda_.1} parent=87 // pred_check
          %p605 = pneg %p139
        $region90: #{_lambda_.1} parent=87 // pred_check_branch
          %607 = sbr.rel (%p605) target = $region92
        $region91: #{_lambda_.1} parent=87 // pred_region
          %609 = dma.done [#allocation3], 32
        $region92: #{_lambda_.1} parent=87 // pred_fallthru
          _
        // Predicated region
        $region93: #{_lambda_.1} parent=87 // pred_check
          %p610 = pneg %p181
        $region94: #{_lambda_.1} parent=87 // pred_check_branch
          %612 = sbr.rel (%p610) target = $region96
        $region95: #{_lambda_.1} parent=87 // pred_region
          %614 = dma.done [#allocation5], 32
        $region96: #{_lambda_.1} parent=87 // pred_fallthru
          _
        // Predicated region
        $region97: #{_lambda_.1} parent=87 // pred_check
          %p615 = pneg %p202
        $region98: #{_lambda_.1} parent=87 // pred_check_branch
          %617 = sbr.rel (%p615) target = $region100
        $region99: #{_lambda_.1} parent=87 // pred_region
          %619 = dma.done [#allocation5], 6144
        $region100: #{_lambda_.1} parent=87 // pred_fallthru
          _
        // Predicated region
        $region101: #{_lambda_.1} parent=87 // pred_check
          %p620 = pneg %p244
        $region102: #{_lambda_.1} parent=87 // pred_check_branch
          %622 = sbr.rel (%p620) target = $region104
        $region103: #{_lambda_.1} parent=87 // pred_region
          %624 = dma.done [#allocation8], 8192
        $region104: #{_lambda_.1} parent=87 // pred_fallthru
          _
        // Predicated region
        $region105: #{_lambda_.1} parent=87 // pred_check
          %p625 = pneg %p265
        $region106: #{_lambda_.1} parent=87 // pred_check_branch
          %627 = sbr.rel (%p625) target = $region108
        $region107: #{_lambda_.1} parent=87 // pred_region
          %629 = dma.done [#allocation8], 128
        $region108: #{_lambda_.1} parent=87 // pred_fallthru
          _
        // Predicated region
        $region109: #{_lambda_.1} parent=87 // pred_check
          %p630 = pneg %p286
        $region110: #{_lambda_.1} parent=87 // pred_check_branch
          %632 = sbr.rel (%p630) target = $region112
        $region111: #{_lambda_.1} parent=87 // pred_region
          %634 = dma.done [#allocation11], 8192
        $region112: #{_lambda_.1} parent=87 // pred_fallthru
          _
        // Predicated region
        $region113: #{_lambda_.1} parent=87 // pred_check
          %p635 = pneg %p307
        $region114: #{_lambda_.1} parent=87 // pred_check_branch
          %637 = sbr.rel (%p635) target = $region116
        $region115: #{_lambda_.1} parent=87 // pred_region
          %639 = dma.done [#allocation11], 32
        $region116: #{_lambda_.1} parent=87 // pred_fallthru
          _
        // Predicated region
        $region117: #{_lambda_.1} parent=87 // pred_check
          %p640 = pneg %p349
        $region118: #{_lambda_.1} parent=87 // pred_check_branch
          %642 = sbr.rel (%p640) target = $region120
        $region119: #{_lambda_.1} parent=87 // pred_region
          %644 = dma.done [#allocation14], 16
        $region120: #{_lambda_.1} parent=87 // pred_fallthru
          _
        // Predicated region
        $region121: #{_lambda_.1} parent=87 // pred_check
          %p645 = pneg %p370
        $region122: #{_lambda_.1} parent=87 // pred_check_branch
          %647 = sbr.rel (%p645) target = $region124
        $region123: #{_lambda_.1} parent=87 // pred_region
          %649 = dma.done [#allocation14], 1024
        $region124: #{_lambda_.1} parent=87 // pred_fallthru
          _
        // Predicated region
        $region125: #{_lambda_.1} parent=87 // pred_check
          %p650 = pneg %p391
        $region126: #{_lambda_.1} parent=87 // pred_check_branch
          %652 = sbr.rel (%p650) target = $region128
        $region127: #{_lambda_.1} parent=87 // pred_region
          %654 = dma.done [#allocation17], 16
        $region128: #{_lambda_.1} parent=87 // pred_fallthru
          _
        %p655 = scmp.lt.s32.totalorder %s34, 1
        %s656 = scalar_select %p655, %s34, 1
        %s657 = smul.addr %s656, 16
        %s658 = smul.addr %s657, 8
        %s659 = scalar_lea.vmem %s0, %s658
        %p660 = pneg %p55
        %p661 = pneg %p52
        %p662 = pneg %p76
        %p663 = pneg %p73
        %p664 = pneg %p97
        %p665 = pneg %p94
        %p666 = pneg %p118
        %p667 = pneg %p115
        %p668 = pneg %p139
        %p669 = pneg %p136
        %p670 = pneg %p160
        %p671 = pneg %p157
        %p672 = pneg %p181
        %p673 = pneg %p178
        %p674 = pneg %p202
        %p675 = pneg %p199
        %p676 = pneg %p223
        %p677 = pneg %p220
        %p678 = pneg %p244
        %p679 = pneg %p241
        %p680 = pneg %p265
        %p681 = pneg %p262
        %p682 = pneg %p286
        %p683 = pneg %p283
        %p684 = pneg %p307
        %p685 = pneg %p304
        %p686 = pneg %p328
        %p687 = pneg %p325
        %p688 = pneg %p349
        %p689 = pneg %p346
        %p690 = pneg %p370
        %p691 = pneg %p367
        %p692 = pneg %p391
        %p693 = pneg %p388
        %p694 = pneg %p417
        %p695 = pneg %p414
        %p696 = scmp.lt.s32.totalorder %s34, 1
        %s697 = scalar_select %p696, %s34, 1
        %s698 = smul.addr %s697, 16
        %s699 = smul.addr %s698, 8
        %s700 = scalar_lea.vmem %s17, %s699
        %p701 = scmp.lt.s32.totalorder %s34, 1
        %s702 = scalar_select %p701, %s34, 1
        %s703 = smul.addr %s702, 16
        %s704 = smul.addr %s703, 8
        %s705 = scalar_lea.vmem %s0, %s704
        %p706 = scmp.lt.s32.totalorder %s34, 1
        %s707 = scalar_select %p706, %s34, 1
        %s708 = smul.addr %s707, 16
        %s709 = smul.addr %s708, 8
        %s710 = scalar_lea.vmem %s17, %s709
        %v711 = vld [vmem:[%s705] sm:$0xff]
        %v712 = vld [vmem:[%s705 + $0x8] sm:$0xff]
        %v713 = vld [vmem:[%s705 + $0x10] sm:$0xff]
        %v714 = vld [vmem:[%s705 + $0x18] sm:$0xff]
        %v715 = vld [vmem:[%s705 + $0x20] sm:$0xff]
        %v716 = vld [vmem:[%s705 + $0x28] sm:$0xff]
        %v717 = vld [vmem:[%s705 + $0x30] sm:$0xff]
        %v718 = vld [vmem:[%s705 + $0x38] sm:$0xff]
        %v719 = vld [vmem:[%s705 + $0x40] sm:$0xff]
        %v720 = vld [vmem:[%s705 + $0x48] sm:$0xff]
        %v721 = vld [vmem:[%s705 + $0x50] sm:$0xff]
        %v722 = vld [vmem:[%s705 + $0x58] sm:$0xff]
        %v723 = vld [vmem:[%s705 + $0x60] sm:$0xff]
        %v724 = vld [vmem:[%s705 + $0x68] sm:$0xff]
        %v725 = vld [vmem:[%s705 + $0x70] sm:$0xff]
        %v726 = vld [vmem:[%s705 + $0x78] sm:$0xff]
        %v727 = vlaneseq
        %v728 = vand.u32 %v727, 127
        %729 = vset.pattern.permute.xlu0 0
        %730 = vperm.xlu0 %729, %v711
        %v731 = vpop.permute.xlu0 %730
        %732 = vset.pattern.permute.xlu0 0
        %733 = vperm.xlu0 %732, %v712
        %v734 = vpop.permute.xlu0 %733
        %735 = vset.pattern.permute.xlu0 0
        %736 = vperm.xlu0 %735, %v713
        %v737 = vpop.permute.xlu0 %736
        %738 = vset.pattern.permute.xlu0 0
        %739 = vperm.xlu0 %738, %v714
        %v740 = vpop.permute.xlu0 %739
        %741 = vset.pattern.permute.xlu0 0
        %742 = vperm.xlu0 %741, %v715
        %v743 = vpop.permute.xlu0 %742
        %744 = vset.pattern.permute.xlu0 0
        %745 = vperm.xlu0 %744, %v716
        %v746 = vpop.permute.xlu0 %745
        %747 = vset.pattern.permute.xlu0 0
        %748 = vperm.xlu0 %747, %v717
        %v749 = vpop.permute.xlu0 %748
        %750 = vset.pattern.permute.xlu0 0
        %751 = vperm.xlu0 %750, %v718
        %v752 = vpop.permute.xlu0 %751
        %753 = vset.pattern.permute.xlu0 0
        %754 = vperm.xlu0 %753, %v719
        %v755 = vpop.permute.xlu0 %754
        %756 = vset.pattern.permute.xlu0 0
        %757 = vperm.xlu0 %756, %v720
        %v758 = vpop.permute.xlu0 %757
        %759 = vset.pattern.permute.xlu0 0
        %760 = vperm.xlu0 %759, %v721
        %v761 = vpop.permute.xlu0 %760
        %762 = vset.pattern.permute.xlu0 0
        %763 = vperm.xlu0 %762, %v722
        %v764 = vpop.permute.xlu0 %763
        %765 = vset.pattern.permute.xlu0 0
        %766 = vperm.xlu0 %765, %v723
        %v767 = vpop.permute.xlu0 %766
        %768 = vset.pattern.permute.xlu0 0
        %769 = vperm.xlu0 %768, %v724
        %v770 = vpop.permute.xlu0 %769
        %771 = vset.pattern.permute.xlu0 0
        %772 = vperm.xlu0 %771, %v725
        %v773 = vpop.permute.xlu0 %772
        %774 = vset.pattern.permute.xlu0 0
        %775 = vperm.xlu0 %774, %v726
        %v776 = vpop.permute.xlu0 %775
        %vm777 = vcmp.eq.s32.totalorder %v728, %v731
        %vm778 = vcmp.eq.s32.totalorder %v728, %v734
        %vm779 = vcmp.eq.s32.totalorder %v728, %v737
        %vm780 = vcmp.eq.s32.totalorder %v728, %v740
        %vm781 = vcmp.eq.s32.totalorder %v728, %v743
        %vm782 = vcmp.eq.s32.totalorder %v728, %v746
        %vm783 = vcmp.eq.s32.totalorder %v728, %v749
        %vm784 = vcmp.eq.s32.totalorder %v728, %v752
        %vm785 = vcmp.eq.s32.totalorder %v728, %v755
        %vm786 = vcmp.eq.s32.totalorder %v728, %v758
        %vm787 = vcmp.eq.s32.totalorder %v728, %v761
        %vm788 = vcmp.eq.s32.totalorder %v728, %v764
        %vm789 = vcmp.eq.s32.totalorder %v728, %v767
        %vm790 = vcmp.eq.s32.totalorder %v728, %v770
        %vm791 = vcmp.eq.s32.totalorder %v728, %v773
        %vm792 = vcmp.eq.s32.totalorder %v728, %v776
        %v793 = vsel %vm777, 1.0, 0.0
        %v794 = vsel %vm778, 1.0, 0.0
        %v795 = vsel %vm779, 1.0, 0.0
        %v796 = vsel %vm780, 1.0, 0.0
        %v797 = vsel %vm781, 1.0, 0.0
        %v798 = vsel %vm782, 1.0, 0.0
        %v799 = vsel %vm783, 1.0, 0.0
        %v800 = vsel %vm784, 1.0, 0.0
        %v801 = vsel %vm785, 1.0, 0.0
        %v802 = vsel %vm786, 1.0, 0.0
        %v803 = vsel %vm787, 1.0, 0.0
        %v804 = vsel %vm788, 1.0, 0.0
        %v805 = vsel %vm789, 1.0, 0.0
        %v806 = vsel %vm790, 1.0, 0.0
        %v807 = vsel %vm791, 1.0, 0.0
        %v808 = vsel %vm792, 1.0, 0.0
        %v809 = vld [vmem:[%s1] sm:$0xf]
        %v810 = vld [vmem:[%s1 + $0x4] sm:$0xf]
        %v811 = vld [vmem:[%s1 + $0x8] sm:$0xf]
        %v812 = vld [vmem:[%s1 + $0xc] sm:$0xf]
        %v813 = vld [vmem:[%s1 + $0x10] sm:$0xf]
        %v814 = vld [vmem:[%s1 + $0x14] sm:$0xf]
        %v815 = vld [vmem:[%s1 + $0x18] sm:$0xf]
        %v816 = vld [vmem:[%s1 + $0x1c] sm:$0xf]
        %v817 = vld [vmem:[%s1 + $0x20] sm:$0xf]
        %v818 = vld [vmem:[%s1 + $0x24] sm:$0xf]
        %v819 = vld [vmem:[%s1 + $0x28] sm:$0xf]
        %v820 = vld [vmem:[%s1 + $0x2c] sm:$0xf]
        %v821 = vld [vmem:[%s1 + $0x30] sm:$0xf]
        %v822 = vld [vmem:[%s1 + $0x34] sm:$0xf]
        %v823 = vld [vmem:[%s1 + $0x38] sm:$0xf]
        %v824 = vld [vmem:[%s1 + $0x3c] sm:$0xf]
        %v825 = vpack.c.bf16 %v794, %v793
        %v826 = vpack.c.bf16 %v796, %v795
        %v827 = vpack.c.bf16 %v798, %v797
        %v828 = vpack.c.bf16 %v800, %v799
        %v829 = vpack.c.bf16 %v802, %v801
        %v830 = vpack.c.bf16 %v804, %v803
        %v831 = vpack.c.bf16 %v806, %v805
        %v832 = vpack.c.bf16 %v808, %v807
        %v833 = vld [vmem:[%s2] sm:$0xf]
        %v834 = vld [vmem:[%s2 + $0x4] sm:$0xf]
        %v835 = vld [vmem:[%s2 + $0x8] sm:$0xf]
        %v836 = vld [vmem:[%s2 + $0xc] sm:$0xf]
        %v837 = vld [vmem:[%s2 + $0x10] sm:$0xf]
        %v838 = vld [vmem:[%s2 + $0x14] sm:$0xf]
        %v839 = vld [vmem:[%s2 + $0x18] sm:$0xf]
        %v840 = vld [vmem:[%s2 + $0x1c] sm:$0xf]
        %v841 = vld [vmem:[%s2 + $0x20] sm:$0xf]
        %v842 = vld [vmem:[%s2 + $0x24] sm:$0xf]
        %v843 = vld [vmem:[%s2 + $0x28] sm:$0xf]
        %v844 = vld [vmem:[%s2 + $0x2c] sm:$0xf]
        %v845 = vld [vmem:[%s2 + $0x30] sm:$0xf]
        %v846 = vld [vmem:[%s2 + $0x34] sm:$0xf]
        %v847 = vld [vmem:[%s2 + $0x38] sm:$0xf]
        %v848 = vld [vmem:[%s2 + $0x3c] sm:$0xf]
        %v849 = vunpack.c.l.bf16 %v833
        %v850 = vunpack.c.l.bf16 %v834
        %v851 = vunpack.c.l.bf16 %v835
        %v852 = vunpack.c.l.bf16 %v836
        %v853 = vunpack.c.l.bf16 %v837
        %v854 = vunpack.c.l.bf16 %v838
        %v855 = vunpack.c.l.bf16 %v839
        %v856 = vunpack.c.l.bf16 %v840
        %v857 = vunpack.c.l.bf16 %v841
        %v858 = vunpack.c.l.bf16 %v842
        %v859 = vunpack.c.l.bf16 %v843
        %v860 = vunpack.c.l.bf16 %v844
        %v861 = vunpack.c.l.bf16 %v845
        %v862 = vunpack.c.l.bf16 %v846
        %v863 = vunpack.c.l.bf16 %v847
        %v864 = vunpack.c.l.bf16 %v848
        %v881 = vunpack.c.l.b16 %v809
        %v882 = vunpack.c.l.b16 %v810
        %v883 = vunpack.c.l.b16 %v811
        %v884 = vunpack.c.l.b16 %v812
        %v885 = vunpack.c.l.b16 %v813
        %v886 = vunpack.c.l.b16 %v814
        %v887 = vunpack.c.l.b16 %v815
        %v888 = vunpack.c.l.b16 %v816
        %v889 = vunpack.c.l.b16 %v817
        %v890 = vunpack.c.l.b16 %v818
        %v891 = vunpack.c.l.b16 %v819
        %v892 = vunpack.c.l.b16 %v820
        %v893 = vunpack.c.l.b16 %v821
        %v894 = vunpack.c.l.b16 %v822
        %v895 = vunpack.c.l.b16 %v823
        %v896 = vunpack.c.l.b16 %v824
        %v897 = vpack.c.b16 %v882, %v881
        %v898 = vpack.c.b16 %v884, %v883
        %v899 = vpack.c.b16 %v886, %v885
        %v900 = vpack.c.b16 %v888, %v887
        %v901 = vpack.c.b16 %v890, %v889
        %v902 = vpack.c.b16 %v892, %v891
        %v903 = vpack.c.b16 %v894, %v893
        %v904 = vpack.c.b16 %v896, %v895
        %913 = vmatpush.bf16.msra.mxu0 %v904
        %914 = vmatpush.bf16.msra.mxu0 %v903
        %915 = vmatpush.bf16.msra.mxu0 %v902
        %916 = vmatpush.bf16.msra.mxu0 %v901
        %917 = vmatpush.bf16.msra.mxu0 %v900
        %918 = vmatpush.bf16.msra.mxu0 %v899
        %919 = vmatpush.bf16.msra.mxu0 %v898
        %920 = vmatpush.bf16.msra.mxu0 %v897
        %921 = vmatmul.bf16.gmra.mxu0 %v825
        %v922 = vpop.f32.mrf.mxu0
        %v923 = vadd.f32 %v849, %v922
        %v924 = vpop.f32.mrf.mxu0
        %v925 = vadd.f32 %v850, %v924
        %926 = vmatmul.bf16.gmra.mxu0 %v826
        %v927 = vpop.f32.mrf.mxu0
        %v928 = vadd.f32 %v851, %v927
        %v929 = vpop.f32.mrf.mxu0
        %v930 = vadd.f32 %v852, %v929
        %931 = vmatmul.bf16.gmra.mxu0 %v827
        %v932 = vpop.f32.mrf.mxu0
        %v933 = vadd.f32 %v853, %v932
        %v934 = vpop.f32.mrf.mxu0
        %v935 = vadd.f32 %v854, %v934
        %936 = vmatmul.bf16.gmra.mxu0 %v828
        %v937 = vpop.f32.mrf.mxu0
        %v938 = vadd.f32 %v855, %v937
        %v939 = vpop.f32.mrf.mxu0
        %v940 = vadd.f32 %v856, %v939
        %941 = vmatmul.bf16.gmra.mxu0 %v829
        %v942 = vpop.f32.mrf.mxu0
        %v943 = vadd.f32 %v857, %v942
        %v944 = vpop.f32.mrf.mxu0
        %v945 = vadd.f32 %v858, %v944
        %946 = vmatmul.bf16.gmra.mxu0 %v830
        %v947 = vpop.f32.mrf.mxu0
        %v948 = vadd.f32 %v859, %v947
        %v949 = vpop.f32.mrf.mxu0
        %v950 = vadd.f32 %v860, %v949
        %951 = vmatmul.bf16.gmra.mxu0 %v831
        %v952 = vpop.f32.mrf.mxu0
        %v953 = vadd.f32 %v861, %v952
        %v954 = vpop.f32.mrf.mxu0
        %v955 = vadd.f32 %v862, %v954
        %956 = vmatmul.bf16.gmra.mxu0 %v832
        %v957 = vpop.f32.mrf.mxu0
        %v958 = vadd.f32 %v863, %v957
        %v959 = vpop.f32.mrf.mxu0
        %v960 = vadd.f32 %v864, %v959
        %961 = vdwg.mxu0
        %v962 = vlaneseq
        %v963 = vshrl.u32 %v962, 7
        %v964 = vadd.s32 %v963, 8
        %v965 = vadd.s32 %v963, 16
        %v966 = vadd.s32 %v963, 24
        %v967 = vadd.s32 %v963, 32
        %v968 = vadd.s32 %v963, 40
        %v969 = vadd.s32 %v963, 48
        %v970 = vadd.s32 %v963, 56
        %v971 = vadd.s32 %v963, 64
        %v972 = vadd.s32 %v963, 72
        %v973 = vadd.s32 %v963, 80
        %v974 = vadd.s32 %v963, 88
        %v975 = vadd.s32 %v963, 96
        %v976 = vadd.s32 %v963, 104
        %v977 = vadd.s32 %v963, 112
        %v978 = vadd.s32 %v963, 120
        %vm979 = vcmp.le.s32.totalorder %v728, %v963
        %vm980 = vcmp.le.s32.totalorder %v728, %v964
        %vm981 = vcmp.le.s32.totalorder %v728, %v965
        %vm982 = vcmp.le.s32.totalorder %v728, %v966
        %vm983 = vcmp.le.s32.totalorder %v728, %v967
        %vm984 = vcmp.le.s32.totalorder %v728, %v968
        %vm985 = vcmp.le.s32.totalorder %v728, %v969
        %vm986 = vcmp.le.s32.totalorder %v728, %v970
        %vm987 = vcmp.le.s32.totalorder %v728, %v971
        %vm988 = vcmp.le.s32.totalorder %v728, %v972
        %vm989 = vcmp.le.s32.totalorder %v728, %v973
        %vm990 = vcmp.le.s32.totalorder %v728, %v974
        %vm991 = vcmp.le.s32.totalorder %v728, %v975
        %vm992 = vcmp.le.s32.totalorder %v728, %v976
        %vm993 = vcmp.le.s32.totalorder %v728, %v977
        %vm994 = vcmp.le.s32.totalorder %v728, %v978
        %v995 = vld [vmem:[%s3] sm:$0x1]
        %v996 = vld [vmem:[#allocation2] sm:$0x1]
        %997 = vadd.xlane.f32.xlu0 %v923
        %v998 = vpop.xlane.xlu0 %997
        %999 = vadd.xlane.f32.xlu0 %v925
        %v1000 = vpop.xlane.xlu0 %999
        %1001 = vadd.xlane.f32.xlu0 %v928
        %v1002 = vpop.xlane.xlu0 %1001
        %1003 = vadd.xlane.f32.xlu0 %v930
        %v1004 = vpop.xlane.xlu0 %1003
        %1005 = vadd.xlane.f32.xlu0 %v933
        %v1006 = vpop.xlane.xlu0 %1005
        %1007 = vadd.xlane.f32.xlu0 %v935
        %v1008 = vpop.xlane.xlu0 %1007
        %1009 = vadd.xlane.f32.xlu0 %v938
        %v1010 = vpop.xlane.xlu0 %1009
        %1011 = vadd.xlane.f32.xlu0 %v940
        %v1012 = vpop.xlane.xlu0 %1011
        %1013 = vadd.xlane.f32.xlu0 %v943
        %v1014 = vpop.xlane.xlu0 %1013
        %1015 = vadd.xlane.f32.xlu0 %v945
        %v1016 = vpop.xlane.xlu0 %1015
        %1017 = vadd.xlane.f32.xlu0 %v948
        %v1018 = vpop.xlane.xlu0 %1017
        %1019 = vadd.xlane.f32.xlu0 %v950
        %v1020 = vpop.xlane.xlu0 %1019
        %1021 = vadd.xlane.f32.xlu0 %v953
        %v1022 = vpop.xlane.xlu0 %1021
        %1023 = vadd.xlane.f32.xlu0 %v955
        %v1024 = vpop.xlane.xlu0 %1023
        %1025 = vadd.xlane.f32.xlu0 %v958
        %v1026 = vpop.xlane.xlu0 %1025
        %1027 = vadd.xlane.f32.xlu0 %v960
        %v1028 = vpop.xlane.xlu0 %1027
        %v1029 = vrcp.pop 128.0
        %v1030 = vmul.f32 128.0, %v1029
        %v1031 = vsub.f32 1.0, %v1030
        %v1032 = vmul.f32 %v1029, %v1031
        %v1033 = vadd.f32 %v1029, %v1032
        %vm1034 = vweird.f32 %v1029
        %v1035 = vsel %vm1034, %v1029, %v1033
        %v1036 = vmul.f32 %v998, %v1035
        %v1037 = vmul.f32 %v1000, %v1035
        %v1038 = vmul.f32 %v1002, %v1035
        %v1039 = vmul.f32 %v1004, %v1035
        %v1040 = vmul.f32 %v1006, %v1035
        %v1041 = vmul.f32 %v1008, %v1035
        %v1042 = vmul.f32 %v1010, %v1035
        %v1043 = vmul.f32 %v1012, %v1035
        %v1044 = vmul.f32 %v1014, %v1035
        %v1045 = vmul.f32 %v1016, %v1035
        %v1046 = vmul.f32 %v1018, %v1035
        %v1047 = vmul.f32 %v1020, %v1035
        %v1048 = vmul.f32 %v1022, %v1035
        %v1049 = vmul.f32 %v1024, %v1035
        %v1050 = vmul.f32 %v1026, %v1035
        %v1051 = vmul.f32 %v1028, %v1035
        %v1052 = vsub.f32 %v923, %v1036
        %v1053 = vsub.f32 %v925, %v1037
        %v1054 = vsub.f32 %v928, %v1038
        %v1055 = vsub.f32 %v930, %v1039
        %v1056 = vsub.f32 %v933, %v1040
        %v1057 = vsub.f32 %v935, %v1041
        %v1058 = vsub.f32 %v938, %v1042
        %v1059 = vsub.f32 %v940, %v1043
        %v1060 = vsub.f32 %v943, %v1044
        %v1061 = vsub.f32 %v945, %v1045
        %v1062 = vsub.f32 %v948, %v1046
        %v1063 = vsub.f32 %v950, %v1047
        %v1064 = vsub.f32 %v953, %v1048
        %v1065 = vsub.f32 %v955, %v1049
        %v1066 = vsub.f32 %v958, %v1050
        %v1067 = vsub.f32 %v960, %v1051
        %v1068 = vmul.f32 %v1052, %v1052
        %v1069 = vmul.f32 %v1053, %v1053
        %v1070 = vmul.f32 %v1054, %v1054
        %v1071 = vmul.f32 %v1055, %v1055
        %v1072 = vmul.f32 %v1056, %v1056
        %v1073 = vmul.f32 %v1057, %v1057
        %v1074 = vmul.f32 %v1058, %v1058
        %v1075 = vmul.f32 %v1059, %v1059
        %v1076 = vmul.f32 %v1060, %v1060
        %v1077 = vmul.f32 %v1061, %v1061
        %v1078 = vmul.f32 %v1062, %v1062
        %v1079 = vmul.f32 %v1063, %v1063
        %v1080 = vmul.f32 %v1064, %v1064
        %v1081 = vmul.f32 %v1065, %v1065
        %v1082 = vmul.f32 %v1066, %v1066
        %v1083 = vmul.f32 %v1067, %v1067
        %1084 = vadd.xlane.f32.xlu0 %v1068
        %v1085 = vpop.xlane.xlu0 %1084
        %1086 = vadd.xlane.f32.xlu0 %v1069
        %v1087 = vpop.xlane.xlu0 %1086
        %1088 = vadd.xlane.f32.xlu0 %v1070
        %v1089 = vpop.xlane.xlu0 %1088
        %1090 = vadd.xlane.f32.xlu0 %v1071
        %v1091 = vpop.xlane.xlu0 %1090
        %1092 = vadd.xlane.f32.xlu0 %v1072
        %v1093 = vpop.xlane.xlu0 %1092
        %1094 = vadd.xlane.f32.xlu0 %v1073
        %v1095 = vpop.xlane.xlu0 %1094
        %1096 = vadd.xlane.f32.xlu0 %v1074
        %v1097 = vpop.xlane.xlu0 %1096
        %1098 = vadd.xlane.f32.xlu0 %v1075
        %v1099 = vpop.xlane.xlu0 %1098
        %1100 = vadd.xlane.f32.xlu0 %v1076
        %v1101 = vpop.xlane.xlu0 %1100
        %1102 = vadd.xlane.f32.xlu0 %v1077
        %v1103 = vpop.xlane.xlu0 %1102
        %1104 = vadd.xlane.f32.xlu0 %v1078
        %v1105 = vpop.xlane.xlu0 %1104
        %1106 = vadd.xlane.f32.xlu0 %v1079
        %v1107 = vpop.xlane.xlu0 %1106
        %1108 = vadd.xlane.f32.xlu0 %v1080
        %v1109 = vpop.xlane.xlu0 %1108
        %1110 = vadd.xlane.f32.xlu0 %v1081
        %v1111 = vpop.xlane.xlu0 %1110
        %1112 = vadd.xlane.f32.xlu0 %v1082
        %v1113 = vpop.xlane.xlu0 %1112
        %1114 = vadd.xlane.f32.xlu0 %v1083
        %v1115 = vpop.xlane.xlu0 %1114
        %v1116 = vmul.f32 %v1085, %v1035
        %v1117 = vmul.f32 %v1087, %v1035
        %v1118 = vmul.f32 %v1089, %v1035
        %v1119 = vmul.f32 %v1091, %v1035
        %v1120 = vmul.f32 %v1093, %v1035
        %v1121 = vmul.f32 %v1095, %v1035
        %v1122 = vmul.f32 %v1097, %v1035
        %v1123 = vmul.f32 %v1099, %v1035
        %v1124 = vmul.f32 %v1101, %v1035
        %v1125 = vmul.f32 %v1103, %v1035
        %v1126 = vmul.f32 %v1105, %v1035
        %v1127 = vmul.f32 %v1107, %v1035
        %v1128 = vmul.f32 %v1109, %v1035
        %v1129 = vmul.f32 %v1111, %v1035
        %v1130 = vmul.f32 %v1113, %v1035
        %v1131 = vmul.f32 %v1115, %v1035
        %v1132 = vadd.f32 %v1116, 1e-05
        %v1133 = vadd.f32 %v1117, 1e-05
        %v1134 = vadd.f32 %v1118, 1e-05
        %v1135 = vadd.f32 %v1119, 1e-05
        %v1136 = vadd.f32 %v1120, 1e-05
        %v1137 = vadd.f32 %v1121, 1e-05
        %v1138 = vadd.f32 %v1122, 1e-05
        %v1139 = vadd.f32 %v1123, 1e-05
        %v1140 = vadd.f32 %v1124, 1e-05
        %v1141 = vadd.f32 %v1125, 1e-05
        %v1142 = vadd.f32 %v1126, 1e-05
        %v1143 = vadd.f32 %v1127, 1e-05
        %v1144 = vadd.f32 %v1128, 1e-05
        %v1145 = vadd.f32 %v1129, 1e-05
        %v1146 = vadd.f32 %v1130, 1e-05
        %v1147 = vadd.f32 %v1131, 1e-05
        %v1148 = vrsqrt.pop %v1132
        %v1149 = vmul.f32 %v1148, %v1132
        %v1150 = vmul.f32 %v1149, %v1148
        %v1151 = vmul.f32 0.5, %v1150
        %v1152 = vsub.f32 1.5, %v1151
        %v1153 = vmul.f32 %v1148, %v1152
        %vm1154 = vweird.f32 %v1132
        %vm1155 = vweird.f32 %v1148
        %vm1156 = vmor %vm1154, %vm1155
        %v1157 = vsel %vm1156, %v1148, %v1153
        %v1158 = vrsqrt.pop %v1133
        %v1159 = vmul.f32 %v1158, %v1133
        %v1160 = vmul.f32 %v1159, %v1158
        %v1161 = vmul.f32 0.5, %v1160
        %v1162 = vsub.f32 1.5, %v1161
        %v1163 = vmul.f32 %v1158, %v1162
        %vm1164 = vweird.f32 %v1133
        %vm1165 = vweird.f32 %v1158
        %vm1166 = vmor %vm1164, %vm1165
        %v1167 = vsel %vm1166, %v1158, %v1163
        %v1168 = vrsqrt.pop %v1134
        %v1169 = vmul.f32 %v1168, %v1134
        %v1170 = vmul.f32 %v1169, %v1168
        %v1171 = vmul.f32 0.5, %v1170
        %v1172 = vsub.f32 1.5, %v1171
        %v1173 = vmul.f32 %v1168, %v1172
        %vm1174 = vweird.f32 %v1134
        %vm1175 = vweird.f32 %v1168
        %vm1176 = vmor %vm1174, %vm1175
        %v1177 = vsel %vm1176, %v1168, %v1173
        %v1178 = vrsqrt.pop %v1135
        %v1179 = vmul.f32 %v1178, %v1135
        %v1180 = vmul.f32 %v1179, %v1178
        %v1181 = vmul.f32 0.5, %v1180
        %v1182 = vsub.f32 1.5, %v1181
        %v1183 = vmul.f32 %v1178, %v1182
        %vm1184 = vweird.f32 %v1135
        %vm1185 = vweird.f32 %v1178
        %vm1186 = vmor %vm1184, %vm1185
        %v1187 = vsel %vm1186, %v1178, %v1183
        %v1188 = vrsqrt.pop %v1136
        %v1189 = vmul.f32 %v1188, %v1136
        %v1190 = vmul.f32 %v1189, %v1188
        %v1191 = vmul.f32 0.5, %v1190
        %v1192 = vsub.f32 1.5, %v1191
        %v1193 = vmul.f32 %v1188, %v1192
        %vm1194 = vweird.f32 %v1136
        %vm1195 = vweird.f32 %v1188
        %vm1196 = vmor %vm1194, %vm1195
        %v1197 = vsel %vm1196, %v1188, %v1193
        %v1198 = vrsqrt.pop %v1137
        %v1199 = vmul.f32 %v1198, %v1137
        %v1200 = vmul.f32 %v1199, %v1198
        %v1201 = vmul.f32 0.5, %v1200
        %v1202 = vsub.f32 1.5, %v1201
        %v1203 = vmul.f32 %v1198, %v1202
        %vm1204 = vweird.f32 %v1137
        %vm1205 = vweird.f32 %v1198
        %vm1206 = vmor %vm1204, %vm1205
        %v1207 = vsel %vm1206, %v1198, %v1203
        %v1208 = vrsqrt.pop %v1138
        %v1209 = vmul.f32 %v1208, %v1138
        %v1210 = vmul.f32 %v1209, %v1208
        %v1211 = vmul.f32 0.5, %v1210
        %v1212 = vsub.f32 1.5, %v1211
        %v1213 = vmul.f32 %v1208, %v1212
        %vm1214 = vweird.f32 %v1138
        %vm1215 = vweird.f32 %v1208
        %vm1216 = vmor %vm1214, %vm1215
        %v1217 = vsel %vm1216, %v1208, %v1213
        %v1218 = vrsqrt.pop %v1139
        %v1219 = vmul.f32 %v1218, %v1139
        %v1220 = vmul.f32 %v1219, %v1218
        %v1221 = vmul.f32 0.5, %v1220
        %v1222 = vsub.f32 1.5, %v1221
        %v1223 = vmul.f32 %v1218, %v1222
        %vm1224 = vweird.f32 %v1139
        %vm1225 = vweird.f32 %v1218
        %vm1226 = vmor %vm1224, %vm1225
        %v1227 = vsel %vm1226, %v1218, %v1223
        %v1228 = vrsqrt.pop %v1140
        %v1229 = vmul.f32 %v1228, %v1140
        %v1230 = vmul.f32 %v1229, %v1228
        %v1231 = vmul.f32 0.5, %v1230
        %v1232 = vsub.f32 1.5, %v1231
        %v1233 = vmul.f32 %v1228, %v1232
        %vm1234 = vweird.f32 %v1140
        %vm1235 = vweird.f32 %v1228
        %vm1236 = vmor %vm1234, %vm1235
        %v1237 = vsel %vm1236, %v1228, %v1233
        %v1238 = vrsqrt.pop %v1141
        %v1239 = vmul.f32 %v1238, %v1141
        %v1240 = vmul.f32 %v1239, %v1238
        %v1241 = vmul.f32 0.5, %v1240
        %v1242 = vsub.f32 1.5, %v1241
        %v1243 = vmul.f32 %v1238, %v1242
        %vm1244 = vweird.f32 %v1141
        %vm1245 = vweird.f32 %v1238
        %vm1246 = vmor %vm1244, %vm1245
        %v1247 = vsel %vm1246, %v1238, %v1243
        %v1248 = vrsqrt.pop %v1142
        %v1249 = vmul.f32 %v1248, %v1142
        %v1250 = vmul.f32 %v1249, %v1248
        %v1251 = vmul.f32 0.5, %v1250
        %v1252 = vsub.f32 1.5, %v1251
        %v1253 = vmul.f32 %v1248, %v1252
        %vm1254 = vweird.f32 %v1142
        %vm1255 = vweird.f32 %v1248
        %vm1256 = vmor %vm1254, %vm1255
        %v1257 = vsel %vm1256, %v1248, %v1253
        %v1258 = vrsqrt.pop %v1143
        %v1259 = vmul.f32 %v1258, %v1143
        %v1260 = vmul.f32 %v1259, %v1258
        %v1261 = vmul.f32 0.5, %v1260
        %v1262 = vsub.f32 1.5, %v1261
        %v1263 = vmul.f32 %v1258, %v1262
        %vm1264 = vweird.f32 %v1143
        %vm1265 = vweird.f32 %v1258
        %vm1266 = vmor %vm1264, %vm1265
        %v1267 = vsel %vm1266, %v1258, %v1263
        %v1268 = vrsqrt.pop %v1144
        %v1269 = vmul.f32 %v1268, %v1144
        %v1270 = vmul.f32 %v1269, %v1268
        %v1271 = vmul.f32 0.5, %v1270
        %v1272 = vsub.f32 1.5, %v1271
        %v1273 = vmul.f32 %v1268, %v1272
        %vm1274 = vweird.f32 %v1144
        %vm1275 = vweird.f32 %v1268
        %vm1276 = vmor %vm1274, %vm1275
        %v1277 = vsel %vm1276, %v1268, %v1273
        %v1278 = vrsqrt.pop %v1145
        %v1279 = vmul.f32 %v1278, %v1145
        %v1280 = vmul.f32 %v1279, %v1278
        %v1281 = vmul.f32 0.5, %v1280
        %v1282 = vsub.f32 1.5, %v1281
        %v1283 = vmul.f32 %v1278, %v1282
        %vm1284 = vweird.f32 %v1145
        %vm1285 = vweird.f32 %v1278
        %vm1286 = vmor %vm1284, %vm1285
        %v1287 = vsel %vm1286, %v1278, %v1283
        %v1288 = vrsqrt.pop %v1146
        %v1289 = vmul.f32 %v1288, %v1146
        %v1290 = vmul.f32 %v1289, %v1288
        %v1291 = vmul.f32 0.5, %v1290
        %v1292 = vsub.f32 1.5, %v1291
        %v1293 = vmul.f32 %v1288, %v1292
        %vm1294 = vweird.f32 %v1146
        %vm1295 = vweird.f32 %v1288
        %vm1296 = vmor %vm1294, %vm1295
        %v1297 = vsel %vm1296, %v1288, %v1293
        %v1298 = vrsqrt.pop %v1147
        %v1299 = vmul.f32 %v1298, %v1147
        %v1300 = vmul.f32 %v1299, %v1298
        %v1301 = vmul.f32 0.5, %v1300
        %v1302 = vsub.f32 1.5, %v1301
        %v1303 = vmul.f32 %v1298, %v1302
        %vm1304 = vweird.f32 %v1147
        %vm1305 = vweird.f32 %v1298
        %vm1306 = vmor %vm1304, %vm1305
        %v1307 = vsel %vm1306, %v1298, %v1303
        %v1308 = vmul.f32 %v1052, %v1157
        %v1309 = vmul.f32 %v1053, %v1167
        %v1310 = vmul.f32 %v1054, %v1177
        %v1311 = vmul.f32 %v1055, %v1187
        %v1312 = vmul.f32 %v1056, %v1197
        %v1313 = vmul.f32 %v1057, %v1207
        %v1314 = vmul.f32 %v1058, %v1217
        %v1315 = vmul.f32 %v1059, %v1227
        %v1316 = vmul.f32 %v1060, %v1237
        %v1317 = vmul.f32 %v1061, %v1247
        %v1318 = vmul.f32 %v1062, %v1257
        %v1319 = vmul.f32 %v1063, %v1267
        %v1320 = vmul.f32 %v1064, %v1277
        %v1321 = vmul.f32 %v1065, %v1287
        %v1322 = vmul.f32 %v1066, %v1297
        %v1323 = vmul.f32 %v1067, %v1307
        %v1325 = vperm.slane %v995, 0
        %v1327 = vmul.f32 %v1308, %v1325
        %v1328 = vmul.f32 %v1309, %v1325
        %v1329 = vmul.f32 %v1310, %v1325
        %v1330 = vmul.f32 %v1311, %v1325
        %v1331 = vmul.f32 %v1312, %v1325
        %v1332 = vmul.f32 %v1313, %v1325
        %v1333 = vmul.f32 %v1314, %v1325
        %v1334 = vmul.f32 %v1315, %v1325
        %v1335 = vmul.f32 %v1316, %v1325
        %v1336 = vmul.f32 %v1317, %v1325
        %v1337 = vmul.f32 %v1318, %v1325
        %v1338 = vmul.f32 %v1319, %v1325
        %v1339 = vmul.f32 %v1320, %v1325
        %v1340 = vmul.f32 %v1321, %v1325
        %v1341 = vmul.f32 %v1322, %v1325
        %v1342 = vmul.f32 %v1323, %v1325
        %v1344 = vperm.slane %v996, 0
        %v1346 = vadd.f32 %v1327, %v1344
        %v1347 = vadd.f32 %v1328, %v1344
        %v1348 = vadd.f32 %v1329, %v1344
        %v1349 = vadd.f32 %v1330, %v1344
        %v1350 = vadd.f32 %v1331, %v1344
        %v1351 = vadd.f32 %v1332, %v1344
        %v1352 = vadd.f32 %v1333, %v1344
        %v1353 = vadd.f32 %v1334, %v1344
        %v1354 = vadd.f32 %v1335, %v1344
        %v1355 = vadd.f32 %v1336, %v1344
        %v1356 = vadd.f32 %v1337, %v1344
        %v1357 = vadd.f32 %v1338, %v1344
        %v1358 = vadd.f32 %v1339, %v1344
        %v1359 = vadd.f32 %v1340, %v1344
        %v1360 = vadd.f32 %v1341, %v1344
        %v1361 = vadd.f32 %v1342, %v1344
        %v1362 = vld [vmem:[#allocation6] sm:$0xff]
        %v1363 = vld [vmem:[#allocation6 + $0x8] sm:$0xf]
        %v1364 = vld [vmem:[#allocation6 + $0xc] sm:$0xff]
        %v1365 = vld [vmem:[#allocation6 + $0x14] sm:$0xf]
        %v1366 = vld [vmem:[#allocation6 + $0x18] sm:$0xff]
        %v1367 = vld [vmem:[#allocation6 + $0x20] sm:$0xf]
        %v1368 = vld [vmem:[#allocation6 + $0x24] sm:$0xff]
        %v1369 = vld [vmem:[#allocation6 + $0x2c] sm:$0xf]
        %v1370 = vld [vmem:[#allocation6 + $0x30] sm:$0xff]
        %v1371 = vld [vmem:[#allocation6 + $0x38] sm:$0xf]
        %v1372 = vld [vmem:[#allocation6 + $0x3c] sm:$0xff]
        %v1373 = vld [vmem:[#allocation6 + $0x44] sm:$0xf]
        %v1374 = vld [vmem:[#allocation6 + $0x48] sm:$0xff]
        %v1375 = vld [vmem:[#allocation6 + $0x50] sm:$0xf]
        %v1376 = vld [vmem:[#allocation6 + $0x54] sm:$0xff]
        %v1377 = vld [vmem:[#allocation6 + $0x5c] sm:$0xf]
        %v1378 = vld [vmem:[#allocation6 + $0x60] sm:$0xff]
        %v1379 = vld [vmem:[#allocation6 + $0x68] sm:$0xf]
        %v1380 = vld [vmem:[#allocation6 + $0x6c] sm:$0xff]
        %v1381 = vld [vmem:[#allocation6 + $0x74] sm:$0xf]
        %v1382 = vld [vmem:[#allocation6 + $0x78] sm:$0xff]
        %v1383 = vld [vmem:[#allocation6 + $0x80] sm:$0xf]
        %v1384 = vld [vmem:[#allocation6 + $0x84] sm:$0xff]
        %v1385 = vld [vmem:[#allocation6 + $0x8c] sm:$0xf]
        %v1386 = vld [vmem:[#allocation6 + $0x90] sm:$0xff]
        %v1387 = vld [vmem:[#allocation6 + $0x98] sm:$0xf]
        %v1388 = vld [vmem:[#allocation6 + $0x9c] sm:$0xff]
        %v1389 = vld [vmem:[#allocation6 + $0xa4] sm:$0xf]
        %v1390 = vld [vmem:[#allocation6 + $0xa8] sm:$0xff]
        %v1391 = vld [vmem:[#allocation6 + $0xb0] sm:$0xf]
        %v1392 = vld [vmem:[#allocation6 + $0xb4] sm:$0xff]
        %v1393 = vld [vmem:[#allocation6 + $0xbc] sm:$0xf]
        %v1394 = vpack.c.bf16 %v1347, %v1346
        %v1395 = vpack.c.bf16 %v1349, %v1348
        %v1396 = vpack.c.bf16 %v1351, %v1350
        %v1397 = vpack.c.bf16 %v1353, %v1352
        %v1398 = vpack.c.bf16 %v1355, %v1354
        %v1399 = vpack.c.bf16 %v1357, %v1356
        %v1400 = vpack.c.bf16 %v1359, %v1358
        %v1401 = vpack.c.bf16 %v1361, %v1360
        %v1434 = vunpack.c.l.b16 %v1362
        %v1435 = vunpack.c.h.b16 %v1362
        %v1436 = vunpack.c.l.b16 %v1363
        %v1437 = vunpack.c.l.b16 %v1364
        %v1438 = vunpack.c.h.b16 %v1364
        %v1439 = vunpack.c.l.b16 %v1365
        %v1440 = vunpack.c.l.b16 %v1366
        %v1441 = vunpack.c.h.b16 %v1366
        %v1442 = vunpack.c.l.b16 %v1367
        %v1443 = vunpack.c.l.b16 %v1368
        %v1444 = vunpack.c.h.b16 %v1368
        %v1445 = vunpack.c.l.b16 %v1369
        %v1446 = vunpack.c.l.b16 %v1370
        %v1447 = vunpack.c.h.b16 %v1370
        %v1448 = vunpack.c.l.b16 %v1371
        %v1449 = vunpack.c.l.b16 %v1372
        %v1450 = vunpack.c.h.b16 %v1372
        %v1451 = vunpack.c.l.b16 %v1373
        %v1452 = vunpack.c.l.b16 %v1374
        %v1453 = vunpack.c.h.b16 %v1374
        %v1454 = vunpack.c.l.b16 %v1375
        %v1455 = vunpack.c.l.b16 %v1376
        %v1456 = vunpack.c.h.b16 %v1376
        %v1457 = vunpack.c.l.b16 %v1377
        %v1458 = vunpack.c.l.b16 %v1378
        %v1459 = vunpack.c.h.b16 %v1378
        %v1460 = vunpack.c.l.b16 %v1379
        %v1461 = vunpack.c.l.b16 %v1380
        %v1462 = vunpack.c.h.b16 %v1380
        %v1463 = vunpack.c.l.b16 %v1381
        %v1464 = vunpack.c.l.b16 %v1382
        %v1465 = vunpack.c.h.b16 %v1382
        %v1466 = vunpack.c.l.b16 %v1383
        %v1467 = vunpack.c.l.b16 %v1384
        %v1468 = vunpack.c.h.b16 %v1384
        %v1469 = vunpack.c.l.b16 %v1385
        %v1470 = vunpack.c.l.b16 %v1386
        %v1471 = vunpack.c.h.b16 %v1386
        %v1472 = vunpack.c.l.b16 %v1387
        %v1473 = vunpack.c.l.b16 %v1388
        %v1474 = vunpack.c.h.b16 %v1388
        %v1475 = vunpack.c.l.b16 %v1389
        %v1476 = vunpack.c.l.b16 %v1390
        %v1477 = vunpack.c.h.b16 %v1390
        %v1478 = vunpack.c.l.b16 %v1391
        %v1479 = vunpack.c.l.b16 %v1392
        %v1480 = vunpack.c.h.b16 %v1392
        %v1481 = vunpack.c.l.b16 %v1393
        %v1482 = vpack.c.b16 %v1437, %v1434
        %v1483 = vpack.c.b16 %v1438, %v1435
        %v1484 = vpack.c.b16 %v1439, %v1436
        %v1485 = vpack.c.b16 %v1443, %v1440
        %v1486 = vpack.c.b16 %v1444, %v1441
        %v1487 = vpack.c.b16 %v1445, %v1442
        %v1488 = vpack.c.b16 %v1449, %v1446
        %v1489 = vpack.c.b16 %v1450, %v1447
        %v1490 = vpack.c.b16 %v1451, %v1448
        %v1491 = vpack.c.b16 %v1455, %v1452
        %v1492 = vpack.c.b16 %v1456, %v1453
        %v1493 = vpack.c.b16 %v1457, %v1454
        %v1494 = vpack.c.b16 %v1461, %v1458
        %v1495 = vpack.c.b16 %v1462, %v1459
        %v1496 = vpack.c.b16 %v1463, %v1460
        %v1497 = vpack.c.b16 %v1467, %v1464
        %v1498 = vpack.c.b16 %v1468, %v1465
        %v1499 = vpack.c.b16 %v1469, %v1466
        %v1500 = vpack.c.b16 %v1473, %v1470
        %v1501 = vpack.c.b16 %v1474, %v1471
        %v1502 = vpack.c.b16 %v1475, %v1472
        %v1503 = vpack.c.b16 %v1479, %v1476
        %v1504 = vpack.c.b16 %v1480, %v1477
        %v1505 = vpack.c.b16 %v1481, %v1478
        %1530 = vmatpush.bf16.msra.mxu0 %v1503
        %1531 = vmatpush.bf16.msra.mxu0 %v1500
        %1532 = vmatpush.bf16.msra.mxu0 %v1497
        %1533 = vmatpush.bf16.msra.mxu0 %v1494
        %1534 = vmatpush.bf16.msra.mxu0 %v1491
        %1535 = vmatpush.bf16.msra.mxu0 %v1488
        %1536 = vmatpush.bf16.msra.mxu0 %v1485
        %1537 = vmatpush.bf16.msra.mxu0 %v1482
        %1538 = vmatmul.bf16.gmra.mxu0 %v1394
        %v1539 = vpop.f32.mrf.mxu0
        %v1540 = vadd.f32 0.0, %v1539
        %v1541 = vpop.f32.mrf.mxu0
        %v1542 = vadd.f32 0.0, %v1541
        %1543 = vmatmul.bf16.gmra.mxu0 %v1395
        %v1544 = vpop.f32.mrf.mxu0
        %v1545 = vadd.f32 0.0, %v1544
        %v1546 = vpop.f32.mrf.mxu0
        %v1547 = vadd.f32 0.0, %v1546
        %1548 = vmatmul.bf16.gmra.mxu0 %v1396
        %v1549 = vpop.f32.mrf.mxu0
        %v1550 = vadd.f32 0.0, %v1549
        %v1551 = vpop.f32.mrf.mxu0
        %v1552 = vadd.f32 0.0, %v1551
        %1553 = vmatmul.bf16.gmra.mxu0 %v1397
        %v1554 = vpop.f32.mrf.mxu0
        %v1555 = vadd.f32 0.0, %v1554
        %v1556 = vpop.f32.mrf.mxu0
        %v1557 = vadd.f32 0.0, %v1556
        %1558 = vmatmul.bf16.gmra.mxu0 %v1398
        %v1559 = vpop.f32.mrf.mxu0
        %v1560 = vadd.f32 0.0, %v1559
        %v1561 = vpop.f32.mrf.mxu0
        %v1562 = vadd.f32 0.0, %v1561
        %1563 = vmatmul.bf16.gmra.mxu0 %v1399
        %v1564 = vpop.f32.mrf.mxu0
        %v1565 = vadd.f32 0.0, %v1564
        %v1566 = vpop.f32.mrf.mxu0
        %v1567 = vadd.f32 0.0, %v1566
        %1568 = vmatmul.bf16.gmra.mxu0 %v1400
        %v1569 = vpop.f32.mrf.mxu0
        %v1570 = vadd.f32 0.0, %v1569
        %v1571 = vpop.f32.mrf.mxu0
        %v1572 = vadd.f32 0.0, %v1571
        %1573 = vmatmul.bf16.gmra.mxu0 %v1401
        %v1574 = vpop.f32.mrf.mxu0
        %v1575 = vadd.f32 0.0, %v1574
        %v1576 = vpop.f32.mrf.mxu0
        %v1577 = vadd.f32 0.0, %v1576
        %1578 = vdwg.mxu0
        %1579 = vmatpush.bf16.msra.mxu0 %v1504
        %1580 = vmatpush.bf16.msra.mxu0 %v1501
        %1581 = vmatpush.bf16.msra.mxu0 %v1498
        %1582 = vmatpush.bf16.msra.mxu0 %v1495
        %1583 = vmatpush.bf16.msra.mxu0 %v1492
        %1584 = vmatpush.bf16.msra.mxu0 %v1489
        %1585 = vmatpush.bf16.msra.mxu0 %v1486
        %1586 = vmatpush.bf16.msra.mxu0 %v1483
        %1587 = vmatmul.bf16.gmra.mxu0 %v1394
        %v1588 = vpop.f32.mrf.mxu0
        %v1589 = vadd.f32 0.0, %v1588
        %v1590 = vpop.f32.mrf.mxu0
        %v1591 = vadd.f32 0.0, %v1590
        %1592 = vmatmul.bf16.gmra.mxu0 %v1395
        %v1593 = vpop.f32.mrf.mxu0
        %v1594 = vadd.f32 0.0, %v1593
        %v1595 = vpop.f32.mrf.mxu0
        %v1596 = vadd.f32 0.0, %v1595
        %1597 = vmatmul.bf16.gmra.mxu0 %v1396
        %v1598 = vpop.f32.mrf.mxu0
        %v1599 = vadd.f32 0.0, %v1598
        %v1600 = vpop.f32.mrf.mxu0
        %v1601 = vadd.f32 0.0, %v1600
        %1602 = vmatmul.bf16.gmra.mxu0 %v1397
        %v1603 = vpop.f32.mrf.mxu0
        %v1604 = vadd.f32 0.0, %v1603
        %v1605 = vpop.f32.mrf.mxu0
        %v1606 = vadd.f32 0.0, %v1605
        %1607 = vmatmul.bf16.gmra.mxu0 %v1398
        %v1608 = vpop.f32.mrf.mxu0
        %v1609 = vadd.f32 0.0, %v1608
        %v1610 = vpop.f32.mrf.mxu0
        %v1611 = vadd.f32 0.0, %v1610
        %1612 = vmatmul.bf16.gmra.mxu0 %v1399
        %v1613 = vpop.f32.mrf.mxu0
        %v1614 = vadd.f32 0.0, %v1613
        %v1615 = vpop.f32.mrf.mxu0
        %v1616 = vadd.f32 0.0, %v1615
        %1617 = vmatmul.bf16.gmra.mxu0 %v1400
        %v1618 = vpop.f32.mrf.mxu0
        %v1619 = vadd.f32 0.0, %v1618
        %v1620 = vpop.f32.mrf.mxu0
        %v1621 = vadd.f32 0.0, %v1620
        %1622 = vmatmul.bf16.gmra.mxu0 %v1401
        %v1623 = vpop.f32.mrf.mxu0
        %v1624 = vadd.f32 0.0, %v1623
        %v1625 = vpop.f32.mrf.mxu0
        %v1626 = vadd.f32 0.0, %v1625
        %1627 = vdwg.mxu0
        %1628 = vmatpush.bf16.msra.mxu0 %v1505
        %1629 = vmatpush.bf16.msra.mxu0 %v1502
        %1630 = vmatpush.bf16.msra.mxu0 %v1499
        %1631 = vmatpush.bf16.msra.mxu0 %v1496
        %1632 = vmatpush.bf16.msra.mxu0 %v1493
        %1633 = vmatpush.bf16.msra.mxu0 %v1490
        %1634 = vmatpush.bf16.msra.mxu0 %v1487
        %1635 = vmatpush.bf16.msra.mxu0 %v1484
        %1636 = vmatmul.bf16.gmra.mxu0 %v1394
        %v1637 = vpop.f32.mrf.mxu0
        %v1638 = vadd.f32 0.0, %v1637
        %v1639 = vpop.f32.mrf.mxu0
        %v1640 = vadd.f32 0.0, %v1639
        %1641 = vmatmul.bf16.gmra.mxu0 %v1395
        %v1642 = vpop.f32.mrf.mxu0
        %v1643 = vadd.f32 0.0, %v1642
        %v1644 = vpop.f32.mrf.mxu0
        %v1645 = vadd.f32 0.0, %v1644
        %1646 = vmatmul.bf16.gmra.mxu0 %v1396
        %v1647 = vpop.f32.mrf.mxu0
        %v1648 = vadd.f32 0.0, %v1647
        %v1649 = vpop.f32.mrf.mxu0
        %v1650 = vadd.f32 0.0, %v1649
        %1651 = vmatmul.bf16.gmra.mxu0 %v1397
        %v1652 = vpop.f32.mrf.mxu0
        %v1653 = vadd.f32 0.0, %v1652
        %v1654 = vpop.f32.mrf.mxu0
        %v1655 = vadd.f32 0.0, %v1654
        %1656 = vmatmul.bf16.gmra.mxu0 %v1398
        %v1657 = vpop.f32.mrf.mxu0
        %v1658 = vadd.f32 0.0, %v1657
        %v1659 = vpop.f32.mrf.mxu0
        %v1660 = vadd.f32 0.0, %v1659
        %1661 = vmatmul.bf16.gmra.mxu0 %v1399
        %v1662 = vpop.f32.mrf.mxu0
        %v1663 = vadd.f32 0.0, %v1662
        %v1664 = vpop.f32.mrf.mxu0
        %v1665 = vadd.f32 0.0, %v1664
        %1666 = vmatmul.bf16.gmra.mxu0 %v1400
        %v1667 = vpop.f32.mrf.mxu0
        %v1668 = vadd.f32 0.0, %v1667
        %v1669 = vpop.f32.mrf.mxu0
        %v1670 = vadd.f32 0.0, %v1669
        %1671 = vmatmul.bf16.gmra.mxu0 %v1401
        %v1672 = vpop.f32.mrf.mxu0
        %v1673 = vadd.f32 0.0, %v1672
        %v1674 = vpop.f32.mrf.mxu0
        %v1675 = vadd.f32 0.0, %v1674
        %1676 = vdwg.mxu0
        %v1677 = vpack.c.bf16 %v1542, %v1540
        %v1678 = vpack.c.bf16 %v1547, %v1545
        %v1679 = vpack.c.bf16 %v1552, %v1550
        %v1680 = vpack.c.bf16 %v1557, %v1555
        %v1681 = vpack.c.bf16 %v1562, %v1560
        %v1682 = vpack.c.bf16 %v1567, %v1565
        %v1683 = vpack.c.bf16 %v1572, %v1570
        %v1684 = vpack.c.bf16 %v1577, %v1575
        %v1685 = vpack.c.bf16 %v1591, %v1589
        %v1686 = vpack.c.bf16 %v1596, %v1594
        %v1687 = vpack.c.bf16 %v1601, %v1599
        %v1688 = vpack.c.bf16 %v1606, %v1604
        %v1689 = vpack.c.bf16 %v1611, %v1609
        %v1690 = vpack.c.bf16 %v1616, %v1614
        %v1691 = vpack.c.bf16 %v1621, %v1619
        %v1692 = vpack.c.bf16 %v1626, %v1624
        %vm1693 = vcmask 261120
        %v1695 = vsel %vm1693, %v1677, 0
        %v1698 = vsel %vm1693, %v1678, 0
        %v1701 = vsel %vm1693, %v1679, 0
        %v1704 = vsel %vm1693, %v1680, 0
        %v1707 = vsel %vm1693, %v1681, 0
        %v1710 = vsel %vm1693, %v1682, 0
        %v1713 = vsel %vm1693, %v1683, 0
        %v1716 = vsel %vm1693, %v1684, 0
        %v1719 = vsel %vm1693, %v1685, 0
        %v1722 = vsel %vm1693, %v1686, 0
        %v1725 = vsel %vm1693, %v1687, 0
        %v1728 = vsel %vm1693, %v1688, 0
        %v1731 = vsel %vm1693, %v1689, 0
        %v1734 = vsel %vm1693, %v1690, 0
        %v1737 = vsel %vm1693, %v1691, 0
        %v1740 = vsel %vm1693, %v1692, 0
        %1742 = vmatpush.bf16.xpose.msra.mxu0 %v1740
        %1743 = vmatpush.bf16.xpose.msra.mxu0 %v1737
        %1744 = vmatpush.bf16.xpose.msra.mxu0 %v1734
        %1745 = vmatpush.bf16.xpose.msra.mxu0 %v1731
        %1746 = vmatpush.bf16.xpose.msra.mxu0 %v1728
        %1747 = vmatpush.bf16.xpose.msra.mxu0 %v1725
        %1748 = vmatpush.bf16.xpose.msra.mxu0 %v1722
        %1749 = vmatpush.bf16.xpose.msra.mxu0 %v1719
        %1750 = vmatmul.bf16.gmra.mxu0 %v1695
        %v1751 = vpop.f32.mrf.mxu0
        %v1752 = vadd.f32 0.0, %v1751
        %v1753 = vpop.f32.mrf.mxu0
        %v1754 = vadd.f32 0.0, %v1753
        %1755 = vmatmul.bf16.gmra.mxu0 %v1698
        %v1756 = vpop.f32.mrf.mxu0
        %v1757 = vadd.f32 0.0, %v1756
        %v1758 = vpop.f32.mrf.mxu0
        %v1759 = vadd.f32 0.0, %v1758
        %1760 = vmatmul.bf16.gmra.mxu0 %v1701
        %v1761 = vpop.f32.mrf.mxu0
        %v1762 = vadd.f32 0.0, %v1761
        %v1763 = vpop.f32.mrf.mxu0
        %v1764 = vadd.f32 0.0, %v1763
        %1765 = vmatmul.bf16.gmra.mxu0 %v1704
        %v1766 = vpop.f32.mrf.mxu0
        %v1767 = vadd.f32 0.0, %v1766
        %v1768 = vpop.f32.mrf.mxu0
        %v1769 = vadd.f32 0.0, %v1768
        %1770 = vmatmul.bf16.gmra.mxu0 %v1707
        %v1771 = vpop.f32.mrf.mxu0
        %v1772 = vadd.f32 0.0, %v1771
        %v1773 = vpop.f32.mrf.mxu0
        %v1774 = vadd.f32 0.0, %v1773
        %1775 = vmatmul.bf16.gmra.mxu0 %v1710
        %v1776 = vpop.f32.mrf.mxu0
        %v1777 = vadd.f32 0.0, %v1776
        %v1778 = vpop.f32.mrf.mxu0
        %v1779 = vadd.f32 0.0, %v1778
        %1780 = vmatmul.bf16.gmra.mxu0 %v1713
        %v1781 = vpop.f32.mrf.mxu0
        %v1782 = vadd.f32 0.0, %v1781
        %v1783 = vpop.f32.mrf.mxu0
        %v1784 = vadd.f32 0.0, %v1783
        %1785 = vmatmul.bf16.gmra.mxu0 %v1716
        %v1786 = vpop.f32.mrf.mxu0
        %v1787 = vadd.f32 0.0, %v1786
        %v1788 = vpop.f32.mrf.mxu0
        %v1789 = vadd.f32 0.0, %v1788
        %1790 = vdwg.mxu0
        %v1791 = vmul.f32 %v1752, 0.17677669
        %v1792 = vmul.f32 %v1754, 0.17677669
        %v1793 = vmul.f32 %v1757, 0.17677669
        %v1794 = vmul.f32 %v1759, 0.17677669
        %v1795 = vmul.f32 %v1762, 0.17677669
        %v1796 = vmul.f32 %v1764, 0.17677669
        %v1797 = vmul.f32 %v1767, 0.17677669
        %v1798 = vmul.f32 %v1769, 0.17677669
        %v1799 = vmul.f32 %v1772, 0.17677669
        %v1800 = vmul.f32 %v1774, 0.17677669
        %v1801 = vmul.f32 %v1777, 0.17677669
        %v1802 = vmul.f32 %v1779, 0.17677669
        %v1803 = vmul.f32 %v1782, 0.17677669
        %v1804 = vmul.f32 %v1784, 0.17677669
        %v1805 = vmul.f32 %v1787, 0.17677669
        %v1806 = vmul.f32 %v1789, 0.17677669
        %v1807 = vsel %vm979, %v1791, -1e+30
        %v1808 = vsel %vm980, %v1792, -1e+30
        %v1809 = vsel %vm981, %v1793, -1e+30
        %v1810 = vsel %vm982, %v1794, -1e+30
        %v1811 = vsel %vm983, %v1795, -1e+30
        %v1812 = vsel %vm984, %v1796, -1e+30
        %v1813 = vsel %vm985, %v1797, -1e+30
        %v1814 = vsel %vm986, %v1798, -1e+30
        %v1815 = vsel %vm987, %v1799, -1e+30
        %v1816 = vsel %vm988, %v1800, -1e+30
        %v1817 = vsel %vm989, %v1801, -1e+30
        %v1818 = vsel %vm990, %v1802, -1e+30
        %v1819 = vsel %vm991, %v1803, -1e+30
        %v1820 = vsel %vm992, %v1804, -1e+30
        %v1821 = vsel %vm993, %v1805, -1e+30
        %v1822 = vsel %vm994, %v1806, -1e+30
        %1823 = vmax.xlane.f32.xlu0 %v1807
        %v1824 = vpop.xlane.xlu0 %1823
        %1825 = vmax.xlane.f32.xlu0 %v1808
        %v1826 = vpop.xlane.xlu0 %1825
        %1827 = vmax.xlane.f32.xlu0 %v1809
        %v1828 = vpop.xlane.xlu0 %1827
        %1829 = vmax.xlane.f32.xlu0 %v1810
        %v1830 = vpop.xlane.xlu0 %1829
        %1831 = vmax.xlane.f32.xlu0 %v1811
        %v1832 = vpop.xlane.xlu0 %1831
        %1833 = vmax.xlane.f32.xlu0 %v1812
        %v1834 = vpop.xlane.xlu0 %1833
        %1835 = vmax.xlane.f32.xlu0 %v1813
        %v1836 = vpop.xlane.xlu0 %1835
        %1837 = vmax.xlane.f32.xlu0 %v1814
        %v1838 = vpop.xlane.xlu0 %1837
        %1839 = vmax.xlane.f32.xlu0 %v1815
        %v1840 = vpop.xlane.xlu0 %1839
        %1841 = vmax.xlane.f32.xlu0 %v1816
        %v1842 = vpop.xlane.xlu0 %1841
        %1843 = vmax.xlane.f32.xlu0 %v1817
        %v1844 = vpop.xlane.xlu0 %1843
        %1845 = vmax.xlane.f32.xlu0 %v1818
        %v1846 = vpop.xlane.xlu0 %1845
        %1847 = vmax.xlane.f32.xlu0 %v1819
        %v1848 = vpop.xlane.xlu0 %1847
        %1849 = vmax.xlane.f32.xlu0 %v1820
        %v1850 = vpop.xlane.xlu0 %1849
        %1851 = vmax.xlane.f32.xlu0 %v1821
        %v1852 = vpop.xlane.xlu0 %1851
        %1853 = vmax.xlane.f32.xlu0 %v1822
        %v1854 = vpop.xlane.xlu0 %1853
        %v1855 = vsub.f32 %v1807, %v1824
        %v1856 = vsub.f32 %v1808, %v1826
        %v1857 = vsub.f32 %v1809, %v1828
        %v1858 = vsub.f32 %v1810, %v1830
        %v1859 = vsub.f32 %v1811, %v1832
        %v1860 = vsub.f32 %v1812, %v1834
        %v1861 = vsub.f32 %v1813, %v1836
        %v1862 = vsub.f32 %v1814, %v1838
        %v1863 = vsub.f32 %v1815, %v1840
        %v1864 = vsub.f32 %v1816, %v1842
        %v1865 = vsub.f32 %v1817, %v1844
        %v1866 = vsub.f32 %v1818, %v1846
        %v1867 = vsub.f32 %v1819, %v1848
        %v1868 = vsub.f32 %v1820, %v1850
        %v1869 = vsub.f32 %v1821, %v1852
        %v1870 = vsub.f32 %v1822, %v1854
        %v1871 = vmul.f32 %v1855, 1.442695
        %v1872 = vpow.pop %v1871
        %v1873 = vmul.f32 %v1856, 1.442695
        %v1874 = vpow.pop %v1873
        %v1875 = vmul.f32 %v1857, 1.442695
        %v1876 = vpow.pop %v1875
        %v1877 = vmul.f32 %v1858, 1.442695
        %v1878 = vpow.pop %v1877
        %v1879 = vmul.f32 %v1859, 1.442695
        %v1880 = vpow.pop %v1879
        %v1881 = vmul.f32 %v1860, 1.442695
        %v1882 = vpow.pop %v1881
        %v1883 = vmul.f32 %v1861, 1.442695
        %v1884 = vpow.pop %v1883
        %v1885 = vmul.f32 %v1862, 1.442695
        %v1886 = vpow.pop %v1885
        %v1887 = vmul.f32 %v1863, 1.442695
        %v1888 = vpow.pop %v1887
        %v1889 = vmul.f32 %v1864, 1.442695
        %v1890 = vpow.pop %v1889
        %v1891 = vmul.f32 %v1865, 1.442695
        %v1892 = vpow.pop %v1891
        %v1893 = vmul.f32 %v1866, 1.442695
        %v1894 = vpow.pop %v1893
        %v1895 = vmul.f32 %v1867, 1.442695
        %v1896 = vpow.pop %v1895
        %v1897 = vmul.f32 %v1868, 1.442695
        %v1898 = vpow.pop %v1897
        %v1899 = vmul.f32 %v1869, 1.442695
        %v1900 = vpow.pop %v1899
        %v1901 = vmul.f32 %v1870, 1.442695
        %v1902 = vpow.pop %v1901
        %1903 = vadd.xlane.f32.xlu0 %v1872
        %v1904 = vpop.xlane.xlu0 %1903
        %1905 = vadd.xlane.f32.xlu0 %v1874
        %v1906 = vpop.xlane.xlu0 %1905
        %1907 = vadd.xlane.f32.xlu0 %v1876
        %v1908 = vpop.xlane.xlu0 %1907
        %1909 = vadd.xlane.f32.xlu0 %v1878
        %v1910 = vpop.xlane.xlu0 %1909
        %1911 = vadd.xlane.f32.xlu0 %v1880
        %v1912 = vpop.xlane.xlu0 %1911
        %1913 = vadd.xlane.f32.xlu0 %v1882
        %v1914 = vpop.xlane.xlu0 %1913
        %1915 = vadd.xlane.f32.xlu0 %v1884
        %v1916 = vpop.xlane.xlu0 %1915
        %1917 = vadd.xlane.f32.xlu0 %v1886
        %v1918 = vpop.xlane.xlu0 %1917
        %1919 = vadd.xlane.f32.xlu0 %v1888
        %v1920 = vpop.xlane.xlu0 %1919
        %1921 = vadd.xlane.f32.xlu0 %v1890
        %v1922 = vpop.xlane.xlu0 %1921
        %1923 = vadd.xlane.f32.xlu0 %v1892
        %v1924 = vpop.xlane.xlu0 %1923
        %1925 = vadd.xlane.f32.xlu0 %v1894
        %v1926 = vpop.xlane.xlu0 %1925
        %1927 = vadd.xlane.f32.xlu0 %v1896
        %v1928 = vpop.xlane.xlu0 %1927
        %1929 = vadd.xlane.f32.xlu0 %v1898
        %v1930 = vpop.xlane.xlu0 %1929
        %1931 = vadd.xlane.f32.xlu0 %v1900
        %v1932 = vpop.xlane.xlu0 %1931
        %1933 = vadd.xlane.f32.xlu0 %v1902
        %v1934 = vpop.xlane.xlu0 %1933
        %v1935 = vpack.c.bf16 %v1874, %v1872
        %v1936 = vpack.c.bf16 %v1878, %v1876
        %v1937 = vpack.c.bf16 %v1882, %v1880
        %v1938 = vpack.c.bf16 %v1886, %v1884
        %v1939 = vpack.c.bf16 %v1890, %v1888
        %v1940 = vpack.c.bf16 %v1894, %v1892
        %v1941 = vpack.c.bf16 %v1898, %v1896
        %v1942 = vpack.c.bf16 %v1902, %v1900
        %v1943 = vpack.c.bf16 %v1640, %v1638
        %v1944 = vpack.c.bf16 %v1645, %v1643
        %v1945 = vpack.c.bf16 %v1650, %v1648
        %v1946 = vpack.c.bf16 %v1655, %v1653
        %v1947 = vpack.c.bf16 %v1660, %v1658
        %v1948 = vpack.c.bf16 %v1665, %v1663
        %v1949 = vpack.c.bf16 %v1670, %v1668
        %v1950 = vpack.c.bf16 %v1675, %v1673
        %1951 = vmatpush.bf16.msra.mxu0 %v1950
        %1952 = vmatpush.bf16.msra.mxu0 %v1949
        %1953 = vmatpush.bf16.msra.mxu0 %v1948
        %1954 = vmatpush.bf16.msra.mxu0 %v1947
        %1955 = vmatpush.bf16.msra.mxu0 %v1946
        %1956 = vmatpush.bf16.msra.mxu0 %v1945
        %1957 = vmatpush.bf16.msra.mxu0 %v1944
        %1958 = vmatpush.bf16.msra.mxu0 %v1943
        %1959 = vmatmul.bf16.gmra.mxu0 %v1935
        %v1960 = vpop.f32.mrf.mxu0
        %v1961 = vadd.f32 0.0, %v1960
        %v1962 = vpop.f32.mrf.mxu0
        %v1963 = vadd.f32 0.0, %v1962
        %1964 = vmatmul.bf16.gmra.mxu0 %v1936
        %v1965 = vpop.f32.mrf.mxu0
        %v1966 = vadd.f32 0.0, %v1965
        %v1967 = vpop.f32.mrf.mxu0
        %v1968 = vadd.f32 0.0, %v1967
        %1969 = vmatmul.bf16.gmra.mxu0 %v1937
        %v1970 = vpop.f32.mrf.mxu0
        %v1971 = vadd.f32 0.0, %v1970
        %v1972 = vpop.f32.mrf.mxu0
        %v1973 = vadd.f32 0.0, %v1972
        %1974 = vmatmul.bf16.gmra.mxu0 %v1938
        %v1975 = vpop.f32.mrf.mxu0
        %v1976 = vadd.f32 0.0, %v1975
        %v1977 = vpop.f32.mrf.mxu0
        %v1978 = vadd.f32 0.0, %v1977
        %1979 = vmatmul.bf16.gmra.mxu0 %v1939
        %v1980 = vpop.f32.mrf.mxu0
        %v1981 = vadd.f32 0.0, %v1980
        %v1982 = vpop.f32.mrf.mxu0
        %v1983 = vadd.f32 0.0, %v1982
        %1984 = vmatmul.bf16.gmra.mxu0 %v1940
        %v1985 = vpop.f32.mrf.mxu0
        %v1986 = vadd.f32 0.0, %v1985
        %v1987 = vpop.f32.mrf.mxu0
        %v1988 = vadd.f32 0.0, %v1987
        %1989 = vmatmul.bf16.gmra.mxu0 %v1941
        %v1990 = vpop.f32.mrf.mxu0
        %v1991 = vadd.f32 0.0, %v1990
        %v1992 = vpop.f32.mrf.mxu0
        %v1993 = vadd.f32 0.0, %v1992
        %1994 = vmatmul.bf16.gmra.mxu0 %v1942
        %v1995 = vpop.f32.mrf.mxu0
        %v1996 = vadd.f32 0.0, %v1995
        %v1997 = vpop.f32.mrf.mxu0
        %v1998 = vadd.f32 0.0, %v1997
        %1999 = vdwg.mxu0
        %v2000 = vrcp.pop %v1904
        %v2001 = vrcp.pop %v1906
        %v2002 = vrcp.pop %v1908
        %v2003 = vrcp.pop %v1910
        %v2004 = vrcp.pop %v1912
        %v2005 = vrcp.pop %v1914
        %v2006 = vrcp.pop %v1916
        %v2007 = vrcp.pop %v1918
        %v2008 = vrcp.pop %v1920
        %v2009 = vrcp.pop %v1922
        %v2010 = vrcp.pop %v1924
        %v2011 = vrcp.pop %v1926
        %v2012 = vrcp.pop %v1928
        %v2013 = vrcp.pop %v1930
        %v2014 = vrcp.pop %v1932
        %v2015 = vrcp.pop %v1934
        %v2016 = vmul.f32 %v1961, %v2000
        %v2017 = vmul.f32 %v1963, %v2001
        %v2018 = vmul.f32 %v1966, %v2002
        %v2019 = vmul.f32 %v1968, %v2003
        %v2020 = vmul.f32 %v1971, %v2004
        %v2021 = vmul.f32 %v1973, %v2005
        %v2022 = vmul.f32 %v1976, %v2006
        %v2023 = vmul.f32 %v1978, %v2007
        %v2024 = vmul.f32 %v1981, %v2008
        %v2025 = vmul.f32 %v1983, %v2009
        %v2026 = vmul.f32 %v1986, %v2010
        %v2027 = vmul.f32 %v1988, %v2011
        %v2028 = vmul.f32 %v1991, %v2012
        %v2029 = vmul.f32 %v1993, %v2013
        %v2030 = vmul.f32 %v1996, %v2014
        %v2031 = vmul.f32 %v1998, %v2015
        %2040 = vrot.lane.b32.xlu0 %v1677, 96
        %v2041 = vpop.permute.xlu0 %2040
        %2042 = vrot.lane.b32.xlu0 %v1678, 96
        %v2043 = vpop.permute.xlu0 %2042
        %2044 = vrot.lane.b32.xlu0 %v1679, 96
        %v2045 = vpop.permute.xlu0 %2044
        %2046 = vrot.lane.b32.xlu0 %v1680, 96
        %v2047 = vpop.permute.xlu0 %2046
        %2048 = vrot.lane.b32.xlu0 %v1681, 96
        %v2049 = vpop.permute.xlu0 %2048
        %2050 = vrot.lane.b32.xlu0 %v1682, 96
        %v2051 = vpop.permute.xlu0 %2050
        %2052 = vrot.lane.b32.xlu0 %v1683, 96
        %v2053 = vpop.permute.xlu0 %2052
        %2054 = vrot.lane.b32.xlu0 %v1684, 96
        %v2055 = vpop.permute.xlu0 %2054
        %2064 = vrot.lane.b32.xlu0 %v1685, 96
        %v2065 = vpop.permute.xlu0 %2064
        %2066 = vrot.lane.b32.xlu0 %v1686, 96
        %v2067 = vpop.permute.xlu0 %2066
        %2068 = vrot.lane.b32.xlu0 %v1687, 96
        %v2069 = vpop.permute.xlu0 %2068
        %2070 = vrot.lane.b32.xlu0 %v1688, 96
        %v2071 = vpop.permute.xlu0 %2070
        %2072 = vrot.lane.b32.xlu0 %v1689, 96
        %v2073 = vpop.permute.xlu0 %2072
        %2074 = vrot.lane.b32.xlu0 %v1690, 96
        %v2075 = vpop.permute.xlu0 %2074
        %2076 = vrot.lane.b32.xlu0 %v1691, 96
        %v2077 = vpop.permute.xlu0 %2076
        %2078 = vrot.lane.b32.xlu0 %v1692, 96
        %v2079 = vpop.permute.xlu0 %2078
        %v2081 = vsel %vm1693, %v2041, 0
        %v2084 = vsel %vm1693, %v2043, 0
        %v2087 = vsel %vm1693, %v2045, 0
        %v2090 = vsel %vm1693, %v2047, 0
        %v2093 = vsel %vm1693, %v2049, 0
        %v2096 = vsel %vm1693, %v2051, 0
        %v2099 = vsel %vm1693, %v2053, 0
        %v2102 = vsel %vm1693, %v2055, 0
        %v2105 = vsel %vm1693, %v2065, 0
        %v2108 = vsel %vm1693, %v2067, 0
        %v2111 = vsel %vm1693, %v2069, 0
        %v2114 = vsel %vm1693, %v2071, 0
        %v2117 = vsel %vm1693, %v2073, 0
        %v2120 = vsel %vm1693, %v2075, 0
        %v2123 = vsel %vm1693, %v2077, 0
        %v2126 = vsel %vm1693, %v2079, 0
        %2128 = vmatpush.bf16.xpose.msra.mxu0 %v2126
        %2129 = vmatpush.bf16.xpose.msra.mxu0 %v2123
        %2130 = vmatpush.bf16.xpose.msra.mxu0 %v2120
        %2131 = vmatpush.bf16.xpose.msra.mxu0 %v2117
        %2132 = vmatpush.bf16.xpose.msra.mxu0 %v2114
        %2133 = vmatpush.bf16.xpose.msra.mxu0 %v2111
        %2134 = vmatpush.bf16.xpose.msra.mxu0 %v2108
        %2135 = vmatpush.bf16.xpose.msra.mxu0 %v2105
        %2136 = vmatmul.bf16.gmra.mxu0 %v2081
        %v2137 = vpop.f32.mrf.mxu0
        %v2138 = vadd.f32 0.0, %v2137
        %v2139 = vpop.f32.mrf.mxu0
        %v2140 = vadd.f32 0.0, %v2139
        %2141 = vmatmul.bf16.gmra.mxu0 %v2084
        %v2142 = vpop.f32.mrf.mxu0
        %v2143 = vadd.f32 0.0, %v2142
        %v2144 = vpop.f32.mrf.mxu0
        %v2145 = vadd.f32 0.0, %v2144
        %2146 = vmatmul.bf16.gmra.mxu0 %v2087
        %v2147 = vpop.f32.mrf.mxu0
        %v2148 = vadd.f32 0.0, %v2147
        %v2149 = vpop.f32.mrf.mxu0
        %v2150 = vadd.f32 0.0, %v2149
        %2151 = vmatmul.bf16.gmra.mxu0 %v2090
        %v2152 = vpop.f32.mrf.mxu0
        %v2153 = vadd.f32 0.0, %v2152
        %v2154 = vpop.f32.mrf.mxu0
        %v2155 = vadd.f32 0.0, %v2154
        %2156 = vmatmul.bf16.gmra.mxu0 %v2093
        %v2157 = vpop.f32.mrf.mxu0
        %v2158 = vadd.f32 0.0, %v2157
        %v2159 = vpop.f32.mrf.mxu0
        %v2160 = vadd.f32 0.0, %v2159
        %2161 = vmatmul.bf16.gmra.mxu0 %v2096
        %v2162 = vpop.f32.mrf.mxu0
        %v2163 = vadd.f32 0.0, %v2162
        %v2164 = vpop.f32.mrf.mxu0
        %v2165 = vadd.f32 0.0, %v2164
        %2166 = vmatmul.bf16.gmra.mxu0 %v2099
        %v2167 = vpop.f32.mrf.mxu0
        %v2168 = vadd.f32 0.0, %v2167
        %v2169 = vpop.f32.mrf.mxu0
        %v2170 = vadd.f32 0.0, %v2169
        %2171 = vmatmul.bf16.gmra.mxu0 %v2102
        %v2172 = vpop.f32.mrf.mxu0
        %v2173 = vadd.f32 0.0, %v2172
        %v2174 = vpop.f32.mrf.mxu0
        %v2175 = vadd.f32 0.0, %v2174
        %2176 = vdwg.mxu0
        %v2177 = vmul.f32 %v2138, 0.17677669
        %v2178 = vmul.f32 %v2140, 0.17677669
        %v2179 = vmul.f32 %v2143, 0.17677669
        %v2180 = vmul.f32 %v2145, 0.17677669
        %v2181 = vmul.f32 %v2148, 0.17677669
        %v2182 = vmul.f32 %v2150, 0.17677669
        %v2183 = vmul.f32 %v2153, 0.17677669
        %v2184 = vmul.f32 %v2155, 0.17677669
        %v2185 = vmul.f32 %v2158, 0.17677669
        %v2186 = vmul.f32 %v2160, 0.17677669
        %v2187 = vmul.f32 %v2163, 0.17677669
        %v2188 = vmul.f32 %v2165, 0.17677669
        %v2189 = vmul.f32 %v2168, 0.17677669
        %v2190 = vmul.f32 %v2170, 0.17677669
        %v2191 = vmul.f32 %v2173, 0.17677669
        %v2192 = vmul.f32 %v2175, 0.17677669
        %v2193 = vsel %vm979, %v2177, -1e+30
        %v2194 = vsel %vm980, %v2178, -1e+30
        %v2195 = vsel %vm981, %v2179, -1e+30
        %v2196 = vsel %vm982, %v2180, -1e+30
        %v2197 = vsel %vm983, %v2181, -1e+30
        %v2198 = vsel %vm984, %v2182, -1e+30
        %v2199 = vsel %vm985, %v2183, -1e+30
        %v2200 = vsel %vm986, %v2184, -1e+30
        %v2201 = vsel %vm987, %v2185, -1e+30
        %v2202 = vsel %vm988, %v2186, -1e+30
        %v2203 = vsel %vm989, %v2187, -1e+30
        %v2204 = vsel %vm990, %v2188, -1e+30
        %v2205 = vsel %vm991, %v2189, -1e+30
        %v2206 = vsel %vm992, %v2190, -1e+30
        %v2207 = vsel %vm993, %v2191, -1e+30
        %v2208 = vsel %vm994, %v2192, -1e+30
        %2209 = vmax.xlane.f32.xlu0 %v2193
        %v2210 = vpop.xlane.xlu0 %2209
        %2211 = vmax.xlane.f32.xlu0 %v2194
        %v2212 = vpop.xlane.xlu0 %2211
        %2213 = vmax.xlane.f32.xlu0 %v2195
        %v2214 = vpop.xlane.xlu0 %2213
        %2215 = vmax.xlane.f32.xlu0 %v2196
        %v2216 = vpop.xlane.xlu0 %2215
        %2217 = vmax.xlane.f32.xlu0 %v2197
        %v2218 = vpop.xlane.xlu0 %2217
        %2219 = vmax.xlane.f32.xlu0 %v2198
        %v2220 = vpop.xlane.xlu0 %2219
        %2221 = vmax.xlane.f32.xlu0 %v2199
        %v2222 = vpop.xlane.xlu0 %2221
        %2223 = vmax.xlane.f32.xlu0 %v2200
        %v2224 = vpop.xlane.xlu0 %2223
        %2225 = vmax.xlane.f32.xlu0 %v2201
        %v2226 = vpop.xlane.xlu0 %2225
        %2227 = vmax.xlane.f32.xlu0 %v2202
        %v2228 = vpop.xlane.xlu0 %2227
        %2229 = vmax.xlane.f32.xlu0 %v2203
        %v2230 = vpop.xlane.xlu0 %2229
        %2231 = vmax.xlane.f32.xlu0 %v2204
        %v2232 = vpop.xlane.xlu0 %2231
        %2233 = vmax.xlane.f32.xlu0 %v2205
        %v2234 = vpop.xlane.xlu0 %2233
        %2235 = vmax.xlane.f32.xlu0 %v2206
        %v2236 = vpop.xlane.xlu0 %2235
        %2237 = vmax.xlane.f32.xlu0 %v2207
        %v2238 = vpop.xlane.xlu0 %2237
        %2239 = vmax.xlane.f32.xlu0 %v2208
        %v2240 = vpop.xlane.xlu0 %2239
        %v2241 = vsub.f32 %v2193, %v2210
        %v2242 = vsub.f32 %v2194, %v2212
        %v2243 = vsub.f32 %v2195, %v2214
        %v2244 = vsub.f32 %v2196, %v2216
        %v2245 = vsub.f32 %v2197, %v2218
        %v2246 = vsub.f32 %v2198, %v2220
        %v2247 = vsub.f32 %v2199, %v2222
        %v2248 = vsub.f32 %v2200, %v2224
        %v2249 = vsub.f32 %v2201, %v2226
        %v2250 = vsub.f32 %v2202, %v2228
        %v2251 = vsub.f32 %v2203, %v2230
        %v2252 = vsub.f32 %v2204, %v2232
        %v2253 = vsub.f32 %v2205, %v2234
        %v2254 = vsub.f32 %v2206, %v2236
        %v2255 = vsub.f32 %v2207, %v2238
        %v2256 = vsub.f32 %v2208, %v2240
        %v2257 = vmul.f32 %v2241, 1.442695
        %v2258 = vpow.pop %v2257
        %v2259 = vmul.f32 %v2242, 1.442695
        %v2260 = vpow.pop %v2259
        %v2261 = vmul.f32 %v2243, 1.442695
        %v2262 = vpow.pop %v2261
        %v2263 = vmul.f32 %v2244, 1.442695
        %v2264 = vpow.pop %v2263
        %v2265 = vmul.f32 %v2245, 1.442695
        %v2266 = vpow.pop %v2265
        %v2267 = vmul.f32 %v2246, 1.442695
        %v2268 = vpow.pop %v2267
        %v2269 = vmul.f32 %v2247, 1.442695
        %v2270 = vpow.pop %v2269
        %v2271 = vmul.f32 %v2248, 1.442695
        %v2272 = vpow.pop %v2271
        %v2273 = vmul.f32 %v2249, 1.442695
        %v2274 = vpow.pop %v2273
        %v2275 = vmul.f32 %v2250, 1.442695
        %v2276 = vpow.pop %v2275
        %v2277 = vmul.f32 %v2251, 1.442695
        %v2278 = vpow.pop %v2277
        %v2279 = vmul.f32 %v2252, 1.442695
        %v2280 = vpow.pop %v2279
        %v2281 = vmul.f32 %v2253, 1.442695
        %v2282 = vpow.pop %v2281
        %v2283 = vmul.f32 %v2254, 1.442695
        %v2284 = vpow.pop %v2283
        %v2285 = vmul.f32 %v2255, 1.442695
        %v2286 = vpow.pop %v2285
        %v2287 = vmul.f32 %v2256, 1.442695
        %v2288 = vpow.pop %v2287
        %2289 = vadd.xlane.f32.xlu0 %v2258
        %v2290 = vpop.xlane.xlu0 %2289
        %2291 = vadd.xlane.f32.xlu0 %v2260
        %v2292 = vpop.xlane.xlu0 %2291
        %2293 = vadd.xlane.f32.xlu0 %v2262
        %v2294 = vpop.xlane.xlu0 %2293
        %2295 = vadd.xlane.f32.xlu0 %v2264
        %v2296 = vpop.xlane.xlu0 %2295
        %2297 = vadd.xlane.f32.xlu0 %v2266
        %v2298 = vpop.xlane.xlu0 %2297
        %2299 = vadd.xlane.f32.xlu0 %v2268
        %v2300 = vpop.xlane.xlu0 %2299
        %2301 = vadd.xlane.f32.xlu0 %v2270
        %v2302 = vpop.xlane.xlu0 %2301
        %2303 = vadd.xlane.f32.xlu0 %v2272
        %v2304 = vpop.xlane.xlu0 %2303
        %2305 = vadd.xlane.f32.xlu0 %v2274
        %v2306 = vpop.xlane.xlu0 %2305
        %2307 = vadd.xlane.f32.xlu0 %v2276
        %v2308 = vpop.xlane.xlu0 %2307
        %2309 = vadd.xlane.f32.xlu0 %v2278
        %v2310 = vpop.xlane.xlu0 %2309
        %2311 = vadd.xlane.f32.xlu0 %v2280
        %v2312 = vpop.xlane.xlu0 %2311
        %2313 = vadd.xlane.f32.xlu0 %v2282
        %v2314 = vpop.xlane.xlu0 %2313
        %2315 = vadd.xlane.f32.xlu0 %v2284
        %v2316 = vpop.xlane.xlu0 %2315
        %2317 = vadd.xlane.f32.xlu0 %v2286
        %v2318 = vpop.xlane.xlu0 %2317
        %2319 = vadd.xlane.f32.xlu0 %v2288
        %v2320 = vpop.xlane.xlu0 %2319
        %v2321 = vpack.c.bf16 %v2260, %v2258
        %v2322 = vpack.c.bf16 %v2264, %v2262
        %v2323 = vpack.c.bf16 %v2268, %v2266
        %v2324 = vpack.c.bf16 %v2272, %v2270
        %v2325 = vpack.c.bf16 %v2276, %v2274
        %v2326 = vpack.c.bf16 %v2280, %v2278
        %v2327 = vpack.c.bf16 %v2284, %v2282
        %v2328 = vpack.c.bf16 %v2288, %v2286
        %2337 = vrot.lane.b32.xlu0 %v1943, 96
        %v2338 = vpop.permute.xlu0 %2337
        %2339 = vrot.lane.b32.xlu0 %v1944, 96
        %v2340 = vpop.permute.xlu0 %2339
        %2341 = vrot.lane.b32.xlu0 %v1945, 96
        %v2342 = vpop.permute.xlu0 %2341
        %2343 = vrot.lane.b32.xlu0 %v1946, 96
        %v2344 = vpop.permute.xlu0 %2343
        %2345 = vrot.lane.b32.xlu0 %v1947, 96
        %v2346 = vpop.permute.xlu0 %2345
        %2347 = vrot.lane.b32.xlu0 %v1948, 96
        %v2348 = vpop.permute.xlu0 %2347
        %2349 = vrot.lane.b32.xlu0 %v1949, 96
        %v2350 = vpop.permute.xlu0 %2349
        %2351 = vrot.lane.b32.xlu0 %v1950, 96
        %v2352 = vpop.permute.xlu0 %2351
        %2361 = vmatpush.bf16.msra.mxu0 %v2352
        %2362 = vmatpush.bf16.msra.mxu0 %v2350
        %2363 = vmatpush.bf16.msra.mxu0 %v2348
        %2364 = vmatpush.bf16.msra.mxu0 %v2346
        %2365 = vmatpush.bf16.msra.mxu0 %v2344
        %2366 = vmatpush.bf16.msra.mxu0 %v2342
        %2367 = vmatpush.bf16.msra.mxu0 %v2340
        %2368 = vmatpush.bf16.msra.mxu0 %v2338
        %2369 = vmatmul.bf16.gmra.mxu0 %v2321
        %v2370 = vpop.f32.mrf.mxu0
        %v2371 = vadd.f32 0.0, %v2370
        %v2372 = vpop.f32.mrf.mxu0
        %v2373 = vadd.f32 0.0, %v2372
        %2374 = vmatmul.bf16.gmra.mxu0 %v2322
        %v2375 = vpop.f32.mrf.mxu0
        %v2376 = vadd.f32 0.0, %v2375
        %v2377 = vpop.f32.mrf.mxu0
        %v2378 = vadd.f32 0.0, %v2377
        %2379 = vmatmul.bf16.gmra.mxu0 %v2323
        %v2380 = vpop.f32.mrf.mxu0
        %v2381 = vadd.f32 0.0, %v2380
        %v2382 = vpop.f32.mrf.mxu0
        %v2383 = vadd.f32 0.0, %v2382
        %2384 = vmatmul.bf16.gmra.mxu0 %v2324
        %v2385 = vpop.f32.mrf.mxu0
        %v2386 = vadd.f32 0.0, %v2385
        %v2387 = vpop.f32.mrf.mxu0
        %v2388 = vadd.f32 0.0, %v2387
        %2389 = vmatmul.bf16.gmra.mxu0 %v2325
        %v2390 = vpop.f32.mrf.mxu0
        %v2391 = vadd.f32 0.0, %v2390
        %v2392 = vpop.f32.mrf.mxu0
        %v2393 = vadd.f32 0.0, %v2392
        %2394 = vmatmul.bf16.gmra.mxu0 %v2326
        %v2395 = vpop.f32.mrf.mxu0
        %v2396 = vadd.f32 0.0, %v2395
        %v2397 = vpop.f32.mrf.mxu0
        %v2398 = vadd.f32 0.0, %v2397
        %2399 = vmatmul.bf16.gmra.mxu0 %v2327
        %v2400 = vpop.f32.mrf.mxu0
        %v2401 = vadd.f32 0.0, %v2400
        %v2402 = vpop.f32.mrf.mxu0
        %v2403 = vadd.f32 0.0, %v2402
        %2404 = vmatmul.bf16.gmra.mxu0 %v2328
        %v2405 = vpop.f32.mrf.mxu0
        %v2406 = vadd.f32 0.0, %v2405
        %v2407 = vpop.f32.mrf.mxu0
        %v2408 = vadd.f32 0.0, %v2407
        %2409 = vdwg.mxu0
        %v2410 = vrcp.pop %v2290
        %v2411 = vrcp.pop %v2292
        %v2412 = vrcp.pop %v2294
        %v2413 = vrcp.pop %v2296
        %v2414 = vrcp.pop %v2298
        %v2415 = vrcp.pop %v2300
        %v2416 = vrcp.pop %v2302
        %v2417 = vrcp.pop %v2304
        %v2418 = vrcp.pop %v2306
        %v2419 = vrcp.pop %v2308
        %v2420 = vrcp.pop %v2310
        %v2421 = vrcp.pop %v2312
        %v2422 = vrcp.pop %v2314
        %v2423 = vrcp.pop %v2316
        %v2424 = vrcp.pop %v2318
        %v2425 = vrcp.pop %v2320
        %v2426 = vmul.f32 %v2371, %v2410
        %v2427 = vmul.f32 %v2373, %v2411
        %v2428 = vmul.f32 %v2376, %v2412
        %v2429 = vmul.f32 %v2378, %v2413
        %v2430 = vmul.f32 %v2381, %v2414
        %v2431 = vmul.f32 %v2383, %v2415
        %v2432 = vmul.f32 %v2386, %v2416
        %v2433 = vmul.f32 %v2388, %v2417
        %v2434 = vmul.f32 %v2391, %v2418
        %v2435 = vmul.f32 %v2393, %v2419
        %v2436 = vmul.f32 %v2396, %v2420
        %v2437 = vmul.f32 %v2398, %v2421
        %v2438 = vmul.f32 %v2401, %v2422
        %v2439 = vmul.f32 %v2403, %v2423
        %v2440 = vmul.f32 %v2406, %v2424
        %v2441 = vmul.f32 %v2408, %v2425
        %2442 = vrot.lane.b32.xlu0 %v1677, 64
        %v2443 = vpop.permute.xlu0 %2442
        %2444 = vrot.lane.b32.xlu0 %v1678, 64
        %v2445 = vpop.permute.xlu0 %2444
        %2446 = vrot.lane.b32.xlu0 %v1679, 64
        %v2447 = vpop.permute.xlu0 %2446
        %2448 = vrot.lane.b32.xlu0 %v1680, 64
        %v2449 = vpop.permute.xlu0 %2448
        %2450 = vrot.lane.b32.xlu0 %v1681, 64
        %v2451 = vpop.permute.xlu0 %2450
        %2452 = vrot.lane.b32.xlu0 %v1682, 64
        %v2453 = vpop.permute.xlu0 %2452
        %2454 = vrot.lane.b32.xlu0 %v1683, 64
        %v2455 = vpop.permute.xlu0 %2454
        %2456 = vrot.lane.b32.xlu0 %v1684, 64
        %v2457 = vpop.permute.xlu0 %2456
        %2458 = vrot.lane.b32.xlu0 %v1685, 64
        %v2459 = vpop.permute.xlu0 %2458
        %2460 = vrot.lane.b32.xlu0 %v1686, 64
        %v2461 = vpop.permute.xlu0 %2460
        %2462 = vrot.lane.b32.xlu0 %v1687, 64
        %v2463 = vpop.permute.xlu0 %2462
        %2464 = vrot.lane.b32.xlu0 %v1688, 64
        %v2465 = vpop.permute.xlu0 %2464
        %2466 = vrot.lane.b32.xlu0 %v1689, 64
        %v2467 = vpop.permute.xlu0 %2466
        %2468 = vrot.lane.b32.xlu0 %v1690, 64
        %v2469 = vpop.permute.xlu0 %2468
        %2470 = vrot.lane.b32.xlu0 %v1691, 64
        %v2471 = vpop.permute.xlu0 %2470
        %2472 = vrot.lane.b32.xlu0 %v1692, 64
        %v2473 = vpop.permute.xlu0 %2472
        %v2475 = vsel %vm1693, %v2443, 0
        %v2478 = vsel %vm1693, %v2445, 0
        %v2481 = vsel %vm1693, %v2447, 0
        %v2484 = vsel %vm1693, %v2449, 0
        %v2487 = vsel %vm1693, %v2451, 0
        %v2490 = vsel %vm1693, %v2453, 0
        %v2493 = vsel %vm1693, %v2455, 0
        %v2496 = vsel %vm1693, %v2457, 0
        %v2499 = vsel %vm1693, %v2459, 0
        %v2502 = vsel %vm1693, %v2461, 0
        %v2505 = vsel %vm1693, %v2463, 0
        %v2508 = vsel %vm1693, %v2465, 0
        %v2511 = vsel %vm1693, %v2467, 0
        %v2514 = vsel %vm1693, %v2469, 0
        %v2517 = vsel %vm1693, %v2471, 0
        %v2520 = vsel %vm1693, %v2473, 0
        %2522 = vmatpush.bf16.xpose.msra.mxu0 %v2520
        %2523 = vmatpush.bf16.xpose.msra.mxu0 %v2517
        %2524 = vmatpush.bf16.xpose.msra.mxu0 %v2514
        %2525 = vmatpush.bf16.xpose.msra.mxu0 %v2511
        %2526 = vmatpush.bf16.xpose.msra.mxu0 %v2508
        %2527 = vmatpush.bf16.xpose.msra.mxu0 %v2505
        %2528 = vmatpush.bf16.xpose.msra.mxu0 %v2502
        %2529 = vmatpush.bf16.xpose.msra.mxu0 %v2499
        %2530 = vmatmul.bf16.gmra.mxu0 %v2475
        %v2531 = vpop.f32.mrf.mxu0
        %v2532 = vadd.f32 0.0, %v2531
        %v2533 = vpop.f32.mrf.mxu0
        %v2534 = vadd.f32 0.0, %v2533
        %2535 = vmatmul.bf16.gmra.mxu0 %v2478
        %v2536 = vpop.f32.mrf.mxu0
        %v2537 = vadd.f32 0.0, %v2536
        %v2538 = vpop.f32.mrf.mxu0
        %v2539 = vadd.f32 0.0, %v2538
        %2540 = vmatmul.bf16.gmra.mxu0 %v2481
        %v2541 = vpop.f32.mrf.mxu0
        %v2542 = vadd.f32 0.0, %v2541
        %v2543 = vpop.f32.mrf.mxu0
        %v2544 = vadd.f32 0.0, %v2543
        %2545 = vmatmul.bf16.gmra.mxu0 %v2484
        %v2546 = vpop.f32.mrf.mxu0
        %v2547 = vadd.f32 0.0, %v2546
        %v2548 = vpop.f32.mrf.mxu0
        %v2549 = vadd.f32 0.0, %v2548
        %2550 = vmatmul.bf16.gmra.mxu0 %v2487
        %v2551 = vpop.f32.mrf.mxu0
        %v2552 = vadd.f32 0.0, %v2551
        %v2553 = vpop.f32.mrf.mxu0
        %v2554 = vadd.f32 0.0, %v2553
        %2555 = vmatmul.bf16.gmra.mxu0 %v2490
        %v2556 = vpop.f32.mrf.mxu0
        %v2557 = vadd.f32 0.0, %v2556
        %v2558 = vpop.f32.mrf.mxu0
        %v2559 = vadd.f32 0.0, %v2558
        %2560 = vmatmul.bf16.gmra.mxu0 %v2493
        %v2561 = vpop.f32.mrf.mxu0
        %v2562 = vadd.f32 0.0, %v2561
        %v2563 = vpop.f32.mrf.mxu0
        %v2564 = vadd.f32 0.0, %v2563
        %2565 = vmatmul.bf16.gmra.mxu0 %v2496
        %v2566 = vpop.f32.mrf.mxu0
        %v2567 = vadd.f32 0.0, %v2566
        %v2568 = vpop.f32.mrf.mxu0
        %v2569 = vadd.f32 0.0, %v2568
        %2570 = vdwg.mxu0
        %v2571 = vmul.f32 %v2532, 0.17677669
        %v2572 = vmul.f32 %v2534, 0.17677669
        %v2573 = vmul.f32 %v2537, 0.17677669
        %v2574 = vmul.f32 %v2539, 0.17677669
        %v2575 = vmul.f32 %v2542, 0.17677669
        %v2576 = vmul.f32 %v2544, 0.17677669
        %v2577 = vmul.f32 %v2547, 0.17677669
        %v2578 = vmul.f32 %v2549, 0.17677669
        %v2579 = vmul.f32 %v2552, 0.17677669
        %v2580 = vmul.f32 %v2554, 0.17677669
        %v2581 = vmul.f32 %v2557, 0.17677669
        %v2582 = vmul.f32 %v2559, 0.17677669
        %v2583 = vmul.f32 %v2562, 0.17677669
        %v2584 = vmul.f32 %v2564, 0.17677669
        %v2585 = vmul.f32 %v2567, 0.17677669
        %v2586 = vmul.f32 %v2569, 0.17677669
        %v2587 = vsel %vm979, %v2571, -1e+30
        %v2588 = vsel %vm980, %v2572, -1e+30
        %v2589 = vsel %vm981, %v2573, -1e+30
        %v2590 = vsel %vm982, %v2574, -1e+30
        %v2591 = vsel %vm983, %v2575, -1e+30
        %v2592 = vsel %vm984, %v2576, -1e+30
        %v2593 = vsel %vm985, %v2577, -1e+30
        %v2594 = vsel %vm986, %v2578, -1e+30
        %v2595 = vsel %vm987, %v2579, -1e+30
        %v2596 = vsel %vm988, %v2580, -1e+30
        %v2597 = vsel %vm989, %v2581, -1e+30
        %v2598 = vsel %vm990, %v2582, -1e+30
        %v2599 = vsel %vm991, %v2583, -1e+30
        %v2600 = vsel %vm992, %v2584, -1e+30
        %v2601 = vsel %vm993, %v2585, -1e+30
        %v2602 = vsel %vm994, %v2586, -1e+30
        %2603 = vmax.xlane.f32.xlu0 %v2587
        %v2604 = vpop.xlane.xlu0 %2603
        %2605 = vmax.xlane.f32.xlu0 %v2588
        %v2606 = vpop.xlane.xlu0 %2605
        %2607 = vmax.xlane.f32.xlu0 %v2589
        %v2608 = vpop.xlane.xlu0 %2607
        %2609 = vmax.xlane.f32.xlu0 %v2590
        %v2610 = vpop.xlane.xlu0 %2609
        %2611 = vmax.xlane.f32.xlu0 %v2591
        %v2612 = vpop.xlane.xlu0 %2611
        %2613 = vmax.xlane.f32.xlu0 %v2592
        %v2614 = vpop.xlane.xlu0 %2613
        %2615 = vmax.xlane.f32.xlu0 %v2593
        %v2616 = vpop.xlane.xlu0 %2615
        %2617 = vmax.xlane.f32.xlu0 %v2594
        %v2618 = vpop.xlane.xlu0 %2617
        %2619 = vmax.xlane.f32.xlu0 %v2595
        %v2620 = vpop.xlane.xlu0 %2619
        %2621 = vmax.xlane.f32.xlu0 %v2596
        %v2622 = vpop.xlane.xlu0 %2621
        %2623 = vmax.xlane.f32.xlu0 %v2597
        %v2624 = vpop.xlane.xlu0 %2623
        %2625 = vmax.xlane.f32.xlu0 %v2598
        %v2626 = vpop.xlane.xlu0 %2625
        %2627 = vmax.xlane.f32.xlu0 %v2599
        %v2628 = vpop.xlane.xlu0 %2627
        %2629 = vmax.xlane.f32.xlu0 %v2600
        %v2630 = vpop.xlane.xlu0 %2629
        %2631 = vmax.xlane.f32.xlu0 %v2601
        %v2632 = vpop.xlane.xlu0 %2631
        %2633 = vmax.xlane.f32.xlu0 %v2602
        %v2634 = vpop.xlane.xlu0 %2633
        %v2635 = vsub.f32 %v2587, %v2604
        %v2636 = vsub.f32 %v2588, %v2606
        %v2637 = vsub.f32 %v2589, %v2608
        %v2638 = vsub.f32 %v2590, %v2610
        %v2639 = vsub.f32 %v2591, %v2612
        %v2640 = vsub.f32 %v2592, %v2614
        %v2641 = vsub.f32 %v2593, %v2616
        %v2642 = vsub.f32 %v2594, %v2618
        %v2643 = vsub.f32 %v2595, %v2620
        %v2644 = vsub.f32 %v2596, %v2622
        %v2645 = vsub.f32 %v2597, %v2624
        %v2646 = vsub.f32 %v2598, %v2626
        %v2647 = vsub.f32 %v2599, %v2628
        %v2648 = vsub.f32 %v2600, %v2630
        %v2649 = vsub.f32 %v2601, %v2632
        %v2650 = vsub.f32 %v2602, %v2634
        %v2651 = vmul.f32 %v2635, 1.442695
        %v2652 = vpow.pop %v2651
        %v2653 = vmul.f32 %v2636, 1.442695
        %v2654 = vpow.pop %v2653
        %v2655 = vmul.f32 %v2637, 1.442695
        %v2656 = vpow.pop %v2655
        %v2657 = vmul.f32 %v2638, 1.442695
        %v2658 = vpow.pop %v2657
        %v2659 = vmul.f32 %v2639, 1.442695
        %v2660 = vpow.pop %v2659
        %v2661 = vmul.f32 %v2640, 1.442695
        %v2662 = vpow.pop %v2661
        %v2663 = vmul.f32 %v2641, 1.442695
        %v2664 = vpow.pop %v2663
        %v2665 = vmul.f32 %v2642, 1.442695
        %v2666 = vpow.pop %v2665
        %v2667 = vmul.f32 %v2643, 1.442695
        %v2668 = vpow.pop %v2667
        %v2669 = vmul.f32 %v2644, 1.442695
        %v2670 = vpow.pop %v2669
        %v2671 = vmul.f32 %v2645, 1.442695
        %v2672 = vpow.pop %v2671
        %v2673 = vmul.f32 %v2646, 1.442695
        %v2674 = vpow.pop %v2673
        %v2675 = vmul.f32 %v2647, 1.442695
        %v2676 = vpow.pop %v2675
        %v2677 = vmul.f32 %v2648, 1.442695
        %v2678 = vpow.pop %v2677
        %v2679 = vmul.f32 %v2649, 1.442695
        %v2680 = vpow.pop %v2679
        %v2681 = vmul.f32 %v2650, 1.442695
        %v2682 = vpow.pop %v2681
        %2683 = vadd.xlane.f32.xlu0 %v2652
        %v2684 = vpop.xlane.xlu0 %2683
        %2685 = vadd.xlane.f32.xlu0 %v2654
        %v2686 = vpop.xlane.xlu0 %2685
        %2687 = vadd.xlane.f32.xlu0 %v2656
        %v2688 = vpop.xlane.xlu0 %2687
        %2689 = vadd.xlane.f32.xlu0 %v2658
        %v2690 = vpop.xlane.xlu0 %2689
        %2691 = vadd.xlane.f32.xlu0 %v2660
        %v2692 = vpop.xlane.xlu0 %2691
        %2693 = vadd.xlane.f32.xlu0 %v2662
        %v2694 = vpop.xlane.xlu0 %2693
        %2695 = vadd.xlane.f32.xlu0 %v2664
        %v2696 = vpop.xlane.xlu0 %2695
        %2697 = vadd.xlane.f32.xlu0 %v2666
        %v2698 = vpop.xlane.xlu0 %2697
        %2699 = vadd.xlane.f32.xlu0 %v2668
        %v2700 = vpop.xlane.xlu0 %2699
        %2701 = vadd.xlane.f32.xlu0 %v2670
        %v2702 = vpop.xlane.xlu0 %2701
        %2703 = vadd.xlane.f32.xlu0 %v2672
        %v2704 = vpop.xlane.xlu0 %2703
        %2705 = vadd.xlane.f32.xlu0 %v2674
        %v2706 = vpop.xlane.xlu0 %2705
        %2707 = vadd.xlane.f32.xlu0 %v2676
        %v2708 = vpop.xlane.xlu0 %2707
        %2709 = vadd.xlane.f32.xlu0 %v2678
        %v2710 = vpop.xlane.xlu0 %2709
        %2711 = vadd.xlane.f32.xlu0 %v2680
        %v2712 = vpop.xlane.xlu0 %2711
        %2713 = vadd.xlane.f32.xlu0 %v2682
        %v2714 = vpop.xlane.xlu0 %2713
        %v2715 = vpack.c.bf16 %v2654, %v2652
        %v2716 = vpack.c.bf16 %v2658, %v2656
        %v2717 = vpack.c.bf16 %v2662, %v2660
        %v2718 = vpack.c.bf16 %v2666, %v2664
        %v2719 = vpack.c.bf16 %v2670, %v2668
        %v2720 = vpack.c.bf16 %v2674, %v2672
        %v2721 = vpack.c.bf16 %v2678, %v2676
        %v2722 = vpack.c.bf16 %v2682, %v2680
        %2723 = vrot.lane.b32.xlu0 %v1943, 64
        %v2724 = vpop.permute.xlu0 %2723
        %2725 = vrot.lane.b32.xlu0 %v1944, 64
        %v2726 = vpop.permute.xlu0 %2725
        %2727 = vrot.lane.b32.xlu0 %v1945, 64
        %v2728 = vpop.permute.xlu0 %2727
        %2729 = vrot.lane.b32.xlu0 %v1946, 64
        %v2730 = vpop.permute.xlu0 %2729
        %2731 = vrot.lane.b32.xlu0 %v1947, 64
        %v2732 = vpop.permute.xlu0 %2731
        %2733 = vrot.lane.b32.xlu0 %v1948, 64
        %v2734 = vpop.permute.xlu0 %2733
        %2735 = vrot.lane.b32.xlu0 %v1949, 64
        %v2736 = vpop.permute.xlu0 %2735
        %2737 = vrot.lane.b32.xlu0 %v1950, 64
        %v2738 = vpop.permute.xlu0 %2737
        %2747 = vmatpush.bf16.msra.mxu0 %v2738
        %2748 = vmatpush.bf16.msra.mxu0 %v2736
        %2749 = vmatpush.bf16.msra.mxu0 %v2734
        %2750 = vmatpush.bf16.msra.mxu0 %v2732
        %2751 = vmatpush.bf16.msra.mxu0 %v2730
        %2752 = vmatpush.bf16.msra.mxu0 %v2728
        %2753 = vmatpush.bf16.msra.mxu0 %v2726
        %2754 = vmatpush.bf16.msra.mxu0 %v2724
        %2755 = vmatmul.bf16.gmra.mxu0 %v2715
        %v2756 = vpop.f32.mrf.mxu0
        %v2757 = vadd.f32 0.0, %v2756
        %v2758 = vpop.f32.mrf.mxu0
        %v2759 = vadd.f32 0.0, %v2758
        %2760 = vmatmul.bf16.gmra.mxu0 %v2716
        %v2761 = vpop.f32.mrf.mxu0
        %v2762 = vadd.f32 0.0, %v2761
        %v2763 = vpop.f32.mrf.mxu0
        %v2764 = vadd.f32 0.0, %v2763
        %2765 = vmatmul.bf16.gmra.mxu0 %v2717
        %v2766 = vpop.f32.mrf.mxu0
        %v2767 = vadd.f32 0.0, %v2766
        %v2768 = vpop.f32.mrf.mxu0
        %v2769 = vadd.f32 0.0, %v2768
        %2770 = vmatmul.bf16.gmra.mxu0 %v2718
        %v2771 = vpop.f32.mrf.mxu0
        %v2772 = vadd.f32 0.0, %v2771
        %v2773 = vpop.f32.mrf.mxu0
        %v2774 = vadd.f32 0.0, %v2773
        %2775 = vmatmul.bf16.gmra.mxu0 %v2719
        %v2776 = vpop.f32.mrf.mxu0
        %v2777 = vadd.f32 0.0, %v2776
        %v2778 = vpop.f32.mrf.mxu0
        %v2779 = vadd.f32 0.0, %v2778
        %2780 = vmatmul.bf16.gmra.mxu0 %v2720
        %v2781 = vpop.f32.mrf.mxu0
        %v2782 = vadd.f32 0.0, %v2781
        %v2783 = vpop.f32.mrf.mxu0
        %v2784 = vadd.f32 0.0, %v2783
        %2785 = vmatmul.bf16.gmra.mxu0 %v2721
        %v2786 = vpop.f32.mrf.mxu0
        %v2787 = vadd.f32 0.0, %v2786
        %v2788 = vpop.f32.mrf.mxu0
        %v2789 = vadd.f32 0.0, %v2788
        %2790 = vmatmul.bf16.gmra.mxu0 %v2722
        %v2791 = vpop.f32.mrf.mxu0
        %v2792 = vadd.f32 0.0, %v2791
        %v2793 = vpop.f32.mrf.mxu0
        %v2794 = vadd.f32 0.0, %v2793
        %2795 = vdwg.mxu0
        %v2796 = vrcp.pop %v2684
        %v2797 = vrcp.pop %v2686
        %v2798 = vrcp.pop %v2688
        %v2799 = vrcp.pop %v2690
        %v2800 = vrcp.pop %v2692
        %v2801 = vrcp.pop %v2694
        %v2802 = vrcp.pop %v2696
        %v2803 = vrcp.pop %v2698
        %v2804 = vrcp.pop %v2700
        %v2805 = vrcp.pop %v2702
        %v2806 = vrcp.pop %v2704
        %v2807 = vrcp.pop %v2706
        %v2808 = vrcp.pop %v2708
        %v2809 = vrcp.pop %v2710
        %v2810 = vrcp.pop %v2712
        %v2811 = vrcp.pop %v2714
        %v2812 = vmul.f32 %v2757, %v2796
        %v2813 = vmul.f32 %v2759, %v2797
        %v2814 = vmul.f32 %v2762, %v2798
        %v2815 = vmul.f32 %v2764, %v2799
        %v2816 = vmul.f32 %v2767, %v2800
        %v2817 = vmul.f32 %v2769, %v2801
        %v2818 = vmul.f32 %v2772, %v2802
        %v2819 = vmul.f32 %v2774, %v2803
        %v2820 = vmul.f32 %v2777, %v2804
        %v2821 = vmul.f32 %v2779, %v2805
        %v2822 = vmul.f32 %v2782, %v2806
        %v2823 = vmul.f32 %v2784, %v2807
        %v2824 = vmul.f32 %v2787, %v2808
        %v2825 = vmul.f32 %v2789, %v2809
        %v2826 = vmul.f32 %v2792, %v2810
        %v2827 = vmul.f32 %v2794, %v2811
        %2828 = vrot.lane.b32.xlu0 %v1677, 32
        %v2829 = vpop.permute.xlu0 %2828
        %2830 = vrot.lane.b32.xlu0 %v1678, 32
        %v2831 = vpop.permute.xlu0 %2830
        %2832 = vrot.lane.b32.xlu0 %v1679, 32
        %v2833 = vpop.permute.xlu0 %2832
        %2834 = vrot.lane.b32.xlu0 %v1680, 32
        %v2835 = vpop.permute.xlu0 %2834
        %2836 = vrot.lane.b32.xlu0 %v1681, 32
        %v2837 = vpop.permute.xlu0 %2836
        %2838 = vrot.lane.b32.xlu0 %v1682, 32
        %v2839 = vpop.permute.xlu0 %2838
        %2840 = vrot.lane.b32.xlu0 %v1683, 32
        %v2841 = vpop.permute.xlu0 %2840
        %2842 = vrot.lane.b32.xlu0 %v1684, 32
        %v2843 = vpop.permute.xlu0 %2842
        %2844 = vrot.lane.b32.xlu0 %v1685, 32
        %v2845 = vpop.permute.xlu0 %2844
        %2846 = vrot.lane.b32.xlu0 %v1686, 32
        %v2847 = vpop.permute.xlu0 %2846
        %2848 = vrot.lane.b32.xlu0 %v1687, 32
        %v2849 = vpop.permute.xlu0 %2848
        %2850 = vrot.lane.b32.xlu0 %v1688, 32
        %v2851 = vpop.permute.xlu0 %2850
        %2852 = vrot.lane.b32.xlu0 %v1689, 32
        %v2853 = vpop.permute.xlu0 %2852
        %2854 = vrot.lane.b32.xlu0 %v1690, 32
        %v2855 = vpop.permute.xlu0 %2854
        %2856 = vrot.lane.b32.xlu0 %v1691, 32
        %v2857 = vpop.permute.xlu0 %2856
        %2858 = vrot.lane.b32.xlu0 %v1692, 32
        %v2859 = vpop.permute.xlu0 %2858
        %v2861 = vsel %vm1693, %v2829, 0
        %v2864 = vsel %vm1693, %v2831, 0
        %v2867 = vsel %vm1693, %v2833, 0
        %v2870 = vsel %vm1693, %v2835, 0
        %v2873 = vsel %vm1693, %v2837, 0
        %v2876 = vsel %vm1693, %v2839, 0
        %v2879 = vsel %vm1693, %v2841, 0
        %v2882 = vsel %vm1693, %v2843, 0
        %v2885 = vsel %vm1693, %v2845, 0
        %v2888 = vsel %vm1693, %v2847, 0
        %v2891 = vsel %vm1693, %v2849, 0
        %v2894 = vsel %vm1693, %v2851, 0
        %v2897 = vsel %vm1693, %v2853, 0
        %v2900 = vsel %vm1693, %v2855, 0
        %v2903 = vsel %vm1693, %v2857, 0
        %v2906 = vsel %vm1693, %v2859, 0
        %2908 = vmatpush.bf16.xpose.msra.mxu0 %v2906
        %2909 = vmatpush.bf16.xpose.msra.mxu0 %v2903
        %2910 = vmatpush.bf16.xpose.msra.mxu0 %v2900
        %2911 = vmatpush.bf16.xpose.msra.mxu0 %v2897
        %2912 = vmatpush.bf16.xpose.msra.mxu0 %v2894
        %2913 = vmatpush.bf16.xpose.msra.mxu0 %v2891
        %2914 = vmatpush.bf16.xpose.msra.mxu0 %v2888
        %2915 = vmatpush.bf16.xpose.msra.mxu0 %v2885
        %2916 = vmatmul.bf16.gmra.mxu0 %v2861
        %v2917 = vpop.f32.mrf.mxu0
        %v2918 = vadd.f32 0.0, %v2917
        %v2919 = vpop.f32.mrf.mxu0
        %v2920 = vadd.f32 0.0, %v2919
        %2921 = vmatmul.bf16.gmra.mxu0 %v2864
        %v2922 = vpop.f32.mrf.mxu0
        %v2923 = vadd.f32 0.0, %v2922
        %v2924 = vpop.f32.mrf.mxu0
        %v2925 = vadd.f32 0.0, %v2924
        %2926 = vmatmul.bf16.gmra.mxu0 %v2867
        %v2927 = vpop.f32.mrf.mxu0
        %v2928 = vadd.f32 0.0, %v2927
        %v2929 = vpop.f32.mrf.mxu0
        %v2930 = vadd.f32 0.0, %v2929
        %2931 = vmatmul.bf16.gmra.mxu0 %v2870
        %v2932 = vpop.f32.mrf.mxu0
        %v2933 = vadd.f32 0.0, %v2932
        %v2934 = vpop.f32.mrf.mxu0
        %v2935 = vadd.f32 0.0, %v2934
        %2936 = vmatmul.bf16.gmra.mxu0 %v2873
        %v2937 = vpop.f32.mrf.mxu0
        %v2938 = vadd.f32 0.0, %v2937
        %v2939 = vpop.f32.mrf.mxu0
        %v2940 = vadd.f32 0.0, %v2939
        %2941 = vmatmul.bf16.gmra.mxu0 %v2876
        %v2942 = vpop.f32.mrf.mxu0
        %v2943 = vadd.f32 0.0, %v2942
        %v2944 = vpop.f32.mrf.mxu0
        %v2945 = vadd.f32 0.0, %v2944
        %2946 = vmatmul.bf16.gmra.mxu0 %v2879
        %v2947 = vpop.f32.mrf.mxu0
        %v2948 = vadd.f32 0.0, %v2947
        %v2949 = vpop.f32.mrf.mxu0
        %v2950 = vadd.f32 0.0, %v2949
        %2951 = vmatmul.bf16.gmra.mxu0 %v2882
        %v2952 = vpop.f32.mrf.mxu0
        %v2953 = vadd.f32 0.0, %v2952
        %v2954 = vpop.f32.mrf.mxu0
        %v2955 = vadd.f32 0.0, %v2954
        %2956 = vdwg.mxu0
        %v2957 = vmul.f32 %v2918, 0.17677669
        %v2958 = vmul.f32 %v2920, 0.17677669
        %v2959 = vmul.f32 %v2923, 0.17677669
        %v2960 = vmul.f32 %v2925, 0.17677669
        %v2961 = vmul.f32 %v2928, 0.17677669
        %v2962 = vmul.f32 %v2930, 0.17677669
        %v2963 = vmul.f32 %v2933, 0.17677669
        %v2964 = vmul.f32 %v2935, 0.17677669
        %v2965 = vmul.f32 %v2938, 0.17677669
        %v2966 = vmul.f32 %v2940, 0.17677669
        %v2967 = vmul.f32 %v2943, 0.17677669
        %v2968 = vmul.f32 %v2945, 0.17677669
        %v2969 = vmul.f32 %v2948, 0.17677669
        %v2970 = vmul.f32 %v2950, 0.17677669
        %v2971 = vmul.f32 %v2953, 0.17677669
        %v2972 = vmul.f32 %v2955, 0.17677669
        %v2973 = vsel %vm979, %v2957, -1e+30
        %v2974 = vsel %vm980, %v2958, -1e+30
        %v2975 = vsel %vm981, %v2959, -1e+30
        %v2976 = vsel %vm982, %v2960, -1e+30
        %v2977 = vsel %vm983, %v2961, -1e+30
        %v2978 = vsel %vm984, %v2962, -1e+30
        %v2979 = vsel %vm985, %v2963, -1e+30
        %v2980 = vsel %vm986, %v2964, -1e+30
        %v2981 = vsel %vm987, %v2965, -1e+30
        %v2982 = vsel %vm988, %v2966, -1e+30
        %v2983 = vsel %vm989, %v2967, -1e+30
        %v2984 = vsel %vm990, %v2968, -1e+30
        %v2985 = vsel %vm991, %v2969, -1e+30
        %v2986 = vsel %vm992, %v2970, -1e+30
        %v2987 = vsel %vm993, %v2971, -1e+30
        %v2988 = vsel %vm994, %v2972, -1e+30
        %2989 = vmax.xlane.f32.xlu0 %v2973
        %v2990 = vpop.xlane.xlu0 %2989
        %2991 = vmax.xlane.f32.xlu0 %v2974
        %v2992 = vpop.xlane.xlu0 %2991
        %2993 = vmax.xlane.f32.xlu0 %v2975
        %v2994 = vpop.xlane.xlu0 %2993
        %2995 = vmax.xlane.f32.xlu0 %v2976
        %v2996 = vpop.xlane.xlu0 %2995
        %2997 = vmax.xlane.f32.xlu0 %v2977
        %v2998 = vpop.xlane.xlu0 %2997
        %2999 = vmax.xlane.f32.xlu0 %v2978
        %v3000 = vpop.xlane.xlu0 %2999
        %3001 = vmax.xlane.f32.xlu0 %v2979
        %v3002 = vpop.xlane.xlu0 %3001
        %3003 = vmax.xlane.f32.xlu0 %v2980
        %v3004 = vpop.xlane.xlu0 %3003
        %3005 = vmax.xlane.f32.xlu0 %v2981
        %v3006 = vpop.xlane.xlu0 %3005
        %3007 = vmax.xlane.f32.xlu0 %v2982
        %v3008 = vpop.xlane.xlu0 %3007
        %3009 = vmax.xlane.f32.xlu0 %v2983
        %v3010 = vpop.xlane.xlu0 %3009
        %3011 = vmax.xlane.f32.xlu0 %v2984
        %v3012 = vpop.xlane.xlu0 %3011
        %3013 = vmax.xlane.f32.xlu0 %v2985
        %v3014 = vpop.xlane.xlu0 %3013
        %3015 = vmax.xlane.f32.xlu0 %v2986
        %v3016 = vpop.xlane.xlu0 %3015
        %3017 = vmax.xlane.f32.xlu0 %v2987
        %v3018 = vpop.xlane.xlu0 %3017
        %3019 = vmax.xlane.f32.xlu0 %v2988
        %v3020 = vpop.xlane.xlu0 %3019
        %v3021 = vsub.f32 %v2973, %v2990
        %v3022 = vsub.f32 %v2974, %v2992
        %v3023 = vsub.f32 %v2975, %v2994
        %v3024 = vsub.f32 %v2976, %v2996
        %v3025 = vsub.f32 %v2977, %v2998
        %v3026 = vsub.f32 %v2978, %v3000
        %v3027 = vsub.f32 %v2979, %v3002
        %v3028 = vsub.f32 %v2980, %v3004
        %v3029 = vsub.f32 %v2981, %v3006
        %v3030 = vsub.f32 %v2982, %v3008
        %v3031 = vsub.f32 %v2983, %v3010
        %v3032 = vsub.f32 %v2984, %v3012
        %v3033 = vsub.f32 %v2985, %v3014
        %v3034 = vsub.f32 %v2986, %v3016
        %v3035 = vsub.f32 %v2987, %v3018
        %v3036 = vsub.f32 %v2988, %v3020
        %v3037 = vmul.f32 %v3021, 1.442695
        %v3038 = vpow.pop %v3037
        %v3039 = vmul.f32 %v3022, 1.442695
        %v3040 = vpow.pop %v3039
        %v3041 = vmul.f32 %v3023, 1.442695
        %v3042 = vpow.pop %v3041
        %v3043 = vmul.f32 %v3024, 1.442695
        %v3044 = vpow.pop %v3043
        %v3045 = vmul.f32 %v3025, 1.442695
        %v3046 = vpow.pop %v3045
        %v3047 = vmul.f32 %v3026, 1.442695
        %v3048 = vpow.pop %v3047
        %v3049 = vmul.f32 %v3027, 1.442695
        %v3050 = vpow.pop %v3049
        %v3051 = vmul.f32 %v3028, 1.442695
        %v3052 = vpow.pop %v3051
        %v3053 = vmul.f32 %v3029, 1.442695
        %v3054 = vpow.pop %v3053
        %v3055 = vmul.f32 %v3030, 1.442695
        %v3056 = vpow.pop %v3055
        %v3057 = vmul.f32 %v3031, 1.442695
        %v3058 = vpow.pop %v3057
        %v3059 = vmul.f32 %v3032, 1.442695
        %v3060 = vpow.pop %v3059
        %v3061 = vmul.f32 %v3033, 1.442695
        %v3062 = vpow.pop %v3061
        %v3063 = vmul.f32 %v3034, 1.442695
        %v3064 = vpow.pop %v3063
        %v3065 = vmul.f32 %v3035, 1.442695
        %v3066 = vpow.pop %v3065
        %v3067 = vmul.f32 %v3036, 1.442695
        %v3068 = vpow.pop %v3067
        %3069 = vadd.xlane.f32.xlu0 %v3038
        %v3070 = vpop.xlane.xlu0 %3069
        %3071 = vadd.xlane.f32.xlu0 %v3040
        %v3072 = vpop.xlane.xlu0 %3071
        %3073 = vadd.xlane.f32.xlu0 %v3042
        %v3074 = vpop.xlane.xlu0 %3073
        %3075 = vadd.xlane.f32.xlu0 %v3044
        %v3076 = vpop.xlane.xlu0 %3075
        %3077 = vadd.xlane.f32.xlu0 %v3046
        %v3078 = vpop.xlane.xlu0 %3077
        %3079 = vadd.xlane.f32.xlu0 %v3048
        %v3080 = vpop.xlane.xlu0 %3079
        %3081 = vadd.xlane.f32.xlu0 %v3050
        %v3082 = vpop.xlane.xlu0 %3081
        %3083 = vadd.xlane.f32.xlu0 %v3052
        %v3084 = vpop.xlane.xlu0 %3083
        %3085 = vadd.xlane.f32.xlu0 %v3054
        %v3086 = vpop.xlane.xlu0 %3085
        %3087 = vadd.xlane.f32.xlu0 %v3056
        %v3088 = vpop.xlane.xlu0 %3087
        %3089 = vadd.xlane.f32.xlu0 %v3058
        %v3090 = vpop.xlane.xlu0 %3089
        %3091 = vadd.xlane.f32.xlu0 %v3060
        %v3092 = vpop.xlane.xlu0 %3091
        %3093 = vadd.xlane.f32.xlu0 %v3062
        %v3094 = vpop.xlane.xlu0 %3093
        %3095 = vadd.xlane.f32.xlu0 %v3064
        %v3096 = vpop.xlane.xlu0 %3095
        %3097 = vadd.xlane.f32.xlu0 %v3066
        %v3098 = vpop.xlane.xlu0 %3097
        %3099 = vadd.xlane.f32.xlu0 %v3068
        %v3100 = vpop.xlane.xlu0 %3099
        %v3101 = vpack.c.bf16 %v3040, %v3038
        %v3102 = vpack.c.bf16 %v3044, %v3042
        %v3103 = vpack.c.bf16 %v3048, %v3046
        %v3104 = vpack.c.bf16 %v3052, %v3050
        %v3105 = vpack.c.bf16 %v3056, %v3054
        %v3106 = vpack.c.bf16 %v3060, %v3058
        %v3107 = vpack.c.bf16 %v3064, %v3062
        %v3108 = vpack.c.bf16 %v3068, %v3066
        %3109 = vrot.lane.b32.xlu0 %v1943, 32
        %v3110 = vpop.permute.xlu0 %3109
        %3111 = vrot.lane.b32.xlu0 %v1944, 32
        %v3112 = vpop.permute.xlu0 %3111
        %3113 = vrot.lane.b32.xlu0 %v1945, 32
        %v3114 = vpop.permute.xlu0 %3113
        %3115 = vrot.lane.b32.xlu0 %v1946, 32
        %v3116 = vpop.permute.xlu0 %3115
        %3117 = vrot.lane.b32.xlu0 %v1947, 32
        %v3118 = vpop.permute.xlu0 %3117
        %3119 = vrot.lane.b32.xlu0 %v1948, 32
        %v3120 = vpop.permute.xlu0 %3119
        %3121 = vrot.lane.b32.xlu0 %v1949, 32
        %v3122 = vpop.permute.xlu0 %3121
        %3123 = vrot.lane.b32.xlu0 %v1950, 32
        %v3124 = vpop.permute.xlu0 %3123
        %3133 = vmatpush.bf16.msra.mxu0 %v3124
        %3134 = vmatpush.bf16.msra.mxu0 %v3122
        %3135 = vmatpush.bf16.msra.mxu0 %v3120
        %3136 = vmatpush.bf16.msra.mxu0 %v3118
        %3137 = vmatpush.bf16.msra.mxu0 %v3116
        %3138 = vmatpush.bf16.msra.mxu0 %v3114
        %3139 = vmatpush.bf16.msra.mxu0 %v3112
        %3140 = vmatpush.bf16.msra.mxu0 %v3110
        %3141 = vmatmul.bf16.gmra.mxu0 %v3101
        %v3142 = vpop.f32.mrf.mxu0
        %v3143 = vadd.f32 0.0, %v3142
        %v3144 = vpop.f32.mrf.mxu0
        %v3145 = vadd.f32 0.0, %v3144
        %3146 = vmatmul.bf16.gmra.mxu0 %v3102
        %v3147 = vpop.f32.mrf.mxu0
        %v3148 = vadd.f32 0.0, %v3147
        %v3149 = vpop.f32.mrf.mxu0
        %v3150 = vadd.f32 0.0, %v3149
        %3151 = vmatmul.bf16.gmra.mxu0 %v3103
        %v3152 = vpop.f32.mrf.mxu0
        %v3153 = vadd.f32 0.0, %v3152
        %v3154 = vpop.f32.mrf.mxu0
        %v3155 = vadd.f32 0.0, %v3154
        %3156 = vmatmul.bf16.gmra.mxu0 %v3104
        %v3157 = vpop.f32.mrf.mxu0
        %v3158 = vadd.f32 0.0, %v3157
        %v3159 = vpop.f32.mrf.mxu0
        %v3160 = vadd.f32 0.0, %v3159
        %3161 = vmatmul.bf16.gmra.mxu0 %v3105
        %v3162 = vpop.f32.mrf.mxu0
        %v3163 = vadd.f32 0.0, %v3162
        %v3164 = vpop.f32.mrf.mxu0
        %v3165 = vadd.f32 0.0, %v3164
        %3166 = vmatmul.bf16.gmra.mxu0 %v3106
        %v3167 = vpop.f32.mrf.mxu0
        %v3168 = vadd.f32 0.0, %v3167
        %v3169 = vpop.f32.mrf.mxu0
        %v3170 = vadd.f32 0.0, %v3169
        %3171 = vmatmul.bf16.gmra.mxu0 %v3107
        %v3172 = vpop.f32.mrf.mxu0
        %v3173 = vadd.f32 0.0, %v3172
        %v3174 = vpop.f32.mrf.mxu0
        %v3175 = vadd.f32 0.0, %v3174
        %3176 = vmatmul.bf16.gmra.mxu0 %v3108
        %v3177 = vpop.f32.mrf.mxu0
        %v3178 = vadd.f32 0.0, %v3177
        %v3179 = vpop.f32.mrf.mxu0
        %v3180 = vadd.f32 0.0, %v3179
        %3181 = vdwg.mxu0
        %v3182 = vrcp.pop %v3070
        %v3183 = vrcp.pop %v3072
        %v3184 = vrcp.pop %v3074
        %v3185 = vrcp.pop %v3076
        %v3186 = vrcp.pop %v3078
        %v3187 = vrcp.pop %v3080
        %v3188 = vrcp.pop %v3082
        %v3189 = vrcp.pop %v3084
        %v3190 = vrcp.pop %v3086
        %v3191 = vrcp.pop %v3088
        %v3192 = vrcp.pop %v3090
        %v3193 = vrcp.pop %v3092
        %v3194 = vrcp.pop %v3094
        %v3195 = vrcp.pop %v3096
        %v3196 = vrcp.pop %v3098
        %v3197 = vrcp.pop %v3100
        %v3198 = vmul.f32 %v3143, %v3182
        %v3199 = vmul.f32 %v3145, %v3183
        %v3200 = vmul.f32 %v3148, %v3184
        %v3201 = vmul.f32 %v3150, %v3185
        %v3202 = vmul.f32 %v3153, %v3186
        %v3203 = vmul.f32 %v3155, %v3187
        %v3204 = vmul.f32 %v3158, %v3188
        %v3205 = vmul.f32 %v3160, %v3189
        %v3206 = vmul.f32 %v3163, %v3190
        %v3207 = vmul.f32 %v3165, %v3191
        %v3208 = vmul.f32 %v3168, %v3192
        %v3209 = vmul.f32 %v3170, %v3193
        %v3210 = vmul.f32 %v3173, %v3194
        %v3211 = vmul.f32 %v3175, %v3195
        %v3212 = vmul.f32 %v3178, %v3196
        %v3213 = vmul.f32 %v3180, %v3197
        %3230 = vrot.lane.b32.xlu0 %v2426, 32
        %v3231 = vpop.permute.xlu0 %3230
        %3232 = vrot.lane.b32.xlu0 %v2427, 32
        %v3233 = vpop.permute.xlu0 %3232
        %3234 = vrot.lane.b32.xlu0 %v2428, 32
        %v3235 = vpop.permute.xlu0 %3234
        %3236 = vrot.lane.b32.xlu0 %v2429, 32
        %v3237 = vpop.permute.xlu0 %3236
        %3238 = vrot.lane.b32.xlu0 %v2430, 32
        %v3239 = vpop.permute.xlu0 %3238
        %3240 = vrot.lane.b32.xlu0 %v2431, 32
        %v3241 = vpop.permute.xlu0 %3240
        %3242 = vrot.lane.b32.xlu0 %v2432, 32
        %v3243 = vpop.permute.xlu0 %3242
        %3244 = vrot.lane.b32.xlu0 %v2433, 32
        %v3245 = vpop.permute.xlu0 %3244
        %3246 = vrot.lane.b32.xlu0 %v2434, 32
        %v3247 = vpop.permute.xlu0 %3246
        %3248 = vrot.lane.b32.xlu0 %v2435, 32
        %v3249 = vpop.permute.xlu0 %3248
        %3250 = vrot.lane.b32.xlu0 %v2436, 32
        %v3251 = vpop.permute.xlu0 %3250
        %3252 = vrot.lane.b32.xlu0 %v2437, 32
        %v3253 = vpop.permute.xlu0 %3252
        %3254 = vrot.lane.b32.xlu0 %v2438, 32
        %v3255 = vpop.permute.xlu0 %3254
        %3256 = vrot.lane.b32.xlu0 %v2439, 32
        %v3257 = vpop.permute.xlu0 %3256
        %3258 = vrot.lane.b32.xlu0 %v2440, 32
        %v3259 = vpop.permute.xlu0 %3258
        %3260 = vrot.lane.b32.xlu0 %v2441, 32
        %v3261 = vpop.permute.xlu0 %3260
        %3294 = vrot.lane.b32.xlu0 %v2812, 64
        %v3295 = vpop.permute.xlu0 %3294
        %3296 = vrot.lane.b32.xlu0 %v2813, 64
        %v3297 = vpop.permute.xlu0 %3296
        %3298 = vrot.lane.b32.xlu0 %v2814, 64
        %v3299 = vpop.permute.xlu0 %3298
        %3300 = vrot.lane.b32.xlu0 %v2815, 64
        %v3301 = vpop.permute.xlu0 %3300
        %3302 = vrot.lane.b32.xlu0 %v2816, 64
        %v3303 = vpop.permute.xlu0 %3302
        %3304 = vrot.lane.b32.xlu0 %v2817, 64
        %v3305 = vpop.permute.xlu0 %3304
        %3306 = vrot.lane.b32.xlu0 %v2818, 64
        %v3307 = vpop.permute.xlu0 %3306
        %3308 = vrot.lane.b32.xlu0 %v2819, 64
        %v3309 = vpop.permute.xlu0 %3308
        %3310 = vrot.lane.b32.xlu0 %v2820, 64
        %v3311 = vpop.permute.xlu0 %3310
        %3312 = vrot.lane.b32.xlu0 %v2821, 64
        %v3313 = vpop.permute.xlu0 %3312
        %3314 = vrot.lane.b32.xlu0 %v2822, 64
        %v3315 = vpop.permute.xlu0 %3314
        %3316 = vrot.lane.b32.xlu0 %v2823, 64
        %v3317 = vpop.permute.xlu0 %3316
        %3318 = vrot.lane.b32.xlu0 %v2824, 64
        %v3319 = vpop.permute.xlu0 %3318
        %3320 = vrot.lane.b32.xlu0 %v2825, 64
        %v3321 = vpop.permute.xlu0 %3320
        %3322 = vrot.lane.b32.xlu0 %v2826, 64
        %v3323 = vpop.permute.xlu0 %3322
        %3324 = vrot.lane.b32.xlu0 %v2827, 64
        %v3325 = vpop.permute.xlu0 %3324
        %3358 = vrot.lane.b32.xlu0 %v3198, 96
        %v3359 = vpop.permute.xlu0 %3358
        %3360 = vrot.lane.b32.xlu0 %v3199, 96
        %v3361 = vpop.permute.xlu0 %3360
        %3362 = vrot.lane.b32.xlu0 %v3200, 96
        %v3363 = vpop.permute.xlu0 %3362
        %3364 = vrot.lane.b32.xlu0 %v3201, 96
        %v3365 = vpop.permute.xlu0 %3364
        %3366 = vrot.lane.b32.xlu0 %v3202, 96
        %v3367 = vpop.permute.xlu0 %3366
        %3368 = vrot.lane.b32.xlu0 %v3203, 96
        %v3369 = vpop.permute.xlu0 %3368
        %3370 = vrot.lane.b32.xlu0 %v3204, 96
        %v3371 = vpop.permute.xlu0 %3370
        %3372 = vrot.lane.b32.xlu0 %v3205, 96
        %v3373 = vpop.permute.xlu0 %3372
        %3374 = vrot.lane.b32.xlu0 %v3206, 96
        %v3375 = vpop.permute.xlu0 %3374
        %3376 = vrot.lane.b32.xlu0 %v3207, 96
        %v3377 = vpop.permute.xlu0 %3376
        %3378 = vrot.lane.b32.xlu0 %v3208, 96
        %v3379 = vpop.permute.xlu0 %3378
        %3380 = vrot.lane.b32.xlu0 %v3209, 96
        %v3381 = vpop.permute.xlu0 %3380
        %3382 = vrot.lane.b32.xlu0 %v3210, 96
        %v3383 = vpop.permute.xlu0 %3382
        %3384 = vrot.lane.b32.xlu0 %v3211, 96
        %v3385 = vpop.permute.xlu0 %3384
        %3386 = vrot.lane.b32.xlu0 %v3212, 96
        %v3387 = vpop.permute.xlu0 %3386
        %3388 = vrot.lane.b32.xlu0 %v3213, 96
        %v3389 = vpop.permute.xlu0 %3388
        %v3406 = vsel %vm1693, %v2016, %v3231
        %v3407 = vsel %vm1693, %v2017, %v3233
        %v3408 = vsel %vm1693, %v2018, %v3235
        %v3409 = vsel %vm1693, %v2019, %v3237
        %v3410 = vsel %vm1693, %v2020, %v3239
        %v3411 = vsel %vm1693, %v2021, %v3241
        %v3412 = vsel %vm1693, %v2022, %v3243
        %v3413 = vsel %vm1693, %v2023, %v3245
        %v3414 = vsel %vm1693, %v2024, %v3247
        %v3415 = vsel %vm1693, %v2025, %v3249
        %v3416 = vsel %vm1693, %v2026, %v3251
        %v3417 = vsel %vm1693, %v2027, %v3253
        %v3418 = vsel %vm1693, %v2028, %v3255
        %v3419 = vsel %vm1693, %v2029, %v3257
        %v3420 = vsel %vm1693, %v2030, %v3259
        %v3421 = vsel %vm1693, %v2031, %v3261
        %vm3422 = vcmask 523264
        %v3423 = vsel %vm3422, %v3406, %v3295
        %v3424 = vsel %vm3422, %v3407, %v3297
        %v3425 = vsel %vm3422, %v3408, %v3299
        %v3426 = vsel %vm3422, %v3409, %v3301
        %v3427 = vsel %vm3422, %v3410, %v3303
        %v3428 = vsel %vm3422, %v3411, %v3305
        %v3429 = vsel %vm3422, %v3412, %v3307
        %v3430 = vsel %vm3422, %v3413, %v3309
        %v3431 = vsel %vm3422, %v3414, %v3311
        %v3432 = vsel %vm3422, %v3415, %v3313
        %v3433 = vsel %vm3422, %v3416, %v3315
        %v3434 = vsel %vm3422, %v3417, %v3317
        %v3435 = vsel %vm3422, %v3418, %v3319
        %v3436 = vsel %vm3422, %v3419, %v3321
        %v3437 = vsel %vm3422, %v3420, %v3323
        %v3438 = vsel %vm3422, %v3421, %v3325
        %vm3439 = vcmask 785408
        %v3440 = vsel %vm3439, %v3423, %v3359
        %v3441 = vsel %vm3439, %v3424, %v3361
        %v3442 = vsel %vm3439, %v3425, %v3363
        %v3443 = vsel %vm3439, %v3426, %v3365
        %v3444 = vsel %vm3439, %v3427, %v3367
        %v3445 = vsel %vm3439, %v3428, %v3369
        %v3446 = vsel %vm3439, %v3429, %v3371
        %v3447 = vsel %vm3439, %v3430, %v3373
        %v3448 = vsel %vm3439, %v3431, %v3375
        %v3449 = vsel %vm3439, %v3432, %v3377
        %v3450 = vsel %vm3439, %v3433, %v3379
        %v3451 = vsel %vm3439, %v3434, %v3381
        %v3452 = vsel %vm3439, %v3435, %v3383
        %v3453 = vsel %vm3439, %v3436, %v3385
        %v3454 = vsel %vm3439, %v3437, %v3387
        %v3455 = vsel %vm3439, %v3438, %v3389
        %v3456 = vld [vmem:[%s8] sm:$0xf]
        %v3457 = vld [vmem:[%s8 + $0x4] sm:$0xf]
        %v3458 = vld [vmem:[%s8 + $0x8] sm:$0xf]
        %v3459 = vld [vmem:[%s8 + $0xc] sm:$0xf]
        %v3460 = vld [vmem:[%s8 + $0x10] sm:$0xf]
        %v3461 = vld [vmem:[%s8 + $0x14] sm:$0xf]
        %v3462 = vld [vmem:[%s8 + $0x18] sm:$0xf]
        %v3463 = vld [vmem:[%s8 + $0x1c] sm:$0xf]
        %v3464 = vld [vmem:[%s8 + $0x20] sm:$0xf]
        %v3465 = vld [vmem:[%s8 + $0x24] sm:$0xf]
        %v3466 = vld [vmem:[%s8 + $0x28] sm:$0xf]
        %v3467 = vld [vmem:[%s8 + $0x2c] sm:$0xf]
        %v3468 = vld [vmem:[%s8 + $0x30] sm:$0xf]
        %v3469 = vld [vmem:[%s8 + $0x34] sm:$0xf]
        %v3470 = vld [vmem:[%s8 + $0x38] sm:$0xf]
        %v3471 = vld [vmem:[%s8 + $0x3c] sm:$0xf]
        %v3472 = vpack.c.bf16 %v3441, %v3440
        %v3473 = vpack.c.bf16 %v3443, %v3442
        %v3474 = vpack.c.bf16 %v3445, %v3444
        %v3475 = vpack.c.bf16 %v3447, %v3446
        %v3476 = vpack.c.bf16 %v3449, %v3448
        %v3477 = vpack.c.bf16 %v3451, %v3450
        %v3478 = vpack.c.bf16 %v3453, %v3452
        %v3479 = vpack.c.bf16 %v3455, %v3454
        %v3496 = vunpack.c.l.b16 %v3456
        %v3497 = vunpack.c.l.b16 %v3457
        %v3498 = vunpack.c.l.b16 %v3458
        %v3499 = vunpack.c.l.b16 %v3459
        %v3500 = vunpack.c.l.b16 %v3460
        %v3501 = vunpack.c.l.b16 %v3461
        %v3502 = vunpack.c.l.b16 %v3462
        %v3503 = vunpack.c.l.b16 %v3463
        %v3504 = vunpack.c.l.b16 %v3464
        %v3505 = vunpack.c.l.b16 %v3465
        %v3506 = vunpack.c.l.b16 %v3466
        %v3507 = vunpack.c.l.b16 %v3467
        %v3508 = vunpack.c.l.b16 %v3468
        %v3509 = vunpack.c.l.b16 %v3469
        %v3510 = vunpack.c.l.b16 %v3470
        %v3511 = vunpack.c.l.b16 %v3471
        %v3512 = vpack.c.b16 %v3497, %v3496
        %v3513 = vpack.c.b16 %v3499, %v3498
        %v3514 = vpack.c.b16 %v3501, %v3500
        %v3515 = vpack.c.b16 %v3503, %v3502
        %v3516 = vpack.c.b16 %v3505, %v3504
        %v3517 = vpack.c.b16 %v3507, %v3506
        %v3518 = vpack.c.b16 %v3509, %v3508
        %v3519 = vpack.c.b16 %v3511, %v3510
        %3528 = vmatpush.bf16.msra.mxu0 %v3519
        %3529 = vmatpush.bf16.msra.mxu0 %v3518
        %3530 = vmatpush.bf16.msra.mxu0 %v3517
        %3531 = vmatpush.bf16.msra.mxu0 %v3516
        %3532 = vmatpush.bf16.msra.mxu0 %v3515
        %3533 = vmatpush.bf16.msra.mxu0 %v3514
        %3534 = vmatpush.bf16.msra.mxu0 %v3513
        %3535 = vmatpush.bf16.msra.mxu0 %v3512
        %3536 = vmatmul.bf16.gmra.mxu0 %v3472
        %v3537 = vpop.f32.mrf.mxu0
        %v3538 = vadd.f32 0.0, %v3537
        %v3539 = vpop.f32.mrf.mxu0
        %v3540 = vadd.f32 0.0, %v3539
        %3541 = vmatmul.bf16.gmra.mxu0 %v3473
        %v3542 = vpop.f32.mrf.mxu0
        %v3543 = vadd.f32 0.0, %v3542
        %v3544 = vpop.f32.mrf.mxu0
        %v3545 = vadd.f32 0.0, %v3544
        %3546 = vmatmul.bf16.gmra.mxu0 %v3474
        %v3547 = vpop.f32.mrf.mxu0
        %v3548 = vadd.f32 0.0, %v3547
        %v3549 = vpop.f32.mrf.mxu0
        %v3550 = vadd.f32 0.0, %v3549
        %3551 = vmatmul.bf16.gmra.mxu0 %v3475
        %v3552 = vpop.f32.mrf.mxu0
        %v3553 = vadd.f32 0.0, %v3552
        %v3554 = vpop.f32.mrf.mxu0
        %v3555 = vadd.f32 0.0, %v3554
        %3556 = vmatmul.bf16.gmra.mxu0 %v3476
        %v3557 = vpop.f32.mrf.mxu0
        %v3558 = vadd.f32 0.0, %v3557
        %v3559 = vpop.f32.mrf.mxu0
        %v3560 = vadd.f32 0.0, %v3559
        %3561 = vmatmul.bf16.gmra.mxu0 %v3477
        %v3562 = vpop.f32.mrf.mxu0
        %v3563 = vadd.f32 0.0, %v3562
        %v3564 = vpop.f32.mrf.mxu0
        %v3565 = vadd.f32 0.0, %v3564
        %3566 = vmatmul.bf16.gmra.mxu0 %v3478
        %v3567 = vpop.f32.mrf.mxu0
        %v3568 = vadd.f32 0.0, %v3567
        %v3569 = vpop.f32.mrf.mxu0
        %v3570 = vadd.f32 0.0, %v3569
        %3571 = vmatmul.bf16.gmra.mxu0 %v3479
        %v3572 = vpop.f32.mrf.mxu0
        %v3573 = vadd.f32 0.0, %v3572
        %v3574 = vpop.f32.mrf.mxu0
        %v3575 = vadd.f32 0.0, %v3574
        %3576 = vdwg.mxu0
        %v3577 = vadd.f32 %v923, %v3538
        %v3578 = vadd.f32 %v925, %v3540
        %v3579 = vadd.f32 %v928, %v3543
        %v3580 = vadd.f32 %v930, %v3545
        %v3581 = vadd.f32 %v933, %v3548
        %v3582 = vadd.f32 %v935, %v3550
        %v3583 = vadd.f32 %v938, %v3553
        %v3584 = vadd.f32 %v940, %v3555
        %v3585 = vadd.f32 %v943, %v3558
        %v3586 = vadd.f32 %v945, %v3560
        %v3587 = vadd.f32 %v948, %v3563
        %v3588 = vadd.f32 %v950, %v3565
        %v3589 = vadd.f32 %v953, %v3568
        %v3590 = vadd.f32 %v955, %v3570
        %v3591 = vadd.f32 %v958, %v3573
        %v3592 = vadd.f32 %v960, %v3575
        %v3593 = vld [vmem:[%s5] sm:$0x1]
        %v3594 = vld [vmem:[#allocation4] sm:$0x1]
        %3595 = vadd.xlane.f32.xlu0 %v3577
        %v3596 = vpop.xlane.xlu0 %3595
        %3597 = vadd.xlane.f32.xlu0 %v3578
        %v3598 = vpop.xlane.xlu0 %3597
        %3599 = vadd.xlane.f32.xlu0 %v3579
        %v3600 = vpop.xlane.xlu0 %3599
        %3601 = vadd.xlane.f32.xlu0 %v3580
        %v3602 = vpop.xlane.xlu0 %3601
        %3603 = vadd.xlane.f32.xlu0 %v3581
        %v3604 = vpop.xlane.xlu0 %3603
        %3605 = vadd.xlane.f32.xlu0 %v3582
        %v3606 = vpop.xlane.xlu0 %3605
        %3607 = vadd.xlane.f32.xlu0 %v3583
        %v3608 = vpop.xlane.xlu0 %3607
        %3609 = vadd.xlane.f32.xlu0 %v3584
        %v3610 = vpop.xlane.xlu0 %3609
        %3611 = vadd.xlane.f32.xlu0 %v3585
        %v3612 = vpop.xlane.xlu0 %3611
        %3613 = vadd.xlane.f32.xlu0 %v3586
        %v3614 = vpop.xlane.xlu0 %3613
        %3615 = vadd.xlane.f32.xlu0 %v3587
        %v3616 = vpop.xlane.xlu0 %3615
        %3617 = vadd.xlane.f32.xlu0 %v3588
        %v3618 = vpop.xlane.xlu0 %3617
        %3619 = vadd.xlane.f32.xlu0 %v3589
        %v3620 = vpop.xlane.xlu0 %3619
        %3621 = vadd.xlane.f32.xlu0 %v3590
        %v3622 = vpop.xlane.xlu0 %3621
        %3623 = vadd.xlane.f32.xlu0 %v3591
        %v3624 = vpop.xlane.xlu0 %3623
        %3625 = vadd.xlane.f32.xlu0 %v3592
        %v3626 = vpop.xlane.xlu0 %3625
        %v3627 = vmul.f32 %v3596, %v1035
        %v3628 = vmul.f32 %v3598, %v1035
        %v3629 = vmul.f32 %v3600, %v1035
        %v3630 = vmul.f32 %v3602, %v1035
        %v3631 = vmul.f32 %v3604, %v1035
        %v3632 = vmul.f32 %v3606, %v1035
        %v3633 = vmul.f32 %v3608, %v1035
        %v3634 = vmul.f32 %v3610, %v1035
        %v3635 = vmul.f32 %v3612, %v1035
        %v3636 = vmul.f32 %v3614, %v1035
        %v3637 = vmul.f32 %v3616, %v1035
        %v3638 = vmul.f32 %v3618, %v1035
        %v3639 = vmul.f32 %v3620, %v1035
        %v3640 = vmul.f32 %v3622, %v1035
        %v3641 = vmul.f32 %v3624, %v1035
        %v3642 = vmul.f32 %v3626, %v1035
        %v3643 = vsub.f32 %v3577, %v3627
        %v3644 = vsub.f32 %v3578, %v3628
        %v3645 = vsub.f32 %v3579, %v3629
        %v3646 = vsub.f32 %v3580, %v3630
        %v3647 = vsub.f32 %v3581, %v3631
        %v3648 = vsub.f32 %v3582, %v3632
        %v3649 = vsub.f32 %v3583, %v3633
        %v3650 = vsub.f32 %v3584, %v3634
        %v3651 = vsub.f32 %v3585, %v3635
        %v3652 = vsub.f32 %v3586, %v3636
        %v3653 = vsub.f32 %v3587, %v3637
        %v3654 = vsub.f32 %v3588, %v3638
        %v3655 = vsub.f32 %v3589, %v3639
        %v3656 = vsub.f32 %v3590, %v3640
        %v3657 = vsub.f32 %v3591, %v3641
        %v3658 = vsub.f32 %v3592, %v3642
        %v3659 = vmul.f32 %v3643, %v3643
        %v3660 = vmul.f32 %v3644, %v3644
        %v3661 = vmul.f32 %v3645, %v3645
        %v3662 = vmul.f32 %v3646, %v3646
        %v3663 = vmul.f32 %v3647, %v3647
        %v3664 = vmul.f32 %v3648, %v3648
        %v3665 = vmul.f32 %v3649, %v3649
        %v3666 = vmul.f32 %v3650, %v3650
        %v3667 = vmul.f32 %v3651, %v3651
        %v3668 = vmul.f32 %v3652, %v3652
        %v3669 = vmul.f32 %v3653, %v3653
        %v3670 = vmul.f32 %v3654, %v3654
        %v3671 = vmul.f32 %v3655, %v3655
        %v3672 = vmul.f32 %v3656, %v3656
        %v3673 = vmul.f32 %v3657, %v3657
        %v3674 = vmul.f32 %v3658, %v3658
        %3675 = vadd.xlane.f32.xlu0 %v3659
        %v3676 = vpop.xlane.xlu0 %3675
        %3677 = vadd.xlane.f32.xlu0 %v3660
        %v3678 = vpop.xlane.xlu0 %3677
        %3679 = vadd.xlane.f32.xlu0 %v3661
        %v3680 = vpop.xlane.xlu0 %3679
        %3681 = vadd.xlane.f32.xlu0 %v3662
        %v3682 = vpop.xlane.xlu0 %3681
        %3683 = vadd.xlane.f32.xlu0 %v3663
        %v3684 = vpop.xlane.xlu0 %3683
        %3685 = vadd.xlane.f32.xlu0 %v3664
        %v3686 = vpop.xlane.xlu0 %3685
        %3687 = vadd.xlane.f32.xlu0 %v3665
        %v3688 = vpop.xlane.xlu0 %3687
        %3689 = vadd.xlane.f32.xlu0 %v3666
        %v3690 = vpop.xlane.xlu0 %3689
        %3691 = vadd.xlane.f32.xlu0 %v3667
        %v3692 = vpop.xlane.xlu0 %3691
        %3693 = vadd.xlane.f32.xlu0 %v3668
        %v3694 = vpop.xlane.xlu0 %3693
        %3695 = vadd.xlane.f32.xlu0 %v3669
        %v3696 = vpop.xlane.xlu0 %3695
        %3697 = vadd.xlane.f32.xlu0 %v3670
        %v3698 = vpop.xlane.xlu0 %3697
        %3699 = vadd.xlane.f32.xlu0 %v3671
        %v3700 = vpop.xlane.xlu0 %3699
        %3701 = vadd.xlane.f32.xlu0 %v3672
        %v3702 = vpop.xlane.xlu0 %3701
        %3703 = vadd.xlane.f32.xlu0 %v3673
        %v3704 = vpop.xlane.xlu0 %3703
        %3705 = vadd.xlane.f32.xlu0 %v3674
        %v3706 = vpop.xlane.xlu0 %3705
        %v3707 = vmul.f32 %v3676, %v1035
        %v3708 = vmul.f32 %v3678, %v1035
        %v3709 = vmul.f32 %v3680, %v1035
        %v3710 = vmul.f32 %v3682, %v1035
        %v3711 = vmul.f32 %v3684, %v1035
        %v3712 = vmul.f32 %v3686, %v1035
        %v3713 = vmul.f32 %v3688, %v1035
        %v3714 = vmul.f32 %v3690, %v1035
        %v3715 = vmul.f32 %v3692, %v1035
        %v3716 = vmul.f32 %v3694, %v1035
        %v3717 = vmul.f32 %v3696, %v1035
        %v3718 = vmul.f32 %v3698, %v1035
        %v3719 = vmul.f32 %v3700, %v1035
        %v3720 = vmul.f32 %v3702, %v1035
        %v3721 = vmul.f32 %v3704, %v1035
        %v3722 = vmul.f32 %v3706, %v1035
        %v3723 = vadd.f32 %v3707, 1e-05
        %v3724 = vadd.f32 %v3708, 1e-05
        %v3725 = vadd.f32 %v3709, 1e-05
        %v3726 = vadd.f32 %v3710, 1e-05
        %v3727 = vadd.f32 %v3711, 1e-05
        %v3728 = vadd.f32 %v3712, 1e-05
        %v3729 = vadd.f32 %v3713, 1e-05
        %v3730 = vadd.f32 %v3714, 1e-05
        %v3731 = vadd.f32 %v3715, 1e-05
        %v3732 = vadd.f32 %v3716, 1e-05
        %v3733 = vadd.f32 %v3717, 1e-05
        %v3734 = vadd.f32 %v3718, 1e-05
        %v3735 = vadd.f32 %v3719, 1e-05
        %v3736 = vadd.f32 %v3720, 1e-05
        %v3737 = vadd.f32 %v3721, 1e-05
        %v3738 = vadd.f32 %v3722, 1e-05
        %v3739 = vrsqrt.pop %v3723
        %v3740 = vmul.f32 %v3739, %v3723
        %v3741 = vmul.f32 %v3740, %v3739
        %v3742 = vmul.f32 0.5, %v3741
        %v3743 = vsub.f32 1.5, %v3742
        %v3744 = vmul.f32 %v3739, %v3743
        %vm3745 = vweird.f32 %v3723
        %vm3746 = vweird.f32 %v3739
        %vm3747 = vmor %vm3745, %vm3746
        %v3748 = vsel %vm3747, %v3739, %v3744
        %v3749 = vrsqrt.pop %v3724
        %v3750 = vmul.f32 %v3749, %v3724
        %v3751 = vmul.f32 %v3750, %v3749
        %v3752 = vmul.f32 0.5, %v3751
        %v3753 = vsub.f32 1.5, %v3752
        %v3754 = vmul.f32 %v3749, %v3753
        %vm3755 = vweird.f32 %v3724
        %vm3756 = vweird.f32 %v3749
        %vm3757 = vmor %vm3755, %vm3756
        %v3758 = vsel %vm3757, %v3749, %v3754
        %v3759 = vrsqrt.pop %v3725
        %v3760 = vmul.f32 %v3759, %v3725
        %v3761 = vmul.f32 %v3760, %v3759
        %v3762 = vmul.f32 0.5, %v3761
        %v3763 = vsub.f32 1.5, %v3762
        %v3764 = vmul.f32 %v3759, %v3763
        %vm3765 = vweird.f32 %v3725
        %vm3766 = vweird.f32 %v3759
        %vm3767 = vmor %vm3765, %vm3766
        %v3768 = vsel %vm3767, %v3759, %v3764
        %v3769 = vrsqrt.pop %v3726
        %v3770 = vmul.f32 %v3769, %v3726
        %v3771 = vmul.f32 %v3770, %v3769
        %v3772 = vmul.f32 0.5, %v3771
        %v3773 = vsub.f32 1.5, %v3772
        %v3774 = vmul.f32 %v3769, %v3773
        %vm3775 = vweird.f32 %v3726
        %vm3776 = vweird.f32 %v3769
        %vm3777 = vmor %vm3775, %vm3776
        %v3778 = vsel %vm3777, %v3769, %v3774
        %v3779 = vrsqrt.pop %v3727
        %v3780 = vmul.f32 %v3779, %v3727
        %v3781 = vmul.f32 %v3780, %v3779
        %v3782 = vmul.f32 0.5, %v3781
        %v3783 = vsub.f32 1.5, %v3782
        %v3784 = vmul.f32 %v3779, %v3783
        %vm3785 = vweird.f32 %v3727
        %vm3786 = vweird.f32 %v3779
        %vm3787 = vmor %vm3785, %vm3786
        %v3788 = vsel %vm3787, %v3779, %v3784
        %v3789 = vrsqrt.pop %v3728
        %v3790 = vmul.f32 %v3789, %v3728
        %v3791 = vmul.f32 %v3790, %v3789
        %v3792 = vmul.f32 0.5, %v3791
        %v3793 = vsub.f32 1.5, %v3792
        %v3794 = vmul.f32 %v3789, %v3793
        %vm3795 = vweird.f32 %v3728
        %vm3796 = vweird.f32 %v3789
        %vm3797 = vmor %vm3795, %vm3796
        %v3798 = vsel %vm3797, %v3789, %v3794
        %v3799 = vrsqrt.pop %v3729
        %v3800 = vmul.f32 %v3799, %v3729
        %v3801 = vmul.f32 %v3800, %v3799
        %v3802 = vmul.f32 0.5, %v3801
        %v3803 = vsub.f32 1.5, %v3802
        %v3804 = vmul.f32 %v3799, %v3803
        %vm3805 = vweird.f32 %v3729
        %vm3806 = vweird.f32 %v3799
        %vm3807 = vmor %vm3805, %vm3806
        %v3808 = vsel %vm3807, %v3799, %v3804
        %v3809 = vrsqrt.pop %v3730
        %v3810 = vmul.f32 %v3809, %v3730
        %v3811 = vmul.f32 %v3810, %v3809
        %v3812 = vmul.f32 0.5, %v3811
        %v3813 = vsub.f32 1.5, %v3812
        %v3814 = vmul.f32 %v3809, %v3813
        %vm3815 = vweird.f32 %v3730
        %vm3816 = vweird.f32 %v3809
        %vm3817 = vmor %vm3815, %vm3816
        %v3818 = vsel %vm3817, %v3809, %v3814
        %v3819 = vrsqrt.pop %v3731
        %v3820 = vmul.f32 %v3819, %v3731
        %v3821 = vmul.f32 %v3820, %v3819
        %v3822 = vmul.f32 0.5, %v3821
        %v3823 = vsub.f32 1.5, %v3822
        %v3824 = vmul.f32 %v3819, %v3823
        %vm3825 = vweird.f32 %v3731
        %vm3826 = vweird.f32 %v3819
        %vm3827 = vmor %vm3825, %vm3826
        %v3828 = vsel %vm3827, %v3819, %v3824
        %v3829 = vrsqrt.pop %v3732
        %v3830 = vmul.f32 %v3829, %v3732
        %v3831 = vmul.f32 %v3830, %v3829
        %v3832 = vmul.f32 0.5, %v3831
        %v3833 = vsub.f32 1.5, %v3832
        %v3834 = vmul.f32 %v3829, %v3833
        %vm3835 = vweird.f32 %v3732
        %vm3836 = vweird.f32 %v3829
        %vm3837 = vmor %vm3835, %vm3836
        %v3838 = vsel %vm3837, %v3829, %v3834
        %v3839 = vrsqrt.pop %v3733
        %v3840 = vmul.f32 %v3839, %v3733
        %v3841 = vmul.f32 %v3840, %v3839
        %v3842 = vmul.f32 0.5, %v3841
        %v3843 = vsub.f32 1.5, %v3842
        %v3844 = vmul.f32 %v3839, %v3843
        %vm3845 = vweird.f32 %v3733
        %vm3846 = vweird.f32 %v3839
        %vm3847 = vmor %vm3845, %vm3846
        %v3848 = vsel %vm3847, %v3839, %v3844
        %v3849 = vrsqrt.pop %v3734
        %v3850 = vmul.f32 %v3849, %v3734
        %v3851 = vmul.f32 %v3850, %v3849
        %v3852 = vmul.f32 0.5, %v3851
        %v3853 = vsub.f32 1.5, %v3852
        %v3854 = vmul.f32 %v3849, %v3853
        %vm3855 = vweird.f32 %v3734
        %vm3856 = vweird.f32 %v3849
        %vm3857 = vmor %vm3855, %vm3856
        %v3858 = vsel %vm3857, %v3849, %v3854
        %v3859 = vrsqrt.pop %v3735
        %v3860 = vmul.f32 %v3859, %v3735
        %v3861 = vmul.f32 %v3860, %v3859
        %v3862 = vmul.f32 0.5, %v3861
        %v3863 = vsub.f32 1.5, %v3862
        %v3864 = vmul.f32 %v3859, %v3863
        %vm3865 = vweird.f32 %v3735
        %vm3866 = vweird.f32 %v3859
        %vm3867 = vmor %vm3865, %vm3866
        %v3868 = vsel %vm3867, %v3859, %v3864
        %v3869 = vrsqrt.pop %v3736
        %v3870 = vmul.f32 %v3869, %v3736
        %v3871 = vmul.f32 %v3870, %v3869
        %v3872 = vmul.f32 0.5, %v3871
        %v3873 = vsub.f32 1.5, %v3872
        %v3874 = vmul.f32 %v3869, %v3873
        %vm3875 = vweird.f32 %v3736
        %vm3876 = vweird.f32 %v3869
        %vm3877 = vmor %vm3875, %vm3876
        %v3878 = vsel %vm3877, %v3869, %v3874
        %v3879 = vrsqrt.pop %v3737
        %v3880 = vmul.f32 %v3879, %v3737
        %v3881 = vmul.f32 %v3880, %v3879
        %v3882 = vmul.f32 0.5, %v3881
        %v3883 = vsub.f32 1.5, %v3882
        %v3884 = vmul.f32 %v3879, %v3883
        %vm3885 = vweird.f32 %v3737
        %vm3886 = vweird.f32 %v3879
        %vm3887 = vmor %vm3885, %vm3886
        %v3888 = vsel %vm3887, %v3879, %v3884
        %v3889 = vrsqrt.pop %v3738
        %v3890 = vmul.f32 %v3889, %v3738
        %v3891 = vmul.f32 %v3890, %v3889
        %v3892 = vmul.f32 0.5, %v3891
        %v3893 = vsub.f32 1.5, %v3892
        %v3894 = vmul.f32 %v3889, %v3893
        %vm3895 = vweird.f32 %v3738
        %vm3896 = vweird.f32 %v3889
        %vm3897 = vmor %vm3895, %vm3896
        %v3898 = vsel %vm3897, %v3889, %v3894
        %v3899 = vmul.f32 %v3643, %v3748
        %v3900 = vmul.f32 %v3644, %v3758
        %v3901 = vmul.f32 %v3645, %v3768
        %v3902 = vmul.f32 %v3646, %v3778
        %v3903 = vmul.f32 %v3647, %v3788
        %v3904 = vmul.f32 %v3648, %v3798
        %v3905 = vmul.f32 %v3649, %v3808
        %v3906 = vmul.f32 %v3650, %v3818
        %v3907 = vmul.f32 %v3651, %v3828
        %v3908 = vmul.f32 %v3652, %v3838
        %v3909 = vmul.f32 %v3653, %v3848
        %v3910 = vmul.f32 %v3654, %v3858
        %v3911 = vmul.f32 %v3655, %v3868
        %v3912 = vmul.f32 %v3656, %v3878
        %v3913 = vmul.f32 %v3657, %v3888
        %v3914 = vmul.f32 %v3658, %v3898
        %v3916 = vperm.slane %v3593, 0
        %v3918 = vmul.f32 %v3899, %v3916
        %v3919 = vmul.f32 %v3900, %v3916
        %v3920 = vmul.f32 %v3901, %v3916
        %v3921 = vmul.f32 %v3902, %v3916
        %v3922 = vmul.f32 %v3903, %v3916
        %v3923 = vmul.f32 %v3904, %v3916
        %v3924 = vmul.f32 %v3905, %v3916
        %v3925 = vmul.f32 %v3906, %v3916
        %v3926 = vmul.f32 %v3907, %v3916
        %v3927 = vmul.f32 %v3908, %v3916
        %v3928 = vmul.f32 %v3909, %v3916
        %v3929 = vmul.f32 %v3910, %v3916
        %v3930 = vmul.f32 %v3911, %v3916
        %v3931 = vmul.f32 %v3912, %v3916
        %v3932 = vmul.f32 %v3913, %v3916
        %v3933 = vmul.f32 %v3914, %v3916
        %v3935 = vperm.slane %v3594, 0
        %v3937 = vadd.f32 %v3918, %v3935
        %v3938 = vadd.f32 %v3919, %v3935
        %v3939 = vadd.f32 %v3920, %v3935
        %v3940 = vadd.f32 %v3921, %v3935
        %v3941 = vadd.f32 %v3922, %v3935
        %v3942 = vadd.f32 %v3923, %v3935
        %v3943 = vadd.f32 %v3924, %v3935
        %v3944 = vadd.f32 %v3925, %v3935
        %v3945 = vadd.f32 %v3926, %v3935
        %v3946 = vadd.f32 %v3927, %v3935
        %v3947 = vadd.f32 %v3928, %v3935
        %v3948 = vadd.f32 %v3929, %v3935
        %v3949 = vadd.f32 %v3930, %v3935
        %v3950 = vadd.f32 %v3931, %v3935
        %v3951 = vadd.f32 %v3932, %v3935
        %v3952 = vadd.f32 %v3933, %v3935
        %v3953 = vld [vmem:[#allocation7] sm:$0xff]
        %v3954 = vld [vmem:[#allocation7 + $0x8] sm:$0xff]
        %v3955 = vld [vmem:[#allocation7 + $0x10] sm:$0xff]
        %v3956 = vld [vmem:[#allocation7 + $0x18] sm:$0xff]
        %v3957 = vld [vmem:[#allocation7 + $0x20] sm:$0xff]
        %v3958 = vld [vmem:[#allocation7 + $0x28] sm:$0xff]
        %v3959 = vld [vmem:[#allocation7 + $0x30] sm:$0xff]
        %v3960 = vld [vmem:[#allocation7 + $0x38] sm:$0xff]
        %v3961 = vld [vmem:[#allocation7 + $0x40] sm:$0xff]
        %v3962 = vld [vmem:[#allocation7 + $0x48] sm:$0xff]
        %v3963 = vld [vmem:[#allocation7 + $0x50] sm:$0xff]
        %v3964 = vld [vmem:[#allocation7 + $0x58] sm:$0xff]
        %v3965 = vld [vmem:[#allocation7 + $0x60] sm:$0xff]
        %v3966 = vld [vmem:[#allocation7 + $0x68] sm:$0xff]
        %v3967 = vld [vmem:[#allocation7 + $0x70] sm:$0xff]
        %v3968 = vld [vmem:[#allocation7 + $0x78] sm:$0xff]
        %v3969 = vld [vmem:[#allocation7 + $0x80] sm:$0xff]
        %v3970 = vld [vmem:[#allocation7 + $0x88] sm:$0xff]
        %v3971 = vld [vmem:[#allocation7 + $0x90] sm:$0xff]
        %v3972 = vld [vmem:[#allocation7 + $0x98] sm:$0xff]
        %v3973 = vld [vmem:[#allocation7 + $0xa0] sm:$0xff]
        %v3974 = vld [vmem:[#allocation7 + $0xa8] sm:$0xff]
        %v3975 = vld [vmem:[#allocation7 + $0xb0] sm:$0xff]
        %v3976 = vld [vmem:[#allocation7 + $0xb8] sm:$0xff]
        %v3977 = vld [vmem:[#allocation7 + $0xc0] sm:$0xff]
        %v3978 = vld [vmem:[#allocation7 + $0xc8] sm:$0xff]
        %v3979 = vld [vmem:[#allocation7 + $0xd0] sm:$0xff]
        %v3980 = vld [vmem:[#allocation7 + $0xd8] sm:$0xff]
        %v3981 = vld [vmem:[#allocation7 + $0xe0] sm:$0xff]
        %v3982 = vld [vmem:[#allocation7 + $0xe8] sm:$0xff]
        %v3983 = vld [vmem:[#allocation7 + $0xf0] sm:$0xff]
        %v3984 = vld [vmem:[#allocation7 + $0xf8] sm:$0xff]
        %v3985 = vpack.c.bf16 %v3938, %v3937
        %v3986 = vpack.c.bf16 %v3940, %v3939
        %v3987 = vpack.c.bf16 %v3942, %v3941
        %v3988 = vpack.c.bf16 %v3944, %v3943
        %v3989 = vpack.c.bf16 %v3946, %v3945
        %v3990 = vpack.c.bf16 %v3948, %v3947
        %v3991 = vpack.c.bf16 %v3950, %v3949
        %v3992 = vpack.c.bf16 %v3952, %v3951
        %v3993 = vld [vmem:[#allocation9] sm:$0xf]
        %v3995 = vperm.slane %v3993, 0
        %v3996 = vperm.slane %v3993, 1
        %v3997 = vperm.slane %v3993, 2
        %v3998 = vperm.slane %v3993, 3
        %v4035 = vunpack.c.l.b16 %v3953
        %v4036 = vunpack.c.h.b16 %v3953
        %v4037 = vunpack.c.l.b16 %v3954
        %v4038 = vunpack.c.h.b16 %v3954
        %v4039 = vunpack.c.l.b16 %v3955
        %v4040 = vunpack.c.h.b16 %v3955
        %v4041 = vunpack.c.l.b16 %v3956
        %v4042 = vunpack.c.h.b16 %v3956
        %v4043 = vunpack.c.l.b16 %v3957
        %v4044 = vunpack.c.h.b16 %v3957
        %v4045 = vunpack.c.l.b16 %v3958
        %v4046 = vunpack.c.h.b16 %v3958
        %v4047 = vunpack.c.l.b16 %v3959
        %v4048 = vunpack.c.h.b16 %v3959
        %v4049 = vunpack.c.l.b16 %v3960
        %v4050 = vunpack.c.h.b16 %v3960
        %v4051 = vunpack.c.l.b16 %v3961
        %v4052 = vunpack.c.h.b16 %v3961
        %v4053 = vunpack.c.l.b16 %v3962
        %v4054 = vunpack.c.h.b16 %v3962
        %v4055 = vunpack.c.l.b16 %v3963
        %v4056 = vunpack.c.h.b16 %v3963
        %v4057 = vunpack.c.l.b16 %v3964
        %v4058 = vunpack.c.h.b16 %v3964
        %v4059 = vunpack.c.l.b16 %v3965
        %v4060 = vunpack.c.h.b16 %v3965
        %v4061 = vunpack.c.l.b16 %v3966
        %v4062 = vunpack.c.h.b16 %v3966
        %v4063 = vunpack.c.l.b16 %v3967
        %v4064 = vunpack.c.h.b16 %v3967
        %v4065 = vunpack.c.l.b16 %v3968
        %v4066 = vunpack.c.h.b16 %v3968
        %v4067 = vunpack.c.l.b16 %v3969
        %v4068 = vunpack.c.h.b16 %v3969
        %v4069 = vunpack.c.l.b16 %v3970
        %v4070 = vunpack.c.h.b16 %v3970
        %v4071 = vunpack.c.l.b16 %v3971
        %v4072 = vunpack.c.h.b16 %v3971
        %v4073 = vunpack.c.l.b16 %v3972
        %v4074 = vunpack.c.h.b16 %v3972
        %v4075 = vunpack.c.l.b16 %v3973
        %v4076 = vunpack.c.h.b16 %v3973
        %v4077 = vunpack.c.l.b16 %v3974
        %v4078 = vunpack.c.h.b16 %v3974
        %v4079 = vunpack.c.l.b16 %v3975
        %v4080 = vunpack.c.h.b16 %v3975
        %v4081 = vunpack.c.l.b16 %v3976
        %v4082 = vunpack.c.h.b16 %v3976
        %v4083 = vunpack.c.l.b16 %v3977
        %v4084 = vunpack.c.h.b16 %v3977
        %v4085 = vunpack.c.l.b16 %v3978
        %v4086 = vunpack.c.h.b16 %v3978
        %v4087 = vunpack.c.l.b16 %v3979
        %v4088 = vunpack.c.h.b16 %v3979
        %v4089 = vunpack.c.l.b16 %v3980
        %v4090 = vunpack.c.h.b16 %v3980
        %v4091 = vunpack.c.l.b16 %v3981
        %v4092 = vunpack.c.h.b16 %v3981
        %v4093 = vunpack.c.l.b16 %v3982
        %v4094 = vunpack.c.h.b16 %v3982
        %v4095 = vunpack.c.l.b16 %v3983
        %v4096 = vunpack.c.h.b16 %v3983
        %v4097 = vunpack.c.l.b16 %v3984
        %v4098 = vunpack.c.h.b16 %v3984
        %v4099 = vpack.c.b16 %v4039, %v4035
        %v4100 = vpack.c.b16 %v4040, %v4036
        %v4101 = vpack.c.b16 %v4041, %v4037
        %v4102 = vpack.c.b16 %v4042, %v4038
        %v4103 = vpack.c.b16 %v4047, %v4043
        %v4104 = vpack.c.b16 %v4048, %v4044
        %v4105 = vpack.c.b16 %v4049, %v4045
        %v4106 = vpack.c.b16 %v4050, %v4046
        %v4107 = vpack.c.b16 %v4055, %v4051
        %v4108 = vpack.c.b16 %v4056, %v4052
        %v4109 = vpack.c.b16 %v4057, %v4053
        %v4110 = vpack.c.b16 %v4058, %v4054
        %v4111 = vpack.c.b16 %v4063, %v4059
        %v4112 = vpack.c.b16 %v4064, %v4060
        %v4113 = vpack.c.b16 %v4065, %v4061
        %v4114 = vpack.c.b16 %v4066, %v4062
        %v4115 = vpack.c.b16 %v4071, %v4067
        %v4116 = vpack.c.b16 %v4072, %v4068
        %v4117 = vpack.c.b16 %v4073, %v4069
        %v4118 = vpack.c.b16 %v4074, %v4070
        %v4119 = vpack.c.b16 %v4079, %v4075
        %v4120 = vpack.c.b16 %v4080, %v4076
        %v4121 = vpack.c.b16 %v4081, %v4077
        %v4122 = vpack.c.b16 %v4082, %v4078
        %v4123 = vpack.c.b16 %v4087, %v4083
        %v4124 = vpack.c.b16 %v4088, %v4084
        %v4125 = vpack.c.b16 %v4089, %v4085
        %v4126 = vpack.c.b16 %v4090, %v4086
        %v4127 = vpack.c.b16 %v4095, %v4091
        %v4128 = vpack.c.b16 %v4096, %v4092
        %v4129 = vpack.c.b16 %v4097, %v4093
        %v4130 = vpack.c.b16 %v4098, %v4094
        %4163 = vmatpush.bf16.msra.mxu0 %v4127
        %4164 = vmatpush.bf16.msra.mxu0 %v4123
        %4165 = vmatpush.bf16.msra.mxu0 %v4119
        %4166 = vmatpush.bf16.msra.mxu0 %v4115
        %4167 = vmatpush.bf16.msra.mxu0 %v4111
        %4168 = vmatpush.bf16.msra.mxu0 %v4107
        %4169 = vmatpush.bf16.msra.mxu0 %v4103
        %4170 = vmatpush.bf16.msra.mxu0 %v4099
        %4171 = vmatmul.bf16.gmra.mxu0 %v3985
        %v4172 = vpop.f32.mrf.mxu0
        %v4173 = vadd.f32 %v3995, %v4172
        %v4174 = vpop.f32.mrf.mxu0
        %v4175 = vadd.f32 %v3995, %v4174
        %4176 = vmatmul.bf16.gmra.mxu0 %v3986
        %v4177 = vpop.f32.mrf.mxu0
        %v4178 = vadd.f32 %v3995, %v4177
        %v4179 = vpop.f32.mrf.mxu0
        %v4180 = vadd.f32 %v3995, %v4179
        %4181 = vmatmul.bf16.gmra.mxu0 %v3987
        %v4182 = vpop.f32.mrf.mxu0
        %v4183 = vadd.f32 %v3995, %v4182
        %v4184 = vpop.f32.mrf.mxu0
        %v4185 = vadd.f32 %v3995, %v4184
        %4186 = vmatmul.bf16.gmra.mxu0 %v3988
        %v4187 = vpop.f32.mrf.mxu0
        %v4188 = vadd.f32 %v3995, %v4187
        %v4189 = vpop.f32.mrf.mxu0
        %v4190 = vadd.f32 %v3995, %v4189
        %4191 = vmatmul.bf16.gmra.mxu0 %v3989
        %v4192 = vpop.f32.mrf.mxu0
        %v4193 = vadd.f32 %v3995, %v4192
        %v4194 = vpop.f32.mrf.mxu0
        %v4195 = vadd.f32 %v3995, %v4194
        %4196 = vmatmul.bf16.gmra.mxu0 %v3990
        %v4197 = vpop.f32.mrf.mxu0
        %v4198 = vadd.f32 %v3995, %v4197
        %v4199 = vpop.f32.mrf.mxu0
        %v4200 = vadd.f32 %v3995, %v4199
        %4201 = vmatmul.bf16.gmra.mxu0 %v3991
        %v4202 = vpop.f32.mrf.mxu0
        %v4203 = vadd.f32 %v3995, %v4202
        %v4204 = vpop.f32.mrf.mxu0
        %v4205 = vadd.f32 %v3995, %v4204
        %4206 = vmatmul.bf16.gmra.mxu0 %v3992
        %v4207 = vpop.f32.mrf.mxu0
        %v4208 = vadd.f32 %v3995, %v4207
        %v4209 = vpop.f32.mrf.mxu0
        %v4210 = vadd.f32 %v3995, %v4209
        %4211 = vdwg.mxu0
        %4212 = vmatpush.bf16.msra.mxu0 %v4128
        %4213 = vmatpush.bf16.msra.mxu0 %v4124
        %4214 = vmatpush.bf16.msra.mxu0 %v4120
        %4215 = vmatpush.bf16.msra.mxu0 %v4116
        %4216 = vmatpush.bf16.msra.mxu0 %v4112
        %4217 = vmatpush.bf16.msra.mxu0 %v4108
        %4218 = vmatpush.bf16.msra.mxu0 %v4104
        %4219 = vmatpush.bf16.msra.mxu0 %v4100
        %4220 = vmatmul.bf16.gmra.mxu0 %v3985
        %v4221 = vpop.f32.mrf.mxu0
        %v4222 = vadd.f32 %v3996, %v4221
        %v4223 = vpop.f32.mrf.mxu0
        %v4224 = vadd.f32 %v3996, %v4223
        %4225 = vmatmul.bf16.gmra.mxu0 %v3986
        %v4226 = vpop.f32.mrf.mxu0
        %v4227 = vadd.f32 %v3996, %v4226
        %v4228 = vpop.f32.mrf.mxu0
        %v4229 = vadd.f32 %v3996, %v4228
        %4230 = vmatmul.bf16.gmra.mxu0 %v3987
        %v4231 = vpop.f32.mrf.mxu0
        %v4232 = vadd.f32 %v3996, %v4231
        %v4233 = vpop.f32.mrf.mxu0
        %v4234 = vadd.f32 %v3996, %v4233
        %4235 = vmatmul.bf16.gmra.mxu0 %v3988
        %v4236 = vpop.f32.mrf.mxu0
        %v4237 = vadd.f32 %v3996, %v4236
        %v4238 = vpop.f32.mrf.mxu0
        %v4239 = vadd.f32 %v3996, %v4238
        %4240 = vmatmul.bf16.gmra.mxu0 %v3989
        %v4241 = vpop.f32.mrf.mxu0
        %v4242 = vadd.f32 %v3996, %v4241
        %v4243 = vpop.f32.mrf.mxu0
        %v4244 = vadd.f32 %v3996, %v4243
        %4245 = vmatmul.bf16.gmra.mxu0 %v3990
        %v4246 = vpop.f32.mrf.mxu0
        %v4247 = vadd.f32 %v3996, %v4246
        %v4248 = vpop.f32.mrf.mxu0
        %v4249 = vadd.f32 %v3996, %v4248
        %4250 = vmatmul.bf16.gmra.mxu0 %v3991
        %v4251 = vpop.f32.mrf.mxu0
        %v4252 = vadd.f32 %v3996, %v4251
        %v4253 = vpop.f32.mrf.mxu0
        %v4254 = vadd.f32 %v3996, %v4253
        %4255 = vmatmul.bf16.gmra.mxu0 %v3992
        %v4256 = vpop.f32.mrf.mxu0
        %v4257 = vadd.f32 %v3996, %v4256
        %v4258 = vpop.f32.mrf.mxu0
        %v4259 = vadd.f32 %v3996, %v4258
        %4260 = vdwg.mxu0
        %4261 = vmatpush.bf16.msra.mxu0 %v4129
        %4262 = vmatpush.bf16.msra.mxu0 %v4125
        %4263 = vmatpush.bf16.msra.mxu0 %v4121
        %4264 = vmatpush.bf16.msra.mxu0 %v4117
        %4265 = vmatpush.bf16.msra.mxu0 %v4113
        %4266 = vmatpush.bf16.msra.mxu0 %v4109
        %4267 = vmatpush.bf16.msra.mxu0 %v4105
        %4268 = vmatpush.bf16.msra.mxu0 %v4101
        %4269 = vmatmul.bf16.gmra.mxu0 %v3985
        %v4270 = vpop.f32.mrf.mxu0
        %v4271 = vadd.f32 %v3997, %v4270
        %v4272 = vpop.f32.mrf.mxu0
        %v4273 = vadd.f32 %v3997, %v4272
        %4274 = vmatmul.bf16.gmra.mxu0 %v3986
        %v4275 = vpop.f32.mrf.mxu0
        %v4276 = vadd.f32 %v3997, %v4275
        %v4277 = vpop.f32.mrf.mxu0
        %v4278 = vadd.f32 %v3997, %v4277
        %4279 = vmatmul.bf16.gmra.mxu0 %v3987
        %v4280 = vpop.f32.mrf.mxu0
        %v4281 = vadd.f32 %v3997, %v4280
        %v4282 = vpop.f32.mrf.mxu0
        %v4283 = vadd.f32 %v3997, %v4282
        %4284 = vmatmul.bf16.gmra.mxu0 %v3988
        %v4285 = vpop.f32.mrf.mxu0
        %v4286 = vadd.f32 %v3997, %v4285
        %v4287 = vpop.f32.mrf.mxu0
        %v4288 = vadd.f32 %v3997, %v4287
        %4289 = vmatmul.bf16.gmra.mxu0 %v3989
        %v4290 = vpop.f32.mrf.mxu0
        %v4291 = vadd.f32 %v3997, %v4290
        %v4292 = vpop.f32.mrf.mxu0
        %v4293 = vadd.f32 %v3997, %v4292
        %4294 = vmatmul.bf16.gmra.mxu0 %v3990
        %v4295 = vpop.f32.mrf.mxu0
        %v4296 = vadd.f32 %v3997, %v4295
        %v4297 = vpop.f32.mrf.mxu0
        %v4298 = vadd.f32 %v3997, %v4297
        %4299 = vmatmul.bf16.gmra.mxu0 %v3991
        %v4300 = vpop.f32.mrf.mxu0
        %v4301 = vadd.f32 %v3997, %v4300
        %v4302 = vpop.f32.mrf.mxu0
        %v4303 = vadd.f32 %v3997, %v4302
        %4304 = vmatmul.bf16.gmra.mxu0 %v3992
        %v4305 = vpop.f32.mrf.mxu0
        %v4306 = vadd.f32 %v3997, %v4305
        %v4307 = vpop.f32.mrf.mxu0
        %v4308 = vadd.f32 %v3997, %v4307
        %4309 = vdwg.mxu0
        %4310 = vmatpush.bf16.msra.mxu0 %v4130
        %4311 = vmatpush.bf16.msra.mxu0 %v4126
        %4312 = vmatpush.bf16.msra.mxu0 %v4122
        %4313 = vmatpush.bf16.msra.mxu0 %v4118
        %4314 = vmatpush.bf16.msra.mxu0 %v4114
        %4315 = vmatpush.bf16.msra.mxu0 %v4110
        %4316 = vmatpush.bf16.msra.mxu0 %v4106
        %4317 = vmatpush.bf16.msra.mxu0 %v4102
        %4318 = vmatmul.bf16.gmra.mxu0 %v3985
        %v4319 = vpop.f32.mrf.mxu0
        %v4320 = vadd.f32 %v3998, %v4319
        %v4321 = vpop.f32.mrf.mxu0
        %v4322 = vadd.f32 %v3998, %v4321
        %4323 = vmatmul.bf16.gmra.mxu0 %v3986
        %v4324 = vpop.f32.mrf.mxu0
        %v4325 = vadd.f32 %v3998, %v4324
        %v4326 = vpop.f32.mrf.mxu0
        %v4327 = vadd.f32 %v3998, %v4326
        %4328 = vmatmul.bf16.gmra.mxu0 %v3987
        %v4329 = vpop.f32.mrf.mxu0
        %v4330 = vadd.f32 %v3998, %v4329
        %v4331 = vpop.f32.mrf.mxu0
        %v4332 = vadd.f32 %v3998, %v4331
        %4333 = vmatmul.bf16.gmra.mxu0 %v3988
        %v4334 = vpop.f32.mrf.mxu0
        %v4335 = vadd.f32 %v3998, %v4334
        %v4336 = vpop.f32.mrf.mxu0
        %v4337 = vadd.f32 %v3998, %v4336
        %4338 = vmatmul.bf16.gmra.mxu0 %v3989
        %v4339 = vpop.f32.mrf.mxu0
        %v4340 = vadd.f32 %v3998, %v4339
        %v4341 = vpop.f32.mrf.mxu0
        %v4342 = vadd.f32 %v3998, %v4341
        %4343 = vmatmul.bf16.gmra.mxu0 %v3990
        %v4344 = vpop.f32.mrf.mxu0
        %v4345 = vadd.f32 %v3998, %v4344
        %v4346 = vpop.f32.mrf.mxu0
        %v4347 = vadd.f32 %v3998, %v4346
        %4348 = vmatmul.bf16.gmra.mxu0 %v3991
        %v4349 = vpop.f32.mrf.mxu0
        %v4350 = vadd.f32 %v3998, %v4349
        %v4351 = vpop.f32.mrf.mxu0
        %v4352 = vadd.f32 %v3998, %v4351
        %4353 = vmatmul.bf16.gmra.mxu0 %v3992
        %v4354 = vpop.f32.mrf.mxu0
        %v4355 = vadd.f32 %v3998, %v4354
        %v4356 = vpop.f32.mrf.mxu0
        %v4357 = vadd.f32 %v3998, %v4356
        %4358 = vdwg.mxu0
        %v4359 = vmax.f32 %v4173, 0.0
        %v4360 = vmax.f32 %v4222, 0.0
        %v4361 = vmax.f32 %v4271, 0.0
        %v4362 = vmax.f32 %v4320, 0.0
        %v4363 = vmax.f32 %v4175, 0.0
        %v4364 = vmax.f32 %v4224, 0.0
        %v4365 = vmax.f32 %v4273, 0.0
        %v4366 = vmax.f32 %v4322, 0.0
        %v4367 = vmax.f32 %v4178, 0.0
        %v4368 = vmax.f32 %v4227, 0.0
        %v4369 = vmax.f32 %v4276, 0.0
        %v4370 = vmax.f32 %v4325, 0.0
        %v4371 = vmax.f32 %v4180, 0.0
        %v4372 = vmax.f32 %v4229, 0.0
        %v4373 = vmax.f32 %v4278, 0.0
        %v4374 = vmax.f32 %v4327, 0.0
        %v4375 = vmax.f32 %v4183, 0.0
        %v4376 = vmax.f32 %v4232, 0.0
        %v4377 = vmax.f32 %v4281, 0.0
        %v4378 = vmax.f32 %v4330, 0.0
        %v4379 = vmax.f32 %v4185, 0.0
        %v4380 = vmax.f32 %v4234, 0.0
        %v4381 = vmax.f32 %v4283, 0.0
        %v4382 = vmax.f32 %v4332, 0.0
        %v4383 = vmax.f32 %v4188, 0.0
        %v4384 = vmax.f32 %v4237, 0.0
        %v4385 = vmax.f32 %v4286, 0.0
        %v4386 = vmax.f32 %v4335, 0.0
        %v4387 = vmax.f32 %v4190, 0.0
        %v4388 = vmax.f32 %v4239, 0.0
        %v4389 = vmax.f32 %v4288, 0.0
        %v4390 = vmax.f32 %v4337, 0.0
        %v4391 = vmax.f32 %v4193, 0.0
        %v4392 = vmax.f32 %v4242, 0.0
        %v4393 = vmax.f32 %v4291, 0.0
        %v4394 = vmax.f32 %v4340, 0.0
        %v4395 = vmax.f32 %v4195, 0.0
        %v4396 = vmax.f32 %v4244, 0.0
        %v4397 = vmax.f32 %v4293, 0.0
        %v4398 = vmax.f32 %v4342, 0.0
        %v4399 = vmax.f32 %v4198, 0.0
        %v4400 = vmax.f32 %v4247, 0.0
        %v4401 = vmax.f32 %v4296, 0.0
        %v4402 = vmax.f32 %v4345, 0.0
        %v4403 = vmax.f32 %v4200, 0.0
        %v4404 = vmax.f32 %v4249, 0.0
        %v4405 = vmax.f32 %v4298, 0.0
        %v4406 = vmax.f32 %v4347, 0.0
        %v4407 = vmax.f32 %v4203, 0.0
        %v4408 = vmax.f32 %v4252, 0.0
        %v4409 = vmax.f32 %v4301, 0.0
        %v4410 = vmax.f32 %v4350, 0.0
        %v4411 = vmax.f32 %v4205, 0.0
        %v4412 = vmax.f32 %v4254, 0.0
        %v4413 = vmax.f32 %v4303, 0.0
        %v4414 = vmax.f32 %v4352, 0.0
        %v4415 = vmax.f32 %v4208, 0.0
        %v4416 = vmax.f32 %v4257, 0.0
        %v4417 = vmax.f32 %v4306, 0.0
        %v4418 = vmax.f32 %v4355, 0.0
        %v4419 = vmax.f32 %v4210, 0.0
        %v4420 = vmax.f32 %v4259, 0.0
        %v4421 = vmax.f32 %v4308, 0.0
        %v4422 = vmax.f32 %v4357, 0.0
        %v4423 = vld [vmem:[#allocation10] sm:$0xf]
        %v4424 = vld [vmem:[#allocation10 + $0x4] sm:$0xf]
        %v4425 = vld [vmem:[#allocation10 + $0x8] sm:$0xf]
        %v4426 = vld [vmem:[#allocation10 + $0xc] sm:$0xf]
        %v4427 = vld [vmem:[#allocation10 + $0x10] sm:$0xf]
        %v4428 = vld [vmem:[#allocation10 + $0x14] sm:$0xf]
        %v4429 = vld [vmem:[#allocation10 + $0x18] sm:$0xf]
        %v4430 = vld [vmem:[#allocation10 + $0x1c] sm:$0xf]
        %v4431 = vld [vmem:[#allocation10 + $0x20] sm:$0xf]
        %v4432 = vld [vmem:[#allocation10 + $0x24] sm:$0xf]
        %v4433 = vld [vmem:[#allocation10 + $0x28] sm:$0xf]
        %v4434 = vld [vmem:[#allocation10 + $0x2c] sm:$0xf]
        %v4435 = vld [vmem:[#allocation10 + $0x30] sm:$0xf]
        %v4436 = vld [vmem:[#allocation10 + $0x34] sm:$0xf]
        %v4437 = vld [vmem:[#allocation10 + $0x38] sm:$0xf]
        %v4438 = vld [vmem:[#allocation10 + $0x3c] sm:$0xf]
        %v4439 = vld [vmem:[#allocation10 + $0x40] sm:$0xf]
        %v4440 = vld [vmem:[#allocation10 + $0x44] sm:$0xf]
        %v4441 = vld [vmem:[#allocation10 + $0x48] sm:$0xf]
        %v4442 = vld [vmem:[#allocation10 + $0x4c] sm:$0xf]
        %v4443 = vld [vmem:[#allocation10 + $0x50] sm:$0xf]
        %v4444 = vld [vmem:[#allocation10 + $0x54] sm:$0xf]
        %v4445 = vld [vmem:[#allocation10 + $0x58] sm:$0xf]
        %v4446 = vld [vmem:[#allocation10 + $0x5c] sm:$0xf]
        %v4447 = vld [vmem:[#allocation10 + $0x60] sm:$0xf]
        %v4448 = vld [vmem:[#allocation10 + $0x64] sm:$0xf]
        %v4449 = vld [vmem:[#allocation10 + $0x68] sm:$0xf]
        %v4450 = vld [vmem:[#allocation10 + $0x6c] sm:$0xf]
        %v4451 = vld [vmem:[#allocation10 + $0x70] sm:$0xf]
        %v4452 = vld [vmem:[#allocation10 + $0x74] sm:$0xf]
        %v4453 = vld [vmem:[#allocation10 + $0x78] sm:$0xf]
        %v4454 = vld [vmem:[#allocation10 + $0x7c] sm:$0xf]
        %v4455 = vld [vmem:[#allocation10 + $0x80] sm:$0xf]
        %v4456 = vld [vmem:[#allocation10 + $0x84] sm:$0xf]
        %v4457 = vld [vmem:[#allocation10 + $0x88] sm:$0xf]
        %v4458 = vld [vmem:[#allocation10 + $0x8c] sm:$0xf]
        %v4459 = vld [vmem:[#allocation10 + $0x90] sm:$0xf]
        %v4460 = vld [vmem:[#allocation10 + $0x94] sm:$0xf]
        %v4461 = vld [vmem:[#allocation10 + $0x98] sm:$0xf]
        %v4462 = vld [vmem:[#allocation10 + $0x9c] sm:$0xf]
        %v4463 = vld [vmem:[#allocation10 + $0xa0] sm:$0xf]
        %v4464 = vld [vmem:[#allocation10 + $0xa4] sm:$0xf]
        %v4465 = vld [vmem:[#allocation10 + $0xa8] sm:$0xf]
        %v4466 = vld [vmem:[#allocation10 + $0xac] sm:$0xf]
        %v4467 = vld [vmem:[#allocation10 + $0xb0] sm:$0xf]
        %v4468 = vld [vmem:[#allocation10 + $0xb4] sm:$0xf]
        %v4469 = vld [vmem:[#allocation10 + $0xb8] sm:$0xf]
        %v4470 = vld [vmem:[#allocation10 + $0xbc] sm:$0xf]
        %v4471 = vld [vmem:[#allocation10 + $0xc0] sm:$0xf]
        %v4472 = vld [vmem:[#allocation10 + $0xc4] sm:$0xf]
        %v4473 = vld [vmem:[#allocation10 + $0xc8] sm:$0xf]
        %v4474 = vld [vmem:[#allocation10 + $0xcc] sm:$0xf]
        %v4475 = vld [vmem:[#allocation10 + $0xd0] sm:$0xf]
        %v4476 = vld [vmem:[#allocation10 + $0xd4] sm:$0xf]
        %v4477 = vld [vmem:[#allocation10 + $0xd8] sm:$0xf]
        %v4478 = vld [vmem:[#allocation10 + $0xdc] sm:$0xf]
        %v4479 = vld [vmem:[#allocation10 + $0xe0] sm:$0xf]
        %v4480 = vld [vmem:[#allocation10 + $0xe4] sm:$0xf]
        %v4481 = vld [vmem:[#allocation10 + $0xe8] sm:$0xf]
        %v4482 = vld [vmem:[#allocation10 + $0xec] sm:$0xf]
        %v4483 = vld [vmem:[#allocation10 + $0xf0] sm:$0xf]
        %v4484 = vld [vmem:[#allocation10 + $0xf4] sm:$0xf]
        %v4485 = vld [vmem:[#allocation10 + $0xf8] sm:$0xf]
        %v4486 = vld [vmem:[#allocation10 + $0xfc] sm:$0xf]
        %v4487 = vpack.c.bf16 %v4363, %v4359
        %v4488 = vpack.c.bf16 %v4364, %v4360
        %v4489 = vpack.c.bf16 %v4365, %v4361
        %v4490 = vpack.c.bf16 %v4366, %v4362
        %v4491 = vpack.c.bf16 %v4371, %v4367
        %v4492 = vpack.c.bf16 %v4372, %v4368
        %v4493 = vpack.c.bf16 %v4373, %v4369
        %v4494 = vpack.c.bf16 %v4374, %v4370
        %v4495 = vpack.c.bf16 %v4379, %v4375
        %v4496 = vpack.c.bf16 %v4380, %v4376
        %v4497 = vpack.c.bf16 %v4381, %v4377
        %v4498 = vpack.c.bf16 %v4382, %v4378
        %v4499 = vpack.c.bf16 %v4387, %v4383
        %v4500 = vpack.c.bf16 %v4388, %v4384
        %v4501 = vpack.c.bf16 %v4389, %v4385
        %v4502 = vpack.c.bf16 %v4390, %v4386
        %v4503 = vpack.c.bf16 %v4395, %v4391
        %v4504 = vpack.c.bf16 %v4396, %v4392
        %v4505 = vpack.c.bf16 %v4397, %v4393
        %v4506 = vpack.c.bf16 %v4398, %v4394
        %v4507 = vpack.c.bf16 %v4403, %v4399
        %v4508 = vpack.c.bf16 %v4404, %v4400
        %v4509 = vpack.c.bf16 %v4405, %v4401
        %v4510 = vpack.c.bf16 %v4406, %v4402
        %v4511 = vpack.c.bf16 %v4411, %v4407
        %v4512 = vpack.c.bf16 %v4412, %v4408
        %v4513 = vpack.c.bf16 %v4413, %v4409
        %v4514 = vpack.c.bf16 %v4414, %v4410
        %v4515 = vpack.c.bf16 %v4419, %v4415
        %v4516 = vpack.c.bf16 %v4420, %v4416
        %v4517 = vpack.c.bf16 %v4421, %v4417
        %v4518 = vpack.c.bf16 %v4422, %v4418
        %v4583 = vunpack.c.l.b16 %v4423
        %v4584 = vunpack.c.l.b16 %v4424
        %v4585 = vunpack.c.l.b16 %v4425
        %v4586 = vunpack.c.l.b16 %v4426
        %v4587 = vunpack.c.l.b16 %v4427
        %v4588 = vunpack.c.l.b16 %v4428
        %v4589 = vunpack.c.l.b16 %v4429
        %v4590 = vunpack.c.l.b16 %v4430
        %v4591 = vunpack.c.l.b16 %v4431
        %v4592 = vunpack.c.l.b16 %v4432
        %v4593 = vunpack.c.l.b16 %v4433
        %v4594 = vunpack.c.l.b16 %v4434
        %v4595 = vunpack.c.l.b16 %v4435
        %v4596 = vunpack.c.l.b16 %v4436
        %v4597 = vunpack.c.l.b16 %v4437
        %v4598 = vunpack.c.l.b16 %v4438
        %v4599 = vunpack.c.l.b16 %v4439
        %v4600 = vunpack.c.l.b16 %v4440
        %v4601 = vunpack.c.l.b16 %v4441
        %v4602 = vunpack.c.l.b16 %v4442
        %v4603 = vunpack.c.l.b16 %v4443
        %v4604 = vunpack.c.l.b16 %v4444
        %v4605 = vunpack.c.l.b16 %v4445
        %v4606 = vunpack.c.l.b16 %v4446
        %v4607 = vunpack.c.l.b16 %v4447
        %v4608 = vunpack.c.l.b16 %v4448
        %v4609 = vunpack.c.l.b16 %v4449
        %v4610 = vunpack.c.l.b16 %v4450
        %v4611 = vunpack.c.l.b16 %v4451
        %v4612 = vunpack.c.l.b16 %v4452
        %v4613 = vunpack.c.l.b16 %v4453
        %v4614 = vunpack.c.l.b16 %v4454
        %v4615 = vunpack.c.l.b16 %v4455
        %v4616 = vunpack.c.l.b16 %v4456
        %v4617 = vunpack.c.l.b16 %v4457
        %v4618 = vunpack.c.l.b16 %v4458
        %v4619 = vunpack.c.l.b16 %v4459
        %v4620 = vunpack.c.l.b16 %v4460
        %v4621 = vunpack.c.l.b16 %v4461
        %v4622 = vunpack.c.l.b16 %v4462
        %v4623 = vunpack.c.l.b16 %v4463
        %v4624 = vunpack.c.l.b16 %v4464
        %v4625 = vunpack.c.l.b16 %v4465
        %v4626 = vunpack.c.l.b16 %v4466
        %v4627 = vunpack.c.l.b16 %v4467
        %v4628 = vunpack.c.l.b16 %v4468
        %v4629 = vunpack.c.l.b16 %v4469
        %v4630 = vunpack.c.l.b16 %v4470
        %v4631 = vunpack.c.l.b16 %v4471
        %v4632 = vunpack.c.l.b16 %v4472
        %v4633 = vunpack.c.l.b16 %v4473
        %v4634 = vunpack.c.l.b16 %v4474
        %v4635 = vunpack.c.l.b16 %v4475
        %v4636 = vunpack.c.l.b16 %v4476
        %v4637 = vunpack.c.l.b16 %v4477
        %v4638 = vunpack.c.l.b16 %v4478
        %v4639 = vunpack.c.l.b16 %v4479
        %v4640 = vunpack.c.l.b16 %v4480
        %v4641 = vunpack.c.l.b16 %v4481
        %v4642 = vunpack.c.l.b16 %v4482
        %v4643 = vunpack.c.l.b16 %v4483
        %v4644 = vunpack.c.l.b16 %v4484
        %v4645 = vunpack.c.l.b16 %v4485
        %v4646 = vunpack.c.l.b16 %v4486
        %v4647 = vpack.c.b16 %v4584, %v4583
        %v4648 = vpack.c.b16 %v4586, %v4585
        %v4649 = vpack.c.b16 %v4588, %v4587
        %v4650 = vpack.c.b16 %v4590, %v4589
        %v4651 = vpack.c.b16 %v4592, %v4591
        %v4652 = vpack.c.b16 %v4594, %v4593
        %v4653 = vpack.c.b16 %v4596, %v4595
        %v4654 = vpack.c.b16 %v4598, %v4597
        %v4655 = vpack.c.b16 %v4600, %v4599
        %v4656 = vpack.c.b16 %v4602, %v4601
        %v4657 = vpack.c.b16 %v4604, %v4603
        %v4658 = vpack.c.b16 %v4606, %v4605
        %v4659 = vpack.c.b16 %v4608, %v4607
        %v4660 = vpack.c.b16 %v4610, %v4609
        %v4661 = vpack.c.b16 %v4612, %v4611
        %v4662 = vpack.c.b16 %v4614, %v4613
        %v4663 = vpack.c.b16 %v4616, %v4615
        %v4664 = vpack.c.b16 %v4618, %v4617
        %v4665 = vpack.c.b16 %v4620, %v4619
        %v4666 = vpack.c.b16 %v4622, %v4621
        %v4667 = vpack.c.b16 %v4624, %v4623
        %v4668 = vpack.c.b16 %v4626, %v4625
        %v4669 = vpack.c.b16 %v4628, %v4627
        %v4670 = vpack.c.b16 %v4630, %v4629
        %v4671 = vpack.c.b16 %v4632, %v4631
        %v4672 = vpack.c.b16 %v4634, %v4633
        %v4673 = vpack.c.b16 %v4636, %v4635
        %v4674 = vpack.c.b16 %v4638, %v4637
        %v4675 = vpack.c.b16 %v4640, %v4639
        %v4676 = vpack.c.b16 %v4642, %v4641
        %v4677 = vpack.c.b16 %v4644, %v4643
        %v4678 = vpack.c.b16 %v4646, %v4645
        %4711 = vmatpush.bf16.msra.mxu0 %v4654
        %4712 = vmatpush.bf16.msra.mxu0 %v4653
        %4713 = vmatpush.bf16.msra.mxu0 %v4652
        %4714 = vmatpush.bf16.msra.mxu0 %v4651
        %4715 = vmatpush.bf16.msra.mxu0 %v4650
        %4716 = vmatpush.bf16.msra.mxu0 %v4649
        %4717 = vmatpush.bf16.msra.mxu0 %v4648
        %4718 = vmatpush.bf16.msra.mxu0 %v4647
        %4719 = vmatmul.bf16.gmra.mxu0 %v4487
        %v4720 = vpop.f32.mrf.mxu0
        %v4721 = vadd.f32 0.0, %v4720
        %v4722 = vpop.f32.mrf.mxu0
        %v4723 = vadd.f32 0.0, %v4722
        %4724 = vmatmul.bf16.gmra.mxu0 %v4491
        %v4725 = vpop.f32.mrf.mxu0
        %v4726 = vadd.f32 0.0, %v4725
        %v4727 = vpop.f32.mrf.mxu0
        %v4728 = vadd.f32 0.0, %v4727
        %4729 = vmatmul.bf16.gmra.mxu0 %v4495
        %v4730 = vpop.f32.mrf.mxu0
        %v4731 = vadd.f32 0.0, %v4730
        %v4732 = vpop.f32.mrf.mxu0
        %v4733 = vadd.f32 0.0, %v4732
        %4734 = vmatmul.bf16.gmra.mxu0 %v4499
        %v4735 = vpop.f32.mrf.mxu0
        %v4736 = vadd.f32 0.0, %v4735
        %v4737 = vpop.f32.mrf.mxu0
        %v4738 = vadd.f32 0.0, %v4737
        %4739 = vmatmul.bf16.gmra.mxu0 %v4503
        %v4740 = vpop.f32.mrf.mxu0
        %v4741 = vadd.f32 0.0, %v4740
        %v4742 = vpop.f32.mrf.mxu0
        %v4743 = vadd.f32 0.0, %v4742
        %4744 = vmatmul.bf16.gmra.mxu0 %v4507
        %v4745 = vpop.f32.mrf.mxu0
        %v4746 = vadd.f32 0.0, %v4745
        %v4747 = vpop.f32.mrf.mxu0
        %v4748 = vadd.f32 0.0, %v4747
        %4749 = vmatmul.bf16.gmra.mxu0 %v4511
        %v4750 = vpop.f32.mrf.mxu0
        %v4751 = vadd.f32 0.0, %v4750
        %v4752 = vpop.f32.mrf.mxu0
        %v4753 = vadd.f32 0.0, %v4752
        %4754 = vmatmul.bf16.gmra.mxu0 %v4515
        %v4755 = vpop.f32.mrf.mxu0
        %v4756 = vadd.f32 0.0, %v4755
        %v4757 = vpop.f32.mrf.mxu0
        %v4758 = vadd.f32 0.0, %v4757
        %4759 = vdwg.mxu0
        %4760 = vmatpush.bf16.msra.mxu0 %v4662
        %4761 = vmatpush.bf16.msra.mxu0 %v4661
        %4762 = vmatpush.bf16.msra.mxu0 %v4660
        %4763 = vmatpush.bf16.msra.mxu0 %v4659
        %4764 = vmatpush.bf16.msra.mxu0 %v4658
        %4765 = vmatpush.bf16.msra.mxu0 %v4657
        %4766 = vmatpush.bf16.msra.mxu0 %v4656
        %4767 = vmatpush.bf16.msra.mxu0 %v4655
        %4768 = vmatmul.bf16.gmra.mxu0 %v4488
        %v4769 = vpop.f32.mrf.mxu0
        %v4770 = vadd.f32 %v4721, %v4769
        %v4771 = vpop.f32.mrf.mxu0
        %v4772 = vadd.f32 %v4723, %v4771
        %4773 = vmatmul.bf16.gmra.mxu0 %v4492
        %v4774 = vpop.f32.mrf.mxu0
        %v4775 = vadd.f32 %v4726, %v4774
        %v4776 = vpop.f32.mrf.mxu0
        %v4777 = vadd.f32 %v4728, %v4776
        %4778 = vmatmul.bf16.gmra.mxu0 %v4496
        %v4779 = vpop.f32.mrf.mxu0
        %v4780 = vadd.f32 %v4731, %v4779
        %v4781 = vpop.f32.mrf.mxu0
        %v4782 = vadd.f32 %v4733, %v4781
        %4783 = vmatmul.bf16.gmra.mxu0 %v4500
        %v4784 = vpop.f32.mrf.mxu0
        %v4785 = vadd.f32 %v4736, %v4784
        %v4786 = vpop.f32.mrf.mxu0
        %v4787 = vadd.f32 %v4738, %v4786
        %4788 = vmatmul.bf16.gmra.mxu0 %v4504
        %v4789 = vpop.f32.mrf.mxu0
        %v4790 = vadd.f32 %v4741, %v4789
        %v4791 = vpop.f32.mrf.mxu0
        %v4792 = vadd.f32 %v4743, %v4791
        %4793 = vmatmul.bf16.gmra.mxu0 %v4508
        %v4794 = vpop.f32.mrf.mxu0
        %v4795 = vadd.f32 %v4746, %v4794
        %v4796 = vpop.f32.mrf.mxu0
        %v4797 = vadd.f32 %v4748, %v4796
        %4798 = vmatmul.bf16.gmra.mxu0 %v4512
        %v4799 = vpop.f32.mrf.mxu0
        %v4800 = vadd.f32 %v4751, %v4799
        %v4801 = vpop.f32.mrf.mxu0
        %v4802 = vadd.f32 %v4753, %v4801
        %4803 = vmatmul.bf16.gmra.mxu0 %v4516
        %v4804 = vpop.f32.mrf.mxu0
        %v4805 = vadd.f32 %v4756, %v4804
        %v4806 = vpop.f32.mrf.mxu0
        %v4807 = vadd.f32 %v4758, %v4806
        %4808 = vdwg.mxu0
        %4809 = vmatpush.bf16.msra.mxu0 %v4670
        %4810 = vmatpush.bf16.msra.mxu0 %v4669
        %4811 = vmatpush.bf16.msra.mxu0 %v4668
        %4812 = vmatpush.bf16.msra.mxu0 %v4667
        %4813 = vmatpush.bf16.msra.mxu0 %v4666
        %4814 = vmatpush.bf16.msra.mxu0 %v4665
        %4815 = vmatpush.bf16.msra.mxu0 %v4664
        %4816 = vmatpush.bf16.msra.mxu0 %v4663
        %4817 = vmatmul.bf16.gmra.mxu0 %v4489
        %v4818 = vpop.f32.mrf.mxu0
        %v4819 = vadd.f32 %v4770, %v4818
        %v4820 = vpop.f32.mrf.mxu0
        %v4821 = vadd.f32 %v4772, %v4820
        %4822 = vmatmul.bf16.gmra.mxu0 %v4493
        %v4823 = vpop.f32.mrf.mxu0
        %v4824 = vadd.f32 %v4775, %v4823
        %v4825 = vpop.f32.mrf.mxu0
        %v4826 = vadd.f32 %v4777, %v4825
        %4827 = vmatmul.bf16.gmra.mxu0 %v4497
        %v4828 = vpop.f32.mrf.mxu0
        %v4829 = vadd.f32 %v4780, %v4828
        %v4830 = vpop.f32.mrf.mxu0
        %v4831 = vadd.f32 %v4782, %v4830
        %4832 = vmatmul.bf16.gmra.mxu0 %v4501
        %v4833 = vpop.f32.mrf.mxu0
        %v4834 = vadd.f32 %v4785, %v4833
        %v4835 = vpop.f32.mrf.mxu0
        %v4836 = vadd.f32 %v4787, %v4835
        %4837 = vmatmul.bf16.gmra.mxu0 %v4505
        %v4838 = vpop.f32.mrf.mxu0
        %v4839 = vadd.f32 %v4790, %v4838
        %v4840 = vpop.f32.mrf.mxu0
        %v4841 = vadd.f32 %v4792, %v4840
        %4842 = vmatmul.bf16.gmra.mxu0 %v4509
        %v4843 = vpop.f32.mrf.mxu0
        %v4844 = vadd.f32 %v4795, %v4843
        %v4845 = vpop.f32.mrf.mxu0
        %v4846 = vadd.f32 %v4797, %v4845
        %4847 = vmatmul.bf16.gmra.mxu0 %v4513
        %v4848 = vpop.f32.mrf.mxu0
        %v4849 = vadd.f32 %v4800, %v4848
        %v4850 = vpop.f32.mrf.mxu0
        %v4851 = vadd.f32 %v4802, %v4850
        %4852 = vmatmul.bf16.gmra.mxu0 %v4517
        %v4853 = vpop.f32.mrf.mxu0
        %v4854 = vadd.f32 %v4805, %v4853
        %v4855 = vpop.f32.mrf.mxu0
        %v4856 = vadd.f32 %v4807, %v4855
        %4857 = vdwg.mxu0
        %4858 = vmatpush.bf16.msra.mxu0 %v4678
        %4859 = vmatpush.bf16.msra.mxu0 %v4677
        %4860 = vmatpush.bf16.msra.mxu0 %v4676
        %4861 = vmatpush.bf16.msra.mxu0 %v4675
        %4862 = vmatpush.bf16.msra.mxu0 %v4674
        %4863 = vmatpush.bf16.msra.mxu0 %v4673
        %4864 = vmatpush.bf16.msra.mxu0 %v4672
        %4865 = vmatpush.bf16.msra.mxu0 %v4671
        %4866 = vmatmul.bf16.gmra.mxu0 %v4490
        %v4867 = vpop.f32.mrf.mxu0
        %v4868 = vadd.f32 %v4819, %v4867
        %v4869 = vpop.f32.mrf.mxu0
        %v4870 = vadd.f32 %v4821, %v4869
        %4871 = vmatmul.bf16.gmra.mxu0 %v4494
        %v4872 = vpop.f32.mrf.mxu0
        %v4873 = vadd.f32 %v4824, %v4872
        %v4874 = vpop.f32.mrf.mxu0
        %v4875 = vadd.f32 %v4826, %v4874
        %4876 = vmatmul.bf16.gmra.mxu0 %v4498
        %v4877 = vpop.f32.mrf.mxu0
        %v4878 = vadd.f32 %v4829, %v4877
        %v4879 = vpop.f32.mrf.mxu0
        %v4880 = vadd.f32 %v4831, %v4879
        %4881 = vmatmul.bf16.gmra.mxu0 %v4502
        %v4882 = vpop.f32.mrf.mxu0
        %v4883 = vadd.f32 %v4834, %v4882
        %v4884 = vpop.f32.mrf.mxu0
        %v4885 = vadd.f32 %v4836, %v4884
        %4886 = vmatmul.bf16.gmra.mxu0 %v4506
        %v4887 = vpop.f32.mrf.mxu0
        %v4888 = vadd.f32 %v4839, %v4887
        %v4889 = vpop.f32.mrf.mxu0
        %v4890 = vadd.f32 %v4841, %v4889
        %4891 = vmatmul.bf16.gmra.mxu0 %v4510
        %v4892 = vpop.f32.mrf.mxu0
        %v4893 = vadd.f32 %v4844, %v4892
        %v4894 = vpop.f32.mrf.mxu0
        %v4895 = vadd.f32 %v4846, %v4894
        %4896 = vmatmul.bf16.gmra.mxu0 %v4514
        %v4897 = vpop.f32.mrf.mxu0
        %v4898 = vadd.f32 %v4849, %v4897
        %v4899 = vpop.f32.mrf.mxu0
        %v4900 = vadd.f32 %v4851, %v4899
        %4901 = vmatmul.bf16.gmra.mxu0 %v4518
        %v4902 = vpop.f32.mrf.mxu0
        %v4903 = vadd.f32 %v4854, %v4902
        %v4904 = vpop.f32.mrf.mxu0
        %v4905 = vadd.f32 %v4856, %v4904
        %4906 = vdwg.mxu0
        %v4907 = vadd.f32 %v3577, %v4868
        %v4908 = vadd.f32 %v3578, %v4870
        %v4909 = vadd.f32 %v3579, %v4873
        %v4910 = vadd.f32 %v3580, %v4875
        %v4911 = vadd.f32 %v3581, %v4878
        %v4912 = vadd.f32 %v3582, %v4880
        %v4913 = vadd.f32 %v3583, %v4883
        %v4914 = vadd.f32 %v3584, %v4885
        %v4915 = vadd.f32 %v3585, %v4888
        %v4916 = vadd.f32 %v3586, %v4890
        %v4917 = vadd.f32 %v3587, %v4893
        %v4918 = vadd.f32 %v3588, %v4895
        %v4919 = vadd.f32 %v3589, %v4898
        %v4920 = vadd.f32 %v3590, %v4900
        %v4921 = vadd.f32 %v3591, %v4903
        %v4922 = vadd.f32 %v3592, %v4905
        %v4923 = vld [vmem:[#allocation12] sm:$0x1]
        %v4925 = vperm.slane %v4923, 0
        %v4927 = vadd.f32 %v4907, %v4925
        %v4928 = vadd.f32 %v4908, %v4925
        %v4929 = vadd.f32 %v4909, %v4925
        %v4930 = vadd.f32 %v4910, %v4925
        %v4931 = vadd.f32 %v4911, %v4925
        %v4932 = vadd.f32 %v4912, %v4925
        %v4933 = vadd.f32 %v4913, %v4925
        %v4934 = vadd.f32 %v4914, %v4925
        %v4935 = vadd.f32 %v4915, %v4925
        %v4936 = vadd.f32 %v4916, %v4925
        %v4937 = vadd.f32 %v4917, %v4925
        %v4938 = vadd.f32 %v4918, %v4925
        %v4939 = vadd.f32 %v4919, %v4925
        %v4940 = vadd.f32 %v4920, %v4925
        %v4941 = vadd.f32 %v4921, %v4925
        %v4942 = vadd.f32 %v4922, %v4925
        %s4943 = scalar_lea.vmem %s3, 1
        %v4944 = vld [vmem:[%s4943] sm:$0x1]
        %s4945 = scalar_lea.vmem [#allocation2], 1
        %v4946 = vld [vmem:[%s4945] sm:$0x1]
        %4947 = vadd.xlane.f32.xlu0 %v4927
        %v4948 = vpop.xlane.xlu0 %4947
        %4949 = vadd.xlane.f32.xlu0 %v4928
        %v4950 = vpop.xlane.xlu0 %4949
        %4951 = vadd.xlane.f32.xlu0 %v4929
        %v4952 = vpop.xlane.xlu0 %4951
        %4953 = vadd.xlane.f32.xlu0 %v4930
        %v4954 = vpop.xlane.xlu0 %4953
        %4955 = vadd.xlane.f32.xlu0 %v4931
        %v4956 = vpop.xlane.xlu0 %4955
        %4957 = vadd.xlane.f32.xlu0 %v4932
        %v4958 = vpop.xlane.xlu0 %4957
        %4959 = vadd.xlane.f32.xlu0 %v4933
        %v4960 = vpop.xlane.xlu0 %4959
        %4961 = vadd.xlane.f32.xlu0 %v4934
        %v4962 = vpop.xlane.xlu0 %4961
        %4963 = vadd.xlane.f32.xlu0 %v4935
        %v4964 = vpop.xlane.xlu0 %4963
        %4965 = vadd.xlane.f32.xlu0 %v4936
        %v4966 = vpop.xlane.xlu0 %4965
        %4967 = vadd.xlane.f32.xlu0 %v4937
        %v4968 = vpop.xlane.xlu0 %4967
        %4969 = vadd.xlane.f32.xlu0 %v4938
        %v4970 = vpop.xlane.xlu0 %4969
        %4971 = vadd.xlane.f32.xlu0 %v4939
        %v4972 = vpop.xlane.xlu0 %4971
        %4973 = vadd.xlane.f32.xlu0 %v4940
        %v4974 = vpop.xlane.xlu0 %4973
        %4975 = vadd.xlane.f32.xlu0 %v4941
        %v4976 = vpop.xlane.xlu0 %4975
        %4977 = vadd.xlane.f32.xlu0 %v4942
        %v4978 = vpop.xlane.xlu0 %4977
        %v4979 = vmul.f32 %v4948, %v1035
        %v4980 = vmul.f32 %v4950, %v1035
        %v4981 = vmul.f32 %v4952, %v1035
        %v4982 = vmul.f32 %v4954, %v1035
        %v4983 = vmul.f32 %v4956, %v1035
        %v4984 = vmul.f32 %v4958, %v1035
        %v4985 = vmul.f32 %v4960, %v1035
        %v4986 = vmul.f32 %v4962, %v1035
        %v4987 = vmul.f32 %v4964, %v1035
        %v4988 = vmul.f32 %v4966, %v1035
        %v4989 = vmul.f32 %v4968, %v1035
        %v4990 = vmul.f32 %v4970, %v1035
        %v4991 = vmul.f32 %v4972, %v1035
        %v4992 = vmul.f32 %v4974, %v1035
        %v4993 = vmul.f32 %v4976, %v1035
        %v4994 = vmul.f32 %v4978, %v1035
        %v4995 = vsub.f32 %v4927, %v4979
        %v4996 = vsub.f32 %v4928, %v4980
        %v4997 = vsub.f32 %v4929, %v4981
        %v4998 = vsub.f32 %v4930, %v4982
        %v4999 = vsub.f32 %v4931, %v4983
        %v5000 = vsub.f32 %v4932, %v4984
        %v5001 = vsub.f32 %v4933, %v4985
        %v5002 = vsub.f32 %v4934, %v4986
        %v5003 = vsub.f32 %v4935, %v4987
        %v5004 = vsub.f32 %v4936, %v4988
        %v5005 = vsub.f32 %v4937, %v4989
        %v5006 = vsub.f32 %v4938, %v4990
        %v5007 = vsub.f32 %v4939, %v4991
        %v5008 = vsub.f32 %v4940, %v4992
        %v5009 = vsub.f32 %v4941, %v4993
        %v5010 = vsub.f32 %v4942, %v4994
        %v5011 = vmul.f32 %v4995, %v4995
        %v5012 = vmul.f32 %v4996, %v4996
        %v5013 = vmul.f32 %v4997, %v4997
        %v5014 = vmul.f32 %v4998, %v4998
        %v5015 = vmul.f32 %v4999, %v4999
        %v5016 = vmul.f32 %v5000, %v5000
        %v5017 = vmul.f32 %v5001, %v5001
        %v5018 = vmul.f32 %v5002, %v5002
        %v5019 = vmul.f32 %v5003, %v5003
        %v5020 = vmul.f32 %v5004, %v5004
        %v5021 = vmul.f32 %v5005, %v5005
        %v5022 = vmul.f32 %v5006, %v5006
        %v5023 = vmul.f32 %v5007, %v5007
        %v5024 = vmul.f32 %v5008, %v5008
        %v5025 = vmul.f32 %v5009, %v5009
        %v5026 = vmul.f32 %v5010, %v5010
        %5027 = vadd.xlane.f32.xlu0 %v5011
        %v5028 = vpop.xlane.xlu0 %5027
        %5029 = vadd.xlane.f32.xlu0 %v5012
        %v5030 = vpop.xlane.xlu0 %5029
        %5031 = vadd.xlane.f32.xlu0 %v5013
        %v5032 = vpop.xlane.xlu0 %5031
        %5033 = vadd.xlane.f32.xlu0 %v5014
        %v5034 = vpop.xlane.xlu0 %5033
        %5035 = vadd.xlane.f32.xlu0 %v5015
        %v5036 = vpop.xlane.xlu0 %5035
        %5037 = vadd.xlane.f32.xlu0 %v5016
        %v5038 = vpop.xlane.xlu0 %5037
        %5039 = vadd.xlane.f32.xlu0 %v5017
        %v5040 = vpop.xlane.xlu0 %5039
        %5041 = vadd.xlane.f32.xlu0 %v5018
        %v5042 = vpop.xlane.xlu0 %5041
        %5043 = vadd.xlane.f32.xlu0 %v5019
        %v5044 = vpop.xlane.xlu0 %5043
        %5045 = vadd.xlane.f32.xlu0 %v5020
        %v5046 = vpop.xlane.xlu0 %5045
        %5047 = vadd.xlane.f32.xlu0 %v5021
        %v5048 = vpop.xlane.xlu0 %5047
        %5049 = vadd.xlane.f32.xlu0 %v5022
        %v5050 = vpop.xlane.xlu0 %5049
        %5051 = vadd.xlane.f32.xlu0 %v5023
        %v5052 = vpop.xlane.xlu0 %5051
        %5053 = vadd.xlane.f32.xlu0 %v5024
        %v5054 = vpop.xlane.xlu0 %5053
        %5055 = vadd.xlane.f32.xlu0 %v5025
        %v5056 = vpop.xlane.xlu0 %5055
        %5057 = vadd.xlane.f32.xlu0 %v5026
        %v5058 = vpop.xlane.xlu0 %5057
        %v5059 = vmul.f32 %v5028, %v1035
        %v5060 = vmul.f32 %v5030, %v1035
        %v5061 = vmul.f32 %v5032, %v1035
        %v5062 = vmul.f32 %v5034, %v1035
        %v5063 = vmul.f32 %v5036, %v1035
        %v5064 = vmul.f32 %v5038, %v1035
        %v5065 = vmul.f32 %v5040, %v1035
        %v5066 = vmul.f32 %v5042, %v1035
        %v5067 = vmul.f32 %v5044, %v1035
        %v5068 = vmul.f32 %v5046, %v1035
        %v5069 = vmul.f32 %v5048, %v1035
        %v5070 = vmul.f32 %v5050, %v1035
        %v5071 = vmul.f32 %v5052, %v1035
        %v5072 = vmul.f32 %v5054, %v1035
        %v5073 = vmul.f32 %v5056, %v1035
        %v5074 = vmul.f32 %v5058, %v1035
        %v5075 = vadd.f32 %v5059, 1e-05
        %v5076 = vadd.f32 %v5060, 1e-05
        %v5077 = vadd.f32 %v5061, 1e-05
        %v5078 = vadd.f32 %v5062, 1e-05
        %v5079 = vadd.f32 %v5063, 1e-05
        %v5080 = vadd.f32 %v5064, 1e-05
        %v5081 = vadd.f32 %v5065, 1e-05
        %v5082 = vadd.f32 %v5066, 1e-05
        %v5083 = vadd.f32 %v5067, 1e-05
        %v5084 = vadd.f32 %v5068, 1e-05
        %v5085 = vadd.f32 %v5069, 1e-05
        %v5086 = vadd.f32 %v5070, 1e-05
        %v5087 = vadd.f32 %v5071, 1e-05
        %v5088 = vadd.f32 %v5072, 1e-05
        %v5089 = vadd.f32 %v5073, 1e-05
        %v5090 = vadd.f32 %v5074, 1e-05
        %v5091 = vrsqrt.pop %v5075
        %v5092 = vmul.f32 %v5091, %v5075
        %v5093 = vmul.f32 %v5092, %v5091
        %v5094 = vmul.f32 0.5, %v5093
        %v5095 = vsub.f32 1.5, %v5094
        %v5096 = vmul.f32 %v5091, %v5095
        %vm5097 = vweird.f32 %v5075
        %vm5098 = vweird.f32 %v5091
        %vm5099 = vmor %vm5097, %vm5098
        %v5100 = vsel %vm5099, %v5091, %v5096
        %v5101 = vrsqrt.pop %v5076
        %v5102 = vmul.f32 %v5101, %v5076
        %v5103 = vmul.f32 %v5102, %v5101
        %v5104 = vmul.f32 0.5, %v5103
        %v5105 = vsub.f32 1.5, %v5104
        %v5106 = vmul.f32 %v5101, %v5105
        %vm5107 = vweird.f32 %v5076
        %vm5108 = vweird.f32 %v5101
        %vm5109 = vmor %vm5107, %vm5108
        %v5110 = vsel %vm5109, %v5101, %v5106
        %v5111 = vrsqrt.pop %v5077
        %v5112 = vmul.f32 %v5111, %v5077
        %v5113 = vmul.f32 %v5112, %v5111
        %v5114 = vmul.f32 0.5, %v5113
        %v5115 = vsub.f32 1.5, %v5114
        %v5116 = vmul.f32 %v5111, %v5115
        %vm5117 = vweird.f32 %v5077
        %vm5118 = vweird.f32 %v5111
        %vm5119 = vmor %vm5117, %vm5118
        %v5120 = vsel %vm5119, %v5111, %v5116
        %v5121 = vrsqrt.pop %v5078
        %v5122 = vmul.f32 %v5121, %v5078
        %v5123 = vmul.f32 %v5122, %v5121
        %v5124 = vmul.f32 0.5, %v5123
        %v5125 = vsub.f32 1.5, %v5124
        %v5126 = vmul.f32 %v5121, %v5125
        %vm5127 = vweird.f32 %v5078
        %vm5128 = vweird.f32 %v5121
        %vm5129 = vmor %vm5127, %vm5128
        %v5130 = vsel %vm5129, %v5121, %v5126
        %v5131 = vrsqrt.pop %v5079
        %v5132 = vmul.f32 %v5131, %v5079
        %v5133 = vmul.f32 %v5132, %v5131
        %v5134 = vmul.f32 0.5, %v5133
        %v5135 = vsub.f32 1.5, %v5134
        %v5136 = vmul.f32 %v5131, %v5135
        %vm5137 = vweird.f32 %v5079
        %vm5138 = vweird.f32 %v5131
        %vm5139 = vmor %vm5137, %vm5138
        %v5140 = vsel %vm5139, %v5131, %v5136
        %v5141 = vrsqrt.pop %v5080
        %v5142 = vmul.f32 %v5141, %v5080
        %v5143 = vmul.f32 %v5142, %v5141
        %v5144 = vmul.f32 0.5, %v5143
        %v5145 = vsub.f32 1.5, %v5144
        %v5146 = vmul.f32 %v5141, %v5145
        %vm5147 = vweird.f32 %v5080
        %vm5148 = vweird.f32 %v5141
        %vm5149 = vmor %vm5147, %vm5148
        %v5150 = vsel %vm5149, %v5141, %v5146
        %v5151 = vrsqrt.pop %v5081
        %v5152 = vmul.f32 %v5151, %v5081
        %v5153 = vmul.f32 %v5152, %v5151
        %v5154 = vmul.f32 0.5, %v5153
        %v5155 = vsub.f32 1.5, %v5154
        %v5156 = vmul.f32 %v5151, %v5155
        %vm5157 = vweird.f32 %v5081
        %vm5158 = vweird.f32 %v5151
        %vm5159 = vmor %vm5157, %vm5158
        %v5160 = vsel %vm5159, %v5151, %v5156
        %v5161 = vrsqrt.pop %v5082
        %v5162 = vmul.f32 %v5161, %v5082
        %v5163 = vmul.f32 %v5162, %v5161
        %v5164 = vmul.f32 0.5, %v5163
        %v5165 = vsub.f32 1.5, %v5164
        %v5166 = vmul.f32 %v5161, %v5165
        %vm5167 = vweird.f32 %v5082
        %vm5168 = vweird.f32 %v5161
        %vm5169 = vmor %vm5167, %vm5168
        %v5170 = vsel %vm5169, %v5161, %v5166
        %v5171 = vrsqrt.pop %v5083
        %v5172 = vmul.f32 %v5171, %v5083
        %v5173 = vmul.f32 %v5172, %v5171
        %v5174 = vmul.f32 0.5, %v5173
        %v5175 = vsub.f32 1.5, %v5174
        %v5176 = vmul.f32 %v5171, %v5175
        %vm5177 = vweird.f32 %v5083
        %vm5178 = vweird.f32 %v5171
        %vm5179 = vmor %vm5177, %vm5178
        %v5180 = vsel %vm5179, %v5171, %v5176
        %v5181 = vrsqrt.pop %v5084
        %v5182 = vmul.f32 %v5181, %v5084
        %v5183 = vmul.f32 %v5182, %v5181
        %v5184 = vmul.f32 0.5, %v5183
        %v5185 = vsub.f32 1.5, %v5184
        %v5186 = vmul.f32 %v5181, %v5185
        %vm5187 = vweird.f32 %v5084
        %vm5188 = vweird.f32 %v5181
        %vm5189 = vmor %vm5187, %vm5188
        %v5190 = vsel %vm5189, %v5181, %v5186
        %v5191 = vrsqrt.pop %v5085
        %v5192 = vmul.f32 %v5191, %v5085
        %v5193 = vmul.f32 %v5192, %v5191
        %v5194 = vmul.f32 0.5, %v5193
        %v5195 = vsub.f32 1.5, %v5194
        %v5196 = vmul.f32 %v5191, %v5195
        %vm5197 = vweird.f32 %v5085
        %vm5198 = vweird.f32 %v5191
        %vm5199 = vmor %vm5197, %vm5198
        %v5200 = vsel %vm5199, %v5191, %v5196
        %v5201 = vrsqrt.pop %v5086
        %v5202 = vmul.f32 %v5201, %v5086
        %v5203 = vmul.f32 %v5202, %v5201
        %v5204 = vmul.f32 0.5, %v5203
        %v5205 = vsub.f32 1.5, %v5204
        %v5206 = vmul.f32 %v5201, %v5205
        %vm5207 = vweird.f32 %v5086
        %vm5208 = vweird.f32 %v5201
        %vm5209 = vmor %vm5207, %vm5208
        %v5210 = vsel %vm5209, %v5201, %v5206
        %v5211 = vrsqrt.pop %v5087
        %v5212 = vmul.f32 %v5211, %v5087
        %v5213 = vmul.f32 %v5212, %v5211
        %v5214 = vmul.f32 0.5, %v5213
        %v5215 = vsub.f32 1.5, %v5214
        %v5216 = vmul.f32 %v5211, %v5215
        %vm5217 = vweird.f32 %v5087
        %vm5218 = vweird.f32 %v5211
        %vm5219 = vmor %vm5217, %vm5218
        %v5220 = vsel %vm5219, %v5211, %v5216
        %v5221 = vrsqrt.pop %v5088
        %v5222 = vmul.f32 %v5221, %v5088
        %v5223 = vmul.f32 %v5222, %v5221
        %v5224 = vmul.f32 0.5, %v5223
        %v5225 = vsub.f32 1.5, %v5224
        %v5226 = vmul.f32 %v5221, %v5225
        %vm5227 = vweird.f32 %v5088
        %vm5228 = vweird.f32 %v5221
        %vm5229 = vmor %vm5227, %vm5228
        %v5230 = vsel %vm5229, %v5221, %v5226
        %v5231 = vrsqrt.pop %v5089
        %v5232 = vmul.f32 %v5231, %v5089
        %v5233 = vmul.f32 %v5232, %v5231
        %v5234 = vmul.f32 0.5, %v5233
        %v5235 = vsub.f32 1.5, %v5234
        %v5236 = vmul.f32 %v5231, %v5235
        %vm5237 = vweird.f32 %v5089
        %vm5238 = vweird.f32 %v5231
        %vm5239 = vmor %vm5237, %vm5238
        %v5240 = vsel %vm5239, %v5231, %v5236
        %v5241 = vrsqrt.pop %v5090
        %v5242 = vmul.f32 %v5241, %v5090
        %v5243 = vmul.f32 %v5242, %v5241
        %v5244 = vmul.f32 0.5, %v5243
        %v5245 = vsub.f32 1.5, %v5244
        %v5246 = vmul.f32 %v5241, %v5245
        %vm5247 = vweird.f32 %v5090
        %vm5248 = vweird.f32 %v5241
        %vm5249 = vmor %vm5247, %vm5248
        %v5250 = vsel %vm5249, %v5241, %v5246
        %v5251 = vmul.f32 %v4995, %v5100
        %v5252 = vmul.f32 %v4996, %v5110
        %v5253 = vmul.f32 %v4997, %v5120
        %v5254 = vmul.f32 %v4998, %v5130
        %v5255 = vmul.f32 %v4999, %v5140
        %v5256 = vmul.f32 %v5000, %v5150
        %v5257 = vmul.f32 %v5001, %v5160
        %v5258 = vmul.f32 %v5002, %v5170
        %v5259 = vmul.f32 %v5003, %v5180
        %v5260 = vmul.f32 %v5004, %v5190
        %v5261 = vmul.f32 %v5005, %v5200
        %v5262 = vmul.f32 %v5006, %v5210
        %v5263 = vmul.f32 %v5007, %v5220
        %v5264 = vmul.f32 %v5008, %v5230
        %v5265 = vmul.f32 %v5009, %v5240
        %v5266 = vmul.f32 %v5010, %v5250
        %v5268 = vperm.slane %v4944, 0
        %v5270 = vmul.f32 %v5251, %v5268
        %v5271 = vmul.f32 %v5252, %v5268
        %v5272 = vmul.f32 %v5253, %v5268
        %v5273 = vmul.f32 %v5254, %v5268
        %v5274 = vmul.f32 %v5255, %v5268
        %v5275 = vmul.f32 %v5256, %v5268
        %v5276 = vmul.f32 %v5257, %v5268
        %v5277 = vmul.f32 %v5258, %v5268
        %v5278 = vmul.f32 %v5259, %v5268
        %v5279 = vmul.f32 %v5260, %v5268
        %v5280 = vmul.f32 %v5261, %v5268
        %v5281 = vmul.f32 %v5262, %v5268
        %v5282 = vmul.f32 %v5263, %v5268
        %v5283 = vmul.f32 %v5264, %v5268
        %v5284 = vmul.f32 %v5265, %v5268
        %v5285 = vmul.f32 %v5266, %v5268
        %v5287 = vperm.slane %v4946, 0
        %v5289 = vadd.f32 %v5270, %v5287
        %v5290 = vadd.f32 %v5271, %v5287
        %v5291 = vadd.f32 %v5272, %v5287
        %v5292 = vadd.f32 %v5273, %v5287
        %v5293 = vadd.f32 %v5274, %v5287
        %v5294 = vadd.f32 %v5275, %v5287
        %v5295 = vadd.f32 %v5276, %v5287
        %v5296 = vadd.f32 %v5277, %v5287
        %v5297 = vadd.f32 %v5278, %v5287
        %v5298 = vadd.f32 %v5279, %v5287
        %v5299 = vadd.f32 %v5280, %v5287
        %v5300 = vadd.f32 %v5281, %v5287
        %v5301 = vadd.f32 %v5282, %v5287
        %v5302 = vadd.f32 %v5283, %v5287
        %v5303 = vadd.f32 %v5284, %v5287
        %v5304 = vadd.f32 %v5285, %v5287
        %s5305 = scalar_lea.vmem [#allocation6], 192
        %v5306 = vld [vmem:[%s5305] sm:$0xff]
        %v5307 = vld [vmem:[%s5305 + $0x8] sm:$0xf]
        %v5308 = vld [vmem:[%s5305 + $0xc] sm:$0xff]
        %v5309 = vld [vmem:[%s5305 + $0x14] sm:$0xf]
        %v5310 = vld [vmem:[%s5305 + $0x18] sm:$0xff]
        %v5311 = vld [vmem:[%s5305 + $0x20] sm:$0xf]
        %v5312 = vld [vmem:[%s5305 + $0x24] sm:$0xff]
        %v5313 = vld [vmem:[%s5305 + $0x2c] sm:$0xf]
        %v5314 = vld [vmem:[%s5305 + $0x30] sm:$0xff]
        %v5315 = vld [vmem:[%s5305 + $0x38] sm:$0xf]
        %v5316 = vld [vmem:[%s5305 + $0x3c] sm:$0xff]
        %v5317 = vld [vmem:[%s5305 + $0x44] sm:$0xf]
        %v5318 = vld [vmem:[%s5305 + $0x48] sm:$0xff]
        %v5319 = vld [vmem:[%s5305 + $0x50] sm:$0xf]
        %v5320 = vld [vmem:[%s5305 + $0x54] sm:$0xff]
        %v5321 = vld [vmem:[%s5305 + $0x5c] sm:$0xf]
        %v5322 = vld [vmem:[%s5305 + $0x60] sm:$0xff]
        %v5323 = vld [vmem:[%s5305 + $0x68] sm:$0xf]
        %v5324 = vld [vmem:[%s5305 + $0x6c] sm:$0xff]
        %v5325 = vld [vmem:[%s5305 + $0x74] sm:$0xf]
        %v5326 = vld [vmem:[%s5305 + $0x78] sm:$0xff]
        %v5327 = vld [vmem:[%s5305 + $0x80] sm:$0xf]
        %v5328 = vld [vmem:[%s5305 + $0x84] sm:$0xff]
        %v5329 = vld [vmem:[%s5305 + $0x8c] sm:$0xf]
        %v5330 = vld [vmem:[%s5305 + $0x90] sm:$0xff]
        %v5331 = vld [vmem:[%s5305 + $0x98] sm:$0xf]
        %v5332 = vld [vmem:[%s5305 + $0x9c] sm:$0xff]
        %v5333 = vld [vmem:[%s5305 + $0xa4] sm:$0xf]
        %v5334 = vld [vmem:[%s5305 + $0xa8] sm:$0xff]
        %v5335 = vld [vmem:[%s5305 + $0xb0] sm:$0xf]
        %v5336 = vld [vmem:[%s5305 + $0xb4] sm:$0xff]
        %v5337 = vld [vmem:[%s5305 + $0xbc] sm:$0xf]
        %v5338 = vpack.c.bf16 %v5290, %v5289
        %v5339 = vpack.c.bf16 %v5292, %v5291
        %v5340 = vpack.c.bf16 %v5294, %v5293
        %v5341 = vpack.c.bf16 %v5296, %v5295
        %v5342 = vpack.c.bf16 %v5298, %v5297
        %v5343 = vpack.c.bf16 %v5300, %v5299
        %v5344 = vpack.c.bf16 %v5302, %v5301
        %v5345 = vpack.c.bf16 %v5304, %v5303
        %v5378 = vunpack.c.l.b16 %v5306
        %v5379 = vunpack.c.h.b16 %v5306
        %v5380 = vunpack.c.l.b16 %v5307
        %v5381 = vunpack.c.l.b16 %v5308
        %v5382 = vunpack.c.h.b16 %v5308
        %v5383 = vunpack.c.l.b16 %v5309
        %v5384 = vunpack.c.l.b16 %v5310
        %v5385 = vunpack.c.h.b16 %v5310
        %v5386 = vunpack.c.l.b16 %v5311
        %v5387 = vunpack.c.l.b16 %v5312
        %v5388 = vunpack.c.h.b16 %v5312
        %v5389 = vunpack.c.l.b16 %v5313
        %v5390 = vunpack.c.l.b16 %v5314
        %v5391 = vunpack.c.h.b16 %v5314
        %v5392 = vunpack.c.l.b16 %v5315
        %v5393 = vunpack.c.l.b16 %v5316
        %v5394 = vunpack.c.h.b16 %v5316
        %v5395 = vunpack.c.l.b16 %v5317
        %v5396 = vunpack.c.l.b16 %v5318
        %v5397 = vunpack.c.h.b16 %v5318
        %v5398 = vunpack.c.l.b16 %v5319
        %v5399 = vunpack.c.l.b16 %v5320
        %v5400 = vunpack.c.h.b16 %v5320
        %v5401 = vunpack.c.l.b16 %v5321
        %v5402 = vunpack.c.l.b16 %v5322
        %v5403 = vunpack.c.h.b16 %v5322
        %v5404 = vunpack.c.l.b16 %v5323
        %v5405 = vunpack.c.l.b16 %v5324
        %v5406 = vunpack.c.h.b16 %v5324
        %v5407 = vunpack.c.l.b16 %v5325
        %v5408 = vunpack.c.l.b16 %v5326
        %v5409 = vunpack.c.h.b16 %v5326
        %v5410 = vunpack.c.l.b16 %v5327
        %v5411 = vunpack.c.l.b16 %v5328
        %v5412 = vunpack.c.h.b16 %v5328
        %v5413 = vunpack.c.l.b16 %v5329
        %v5414 = vunpack.c.l.b16 %v5330
        %v5415 = vunpack.c.h.b16 %v5330
        %v5416 = vunpack.c.l.b16 %v5331
        %v5417 = vunpack.c.l.b16 %v5332
        %v5418 = vunpack.c.h.b16 %v5332
        %v5419 = vunpack.c.l.b16 %v5333
        %v5420 = vunpack.c.l.b16 %v5334
        %v5421 = vunpack.c.h.b16 %v5334
        %v5422 = vunpack.c.l.b16 %v5335
        %v5423 = vunpack.c.l.b16 %v5336
        %v5424 = vunpack.c.h.b16 %v5336
        %v5425 = vunpack.c.l.b16 %v5337
        %v5426 = vpack.c.b16 %v5381, %v5378
        %v5427 = vpack.c.b16 %v5382, %v5379
        %v5428 = vpack.c.b16 %v5383, %v5380
        %v5429 = vpack.c.b16 %v5387, %v5384
        %v5430 = vpack.c.b16 %v5388, %v5385
        %v5431 = vpack.c.b16 %v5389, %v5386
        %v5432 = vpack.c.b16 %v5393, %v5390
        %v5433 = vpack.c.b16 %v5394, %v5391
        %v5434 = vpack.c.b16 %v5395, %v5392
        %v5435 = vpack.c.b16 %v5399, %v5396
        %v5436 = vpack.c.b16 %v5400, %v5397
        %v5437 = vpack.c.b16 %v5401, %v5398
        %v5438 = vpack.c.b16 %v5405, %v5402
        %v5439 = vpack.c.b16 %v5406, %v5403
        %v5440 = vpack.c.b16 %v5407, %v5404
        %v5441 = vpack.c.b16 %v5411, %v5408
        %v5442 = vpack.c.b16 %v5412, %v5409
        %v5443 = vpack.c.b16 %v5413, %v5410
        %v5444 = vpack.c.b16 %v5417, %v5414
        %v5445 = vpack.c.b16 %v5418, %v5415
        %v5446 = vpack.c.b16 %v5419, %v5416
        %v5447 = vpack.c.b16 %v5423, %v5420
        %v5448 = vpack.c.b16 %v5424, %v5421
        %v5449 = vpack.c.b16 %v5425, %v5422
        %5474 = vmatpush.bf16.msra.mxu0 %v5447
        %5475 = vmatpush.bf16.msra.mxu0 %v5444
        %5476 = vmatpush.bf16.msra.mxu0 %v5441
        %5477 = vmatpush.bf16.msra.mxu0 %v5438
        %5478 = vmatpush.bf16.msra.mxu0 %v5435
        %5479 = vmatpush.bf16.msra.mxu0 %v5432
        %5480 = vmatpush.bf16.msra.mxu0 %v5429
        %5481 = vmatpush.bf16.msra.mxu0 %v5426
        %5482 = vmatmul.bf16.gmra.mxu0 %v5338
        %v5483 = vpop.f32.mrf.mxu0
        %v5484 = vadd.f32 0.0, %v5483
        %v5485 = vpop.f32.mrf.mxu0
        %v5486 = vadd.f32 0.0, %v5485
        %5487 = vmatmul.bf16.gmra.mxu0 %v5339
        %v5488 = vpop.f32.mrf.mxu0
        %v5489 = vadd.f32 0.0, %v5488
        %v5490 = vpop.f32.mrf.mxu0
        %v5491 = vadd.f32 0.0, %v5490
        %5492 = vmatmul.bf16.gmra.mxu0 %v5340
        %v5493 = vpop.f32.mrf.mxu0
        %v5494 = vadd.f32 0.0, %v5493
        %v5495 = vpop.f32.mrf.mxu0
        %v5496 = vadd.f32 0.0, %v5495
        %5497 = vmatmul.bf16.gmra.mxu0 %v5341
        %v5498 = vpop.f32.mrf.mxu0
        %v5499 = vadd.f32 0.0, %v5498
        %v5500 = vpop.f32.mrf.mxu0
        %v5501 = vadd.f32 0.0, %v5500
        %5502 = vmatmul.bf16.gmra.mxu0 %v5342
        %v5503 = vpop.f32.mrf.mxu0
        %v5504 = vadd.f32 0.0, %v5503
        %v5505 = vpop.f32.mrf.mxu0
        %v5506 = vadd.f32 0.0, %v5505
        %5507 = vmatmul.bf16.gmra.mxu0 %v5343
        %v5508 = vpop.f32.mrf.mxu0
        %v5509 = vadd.f32 0.0, %v5508
        %v5510 = vpop.f32.mrf.mxu0
        %v5511 = vadd.f32 0.0, %v5510
        %5512 = vmatmul.bf16.gmra.mxu0 %v5344
        %v5513 = vpop.f32.mrf.mxu0
        %v5514 = vadd.f32 0.0, %v5513
        %v5515 = vpop.f32.mrf.mxu0
        %v5516 = vadd.f32 0.0, %v5515
        %5517 = vmatmul.bf16.gmra.mxu0 %v5345
        %v5518 = vpop.f32.mrf.mxu0
        %v5519 = vadd.f32 0.0, %v5518
        %v5520 = vpop.f32.mrf.mxu0
        %v5521 = vadd.f32 0.0, %v5520
        %5522 = vdwg.mxu0
        %5523 = vmatpush.bf16.msra.mxu0 %v5448
        %5524 = vmatpush.bf16.msra.mxu0 %v5445
        %5525 = vmatpush.bf16.msra.mxu0 %v5442
        %5526 = vmatpush.bf16.msra.mxu0 %v5439
        %5527 = vmatpush.bf16.msra.mxu0 %v5436
        %5528 = vmatpush.bf16.msra.mxu0 %v5433
        %5529 = vmatpush.bf16.msra.mxu0 %v5430
        %5530 = vmatpush.bf16.msra.mxu0 %v5427
        %5531 = vmatmul.bf16.gmra.mxu0 %v5338
        %v5532 = vpop.f32.mrf.mxu0
        %v5533 = vadd.f32 0.0, %v5532
        %v5534 = vpop.f32.mrf.mxu0
        %v5535 = vadd.f32 0.0, %v5534
        %5536 = vmatmul.bf16.gmra.mxu0 %v5339
        %v5537 = vpop.f32.mrf.mxu0
        %v5538 = vadd.f32 0.0, %v5537
        %v5539 = vpop.f32.mrf.mxu0
        %v5540 = vadd.f32 0.0, %v5539
        %5541 = vmatmul.bf16.gmra.mxu0 %v5340
        %v5542 = vpop.f32.mrf.mxu0
        %v5543 = vadd.f32 0.0, %v5542
        %v5544 = vpop.f32.mrf.mxu0
        %v5545 = vadd.f32 0.0, %v5544
        %5546 = vmatmul.bf16.gmra.mxu0 %v5341
        %v5547 = vpop.f32.mrf.mxu0
        %v5548 = vadd.f32 0.0, %v5547
        %v5549 = vpop.f32.mrf.mxu0
        %v5550 = vadd.f32 0.0, %v5549
        %5551 = vmatmul.bf16.gmra.mxu0 %v5342
        %v5552 = vpop.f32.mrf.mxu0
        %v5553 = vadd.f32 0.0, %v5552
        %v5554 = vpop.f32.mrf.mxu0
        %v5555 = vadd.f32 0.0, %v5554
        %5556 = vmatmul.bf16.gmra.mxu0 %v5343
        %v5557 = vpop.f32.mrf.mxu0
        %v5558 = vadd.f32 0.0, %v5557
        %v5559 = vpop.f32.mrf.mxu0
        %v5560 = vadd.f32 0.0, %v5559
        %5561 = vmatmul.bf16.gmra.mxu0 %v5344
        %v5562 = vpop.f32.mrf.mxu0
        %v5563 = vadd.f32 0.0, %v5562
        %v5564 = vpop.f32.mrf.mxu0
        %v5565 = vadd.f32 0.0, %v5564
        %5566 = vmatmul.bf16.gmra.mxu0 %v5345
        %v5567 = vpop.f32.mrf.mxu0
        %v5568 = vadd.f32 0.0, %v5567
        %v5569 = vpop.f32.mrf.mxu0
        %v5570 = vadd.f32 0.0, %v5569
        %5571 = vdwg.mxu0
        %5572 = vmatpush.bf16.msra.mxu0 %v5449
        %5573 = vmatpush.bf16.msra.mxu0 %v5446
        %5574 = vmatpush.bf16.msra.mxu0 %v5443
        %5575 = vmatpush.bf16.msra.mxu0 %v5440
        %5576 = vmatpush.bf16.msra.mxu0 %v5437
        %5577 = vmatpush.bf16.msra.mxu0 %v5434
        %5578 = vmatpush.bf16.msra.mxu0 %v5431
        %5579 = vmatpush.bf16.msra.mxu0 %v5428
        %5580 = vmatmul.bf16.gmra.mxu0 %v5338
        %v5581 = vpop.f32.mrf.mxu0
        %v5582 = vadd.f32 0.0, %v5581
        %v5583 = vpop.f32.mrf.mxu0
        %v5584 = vadd.f32 0.0, %v5583
        %5585 = vmatmul.bf16.gmra.mxu0 %v5339
        %v5586 = vpop.f32.mrf.mxu0
        %v5587 = vadd.f32 0.0, %v5586
        %v5588 = vpop.f32.mrf.mxu0
        %v5589 = vadd.f32 0.0, %v5588
        %5590 = vmatmul.bf16.gmra.mxu0 %v5340
        %v5591 = vpop.f32.mrf.mxu0
        %v5592 = vadd.f32 0.0, %v5591
        %v5593 = vpop.f32.mrf.mxu0
        %v5594 = vadd.f32 0.0, %v5593
        %5595 = vmatmul.bf16.gmra.mxu0 %v5341
        %v5596 = vpop.f32.mrf.mxu0
        %v5597 = vadd.f32 0.0, %v5596
        %v5598 = vpop.f32.mrf.mxu0
        %v5599 = vadd.f32 0.0, %v5598
        %5600 = vmatmul.bf16.gmra.mxu0 %v5342
        %v5601 = vpop.f32.mrf.mxu0
        %v5602 = vadd.f32 0.0, %v5601
        %v5603 = vpop.f32.mrf.mxu0
        %v5604 = vadd.f32 0.0, %v5603
        %5605 = vmatmul.bf16.gmra.mxu0 %v5343
        %v5606 = vpop.f32.mrf.mxu0
        %v5607 = vadd.f32 0.0, %v5606
        %v5608 = vpop.f32.mrf.mxu0
        %v5609 = vadd.f32 0.0, %v5608
        %5610 = vmatmul.bf16.gmra.mxu0 %v5344
        %v5611 = vpop.f32.mrf.mxu0
        %v5612 = vadd.f32 0.0, %v5611
        %v5613 = vpop.f32.mrf.mxu0
        %v5614 = vadd.f32 0.0, %v5613
        %5615 = vmatmul.bf16.gmra.mxu0 %v5345
        %v5616 = vpop.f32.mrf.mxu0
        %v5617 = vadd.f32 0.0, %v5616
        %v5618 = vpop.f32.mrf.mxu0
        %v5619 = vadd.f32 0.0, %v5618
        %5620 = vdwg.mxu0
        %v5621 = vpack.c.bf16 %v5486, %v5484
        %v5622 = vpack.c.bf16 %v5491, %v5489
        %v5623 = vpack.c.bf16 %v5496, %v5494
        %v5624 = vpack.c.bf16 %v5501, %v5499
        %v5625 = vpack.c.bf16 %v5506, %v5504
        %v5626 = vpack.c.bf16 %v5511, %v5509
        %v5627 = vpack.c.bf16 %v5516, %v5514
        %v5628 = vpack.c.bf16 %v5521, %v5519
        %v5629 = vpack.c.bf16 %v5535, %v5533
        %v5630 = vpack.c.bf16 %v5540, %v5538
        %v5631 = vpack.c.bf16 %v5545, %v5543
        %v5632 = vpack.c.bf16 %v5550, %v5548
        %v5633 = vpack.c.bf16 %v5555, %v5553
        %v5634 = vpack.c.bf16 %v5560, %v5558
        %v5635 = vpack.c.bf16 %v5565, %v5563
        %v5636 = vpack.c.bf16 %v5570, %v5568
        %v5638 = vsel %vm1693, %v5621, 0
        %v5641 = vsel %vm1693, %v5622, 0
        %v5644 = vsel %vm1693, %v5623, 0
        %v5647 = vsel %vm1693, %v5624, 0
        %v5650 = vsel %vm1693, %v5625, 0
        %v5653 = vsel %vm1693, %v5626, 0
        %v5656 = vsel %vm1693, %v5627, 0
        %v5659 = vsel %vm1693, %v5628, 0
        %v5662 = vsel %vm1693, %v5629, 0
        %v5665 = vsel %vm1693, %v5630, 0
        %v5668 = vsel %vm1693, %v5631, 0
        %v5671 = vsel %vm1693, %v5632, 0
        %v5674 = vsel %vm1693, %v5633, 0
        %v5677 = vsel %vm1693, %v5634, 0
        %v5680 = vsel %vm1693, %v5635, 0
        %v5683 = vsel %vm1693, %v5636, 0
        %5685 = vmatpush.bf16.xpose.msra.mxu0 %v5683
        %5686 = vmatpush.bf16.xpose.msra.mxu0 %v5680
        %5687 = vmatpush.bf16.xpose.msra.mxu0 %v5677
        %5688 = vmatpush.bf16.xpose.msra.mxu0 %v5674
        %5689 = vmatpush.bf16.xpose.msra.mxu0 %v5671
        %5690 = vmatpush.bf16.xpose.msra.mxu0 %v5668
        %5691 = vmatpush.bf16.xpose.msra.mxu0 %v5665
        %5692 = vmatpush.bf16.xpose.msra.mxu0 %v5662
        %5693 = vmatmul.bf16.gmra.mxu0 %v5638
        %v5694 = vpop.f32.mrf.mxu0
        %v5695 = vadd.f32 0.0, %v5694
        %v5696 = vpop.f32.mrf.mxu0
        %v5697 = vadd.f32 0.0, %v5696
        %5698 = vmatmul.bf16.gmra.mxu0 %v5641
        %v5699 = vpop.f32.mrf.mxu0
        %v5700 = vadd.f32 0.0, %v5699
        %v5701 = vpop.f32.mrf.mxu0
        %v5702 = vadd.f32 0.0, %v5701
        %5703 = vmatmul.bf16.gmra.mxu0 %v5644
        %v5704 = vpop.f32.mrf.mxu0
        %v5705 = vadd.f32 0.0, %v5704
        %v5706 = vpop.f32.mrf.mxu0
        %v5707 = vadd.f32 0.0, %v5706
        %5708 = vmatmul.bf16.gmra.mxu0 %v5647
        %v5709 = vpop.f32.mrf.mxu0
        %v5710 = vadd.f32 0.0, %v5709
        %v5711 = vpop.f32.mrf.mxu0
        %v5712 = vadd.f32 0.0, %v5711
        %5713 = vmatmul.bf16.gmra.mxu0 %v5650
        %v5714 = vpop.f32.mrf.mxu0
        %v5715 = vadd.f32 0.0, %v5714
        %v5716 = vpop.f32.mrf.mxu0
        %v5717 = vadd.f32 0.0, %v5716
        %5718 = vmatmul.bf16.gmra.mxu0 %v5653
        %v5719 = vpop.f32.mrf.mxu0
        %v5720 = vadd.f32 0.0, %v5719
        %v5721 = vpop.f32.mrf.mxu0
        %v5722 = vadd.f32 0.0, %v5721
        %5723 = vmatmul.bf16.gmra.mxu0 %v5656
        %v5724 = vpop.f32.mrf.mxu0
        %v5725 = vadd.f32 0.0, %v5724
        %v5726 = vpop.f32.mrf.mxu0
        %v5727 = vadd.f32 0.0, %v5726
        %5728 = vmatmul.bf16.gmra.mxu0 %v5659
        %v5729 = vpop.f32.mrf.mxu0
        %v5730 = vadd.f32 0.0, %v5729
        %v5731 = vpop.f32.mrf.mxu0
        %v5732 = vadd.f32 0.0, %v5731
        %5733 = vdwg.mxu0
        %v5734 = vmul.f32 %v5695, 0.17677669
        %v5735 = vmul.f32 %v5697, 0.17677669
        %v5736 = vmul.f32 %v5700, 0.17677669
        %v5737 = vmul.f32 %v5702, 0.17677669
        %v5738 = vmul.f32 %v5705, 0.17677669
        %v5739 = vmul.f32 %v5707, 0.17677669
        %v5740 = vmul.f32 %v5710, 0.17677669
        %v5741 = vmul.f32 %v5712, 0.17677669
        %v5742 = vmul.f32 %v5715, 0.17677669
        %v5743 = vmul.f32 %v5717, 0.17677669
        %v5744 = vmul.f32 %v5720, 0.17677669
        %v5745 = vmul.f32 %v5722, 0.17677669
        %v5746 = vmul.f32 %v5725, 0.17677669
        %v5747 = vmul.f32 %v5727, 0.17677669
        %v5748 = vmul.f32 %v5730, 0.17677669
        %v5749 = vmul.f32 %v5732, 0.17677669
        %v5750 = vsel %vm979, %v5734, -1e+30
        %v5751 = vsel %vm980, %v5735, -1e+30
        %v5752 = vsel %vm981, %v5736, -1e+30
        %v5753 = vsel %vm982, %v5737, -1e+30
        %v5754 = vsel %vm983, %v5738, -1e+30
        %v5755 = vsel %vm984, %v5739, -1e+30
        %v5756 = vsel %vm985, %v5740, -1e+30
        %v5757 = vsel %vm986, %v5741, -1e+30
        %v5758 = vsel %vm987, %v5742, -1e+30
        %v5759 = vsel %vm988, %v5743, -1e+30
        %v5760 = vsel %vm989, %v5744, -1e+30
        %v5761 = vsel %vm990, %v5745, -1e+30
        %v5762 = vsel %vm991, %v5746, -1e+30
        %v5763 = vsel %vm992, %v5747, -1e+30
        %v5764 = vsel %vm993, %v5748, -1e+30
        %v5765 = vsel %vm994, %v5749, -1e+30
        %5766 = vmax.xlane.f32.xlu0 %v5750
        %v5767 = vpop.xlane.xlu0 %5766
        %5768 = vmax.xlane.f32.xlu0 %v5751
        %v5769 = vpop.xlane.xlu0 %5768
        %5770 = vmax.xlane.f32.xlu0 %v5752
        %v5771 = vpop.xlane.xlu0 %5770
        %5772 = vmax.xlane.f32.xlu0 %v5753
        %v5773 = vpop.xlane.xlu0 %5772
        %5774 = vmax.xlane.f32.xlu0 %v5754
        %v5775 = vpop.xlane.xlu0 %5774
        %5776 = vmax.xlane.f32.xlu0 %v5755
        %v5777 = vpop.xlane.xlu0 %5776
        %5778 = vmax.xlane.f32.xlu0 %v5756
        %v5779 = vpop.xlane.xlu0 %5778
        %5780 = vmax.xlane.f32.xlu0 %v5757
        %v5781 = vpop.xlane.xlu0 %5780
        %5782 = vmax.xlane.f32.xlu0 %v5758
        %v5783 = vpop.xlane.xlu0 %5782
        %5784 = vmax.xlane.f32.xlu0 %v5759
        %v5785 = vpop.xlane.xlu0 %5784
        %5786 = vmax.xlane.f32.xlu0 %v5760
        %v5787 = vpop.xlane.xlu0 %5786
        %5788 = vmax.xlane.f32.xlu0 %v5761
        %v5789 = vpop.xlane.xlu0 %5788
        %5790 = vmax.xlane.f32.xlu0 %v5762
        %v5791 = vpop.xlane.xlu0 %5790
        %5792 = vmax.xlane.f32.xlu0 %v5763
        %v5793 = vpop.xlane.xlu0 %5792
        %5794 = vmax.xlane.f32.xlu0 %v5764
        %v5795 = vpop.xlane.xlu0 %5794
        %5796 = vmax.xlane.f32.xlu0 %v5765
        %v5797 = vpop.xlane.xlu0 %5796
        %v5798 = vsub.f32 %v5750, %v5767
        %v5799 = vsub.f32 %v5751, %v5769
        %v5800 = vsub.f32 %v5752, %v5771
        %v5801 = vsub.f32 %v5753, %v5773
        %v5802 = vsub.f32 %v5754, %v5775
        %v5803 = vsub.f32 %v5755, %v5777
        %v5804 = vsub.f32 %v5756, %v5779
        %v5805 = vsub.f32 %v5757, %v5781
        %v5806 = vsub.f32 %v5758, %v5783
        %v5807 = vsub.f32 %v5759, %v5785
        %v5808 = vsub.f32 %v5760, %v5787
        %v5809 = vsub.f32 %v5761, %v5789
        %v5810 = vsub.f32 %v5762, %v5791
        %v5811 = vsub.f32 %v5763, %v5793
        %v5812 = vsub.f32 %v5764, %v5795
        %v5813 = vsub.f32 %v5765, %v5797
        %v5814 = vmul.f32 %v5798, 1.442695
        %v5815 = vpow.pop %v5814
        %v5816 = vmul.f32 %v5799, 1.442695
        %v5817 = vpow.pop %v5816
        %v5818 = vmul.f32 %v5800, 1.442695
        %v5819 = vpow.pop %v5818
        %v5820 = vmul.f32 %v5801, 1.442695
        %v5821 = vpow.pop %v5820
        %v5822 = vmul.f32 %v5802, 1.442695
        %v5823 = vpow.pop %v5822
        %v5824 = vmul.f32 %v5803, 1.442695
        %v5825 = vpow.pop %v5824
        %v5826 = vmul.f32 %v5804, 1.442695
        %v5827 = vpow.pop %v5826
        %v5828 = vmul.f32 %v5805, 1.442695
        %v5829 = vpow.pop %v5828
        %v5830 = vmul.f32 %v5806, 1.442695
        %v5831 = vpow.pop %v5830
        %v5832 = vmul.f32 %v5807, 1.442695
        %v5833 = vpow.pop %v5832
        %v5834 = vmul.f32 %v5808, 1.442695
        %v5835 = vpow.pop %v5834
        %v5836 = vmul.f32 %v5809, 1.442695
        %v5837 = vpow.pop %v5836
        %v5838 = vmul.f32 %v5810, 1.442695
        %v5839 = vpow.pop %v5838
        %v5840 = vmul.f32 %v5811, 1.442695
        %v5841 = vpow.pop %v5840
        %v5842 = vmul.f32 %v5812, 1.442695
        %v5843 = vpow.pop %v5842
        %v5844 = vmul.f32 %v5813, 1.442695
        %v5845 = vpow.pop %v5844
        %5846 = vadd.xlane.f32.xlu0 %v5815
        %v5847 = vpop.xlane.xlu0 %5846
        %5848 = vadd.xlane.f32.xlu0 %v5817
        %v5849 = vpop.xlane.xlu0 %5848
        %5850 = vadd.xlane.f32.xlu0 %v5819
        %v5851 = vpop.xlane.xlu0 %5850
        %5852 = vadd.xlane.f32.xlu0 %v5821
        %v5853 = vpop.xlane.xlu0 %5852
        %5854 = vadd.xlane.f32.xlu0 %v5823
        %v5855 = vpop.xlane.xlu0 %5854
        %5856 = vadd.xlane.f32.xlu0 %v5825
        %v5857 = vpop.xlane.xlu0 %5856
        %5858 = vadd.xlane.f32.xlu0 %v5827
        %v5859 = vpop.xlane.xlu0 %5858
        %5860 = vadd.xlane.f32.xlu0 %v5829
        %v5861 = vpop.xlane.xlu0 %5860
        %5862 = vadd.xlane.f32.xlu0 %v5831
        %v5863 = vpop.xlane.xlu0 %5862
        %5864 = vadd.xlane.f32.xlu0 %v5833
        %v5865 = vpop.xlane.xlu0 %5864
        %5866 = vadd.xlane.f32.xlu0 %v5835
        %v5867 = vpop.xlane.xlu0 %5866
        %5868 = vadd.xlane.f32.xlu0 %v5837
        %v5869 = vpop.xlane.xlu0 %5868
        %5870 = vadd.xlane.f32.xlu0 %v5839
        %v5871 = vpop.xlane.xlu0 %5870
        %5872 = vadd.xlane.f32.xlu0 %v5841
        %v5873 = vpop.xlane.xlu0 %5872
        %5874 = vadd.xlane.f32.xlu0 %v5843
        %v5875 = vpop.xlane.xlu0 %5874
        %5876 = vadd.xlane.f32.xlu0 %v5845
        %v5877 = vpop.xlane.xlu0 %5876
        %v5878 = vpack.c.bf16 %v5817, %v5815
        %v5879 = vpack.c.bf16 %v5821, %v5819
        %v5880 = vpack.c.bf16 %v5825, %v5823
        %v5881 = vpack.c.bf16 %v5829, %v5827
        %v5882 = vpack.c.bf16 %v5833, %v5831
        %v5883 = vpack.c.bf16 %v5837, %v5835
        %v5884 = vpack.c.bf16 %v5841, %v5839
        %v5885 = vpack.c.bf16 %v5845, %v5843
        %v5886 = vpack.c.bf16 %v5584, %v5582
        %v5887 = vpack.c.bf16 %v5589, %v5587
        %v5888 = vpack.c.bf16 %v5594, %v5592
        %v5889 = vpack.c.bf16 %v5599, %v5597
        %v5890 = vpack.c.bf16 %v5604, %v5602
        %v5891 = vpack.c.bf16 %v5609, %v5607
        %v5892 = vpack.c.bf16 %v5614, %v5612
        %v5893 = vpack.c.bf16 %v5619, %v5617
        %5894 = vmatpush.bf16.msra.mxu0 %v5893
        %5895 = vmatpush.bf16.msra.mxu0 %v5892
        %5896 = vmatpush.bf16.msra.mxu0 %v5891
        %5897 = vmatpush.bf16.msra.mxu0 %v5890
        %5898 = vmatpush.bf16.msra.mxu0 %v5889
        %5899 = vmatpush.bf16.msra.mxu0 %v5888
        %5900 = vmatpush.bf16.msra.mxu0 %v5887
        %5901 = vmatpush.bf16.msra.mxu0 %v5886
        %5902 = vmatmul.bf16.gmra.mxu0 %v5878
        %v5903 = vpop.f32.mrf.mxu0
        %v5904 = vadd.f32 0.0, %v5903
        %v5905 = vpop.f32.mrf.mxu0
        %v5906 = vadd.f32 0.0, %v5905
        %5907 = vmatmul.bf16.gmra.mxu0 %v5879
        %v5908 = vpop.f32.mrf.mxu0
        %v5909 = vadd.f32 0.0, %v5908
        %v5910 = vpop.f32.mrf.mxu0
        %v5911 = vadd.f32 0.0, %v5910
        %5912 = vmatmul.bf16.gmra.mxu0 %v5880
        %v5913 = vpop.f32.mrf.mxu0
        %v5914 = vadd.f32 0.0, %v5913
        %v5915 = vpop.f32.mrf.mxu0
        %v5916 = vadd.f32 0.0, %v5915
        %5917 = vmatmul.bf16.gmra.mxu0 %v5881
        %v5918 = vpop.f32.mrf.mxu0
        %v5919 = vadd.f32 0.0, %v5918
        %v5920 = vpop.f32.mrf.mxu0
        %v5921 = vadd.f32 0.0, %v5920
        %5922 = vmatmul.bf16.gmra.mxu0 %v5882
        %v5923 = vpop.f32.mrf.mxu0
        %v5924 = vadd.f32 0.0, %v5923
        %v5925 = vpop.f32.mrf.mxu0
        %v5926 = vadd.f32 0.0, %v5925
        %5927 = vmatmul.bf16.gmra.mxu0 %v5883
        %v5928 = vpop.f32.mrf.mxu0
        %v5929 = vadd.f32 0.0, %v5928
        %v5930 = vpop.f32.mrf.mxu0
        %v5931 = vadd.f32 0.0, %v5930
        %5932 = vmatmul.bf16.gmra.mxu0 %v5884
        %v5933 = vpop.f32.mrf.mxu0
        %v5934 = vadd.f32 0.0, %v5933
        %v5935 = vpop.f32.mrf.mxu0
        %v5936 = vadd.f32 0.0, %v5935
        %5937 = vmatmul.bf16.gmra.mxu0 %v5885
        %v5938 = vpop.f32.mrf.mxu0
        %v5939 = vadd.f32 0.0, %v5938
        %v5940 = vpop.f32.mrf.mxu0
        %v5941 = vadd.f32 0.0, %v5940
        %5942 = vdwg.mxu0
        %v5943 = vrcp.pop %v5847
        %v5944 = vrcp.pop %v5849
        %v5945 = vrcp.pop %v5851
        %v5946 = vrcp.pop %v5853
        %v5947 = vrcp.pop %v5855
        %v5948 = vrcp.pop %v5857
        %v5949 = vrcp.pop %v5859
        %v5950 = vrcp.pop %v5861
        %v5951 = vrcp.pop %v5863
        %v5952 = vrcp.pop %v5865
        %v5953 = vrcp.pop %v5867
        %v5954 = vrcp.pop %v5869
        %v5955 = vrcp.pop %v5871
        %v5956 = vrcp.pop %v5873
        %v5957 = vrcp.pop %v5875
        %v5958 = vrcp.pop %v5877
        %v5959 = vmul.f32 %v5904, %v5943
        %v5960 = vmul.f32 %v5906, %v5944
        %v5961 = vmul.f32 %v5909, %v5945
        %v5962 = vmul.f32 %v5911, %v5946
        %v5963 = vmul.f32 %v5914, %v5947
        %v5964 = vmul.f32 %v5916, %v5948
        %v5965 = vmul.f32 %v5919, %v5949
        %v5966 = vmul.f32 %v5921, %v5950
        %v5967 = vmul.f32 %v5924, %v5951
        %v5968 = vmul.f32 %v5926, %v5952
        %v5969 = vmul.f32 %v5929, %v5953
        %v5970 = vmul.f32 %v5931, %v5954
        %v5971 = vmul.f32 %v5934, %v5955
        %v5972 = vmul.f32 %v5936, %v5956
        %v5973 = vmul.f32 %v5939, %v5957
        %v5974 = vmul.f32 %v5941, %v5958
        %5983 = vrot.lane.b32.xlu0 %v5621, 96
        %v5984 = vpop.permute.xlu0 %5983
        %5985 = vrot.lane.b32.xlu0 %v5622, 96
        %v5986 = vpop.permute.xlu0 %5985
        %5987 = vrot.lane.b32.xlu0 %v5623, 96
        %v5988 = vpop.permute.xlu0 %5987
        %5989 = vrot.lane.b32.xlu0 %v5624, 96
        %v5990 = vpop.permute.xlu0 %5989
        %5991 = vrot.lane.b32.xlu0 %v5625, 96
        %v5992 = vpop.permute.xlu0 %5991
        %5993 = vrot.lane.b32.xlu0 %v5626, 96
        %v5994 = vpop.permute.xlu0 %5993
        %5995 = vrot.lane.b32.xlu0 %v5627, 96
        %v5996 = vpop.permute.xlu0 %5995
        %5997 = vrot.lane.b32.xlu0 %v5628, 96
        %v5998 = vpop.permute.xlu0 %5997
        %6007 = vrot.lane.b32.xlu0 %v5629, 96
        %v6008 = vpop.permute.xlu0 %6007
        %6009 = vrot.lane.b32.xlu0 %v5630, 96
        %v6010 = vpop.permute.xlu0 %6009
        %6011 = vrot.lane.b32.xlu0 %v5631, 96
        %v6012 = vpop.permute.xlu0 %6011
        %6013 = vrot.lane.b32.xlu0 %v5632, 96
        %v6014 = vpop.permute.xlu0 %6013
        %6015 = vrot.lane.b32.xlu0 %v5633, 96
        %v6016 = vpop.permute.xlu0 %6015
        %6017 = vrot.lane.b32.xlu0 %v5634, 96
        %v6018 = vpop.permute.xlu0 %6017
        %6019 = vrot.lane.b32.xlu0 %v5635, 96
        %v6020 = vpop.permute.xlu0 %6019
        %6021 = vrot.lane.b32.xlu0 %v5636, 96
        %v6022 = vpop.permute.xlu0 %6021
        %v6024 = vsel %vm1693, %v5984, 0
        %v6027 = vsel %vm1693, %v5986, 0
        %v6030 = vsel %vm1693, %v5988, 0
        %v6033 = vsel %vm1693, %v5990, 0
        %v6036 = vsel %vm1693, %v5992, 0
        %v6039 = vsel %vm1693, %v5994, 0
        %v6042 = vsel %vm1693, %v5996, 0
        %v6045 = vsel %vm1693, %v5998, 0
        %v6048 = vsel %vm1693, %v6008, 0
        %v6051 = vsel %vm1693, %v6010, 0
        %v6054 = vsel %vm1693, %v6012, 0
        %v6057 = vsel %vm1693, %v6014, 0
        %v6060 = vsel %vm1693, %v6016, 0
        %v6063 = vsel %vm1693, %v6018, 0
        %v6066 = vsel %vm1693, %v6020, 0
        %v6069 = vsel %vm1693, %v6022, 0
        %6071 = vmatpush.bf16.xpose.msra.mxu0 %v6069
        %6072 = vmatpush.bf16.xpose.msra.mxu0 %v6066
        %6073 = vmatpush.bf16.xpose.msra.mxu0 %v6063
        %6074 = vmatpush.bf16.xpose.msra.mxu0 %v6060
        %6075 = vmatpush.bf16.xpose.msra.mxu0 %v6057
        %6076 = vmatpush.bf16.xpose.msra.mxu0 %v6054
        %6077 = vmatpush.bf16.xpose.msra.mxu0 %v6051
        %6078 = vmatpush.bf16.xpose.msra.mxu0 %v6048
        %6079 = vmatmul.bf16.gmra.mxu0 %v6024
        %v6080 = vpop.f32.mrf.mxu0
        %v6081 = vadd.f32 0.0, %v6080
        %v6082 = vpop.f32.mrf.mxu0
        %v6083 = vadd.f32 0.0, %v6082
        %6084 = vmatmul.bf16.gmra.mxu0 %v6027
        %v6085 = vpop.f32.mrf.mxu0
        %v6086 = vadd.f32 0.0, %v6085
        %v6087 = vpop.f32.mrf.mxu0
        %v6088 = vadd.f32 0.0, %v6087
        %6089 = vmatmul.bf16.gmra.mxu0 %v6030
        %v6090 = vpop.f32.mrf.mxu0
        %v6091 = vadd.f32 0.0, %v6090
        %v6092 = vpop.f32.mrf.mxu0
        %v6093 = vadd.f32 0.0, %v6092
        %6094 = vmatmul.bf16.gmra.mxu0 %v6033
        %v6095 = vpop.f32.mrf.mxu0
        %v6096 = vadd.f32 0.0, %v6095
        %v6097 = vpop.f32.mrf.mxu0
        %v6098 = vadd.f32 0.0, %v6097
        %6099 = vmatmul.bf16.gmra.mxu0 %v6036
        %v6100 = vpop.f32.mrf.mxu0
        %v6101 = vadd.f32 0.0, %v6100
        %v6102 = vpop.f32.mrf.mxu0
        %v6103 = vadd.f32 0.0, %v6102
        %6104 = vmatmul.bf16.gmra.mxu0 %v6039
        %v6105 = vpop.f32.mrf.mxu0
        %v6106 = vadd.f32 0.0, %v6105
        %v6107 = vpop.f32.mrf.mxu0
        %v6108 = vadd.f32 0.0, %v6107
        %6109 = vmatmul.bf16.gmra.mxu0 %v6042
        %v6110 = vpop.f32.mrf.mxu0
        %v6111 = vadd.f32 0.0, %v6110
        %v6112 = vpop.f32.mrf.mxu0
        %v6113 = vadd.f32 0.0, %v6112
        %6114 = vmatmul.bf16.gmra.mxu0 %v6045
        %v6115 = vpop.f32.mrf.mxu0
        %v6116 = vadd.f32 0.0, %v6115
        %v6117 = vpop.f32.mrf.mxu0
        %v6118 = vadd.f32 0.0, %v6117
        %6119 = vdwg.mxu0
        %v6120 = vmul.f32 %v6081, 0.17677669
        %v6121 = vmul.f32 %v6083, 0.17677669
        %v6122 = vmul.f32 %v6086, 0.17677669
        %v6123 = vmul.f32 %v6088, 0.17677669
        %v6124 = vmul.f32 %v6091, 0.17677669
        %v6125 = vmul.f32 %v6093, 0.17677669
        %v6126 = vmul.f32 %v6096, 0.17677669
        %v6127 = vmul.f32 %v6098, 0.17677669
        %v6128 = vmul.f32 %v6101, 0.17677669
        %v6129 = vmul.f32 %v6103, 0.17677669
        %v6130 = vmul.f32 %v6106, 0.17677669
        %v6131 = vmul.f32 %v6108, 0.17677669
        %v6132 = vmul.f32 %v6111, 0.17677669
        %v6133 = vmul.f32 %v6113, 0.17677669
        %v6134 = vmul.f32 %v6116, 0.17677669
        %v6135 = vmul.f32 %v6118, 0.17677669
        %v6136 = vsel %vm979, %v6120, -1e+30
        %v6137 = vsel %vm980, %v6121, -1e+30
        %v6138 = vsel %vm981, %v6122, -1e+30
        %v6139 = vsel %vm982, %v6123, -1e+30
        %v6140 = vsel %vm983, %v6124, -1e+30
        %v6141 = vsel %vm984, %v6125, -1e+30
        %v6142 = vsel %vm985, %v6126, -1e+30
        %v6143 = vsel %vm986, %v6127, -1e+30
        %v6144 = vsel %vm987, %v6128, -1e+30
        %v6145 = vsel %vm988, %v6129, -1e+30
        %v6146 = vsel %vm989, %v6130, -1e+30
        %v6147 = vsel %vm990, %v6131, -1e+30
        %v6148 = vsel %vm991, %v6132, -1e+30
        %v6149 = vsel %vm992, %v6133, -1e+30
        %v6150 = vsel %vm993, %v6134, -1e+30
        %v6151 = vsel %vm994, %v6135, -1e+30
        %6152 = vmax.xlane.f32.xlu0 %v6136
        %v6153 = vpop.xlane.xlu0 %6152
        %6154 = vmax.xlane.f32.xlu0 %v6137
        %v6155 = vpop.xlane.xlu0 %6154
        %6156 = vmax.xlane.f32.xlu0 %v6138
        %v6157 = vpop.xlane.xlu0 %6156
        %6158 = vmax.xlane.f32.xlu0 %v6139
        %v6159 = vpop.xlane.xlu0 %6158
        %6160 = vmax.xlane.f32.xlu0 %v6140
        %v6161 = vpop.xlane.xlu0 %6160
        %6162 = vmax.xlane.f32.xlu0 %v6141
        %v6163 = vpop.xlane.xlu0 %6162
        %6164 = vmax.xlane.f32.xlu0 %v6142
        %v6165 = vpop.xlane.xlu0 %6164
        %6166 = vmax.xlane.f32.xlu0 %v6143
        %v6167 = vpop.xlane.xlu0 %6166
        %6168 = vmax.xlane.f32.xlu0 %v6144
        %v6169 = vpop.xlane.xlu0 %6168
        %6170 = vmax.xlane.f32.xlu0 %v6145
        %v6171 = vpop.xlane.xlu0 %6170
        %6172 = vmax.xlane.f32.xlu0 %v6146
        %v6173 = vpop.xlane.xlu0 %6172
        %6174 = vmax.xlane.f32.xlu0 %v6147
        %v6175 = vpop.xlane.xlu0 %6174
        %6176 = vmax.xlane.f32.xlu0 %v6148
        %v6177 = vpop.xlane.xlu0 %6176
        %6178 = vmax.xlane.f32.xlu0 %v6149
        %v6179 = vpop.xlane.xlu0 %6178
        %6180 = vmax.xlane.f32.xlu0 %v6150
        %v6181 = vpop.xlane.xlu0 %6180
        %6182 = vmax.xlane.f32.xlu0 %v6151
        %v6183 = vpop.xlane.xlu0 %6182
        %v6184 = vsub.f32 %v6136, %v6153
        %v6185 = vsub.f32 %v6137, %v6155
        %v6186 = vsub.f32 %v6138, %v6157
        %v6187 = vsub.f32 %v6139, %v6159
        %v6188 = vsub.f32 %v6140, %v6161
        %v6189 = vsub.f32 %v6141, %v6163
        %v6190 = vsub.f32 %v6142, %v6165
        %v6191 = vsub.f32 %v6143, %v6167
        %v6192 = vsub.f32 %v6144, %v6169
        %v6193 = vsub.f32 %v6145, %v6171
        %v6194 = vsub.f32 %v6146, %v6173
        %v6195 = vsub.f32 %v6147, %v6175
        %v6196 = vsub.f32 %v6148, %v6177
        %v6197 = vsub.f32 %v6149, %v6179
        %v6198 = vsub.f32 %v6150, %v6181
        %v6199 = vsub.f32 %v6151, %v6183
        %v6200 = vmul.f32 %v6184, 1.442695
        %v6201 = vpow.pop %v6200
        %v6202 = vmul.f32 %v6185, 1.442695
        %v6203 = vpow.pop %v6202
        %v6204 = vmul.f32 %v6186, 1.442695
        %v6205 = vpow.pop %v6204
        %v6206 = vmul.f32 %v6187, 1.442695
        %v6207 = vpow.pop %v6206
        %v6208 = vmul.f32 %v6188, 1.442695
        %v6209 = vpow.pop %v6208
        %v6210 = vmul.f32 %v6189, 1.442695
        %v6211 = vpow.pop %v6210
        %v6212 = vmul.f32 %v6190, 1.442695
        %v6213 = vpow.pop %v6212
        %v6214 = vmul.f32 %v6191, 1.442695
        %v6215 = vpow.pop %v6214
        %v6216 = vmul.f32 %v6192, 1.442695
        %v6217 = vpow.pop %v6216
        %v6218 = vmul.f32 %v6193, 1.442695
        %v6219 = vpow.pop %v6218
        %v6220 = vmul.f32 %v6194, 1.442695
        %v6221 = vpow.pop %v6220
        %v6222 = vmul.f32 %v6195, 1.442695
        %v6223 = vpow.pop %v6222
        %v6224 = vmul.f32 %v6196, 1.442695
        %v6225 = vpow.pop %v6224
        %v6226 = vmul.f32 %v6197, 1.442695
        %v6227 = vpow.pop %v6226
        %v6228 = vmul.f32 %v6198, 1.442695
        %v6229 = vpow.pop %v6228
        %v6230 = vmul.f32 %v6199, 1.442695
        %v6231 = vpow.pop %v6230
        %6232 = vadd.xlane.f32.xlu0 %v6201
        %v6233 = vpop.xlane.xlu0 %6232
        %6234 = vadd.xlane.f32.xlu0 %v6203
        %v6235 = vpop.xlane.xlu0 %6234
        %6236 = vadd.xlane.f32.xlu0 %v6205
        %v6237 = vpop.xlane.xlu0 %6236
        %6238 = vadd.xlane.f32.xlu0 %v6207
        %v6239 = vpop.xlane.xlu0 %6238
        %6240 = vadd.xlane.f32.xlu0 %v6209
        %v6241 = vpop.xlane.xlu0 %6240
        %6242 = vadd.xlane.f32.xlu0 %v6211
        %v6243 = vpop.xlane.xlu0 %6242
        %6244 = vadd.xlane.f32.xlu0 %v6213
        %v6245 = vpop.xlane.xlu0 %6244
        %6246 = vadd.xlane.f32.xlu0 %v6215
        %v6247 = vpop.xlane.xlu0 %6246
        %6248 = vadd.xlane.f32.xlu0 %v6217
        %v6249 = vpop.xlane.xlu0 %6248
        %6250 = vadd.xlane.f32.xlu0 %v6219
        %v6251 = vpop.xlane.xlu0 %6250
        %6252 = vadd.xlane.f32.xlu0 %v6221
        %v6253 = vpop.xlane.xlu0 %6252
        %6254 = vadd.xlane.f32.xlu0 %v6223
        %v6255 = vpop.xlane.xlu0 %6254
        %6256 = vadd.xlane.f32.xlu0 %v6225
        %v6257 = vpop.xlane.xlu0 %6256
        %6258 = vadd.xlane.f32.xlu0 %v6227
        %v6259 = vpop.xlane.xlu0 %6258
        %6260 = vadd.xlane.f32.xlu0 %v6229
        %v6261 = vpop.xlane.xlu0 %6260
        %6262 = vadd.xlane.f32.xlu0 %v6231
        %v6263 = vpop.xlane.xlu0 %6262
        %v6264 = vpack.c.bf16 %v6203, %v6201
        %v6265 = vpack.c.bf16 %v6207, %v6205
        %v6266 = vpack.c.bf16 %v6211, %v6209
        %v6267 = vpack.c.bf16 %v6215, %v6213
        %v6268 = vpack.c.bf16 %v6219, %v6217
        %v6269 = vpack.c.bf16 %v6223, %v6221
        %v6270 = vpack.c.bf16 %v6227, %v6225
        %v6271 = vpack.c.bf16 %v6231, %v6229
        %6280 = vrot.lane.b32.xlu0 %v5886, 96
        %v6281 = vpop.permute.xlu0 %6280
        %6282 = vrot.lane.b32.xlu0 %v5887, 96
        %v6283 = vpop.permute.xlu0 %6282
        %6284 = vrot.lane.b32.xlu0 %v5888, 96
        %v6285 = vpop.permute.xlu0 %6284
        %6286 = vrot.lane.b32.xlu0 %v5889, 96
        %v6287 = vpop.permute.xlu0 %6286
        %6288 = vrot.lane.b32.xlu0 %v5890, 96
        %v6289 = vpop.permute.xlu0 %6288
        %6290 = vrot.lane.b32.xlu0 %v5891, 96
        %v6291 = vpop.permute.xlu0 %6290
        %6292 = vrot.lane.b32.xlu0 %v5892, 96
        %v6293 = vpop.permute.xlu0 %6292
        %6294 = vrot.lane.b32.xlu0 %v5893, 96
        %v6295 = vpop.permute.xlu0 %6294
        %6304 = vmatpush.bf16.msra.mxu0 %v6295
        %6305 = vmatpush.bf16.msra.mxu0 %v6293
        %6306 = vmatpush.bf16.msra.mxu0 %v6291
        %6307 = vmatpush.bf16.msra.mxu0 %v6289
        %6308 = vmatpush.bf16.msra.mxu0 %v6287
        %6309 = vmatpush.bf16.msra.mxu0 %v6285
        %6310 = vmatpush.bf16.msra.mxu0 %v6283
        %6311 = vmatpush.bf16.msra.mxu0 %v6281
        %6312 = vmatmul.bf16.gmra.mxu0 %v6264
        %v6313 = vpop.f32.mrf.mxu0
        %v6314 = vadd.f32 0.0, %v6313
        %v6315 = vpop.f32.mrf.mxu0
        %v6316 = vadd.f32 0.0, %v6315
        %6317 = vmatmul.bf16.gmra.mxu0 %v6265
        %v6318 = vpop.f32.mrf.mxu0
        %v6319 = vadd.f32 0.0, %v6318
        %v6320 = vpop.f32.mrf.mxu0
        %v6321 = vadd.f32 0.0, %v6320
        %6322 = vmatmul.bf16.gmra.mxu0 %v6266
        %v6323 = vpop.f32.mrf.mxu0
        %v6324 = vadd.f32 0.0, %v6323
        %v6325 = vpop.f32.mrf.mxu0
        %v6326 = vadd.f32 0.0, %v6325
        %6327 = vmatmul.bf16.gmra.mxu0 %v6267
        %v6328 = vpop.f32.mrf.mxu0
        %v6329 = vadd.f32 0.0, %v6328
        %v6330 = vpop.f32.mrf.mxu0
        %v6331 = vadd.f32 0.0, %v6330
        %6332 = vmatmul.bf16.gmra.mxu0 %v6268
        %v6333 = vpop.f32.mrf.mxu0
        %v6334 = vadd.f32 0.0, %v6333
        %v6335 = vpop.f32.mrf.mxu0
        %v6336 = vadd.f32 0.0, %v6335
        %6337 = vmatmul.bf16.gmra.mxu0 %v6269
        %v6338 = vpop.f32.mrf.mxu0
        %v6339 = vadd.f32 0.0, %v6338
        %v6340 = vpop.f32.mrf.mxu0
        %v6341 = vadd.f32 0.0, %v6340
        %6342 = vmatmul.bf16.gmra.mxu0 %v6270
        %v6343 = vpop.f32.mrf.mxu0
        %v6344 = vadd.f32 0.0, %v6343
        %v6345 = vpop.f32.mrf.mxu0
        %v6346 = vadd.f32 0.0, %v6345
        %6347 = vmatmul.bf16.gmra.mxu0 %v6271
        %v6348 = vpop.f32.mrf.mxu0
        %v6349 = vadd.f32 0.0, %v6348
        %v6350 = vpop.f32.mrf.mxu0
        %v6351 = vadd.f32 0.0, %v6350
        %6352 = vdwg.mxu0
        %v6353 = vrcp.pop %v6233
        %v6354 = vrcp.pop %v6235
        %v6355 = vrcp.pop %v6237
        %v6356 = vrcp.pop %v6239
        %v6357 = vrcp.pop %v6241
        %v6358 = vrcp.pop %v6243
        %v6359 = vrcp.pop %v6245
        %v6360 = vrcp.pop %v6247
        %v6361 = vrcp.pop %v6249
        %v6362 = vrcp.pop %v6251
        %v6363 = vrcp.pop %v6253
        %v6364 = vrcp.pop %v6255
        %v6365 = vrcp.pop %v6257
        %v6366 = vrcp.pop %v6259
        %v6367 = vrcp.pop %v6261
        %v6368 = vrcp.pop %v6263
        %v6369 = vmul.f32 %v6314, %v6353
        %v6370 = vmul.f32 %v6316, %v6354
        %v6371 = vmul.f32 %v6319, %v6355
        %v6372 = vmul.f32 %v6321, %v6356
        %v6373 = vmul.f32 %v6324, %v6357
        %v6374 = vmul.f32 %v6326, %v6358
        %v6375 = vmul.f32 %v6329, %v6359
        %v6376 = vmul.f32 %v6331, %v6360
        %v6377 = vmul.f32 %v6334, %v6361
        %v6378 = vmul.f32 %v6336, %v6362
        %v6379 = vmul.f32 %v6339, %v6363
        %v6380 = vmul.f32 %v6341, %v6364
        %v6381 = vmul.f32 %v6344, %v6365
        %v6382 = vmul.f32 %v6346, %v6366
        %v6383 = vmul.f32 %v6349, %v6367
        %v6384 = vmul.f32 %v6351, %v6368
        %6385 = vrot.lane.b32.xlu0 %v5621, 64
        %v6386 = vpop.permute.xlu0 %6385
        %6387 = vrot.lane.b32.xlu0 %v5622, 64
        %v6388 = vpop.permute.xlu0 %6387
        %6389 = vrot.lane.b32.xlu0 %v5623, 64
        %v6390 = vpop.permute.xlu0 %6389
        %6391 = vrot.lane.b32.xlu0 %v5624, 64
        %v6392 = vpop.permute.xlu0 %6391
        %6393 = vrot.lane.b32.xlu0 %v5625, 64
        %v6394 = vpop.permute.xlu0 %6393
        %6395 = vrot.lane.b32.xlu0 %v5626, 64
        %v6396 = vpop.permute.xlu0 %6395
        %6397 = vrot.lane.b32.xlu0 %v5627, 64
        %v6398 = vpop.permute.xlu0 %6397
        %6399 = vrot.lane.b32.xlu0 %v5628, 64
        %v6400 = vpop.permute.xlu0 %6399
        %6401 = vrot.lane.b32.xlu0 %v5629, 64
        %v6402 = vpop.permute.xlu0 %6401
        %6403 = vrot.lane.b32.xlu0 %v5630, 64
        %v6404 = vpop.permute.xlu0 %6403
        %6405 = vrot.lane.b32.xlu0 %v5631, 64
        %v6406 = vpop.permute.xlu0 %6405
        %6407 = vrot.lane.b32.xlu0 %v5632, 64
        %v6408 = vpop.permute.xlu0 %6407
        %6409 = vrot.lane.b32.xlu0 %v5633, 64
        %v6410 = vpop.permute.xlu0 %6409
        %6411 = vrot.lane.b32.xlu0 %v5634, 64
        %v6412 = vpop.permute.xlu0 %6411
        %6413 = vrot.lane.b32.xlu0 %v5635, 64
        %v6414 = vpop.permute.xlu0 %6413
        %6415 = vrot.lane.b32.xlu0 %v5636, 64
        %v6416 = vpop.permute.xlu0 %6415
        %v6418 = vsel %vm1693, %v6386, 0
        %v6421 = vsel %vm1693, %v6388, 0
        %v6424 = vsel %vm1693, %v6390, 0
        %v6427 = vsel %vm1693, %v6392, 0
        %v6430 = vsel %vm1693, %v6394, 0
        %v6433 = vsel %vm1693, %v6396, 0
        %v6436 = vsel %vm1693, %v6398, 0
        %v6439 = vsel %vm1693, %v6400, 0
        %v6442 = vsel %vm1693, %v6402, 0
        %v6445 = vsel %vm1693, %v6404, 0
        %v6448 = vsel %vm1693, %v6406, 0
        %v6451 = vsel %vm1693, %v6408, 0
        %v6454 = vsel %vm1693, %v6410, 0
        %v6457 = vsel %vm1693, %v6412, 0
        %v6460 = vsel %vm1693, %v6414, 0
        %v6463 = vsel %vm1693, %v6416, 0
        %6465 = vmatpush.bf16.xpose.msra.mxu0 %v6463
        %6466 = vmatpush.bf16.xpose.msra.mxu0 %v6460
        %6467 = vmatpush.bf16.xpose.msra.mxu0 %v6457
        %6468 = vmatpush.bf16.xpose.msra.mxu0 %v6454
        %6469 = vmatpush.bf16.xpose.msra.mxu0 %v6451
        %6470 = vmatpush.bf16.xpose.msra.mxu0 %v6448
        %6471 = vmatpush.bf16.xpose.msra.mxu0 %v6445
        %6472 = vmatpush.bf16.xpose.msra.mxu0 %v6442
        %6473 = vmatmul.bf16.gmra.mxu0 %v6418
        %v6474 = vpop.f32.mrf.mxu0
        %v6475 = vadd.f32 0.0, %v6474
        %v6476 = vpop.f32.mrf.mxu0
        %v6477 = vadd.f32 0.0, %v6476
        %6478 = vmatmul.bf16.gmra.mxu0 %v6421
        %v6479 = vpop.f32.mrf.mxu0
        %v6480 = vadd.f32 0.0, %v6479
        %v6481 = vpop.f32.mrf.mxu0
        %v6482 = vadd.f32 0.0, %v6481
        %6483 = vmatmul.bf16.gmra.mxu0 %v6424
        %v6484 = vpop.f32.mrf.mxu0
        %v6485 = vadd.f32 0.0, %v6484
        %v6486 = vpop.f32.mrf.mxu0
        %v6487 = vadd.f32 0.0, %v6486
        %6488 = vmatmul.bf16.gmra.mxu0 %v6427
        %v6489 = vpop.f32.mrf.mxu0
        %v6490 = vadd.f32 0.0, %v6489
        %v6491 = vpop.f32.mrf.mxu0
        %v6492 = vadd.f32 0.0, %v6491
        %6493 = vmatmul.bf16.gmra.mxu0 %v6430
        %v6494 = vpop.f32.mrf.mxu0
        %v6495 = vadd.f32 0.0, %v6494
        %v6496 = vpop.f32.mrf.mxu0
        %v6497 = vadd.f32 0.0, %v6496
        %6498 = vmatmul.bf16.gmra.mxu0 %v6433
        %v6499 = vpop.f32.mrf.mxu0
        %v6500 = vadd.f32 0.0, %v6499
        %v6501 = vpop.f32.mrf.mxu0
        %v6502 = vadd.f32 0.0, %v6501
        %6503 = vmatmul.bf16.gmra.mxu0 %v6436
        %v6504 = vpop.f32.mrf.mxu0
        %v6505 = vadd.f32 0.0, %v6504
        %v6506 = vpop.f32.mrf.mxu0
        %v6507 = vadd.f32 0.0, %v6506
        %6508 = vmatmul.bf16.gmra.mxu0 %v6439
        %v6509 = vpop.f32.mrf.mxu0
        %v6510 = vadd.f32 0.0, %v6509
        %v6511 = vpop.f32.mrf.mxu0
        %v6512 = vadd.f32 0.0, %v6511
        %6513 = vdwg.mxu0
        %v6514 = vmul.f32 %v6475, 0.17677669
        %v6515 = vmul.f32 %v6477, 0.17677669
        %v6516 = vmul.f32 %v6480, 0.17677669
        %v6517 = vmul.f32 %v6482, 0.17677669
        %v6518 = vmul.f32 %v6485, 0.17677669
        %v6519 = vmul.f32 %v6487, 0.17677669
        %v6520 = vmul.f32 %v6490, 0.17677669
        %v6521 = vmul.f32 %v6492, 0.17677669
        %v6522 = vmul.f32 %v6495, 0.17677669
        %v6523 = vmul.f32 %v6497, 0.17677669
        %v6524 = vmul.f32 %v6500, 0.17677669
        %v6525 = vmul.f32 %v6502, 0.17677669
        %v6526 = vmul.f32 %v6505, 0.17677669
        %v6527 = vmul.f32 %v6507, 0.17677669
        %v6528 = vmul.f32 %v6510, 0.17677669
        %v6529 = vmul.f32 %v6512, 0.17677669
        %v6530 = vsel %vm979, %v6514, -1e+30
        %v6531 = vsel %vm980, %v6515, -1e+30
        %v6532 = vsel %vm981, %v6516, -1e+30
        %v6533 = vsel %vm982, %v6517, -1e+30
        %v6534 = vsel %vm983, %v6518, -1e+30
        %v6535 = vsel %vm984, %v6519, -1e+30
        %v6536 = vsel %vm985, %v6520, -1e+30
        %v6537 = vsel %vm986, %v6521, -1e+30
        %v6538 = vsel %vm987, %v6522, -1e+30
        %v6539 = vsel %vm988, %v6523, -1e+30
        %v6540 = vsel %vm989, %v6524, -1e+30
        %v6541 = vsel %vm990, %v6525, -1e+30
        %v6542 = vsel %vm991, %v6526, -1e+30
        %v6543 = vsel %vm992, %v6527, -1e+30
        %v6544 = vsel %vm993, %v6528, -1e+30
        %v6545 = vsel %vm994, %v6529, -1e+30
        %6546 = vmax.xlane.f32.xlu0 %v6530
        %v6547 = vpop.xlane.xlu0 %6546
        %6548 = vmax.xlane.f32.xlu0 %v6531
        %v6549 = vpop.xlane.xlu0 %6548
        %6550 = vmax.xlane.f32.xlu0 %v6532
        %v6551 = vpop.xlane.xlu0 %6550
        %6552 = vmax.xlane.f32.xlu0 %v6533
        %v6553 = vpop.xlane.xlu0 %6552
        %6554 = vmax.xlane.f32.xlu0 %v6534
        %v6555 = vpop.xlane.xlu0 %6554
        %6556 = vmax.xlane.f32.xlu0 %v6535
        %v6557 = vpop.xlane.xlu0 %6556
        %6558 = vmax.xlane.f32.xlu0 %v6536
        %v6559 = vpop.xlane.xlu0 %6558
        %6560 = vmax.xlane.f32.xlu0 %v6537
        %v6561 = vpop.xlane.xlu0 %6560
        %6562 = vmax.xlane.f32.xlu0 %v6538
        %v6563 = vpop.xlane.xlu0 %6562
        %6564 = vmax.xlane.f32.xlu0 %v6539
        %v6565 = vpop.xlane.xlu0 %6564
        %6566 = vmax.xlane.f32.xlu0 %v6540
        %v6567 = vpop.xlane.xlu0 %6566
        %6568 = vmax.xlane.f32.xlu0 %v6541
        %v6569 = vpop.xlane.xlu0 %6568
        %6570 = vmax.xlane.f32.xlu0 %v6542
        %v6571 = vpop.xlane.xlu0 %6570
        %6572 = vmax.xlane.f32.xlu0 %v6543
        %v6573 = vpop.xlane.xlu0 %6572
        %6574 = vmax.xlane.f32.xlu0 %v6544
        %v6575 = vpop.xlane.xlu0 %6574
        %6576 = vmax.xlane.f32.xlu0 %v6545
        %v6577 = vpop.xlane.xlu0 %6576
        %v6578 = vsub.f32 %v6530, %v6547
        %v6579 = vsub.f32 %v6531, %v6549
        %v6580 = vsub.f32 %v6532, %v6551
        %v6581 = vsub.f32 %v6533, %v6553
        %v6582 = vsub.f32 %v6534, %v6555
        %v6583 = vsub.f32 %v6535, %v6557
        %v6584 = vsub.f32 %v6536, %v6559
        %v6585 = vsub.f32 %v6537, %v6561
        %v6586 = vsub.f32 %v6538, %v6563
        %v6587 = vsub.f32 %v6539, %v6565
        %v6588 = vsub.f32 %v6540, %v6567
        %v6589 = vsub.f32 %v6541, %v6569
        %v6590 = vsub.f32 %v6542, %v6571
        %v6591 = vsub.f32 %v6543, %v6573
        %v6592 = vsub.f32 %v6544, %v6575
        %v6593 = vsub.f32 %v6545, %v6577
        %v6594 = vmul.f32 %v6578, 1.442695
        %v6595 = vpow.pop %v6594
        %v6596 = vmul.f32 %v6579, 1.442695
        %v6597 = vpow.pop %v6596
        %v6598 = vmul.f32 %v6580, 1.442695
        %v6599 = vpow.pop %v6598
        %v6600 = vmul.f32 %v6581, 1.442695
        %v6601 = vpow.pop %v6600
        %v6602 = vmul.f32 %v6582, 1.442695
        %v6603 = vpow.pop %v6602
        %v6604 = vmul.f32 %v6583, 1.442695
        %v6605 = vpow.pop %v6604
        %v6606 = vmul.f32 %v6584, 1.442695
        %v6607 = vpow.pop %v6606
        %v6608 = vmul.f32 %v6585, 1.442695
        %v6609 = vpow.pop %v6608
        %v6610 = vmul.f32 %v6586, 1.442695
        %v6611 = vpow.pop %v6610
        %v6612 = vmul.f32 %v6587, 1.442695
        %v6613 = vpow.pop %v6612
        %v6614 = vmul.f32 %v6588, 1.442695
        %v6615 = vpow.pop %v6614
        %v6616 = vmul.f32 %v6589, 1.442695
        %v6617 = vpow.pop %v6616
        %v6618 = vmul.f32 %v6590, 1.442695
        %v6619 = vpow.pop %v6618
        %v6620 = vmul.f32 %v6591, 1.442695
        %v6621 = vpow.pop %v6620
        %v6622 = vmul.f32 %v6592, 1.442695
        %v6623 = vpow.pop %v6622
        %v6624 = vmul.f32 %v6593, 1.442695
        %v6625 = vpow.pop %v6624
        %6626 = vadd.xlane.f32.xlu0 %v6595
        %v6627 = vpop.xlane.xlu0 %6626
        %6628 = vadd.xlane.f32.xlu0 %v6597
        %v6629 = vpop.xlane.xlu0 %6628
        %6630 = vadd.xlane.f32.xlu0 %v6599
        %v6631 = vpop.xlane.xlu0 %6630
        %6632 = vadd.xlane.f32.xlu0 %v6601
        %v6633 = vpop.xlane.xlu0 %6632
        %6634 = vadd.xlane.f32.xlu0 %v6603
        %v6635 = vpop.xlane.xlu0 %6634
        %6636 = vadd.xlane.f32.xlu0 %v6605
        %v6637 = vpop.xlane.xlu0 %6636
        %6638 = vadd.xlane.f32.xlu0 %v6607
        %v6639 = vpop.xlane.xlu0 %6638
        %6640 = vadd.xlane.f32.xlu0 %v6609
        %v6641 = vpop.xlane.xlu0 %6640
        %6642 = vadd.xlane.f32.xlu0 %v6611
        %v6643 = vpop.xlane.xlu0 %6642
        %6644 = vadd.xlane.f32.xlu0 %v6613
        %v6645 = vpop.xlane.xlu0 %6644
        %6646 = vadd.xlane.f32.xlu0 %v6615
        %v6647 = vpop.xlane.xlu0 %6646
        %6648 = vadd.xlane.f32.xlu0 %v6617
        %v6649 = vpop.xlane.xlu0 %6648
        %6650 = vadd.xlane.f32.xlu0 %v6619
        %v6651 = vpop.xlane.xlu0 %6650
        %6652 = vadd.xlane.f32.xlu0 %v6621
        %v6653 = vpop.xlane.xlu0 %6652
        %6654 = vadd.xlane.f32.xlu0 %v6623
        %v6655 = vpop.xlane.xlu0 %6654
        %6656 = vadd.xlane.f32.xlu0 %v6625
        %v6657 = vpop.xlane.xlu0 %6656
        %v6658 = vpack.c.bf16 %v6597, %v6595
        %v6659 = vpack.c.bf16 %v6601, %v6599
        %v6660 = vpack.c.bf16 %v6605, %v6603
        %v6661 = vpack.c.bf16 %v6609, %v6607
        %v6662 = vpack.c.bf16 %v6613, %v6611
        %v6663 = vpack.c.bf16 %v6617, %v6615
        %v6664 = vpack.c.bf16 %v6621, %v6619
        %v6665 = vpack.c.bf16 %v6625, %v6623
        %6666 = vrot.lane.b32.xlu0 %v5886, 64
        %v6667 = vpop.permute.xlu0 %6666
        %6668 = vrot.lane.b32.xlu0 %v5887, 64
        %v6669 = vpop.permute.xlu0 %6668
        %6670 = vrot.lane.b32.xlu0 %v5888, 64
        %v6671 = vpop.permute.xlu0 %6670
        %6672 = vrot.lane.b32.xlu0 %v5889, 64
        %v6673 = vpop.permute.xlu0 %6672
        %6674 = vrot.lane.b32.xlu0 %v5890, 64
        %v6675 = vpop.permute.xlu0 %6674
        %6676 = vrot.lane.b32.xlu0 %v5891, 64
        %v6677 = vpop.permute.xlu0 %6676
        %6678 = vrot.lane.b32.xlu0 %v5892, 64
        %v6679 = vpop.permute.xlu0 %6678
        %6680 = vrot.lane.b32.xlu0 %v5893, 64
        %v6681 = vpop.permute.xlu0 %6680
        %6690 = vmatpush.bf16.msra.mxu0 %v6681
        %6691 = vmatpush.bf16.msra.mxu0 %v6679
        %6692 = vmatpush.bf16.msra.mxu0 %v6677
        %6693 = vmatpush.bf16.msra.mxu0 %v6675
        %6694 = vmatpush.bf16.msra.mxu0 %v6673
        %6695 = vmatpush.bf16.msra.mxu0 %v6671
        %6696 = vmatpush.bf16.msra.mxu0 %v6669
        %6697 = vmatpush.bf16.msra.mxu0 %v6667
        %6698 = vmatmul.bf16.gmra.mxu0 %v6658
        %v6699 = vpop.f32.mrf.mxu0
        %v6700 = vadd.f32 0.0, %v6699
        %v6701 = vpop.f32.mrf.mxu0
        %v6702 = vadd.f32 0.0, %v6701
        %6703 = vmatmul.bf16.gmra.mxu0 %v6659
        %v6704 = vpop.f32.mrf.mxu0
        %v6705 = vadd.f32 0.0, %v6704
        %v6706 = vpop.f32.mrf.mxu0
        %v6707 = vadd.f32 0.0, %v6706
        %6708 = vmatmul.bf16.gmra.mxu0 %v6660
        %v6709 = vpop.f32.mrf.mxu0
        %v6710 = vadd.f32 0.0, %v6709
        %v6711 = vpop.f32.mrf.mxu0
        %v6712 = vadd.f32 0.0, %v6711
        %6713 = vmatmul.bf16.gmra.mxu0 %v6661
        %v6714 = vpop.f32.mrf.mxu0
        %v6715 = vadd.f32 0.0, %v6714
        %v6716 = vpop.f32.mrf.mxu0
        %v6717 = vadd.f32 0.0, %v6716
        %6718 = vmatmul.bf16.gmra.mxu0 %v6662
        %v6719 = vpop.f32.mrf.mxu0
        %v6720 = vadd.f32 0.0, %v6719
        %v6721 = vpop.f32.mrf.mxu0
        %v6722 = vadd.f32 0.0, %v6721
        %6723 = vmatmul.bf16.gmra.mxu0 %v6663
        %v6724 = vpop.f32.mrf.mxu0
        %v6725 = vadd.f32 0.0, %v6724
        %v6726 = vpop.f32.mrf.mxu0
        %v6727 = vadd.f32 0.0, %v6726
        %6728 = vmatmul.bf16.gmra.mxu0 %v6664
        %v6729 = vpop.f32.mrf.mxu0
        %v6730 = vadd.f32 0.0, %v6729
        %v6731 = vpop.f32.mrf.mxu0
        %v6732 = vadd.f32 0.0, %v6731
        %6733 = vmatmul.bf16.gmra.mxu0 %v6665
        %v6734 = vpop.f32.mrf.mxu0
        %v6735 = vadd.f32 0.0, %v6734
        %v6736 = vpop.f32.mrf.mxu0
        %v6737 = vadd.f32 0.0, %v6736
        %6738 = vdwg.mxu0
        %v6739 = vrcp.pop %v6627
        %v6740 = vrcp.pop %v6629
        %v6741 = vrcp.pop %v6631
        %v6742 = vrcp.pop %v6633
        %v6743 = vrcp.pop %v6635
        %v6744 = vrcp.pop %v6637
        %v6745 = vrcp.pop %v6639
        %v6746 = vrcp.pop %v6641
        %v6747 = vrcp.pop %v6643
        %v6748 = vrcp.pop %v6645
        %v6749 = vrcp.pop %v6647
        %v6750 = vrcp.pop %v6649
        %v6751 = vrcp.pop %v6651
        %v6752 = vrcp.pop %v6653
        %v6753 = vrcp.pop %v6655
        %v6754 = vrcp.pop %v6657
        %v6755 = vmul.f32 %v6700, %v6739
        %v6756 = vmul.f32 %v6702, %v6740
        %v6757 = vmul.f32 %v6705, %v6741
        %v6758 = vmul.f32 %v6707, %v6742
        %v6759 = vmul.f32 %v6710, %v6743
        %v6760 = vmul.f32 %v6712, %v6744
        %v6761 = vmul.f32 %v6715, %v6745
        %v6762 = vmul.f32 %v6717, %v6746
        %v6763 = vmul.f32 %v6720, %v6747
        %v6764 = vmul.f32 %v6722, %v6748
        %v6765 = vmul.f32 %v6725, %v6749
        %v6766 = vmul.f32 %v6727, %v6750
        %v6767 = vmul.f32 %v6730, %v6751
        %v6768 = vmul.f32 %v6732, %v6752
        %v6769 = vmul.f32 %v6735, %v6753
        %v6770 = vmul.f32 %v6737, %v6754
        %6771 = vrot.lane.b32.xlu0 %v5621, 32
        %v6772 = vpop.permute.xlu0 %6771
        %6773 = vrot.lane.b32.xlu0 %v5622, 32
        %v6774 = vpop.permute.xlu0 %6773
        %6775 = vrot.lane.b32.xlu0 %v5623, 32
        %v6776 = vpop.permute.xlu0 %6775
        %6777 = vrot.lane.b32.xlu0 %v5624, 32
        %v6778 = vpop.permute.xlu0 %6777
        %6779 = vrot.lane.b32.xlu0 %v5625, 32
        %v6780 = vpop.permute.xlu0 %6779
        %6781 = vrot.lane.b32.xlu0 %v5626, 32
        %v6782 = vpop.permute.xlu0 %6781
        %6783 = vrot.lane.b32.xlu0 %v5627, 32
        %v6784 = vpop.permute.xlu0 %6783
        %6785 = vrot.lane.b32.xlu0 %v5628, 32
        %v6786 = vpop.permute.xlu0 %6785
        %6787 = vrot.lane.b32.xlu0 %v5629, 32
        %v6788 = vpop.permute.xlu0 %6787
        %6789 = vrot.lane.b32.xlu0 %v5630, 32
        %v6790 = vpop.permute.xlu0 %6789
        %6791 = vrot.lane.b32.xlu0 %v5631, 32
        %v6792 = vpop.permute.xlu0 %6791
        %6793 = vrot.lane.b32.xlu0 %v5632, 32
        %v6794 = vpop.permute.xlu0 %6793
        %6795 = vrot.lane.b32.xlu0 %v5633, 32
        %v6796 = vpop.permute.xlu0 %6795
        %6797 = vrot.lane.b32.xlu0 %v5634, 32
        %v6798 = vpop.permute.xlu0 %6797
        %6799 = vrot.lane.b32.xlu0 %v5635, 32
        %v6800 = vpop.permute.xlu0 %6799
        %6801 = vrot.lane.b32.xlu0 %v5636, 32
        %v6802 = vpop.permute.xlu0 %6801
        %v6804 = vsel %vm1693, %v6772, 0
        %v6807 = vsel %vm1693, %v6774, 0
        %v6810 = vsel %vm1693, %v6776, 0
        %v6813 = vsel %vm1693, %v6778, 0
        %v6816 = vsel %vm1693, %v6780, 0
        %v6819 = vsel %vm1693, %v6782, 0
        %v6822 = vsel %vm1693, %v6784, 0
        %v6825 = vsel %vm1693, %v6786, 0
        %v6828 = vsel %vm1693, %v6788, 0
        %v6831 = vsel %vm1693, %v6790, 0
        %v6834 = vsel %vm1693, %v6792, 0
        %v6837 = vsel %vm1693, %v6794, 0
        %v6840 = vsel %vm1693, %v6796, 0
        %v6843 = vsel %vm1693, %v6798, 0
        %v6846 = vsel %vm1693, %v6800, 0
        %v6849 = vsel %vm1693, %v6802, 0
        %6851 = vmatpush.bf16.xpose.msra.mxu0 %v6849
        %6852 = vmatpush.bf16.xpose.msra.mxu0 %v6846
        %6853 = vmatpush.bf16.xpose.msra.mxu0 %v6843
        %6854 = vmatpush.bf16.xpose.msra.mxu0 %v6840
        %6855 = vmatpush.bf16.xpose.msra.mxu0 %v6837
        %6856 = vmatpush.bf16.xpose.msra.mxu0 %v6834
        %6857 = vmatpush.bf16.xpose.msra.mxu0 %v6831
        %6858 = vmatpush.bf16.xpose.msra.mxu0 %v6828
        %6859 = vmatmul.bf16.gmra.mxu0 %v6804
        %v6860 = vpop.f32.mrf.mxu0
        %v6861 = vadd.f32 0.0, %v6860
        %v6862 = vpop.f32.mrf.mxu0
        %v6863 = vadd.f32 0.0, %v6862
        %6864 = vmatmul.bf16.gmra.mxu0 %v6807
        %v6865 = vpop.f32.mrf.mxu0
        %v6866 = vadd.f32 0.0, %v6865
        %v6867 = vpop.f32.mrf.mxu0
        %v6868 = vadd.f32 0.0, %v6867
        %6869 = vmatmul.bf16.gmra.mxu0 %v6810
        %v6870 = vpop.f32.mrf.mxu0
        %v6871 = vadd.f32 0.0, %v6870
        %v6872 = vpop.f32.mrf.mxu0
        %v6873 = vadd.f32 0.0, %v6872
        %6874 = vmatmul.bf16.gmra.mxu0 %v6813
        %v6875 = vpop.f32.mrf.mxu0
        %v6876 = vadd.f32 0.0, %v6875
        %v6877 = vpop.f32.mrf.mxu0
        %v6878 = vadd.f32 0.0, %v6877
        %6879 = vmatmul.bf16.gmra.mxu0 %v6816
        %v6880 = vpop.f32.mrf.mxu0
        %v6881 = vadd.f32 0.0, %v6880
        %v6882 = vpop.f32.mrf.mxu0
        %v6883 = vadd.f32 0.0, %v6882
        %6884 = vmatmul.bf16.gmra.mxu0 %v6819
        %v6885 = vpop.f32.mrf.mxu0
        %v6886 = vadd.f32 0.0, %v6885
        %v6887 = vpop.f32.mrf.mxu0
        %v6888 = vadd.f32 0.0, %v6887
        %6889 = vmatmul.bf16.gmra.mxu0 %v6822
        %v6890 = vpop.f32.mrf.mxu0
        %v6891 = vadd.f32 0.0, %v6890
        %v6892 = vpop.f32.mrf.mxu0
        %v6893 = vadd.f32 0.0, %v6892
        %6894 = vmatmul.bf16.gmra.mxu0 %v6825
        %v6895 = vpop.f32.mrf.mxu0
        %v6896 = vadd.f32 0.0, %v6895
        %v6897 = vpop.f32.mrf.mxu0
        %v6898 = vadd.f32 0.0, %v6897
        %6899 = vdwg.mxu0
        %v6900 = vmul.f32 %v6861, 0.17677669
        %v6901 = vmul.f32 %v6863, 0.17677669
        %v6902 = vmul.f32 %v6866, 0.17677669
        %v6903 = vmul.f32 %v6868, 0.17677669
        %v6904 = vmul.f32 %v6871, 0.17677669
        %v6905 = vmul.f32 %v6873, 0.17677669
        %v6906 = vmul.f32 %v6876, 0.17677669
        %v6907 = vmul.f32 %v6878, 0.17677669
        %v6908 = vmul.f32 %v6881, 0.17677669
        %v6909 = vmul.f32 %v6883, 0.17677669
        %v6910 = vmul.f32 %v6886, 0.17677669
        %v6911 = vmul.f32 %v6888, 0.17677669
        %v6912 = vmul.f32 %v6891, 0.17677669
        %v6913 = vmul.f32 %v6893, 0.17677669
        %v6914 = vmul.f32 %v6896, 0.17677669
        %v6915 = vmul.f32 %v6898, 0.17677669
        %v6916 = vsel %vm979, %v6900, -1e+30
        %v6917 = vsel %vm980, %v6901, -1e+30
        %v6918 = vsel %vm981, %v6902, -1e+30
        %v6919 = vsel %vm982, %v6903, -1e+30
        %v6920 = vsel %vm983, %v6904, -1e+30
        %v6921 = vsel %vm984, %v6905, -1e+30
        %v6922 = vsel %vm985, %v6906, -1e+30
        %v6923 = vsel %vm986, %v6907, -1e+30
        %v6924 = vsel %vm987, %v6908, -1e+30
        %v6925 = vsel %vm988, %v6909, -1e+30
        %v6926 = vsel %vm989, %v6910, -1e+30
        %v6927 = vsel %vm990, %v6911, -1e+30
        %v6928 = vsel %vm991, %v6912, -1e+30
        %v6929 = vsel %vm992, %v6913, -1e+30
        %v6930 = vsel %vm993, %v6914, -1e+30
        %v6931 = vsel %vm994, %v6915, -1e+30
        %6932 = vmax.xlane.f32.xlu0 %v6916
        %v6933 = vpop.xlane.xlu0 %6932
        %6934 = vmax.xlane.f32.xlu0 %v6917
        %v6935 = vpop.xlane.xlu0 %6934
        %6936 = vmax.xlane.f32.xlu0 %v6918
        %v6937 = vpop.xlane.xlu0 %6936
        %6938 = vmax.xlane.f32.xlu0 %v6919
        %v6939 = vpop.xlane.xlu0 %6938
        %6940 = vmax.xlane.f32.xlu0 %v6920
        %v6941 = vpop.xlane.xlu0 %6940
        %6942 = vmax.xlane.f32.xlu0 %v6921
        %v6943 = vpop.xlane.xlu0 %6942
        %6944 = vmax.xlane.f32.xlu0 %v6922
        %v6945 = vpop.xlane.xlu0 %6944
        %6946 = vmax.xlane.f32.xlu0 %v6923
        %v6947 = vpop.xlane.xlu0 %6946
        %6948 = vmax.xlane.f32.xlu0 %v6924
        %v6949 = vpop.xlane.xlu0 %6948
        %6950 = vmax.xlane.f32.xlu0 %v6925
        %v6951 = vpop.xlane.xlu0 %6950
        %6952 = vmax.xlane.f32.xlu0 %v6926
        %v6953 = vpop.xlane.xlu0 %6952
        %6954 = vmax.xlane.f32.xlu0 %v6927
        %v6955 = vpop.xlane.xlu0 %6954
        %6956 = vmax.xlane.f32.xlu0 %v6928
        %v6957 = vpop.xlane.xlu0 %6956
        %6958 = vmax.xlane.f32.xlu0 %v6929
        %v6959 = vpop.xlane.xlu0 %6958
        %6960 = vmax.xlane.f32.xlu0 %v6930
        %v6961 = vpop.xlane.xlu0 %6960
        %6962 = vmax.xlane.f32.xlu0 %v6931
        %v6963 = vpop.xlane.xlu0 %6962
        %v6964 = vsub.f32 %v6916, %v6933
        %v6965 = vsub.f32 %v6917, %v6935
        %v6966 = vsub.f32 %v6918, %v6937
        %v6967 = vsub.f32 %v6919, %v6939
        %v6968 = vsub.f32 %v6920, %v6941
        %v6969 = vsub.f32 %v6921, %v6943
        %v6970 = vsub.f32 %v6922, %v6945
        %v6971 = vsub.f32 %v6923, %v6947
        %v6972 = vsub.f32 %v6924, %v6949
        %v6973 = vsub.f32 %v6925, %v6951
        %v6974 = vsub.f32 %v6926, %v6953
        %v6975 = vsub.f32 %v6927, %v6955
        %v6976 = vsub.f32 %v6928, %v6957
        %v6977 = vsub.f32 %v6929, %v6959
        %v6978 = vsub.f32 %v6930, %v6961
        %v6979 = vsub.f32 %v6931, %v6963
        %v6980 = vmul.f32 %v6964, 1.442695
        %v6981 = vpow.pop %v6980
        %v6982 = vmul.f32 %v6965, 1.442695
        %v6983 = vpow.pop %v6982
        %v6984 = vmul.f32 %v6966, 1.442695
        %v6985 = vpow.pop %v6984
        %v6986 = vmul.f32 %v6967, 1.442695
        %v6987 = vpow.pop %v6986
        %v6988 = vmul.f32 %v6968, 1.442695
        %v6989 = vpow.pop %v6988
        %v6990 = vmul.f32 %v6969, 1.442695
        %v6991 = vpow.pop %v6990
        %v6992 = vmul.f32 %v6970, 1.442695
        %v6993 = vpow.pop %v6992
        %v6994 = vmul.f32 %v6971, 1.442695
        %v6995 = vpow.pop %v6994
        %v6996 = vmul.f32 %v6972, 1.442695
        %v6997 = vpow.pop %v6996
        %v6998 = vmul.f32 %v6973, 1.442695
        %v6999 = vpow.pop %v6998
        %v7000 = vmul.f32 %v6974, 1.442695
        %v7001 = vpow.pop %v7000
        %v7002 = vmul.f32 %v6975, 1.442695
        %v7003 = vpow.pop %v7002
        %v7004 = vmul.f32 %v6976, 1.442695
        %v7005 = vpow.pop %v7004
        %v7006 = vmul.f32 %v6977, 1.442695
        %v7007 = vpow.pop %v7006
        %v7008 = vmul.f32 %v6978, 1.442695
        %v7009 = vpow.pop %v7008
        %v7010 = vmul.f32 %v6979, 1.442695
        %v7011 = vpow.pop %v7010
        %7012 = vadd.xlane.f32.xlu0 %v6981
        %v7013 = vpop.xlane.xlu0 %7012
        %7014 = vadd.xlane.f32.xlu0 %v6983
        %v7015 = vpop.xlane.xlu0 %7014
        %7016 = vadd.xlane.f32.xlu0 %v6985
        %v7017 = vpop.xlane.xlu0 %7016
        %7018 = vadd.xlane.f32.xlu0 %v6987
        %v7019 = vpop.xlane.xlu0 %7018
        %7020 = vadd.xlane.f32.xlu0 %v6989
        %v7021 = vpop.xlane.xlu0 %7020
        %7022 = vadd.xlane.f32.xlu0 %v6991
        %v7023 = vpop.xlane.xlu0 %7022
        %7024 = vadd.xlane.f32.xlu0 %v6993
        %v7025 = vpop.xlane.xlu0 %7024
        %7026 = vadd.xlane.f32.xlu0 %v6995
        %v7027 = vpop.xlane.xlu0 %7026
        %7028 = vadd.xlane.f32.xlu0 %v6997
        %v7029 = vpop.xlane.xlu0 %7028
        %7030 = vadd.xlane.f32.xlu0 %v6999
        %v7031 = vpop.xlane.xlu0 %7030
        %7032 = vadd.xlane.f32.xlu0 %v7001
        %v7033 = vpop.xlane.xlu0 %7032
        %7034 = vadd.xlane.f32.xlu0 %v7003
        %v7035 = vpop.xlane.xlu0 %7034
        %7036 = vadd.xlane.f32.xlu0 %v7005
        %v7037 = vpop.xlane.xlu0 %7036
        %7038 = vadd.xlane.f32.xlu0 %v7007
        %v7039 = vpop.xlane.xlu0 %7038
        %7040 = vadd.xlane.f32.xlu0 %v7009
        %v7041 = vpop.xlane.xlu0 %7040
        %7042 = vadd.xlane.f32.xlu0 %v7011
        %v7043 = vpop.xlane.xlu0 %7042
        %v7044 = vpack.c.bf16 %v6983, %v6981
        %v7045 = vpack.c.bf16 %v6987, %v6985
        %v7046 = vpack.c.bf16 %v6991, %v6989
        %v7047 = vpack.c.bf16 %v6995, %v6993
        %v7048 = vpack.c.bf16 %v6999, %v6997
        %v7049 = vpack.c.bf16 %v7003, %v7001
        %v7050 = vpack.c.bf16 %v7007, %v7005
        %v7051 = vpack.c.bf16 %v7011, %v7009
        %7052 = vrot.lane.b32.xlu0 %v5886, 32
        %v7053 = vpop.permute.xlu0 %7052
        %7054 = vrot.lane.b32.xlu0 %v5887, 32
        %v7055 = vpop.permute.xlu0 %7054
        %7056 = vrot.lane.b32.xlu0 %v5888, 32
        %v7057 = vpop.permute.xlu0 %7056
        %7058 = vrot.lane.b32.xlu0 %v5889, 32
        %v7059 = vpop.permute.xlu0 %7058
        %7060 = vrot.lane.b32.xlu0 %v5890, 32
        %v7061 = vpop.permute.xlu0 %7060
        %7062 = vrot.lane.b32.xlu0 %v5891, 32
        %v7063 = vpop.permute.xlu0 %7062
        %7064 = vrot.lane.b32.xlu0 %v5892, 32
        %v7065 = vpop.permute.xlu0 %7064
        %7066 = vrot.lane.b32.xlu0 %v5893, 32
        %v7067 = vpop.permute.xlu0 %7066
        %7076 = vmatpush.bf16.msra.mxu0 %v7067
        %7077 = vmatpush.bf16.msra.mxu0 %v7065
        %7078 = vmatpush.bf16.msra.mxu0 %v7063
        %7079 = vmatpush.bf16.msra.mxu0 %v7061
        %7080 = vmatpush.bf16.msra.mxu0 %v7059
        %7081 = vmatpush.bf16.msra.mxu0 %v7057
        %7082 = vmatpush.bf16.msra.mxu0 %v7055
        %7083 = vmatpush.bf16.msra.mxu0 %v7053
        %7084 = vmatmul.bf16.gmra.mxu0 %v7044
        %v7085 = vpop.f32.mrf.mxu0
        %v7086 = vadd.f32 0.0, %v7085
        %v7087 = vpop.f32.mrf.mxu0
        %v7088 = vadd.f32 0.0, %v7087
        %7089 = vmatmul.bf16.gmra.mxu0 %v7045
        %v7090 = vpop.f32.mrf.mxu0
        %v7091 = vadd.f32 0.0, %v7090
        %v7092 = vpop.f32.mrf.mxu0
        %v7093 = vadd.f32 0.0, %v7092
        %7094 = vmatmul.bf16.gmra.mxu0 %v7046
        %v7095 = vpop.f32.mrf.mxu0
        %v7096 = vadd.f32 0.0, %v7095
        %v7097 = vpop.f32.mrf.mxu0
        %v7098 = vadd.f32 0.0, %v7097
        %7099 = vmatmul.bf16.gmra.mxu0 %v7047
        %v7100 = vpop.f32.mrf.mxu0
        %v7101 = vadd.f32 0.0, %v7100
        %v7102 = vpop.f32.mrf.mxu0
        %v7103 = vadd.f32 0.0, %v7102
        %7104 = vmatmul.bf16.gmra.mxu0 %v7048
        %v7105 = vpop.f32.mrf.mxu0
        %v7106 = vadd.f32 0.0, %v7105
        %v7107 = vpop.f32.mrf.mxu0
        %v7108 = vadd.f32 0.0, %v7107
        %7109 = vmatmul.bf16.gmra.mxu0 %v7049
        %v7110 = vpop.f32.mrf.mxu0
        %v7111 = vadd.f32 0.0, %v7110
        %v7112 = vpop.f32.mrf.mxu0
        %v7113 = vadd.f32 0.0, %v7112
        %7114 = vmatmul.bf16.gmra.mxu0 %v7050
        %v7115 = vpop.f32.mrf.mxu0
        %v7116 = vadd.f32 0.0, %v7115
        %v7117 = vpop.f32.mrf.mxu0
        %v7118 = vadd.f32 0.0, %v7117
        %7119 = vmatmul.bf16.gmra.mxu0 %v7051
        %v7120 = vpop.f32.mrf.mxu0
        %v7121 = vadd.f32 0.0, %v7120
        %v7122 = vpop.f32.mrf.mxu0
        %v7123 = vadd.f32 0.0, %v7122
        %7124 = vdwg.mxu0
        %v7125 = vrcp.pop %v7013
        %v7126 = vrcp.pop %v7015
        %v7127 = vrcp.pop %v7017
        %v7128 = vrcp.pop %v7019
        %v7129 = vrcp.pop %v7021
        %v7130 = vrcp.pop %v7023
        %v7131 = vrcp.pop %v7025
        %v7132 = vrcp.pop %v7027
        %v7133 = vrcp.pop %v7029
        %v7134 = vrcp.pop %v7031
        %v7135 = vrcp.pop %v7033
        %v7136 = vrcp.pop %v7035
        %v7137 = vrcp.pop %v7037
        %v7138 = vrcp.pop %v7039
        %v7139 = vrcp.pop %v7041
        %v7140 = vrcp.pop %v7043
        %v7141 = vmul.f32 %v7086, %v7125
        %v7142 = vmul.f32 %v7088, %v7126
        %v7143 = vmul.f32 %v7091, %v7127
        %v7144 = vmul.f32 %v7093, %v7128
        %v7145 = vmul.f32 %v7096, %v7129
        %v7146 = vmul.f32 %v7098, %v7130
        %v7147 = vmul.f32 %v7101, %v7131
        %v7148 = vmul.f32 %v7103, %v7132
        %v7149 = vmul.f32 %v7106, %v7133
        %v7150 = vmul.f32 %v7108, %v7134
        %v7151 = vmul.f32 %v7111, %v7135
        %v7152 = vmul.f32 %v7113, %v7136
        %v7153 = vmul.f32 %v7116, %v7137
        %v7154 = vmul.f32 %v7118, %v7138
        %v7155 = vmul.f32 %v7121, %v7139
        %v7156 = vmul.f32 %v7123, %v7140
        %7173 = vrot.lane.b32.xlu0 %v6369, 32
        %v7174 = vpop.permute.xlu0 %7173
        %7175 = vrot.lane.b32.xlu0 %v6370, 32
        %v7176 = vpop.permute.xlu0 %7175
        %7177 = vrot.lane.b32.xlu0 %v6371, 32
        %v7178 = vpop.permute.xlu0 %7177
        %7179 = vrot.lane.b32.xlu0 %v6372, 32
        %v7180 = vpop.permute.xlu0 %7179
        %7181 = vrot.lane.b32.xlu0 %v6373, 32
        %v7182 = vpop.permute.xlu0 %7181
        %7183 = vrot.lane.b32.xlu0 %v6374, 32
        %v7184 = vpop.permute.xlu0 %7183
        %7185 = vrot.lane.b32.xlu0 %v6375, 32
        %v7186 = vpop.permute.xlu0 %7185
        %7187 = vrot.lane.b32.xlu0 %v6376, 32
        %v7188 = vpop.permute.xlu0 %7187
        %7189 = vrot.lane.b32.xlu0 %v6377, 32
        %v7190 = vpop.permute.xlu0 %7189
        %7191 = vrot.lane.b32.xlu0 %v6378, 32
        %v7192 = vpop.permute.xlu0 %7191
        %7193 = vrot.lane.b32.xlu0 %v6379, 32
        %v7194 = vpop.permute.xlu0 %7193
        %7195 = vrot.lane.b32.xlu0 %v6380, 32
        %v7196 = vpop.permute.xlu0 %7195
        %7197 = vrot.lane.b32.xlu0 %v6381, 32
        %v7198 = vpop.permute.xlu0 %7197
        %7199 = vrot.lane.b32.xlu0 %v6382, 32
        %v7200 = vpop.permute.xlu0 %7199
        %7201 = vrot.lane.b32.xlu0 %v6383, 32
        %v7202 = vpop.permute.xlu0 %7201
        %7203 = vrot.lane.b32.xlu0 %v6384, 32
        %v7204 = vpop.permute.xlu0 %7203
        %7237 = vrot.lane.b32.xlu0 %v6755, 64
        %v7238 = vpop.permute.xlu0 %7237
        %7239 = vrot.lane.b32.xlu0 %v6756, 64
        %v7240 = vpop.permute.xlu0 %7239
        %7241 = vrot.lane.b32.xlu0 %v6757, 64
        %v7242 = vpop.permute.xlu0 %7241
        %7243 = vrot.lane.b32.xlu0 %v6758, 64
        %v7244 = vpop.permute.xlu0 %7243
        %7245 = vrot.lane.b32.xlu0 %v6759, 64
        %v7246 = vpop.permute.xlu0 %7245
        %7247 = vrot.lane.b32.xlu0 %v6760, 64
        %v7248 = vpop.permute.xlu0 %7247
        %7249 = vrot.lane.b32.xlu0 %v6761, 64
        %v7250 = vpop.permute.xlu0 %7249
        %7251 = vrot.lane.b32.xlu0 %v6762, 64
        %v7252 = vpop.permute.xlu0 %7251
        %7253 = vrot.lane.b32.xlu0 %v6763, 64
        %v7254 = vpop.permute.xlu0 %7253
        %7255 = vrot.lane.b32.xlu0 %v6764, 64
        %v7256 = vpop.permute.xlu0 %7255
        %7257 = vrot.lane.b32.xlu0 %v6765, 64
        %v7258 = vpop.permute.xlu0 %7257
        %7259 = vrot.lane.b32.xlu0 %v6766, 64
        %v7260 = vpop.permute.xlu0 %7259
        %7261 = vrot.lane.b32.xlu0 %v6767, 64
        %v7262 = vpop.permute.xlu0 %7261
        %7263 = vrot.lane.b32.xlu0 %v6768, 64
        %v7264 = vpop.permute.xlu0 %7263
        %7265 = vrot.lane.b32.xlu0 %v6769, 64
        %v7266 = vpop.permute.xlu0 %7265
        %7267 = vrot.lane.b32.xlu0 %v6770, 64
        %v7268 = vpop.permute.xlu0 %7267
        %7301 = vrot.lane.b32.xlu0 %v7141, 96
        %v7302 = vpop.permute.xlu0 %7301
        %7303 = vrot.lane.b32.xlu0 %v7142, 96
        %v7304 = vpop.permute.xlu0 %7303
        %7305 = vrot.lane.b32.xlu0 %v7143, 96
        %v7306 = vpop.permute.xlu0 %7305
        %7307 = vrot.lane.b32.xlu0 %v7144, 96
        %v7308 = vpop.permute.xlu0 %7307
        %7309 = vrot.lane.b32.xlu0 %v7145, 96
        %v7310 = vpop.permute.xlu0 %7309
        %7311 = vrot.lane.b32.xlu0 %v7146, 96
        %v7312 = vpop.permute.xlu0 %7311
        %7313 = vrot.lane.b32.xlu0 %v7147, 96
        %v7314 = vpop.permute.xlu0 %7313
        %7315 = vrot.lane.b32.xlu0 %v7148, 96
        %v7316 = vpop.permute.xlu0 %7315
        %7317 = vrot.lane.b32.xlu0 %v7149, 96
        %v7318 = vpop.permute.xlu0 %7317
        %7319 = vrot.lane.b32.xlu0 %v7150, 96
        %v7320 = vpop.permute.xlu0 %7319
        %7321 = vrot.lane.b32.xlu0 %v7151, 96
        %v7322 = vpop.permute.xlu0 %7321
        %7323 = vrot.lane.b32.xlu0 %v7152, 96
        %v7324 = vpop.permute.xlu0 %7323
        %7325 = vrot.lane.b32.xlu0 %v7153, 96
        %v7326 = vpop.permute.xlu0 %7325
        %7327 = vrot.lane.b32.xlu0 %v7154, 96
        %v7328 = vpop.permute.xlu0 %7327
        %7329 = vrot.lane.b32.xlu0 %v7155, 96
        %v7330 = vpop.permute.xlu0 %7329
        %7331 = vrot.lane.b32.xlu0 %v7156, 96
        %v7332 = vpop.permute.xlu0 %7331
        %v7349 = vsel %vm1693, %v5959, %v7174
        %v7350 = vsel %vm1693, %v5960, %v7176
        %v7351 = vsel %vm1693, %v5961, %v7178
        %v7352 = vsel %vm1693, %v5962, %v7180
        %v7353 = vsel %vm1693, %v5963, %v7182
        %v7354 = vsel %vm1693, %v5964, %v7184
        %v7355 = vsel %vm1693, %v5965, %v7186
        %v7356 = vsel %vm1693, %v5966, %v7188
        %v7357 = vsel %vm1693, %v5967, %v7190
        %v7358 = vsel %vm1693, %v5968, %v7192
        %v7359 = vsel %vm1693, %v5969, %v7194
        %v7360 = vsel %vm1693, %v5970, %v7196
        %v7361 = vsel %vm1693, %v5971, %v7198
        %v7362 = vsel %vm1693, %v5972, %v7200
        %v7363 = vsel %vm1693, %v5973, %v7202
        %v7364 = vsel %vm1693, %v5974, %v7204
        %v7365 = vsel %vm3422, %v7349, %v7238
        %v7366 = vsel %vm3422, %v7350, %v7240
        %v7367 = vsel %vm3422, %v7351, %v7242
        %v7368 = vsel %vm3422, %v7352, %v7244
        %v7369 = vsel %vm3422, %v7353, %v7246
        %v7370 = vsel %vm3422, %v7354, %v7248
        %v7371 = vsel %vm3422, %v7355, %v7250
        %v7372 = vsel %vm3422, %v7356, %v7252
        %v7373 = vsel %vm3422, %v7357, %v7254
        %v7374 = vsel %vm3422, %v7358, %v7256
        %v7375 = vsel %vm3422, %v7359, %v7258
        %v7376 = vsel %vm3422, %v7360, %v7260
        %v7377 = vsel %vm3422, %v7361, %v7262
        %v7378 = vsel %vm3422, %v7362, %v7264
        %v7379 = vsel %vm3422, %v7363, %v7266
        %v7380 = vsel %vm3422, %v7364, %v7268
        %v7381 = vsel %vm3439, %v7365, %v7302
        %v7382 = vsel %vm3439, %v7366, %v7304
        %v7383 = vsel %vm3439, %v7367, %v7306
        %v7384 = vsel %vm3439, %v7368, %v7308
        %v7385 = vsel %vm3439, %v7369, %v7310
        %v7386 = vsel %vm3439, %v7370, %v7312
        %v7387 = vsel %vm3439, %v7371, %v7314
        %v7388 = vsel %vm3439, %v7372, %v7316
        %v7389 = vsel %vm3439, %v7373, %v7318
        %v7390 = vsel %vm3439, %v7374, %v7320
        %v7391 = vsel %vm3439, %v7375, %v7322
        %v7392 = vsel %vm3439, %v7376, %v7324
        %v7393 = vsel %vm3439, %v7377, %v7326
        %v7394 = vsel %vm3439, %v7378, %v7328
        %v7395 = vsel %vm3439, %v7379, %v7330
        %v7396 = vsel %vm3439, %v7380, %v7332
        %s7397 = scalar_lea.vmem %s8, 64
        %v7398 = vld [vmem:[%s7397] sm:$0xf]
        %v7399 = vld [vmem:[%s7397 + $0x4] sm:$0xf]
        %v7400 = vld [vmem:[%s7397 + $0x8] sm:$0xf]
        %v7401 = vld [vmem:[%s7397 + $0xc] sm:$0xf]
        %v7402 = vld [vmem:[%s7397 + $0x10] sm:$0xf]
        %v7403 = vld [vmem:[%s7397 + $0x14] sm:$0xf]
        %v7404 = vld [vmem:[%s7397 + $0x18] sm:$0xf]
        %v7405 = vld [vmem:[%s7397 + $0x1c] sm:$0xf]
        %v7406 = vld [vmem:[%s7397 + $0x20] sm:$0xf]
        %v7407 = vld [vmem:[%s7397 + $0x24] sm:$0xf]
        %v7408 = vld [vmem:[%s7397 + $0x28] sm:$0xf]
        %v7409 = vld [vmem:[%s7397 + $0x2c] sm:$0xf]
        %v7410 = vld [vmem:[%s7397 + $0x30] sm:$0xf]
        %v7411 = vld [vmem:[%s7397 + $0x34] sm:$0xf]
        %v7412 = vld [vmem:[%s7397 + $0x38] sm:$0xf]
        %v7413 = vld [vmem:[%s7397 + $0x3c] sm:$0xf]
        %v7414 = vpack.c.bf16 %v7382, %v7381
        %v7415 = vpack.c.bf16 %v7384, %v7383
        %v7416 = vpack.c.bf16 %v7386, %v7385
        %v7417 = vpack.c.bf16 %v7388, %v7387
        %v7418 = vpack.c.bf16 %v7390, %v7389
        %v7419 = vpack.c.bf16 %v7392, %v7391
        %v7420 = vpack.c.bf16 %v7394, %v7393
        %v7421 = vpack.c.bf16 %v7396, %v7395
        %v7438 = vunpack.c.l.b16 %v7398
        %v7439 = vunpack.c.l.b16 %v7399
        %v7440 = vunpack.c.l.b16 %v7400
        %v7441 = vunpack.c.l.b16 %v7401
        %v7442 = vunpack.c.l.b16 %v7402
        %v7443 = vunpack.c.l.b16 %v7403
        %v7444 = vunpack.c.l.b16 %v7404
        %v7445 = vunpack.c.l.b16 %v7405
        %v7446 = vunpack.c.l.b16 %v7406
        %v7447 = vunpack.c.l.b16 %v7407
        %v7448 = vunpack.c.l.b16 %v7408
        %v7449 = vunpack.c.l.b16 %v7409
        %v7450 = vunpack.c.l.b16 %v7410
        %v7451 = vunpack.c.l.b16 %v7411
        %v7452 = vunpack.c.l.b16 %v7412
        %v7453 = vunpack.c.l.b16 %v7413
        %v7454 = vpack.c.b16 %v7439, %v7438
        %v7455 = vpack.c.b16 %v7441, %v7440
        %v7456 = vpack.c.b16 %v7443, %v7442
        %v7457 = vpack.c.b16 %v7445, %v7444
        %v7458 = vpack.c.b16 %v7447, %v7446
        %v7459 = vpack.c.b16 %v7449, %v7448
        %v7460 = vpack.c.b16 %v7451, %v7450
        %v7461 = vpack.c.b16 %v7453, %v7452
        %7470 = vmatpush.bf16.msra.mxu0 %v7461
        %7471 = vmatpush.bf16.msra.mxu0 %v7460
        %7472 = vmatpush.bf16.msra.mxu0 %v7459
        %7473 = vmatpush.bf16.msra.mxu0 %v7458
        %7474 = vmatpush.bf16.msra.mxu0 %v7457
        %7475 = vmatpush.bf16.msra.mxu0 %v7456
        %7476 = vmatpush.bf16.msra.mxu0 %v7455
        %7477 = vmatpush.bf16.msra.mxu0 %v7454
        %7478 = vmatmul.bf16.gmra.mxu0 %v7414
        %v7479 = vpop.f32.mrf.mxu0
        %v7480 = vadd.f32 0.0, %v7479
        %v7481 = vpop.f32.mrf.mxu0
        %v7482 = vadd.f32 0.0, %v7481
        %7483 = vmatmul.bf16.gmra.mxu0 %v7415
        %v7484 = vpop.f32.mrf.mxu0
        %v7485 = vadd.f32 0.0, %v7484
        %v7486 = vpop.f32.mrf.mxu0
        %v7487 = vadd.f32 0.0, %v7486
        %7488 = vmatmul.bf16.gmra.mxu0 %v7416
        %v7489 = vpop.f32.mrf.mxu0
        %v7490 = vadd.f32 0.0, %v7489
        %v7491 = vpop.f32.mrf.mxu0
        %v7492 = vadd.f32 0.0, %v7491
        %7493 = vmatmul.bf16.gmra.mxu0 %v7417
        %v7494 = vpop.f32.mrf.mxu0
        %v7495 = vadd.f32 0.0, %v7494
        %v7496 = vpop.f32.mrf.mxu0
        %v7497 = vadd.f32 0.0, %v7496
        %7498 = vmatmul.bf16.gmra.mxu0 %v7418
        %v7499 = vpop.f32.mrf.mxu0
        %v7500 = vadd.f32 0.0, %v7499
        %v7501 = vpop.f32.mrf.mxu0
        %v7502 = vadd.f32 0.0, %v7501
        %7503 = vmatmul.bf16.gmra.mxu0 %v7419
        %v7504 = vpop.f32.mrf.mxu0
        %v7505 = vadd.f32 0.0, %v7504
        %v7506 = vpop.f32.mrf.mxu0
        %v7507 = vadd.f32 0.0, %v7506
        %7508 = vmatmul.bf16.gmra.mxu0 %v7420
        %v7509 = vpop.f32.mrf.mxu0
        %v7510 = vadd.f32 0.0, %v7509
        %v7511 = vpop.f32.mrf.mxu0
        %v7512 = vadd.f32 0.0, %v7511
        %7513 = vmatmul.bf16.gmra.mxu0 %v7421
        %v7514 = vpop.f32.mrf.mxu0
        %v7515 = vadd.f32 0.0, %v7514
        %v7516 = vpop.f32.mrf.mxu0
        %v7517 = vadd.f32 0.0, %v7516
        %7518 = vdwg.mxu0
        %v7519 = vadd.f32 %v4927, %v7480
        %v7520 = vadd.f32 %v4928, %v7482
        %v7521 = vadd.f32 %v4929, %v7485
        %v7522 = vadd.f32 %v4930, %v7487
        %v7523 = vadd.f32 %v4931, %v7490
        %v7524 = vadd.f32 %v4932, %v7492
        %v7525 = vadd.f32 %v4933, %v7495
        %v7526 = vadd.f32 %v4934, %v7497
        %v7527 = vadd.f32 %v4935, %v7500
        %v7528 = vadd.f32 %v4936, %v7502
        %v7529 = vadd.f32 %v4937, %v7505
        %v7530 = vadd.f32 %v4938, %v7507
        %v7531 = vadd.f32 %v4939, %v7510
        %v7532 = vadd.f32 %v4940, %v7512
        %v7533 = vadd.f32 %v4941, %v7515
        %v7534 = vadd.f32 %v4942, %v7517
        %s7535 = scalar_lea.vmem %s5, 1
        %v7536 = vld [vmem:[%s7535] sm:$0x1]
        %s7537 = scalar_lea.vmem [#allocation4], 1
        %v7538 = vld [vmem:[%s7537] sm:$0x1]
        %7539 = vadd.xlane.f32.xlu0 %v7519
        %v7540 = vpop.xlane.xlu0 %7539
        %7541 = vadd.xlane.f32.xlu0 %v7520
        %v7542 = vpop.xlane.xlu0 %7541
        %7543 = vadd.xlane.f32.xlu0 %v7521
        %v7544 = vpop.xlane.xlu0 %7543
        %7545 = vadd.xlane.f32.xlu0 %v7522
        %v7546 = vpop.xlane.xlu0 %7545
        %7547 = vadd.xlane.f32.xlu0 %v7523
        %v7548 = vpop.xlane.xlu0 %7547
        %7549 = vadd.xlane.f32.xlu0 %v7524
        %v7550 = vpop.xlane.xlu0 %7549
        %7551 = vadd.xlane.f32.xlu0 %v7525
        %v7552 = vpop.xlane.xlu0 %7551
        %7553 = vadd.xlane.f32.xlu0 %v7526
        %v7554 = vpop.xlane.xlu0 %7553
        %7555 = vadd.xlane.f32.xlu0 %v7527
        %v7556 = vpop.xlane.xlu0 %7555
        %7557 = vadd.xlane.f32.xlu0 %v7528
        %v7558 = vpop.xlane.xlu0 %7557
        %7559 = vadd.xlane.f32.xlu0 %v7529
        %v7560 = vpop.xlane.xlu0 %7559
        %7561 = vadd.xlane.f32.xlu0 %v7530
        %v7562 = vpop.xlane.xlu0 %7561
        %7563 = vadd.xlane.f32.xlu0 %v7531
        %v7564 = vpop.xlane.xlu0 %7563
        %7565 = vadd.xlane.f32.xlu0 %v7532
        %v7566 = vpop.xlane.xlu0 %7565
        %7567 = vadd.xlane.f32.xlu0 %v7533
        %v7568 = vpop.xlane.xlu0 %7567
        %7569 = vadd.xlane.f32.xlu0 %v7534
        %v7570 = vpop.xlane.xlu0 %7569
        %v7571 = vmul.f32 %v7540, %v1035
        %v7572 = vmul.f32 %v7542, %v1035
        %v7573 = vmul.f32 %v7544, %v1035
        %v7574 = vmul.f32 %v7546, %v1035
        %v7575 = vmul.f32 %v7548, %v1035
        %v7576 = vmul.f32 %v7550, %v1035
        %v7577 = vmul.f32 %v7552, %v1035
        %v7578 = vmul.f32 %v7554, %v1035
        %v7579 = vmul.f32 %v7556, %v1035
        %v7580 = vmul.f32 %v7558, %v1035
        %v7581 = vmul.f32 %v7560, %v1035
        %v7582 = vmul.f32 %v7562, %v1035
        %v7583 = vmul.f32 %v7564, %v1035
        %v7584 = vmul.f32 %v7566, %v1035
        %v7585 = vmul.f32 %v7568, %v1035
        %v7586 = vmul.f32 %v7570, %v1035
        %v7587 = vsub.f32 %v7519, %v7571
        %v7588 = vsub.f32 %v7520, %v7572
        %v7589 = vsub.f32 %v7521, %v7573
        %v7590 = vsub.f32 %v7522, %v7574
        %v7591 = vsub.f32 %v7523, %v7575
        %v7592 = vsub.f32 %v7524, %v7576
        %v7593 = vsub.f32 %v7525, %v7577
        %v7594 = vsub.f32 %v7526, %v7578
        %v7595 = vsub.f32 %v7527, %v7579
        %v7596 = vsub.f32 %v7528, %v7580
        %v7597 = vsub.f32 %v7529, %v7581
        %v7598 = vsub.f32 %v7530, %v7582
        %v7599 = vsub.f32 %v7531, %v7583
        %v7600 = vsub.f32 %v7532, %v7584
        %v7601 = vsub.f32 %v7533, %v7585
        %v7602 = vsub.f32 %v7534, %v7586
        %v7603 = vmul.f32 %v7587, %v7587
        %v7604 = vmul.f32 %v7588, %v7588
        %v7605 = vmul.f32 %v7589, %v7589
        %v7606 = vmul.f32 %v7590, %v7590
        %v7607 = vmul.f32 %v7591, %v7591
        %v7608 = vmul.f32 %v7592, %v7592
        %v7609 = vmul.f32 %v7593, %v7593
        %v7610 = vmul.f32 %v7594, %v7594
        %v7611 = vmul.f32 %v7595, %v7595
        %v7612 = vmul.f32 %v7596, %v7596
        %v7613 = vmul.f32 %v7597, %v7597
        %v7614 = vmul.f32 %v7598, %v7598
        %v7615 = vmul.f32 %v7599, %v7599
        %v7616 = vmul.f32 %v7600, %v7600
        %v7617 = vmul.f32 %v7601, %v7601
        %v7618 = vmul.f32 %v7602, %v7602
        %7619 = vadd.xlane.f32.xlu0 %v7603
        %v7620 = vpop.xlane.xlu0 %7619
        %7621 = vadd.xlane.f32.xlu0 %v7604
        %v7622 = vpop.xlane.xlu0 %7621
        %7623 = vadd.xlane.f32.xlu0 %v7605
        %v7624 = vpop.xlane.xlu0 %7623
        %7625 = vadd.xlane.f32.xlu0 %v7606
        %v7626 = vpop.xlane.xlu0 %7625
        %7627 = vadd.xlane.f32.xlu0 %v7607
        %v7628 = vpop.xlane.xlu0 %7627
        %7629 = vadd.xlane.f32.xlu0 %v7608
        %v7630 = vpop.xlane.xlu0 %7629
        %7631 = vadd.xlane.f32.xlu0 %v7609
        %v7632 = vpop.xlane.xlu0 %7631
        %7633 = vadd.xlane.f32.xlu0 %v7610
        %v7634 = vpop.xlane.xlu0 %7633
        %7635 = vadd.xlane.f32.xlu0 %v7611
        %v7636 = vpop.xlane.xlu0 %7635
        %7637 = vadd.xlane.f32.xlu0 %v7612
        %v7638 = vpop.xlane.xlu0 %7637
        %7639 = vadd.xlane.f32.xlu0 %v7613
        %v7640 = vpop.xlane.xlu0 %7639
        %7641 = vadd.xlane.f32.xlu0 %v7614
        %v7642 = vpop.xlane.xlu0 %7641
        %7643 = vadd.xlane.f32.xlu0 %v7615
        %v7644 = vpop.xlane.xlu0 %7643
        %7645 = vadd.xlane.f32.xlu0 %v7616
        %v7646 = vpop.xlane.xlu0 %7645
        %7647 = vadd.xlane.f32.xlu0 %v7617
        %v7648 = vpop.xlane.xlu0 %7647
        %7649 = vadd.xlane.f32.xlu0 %v7618
        %v7650 = vpop.xlane.xlu0 %7649
        %v7651 = vmul.f32 %v7620, %v1035
        %v7652 = vmul.f32 %v7622, %v1035
        %v7653 = vmul.f32 %v7624, %v1035
        %v7654 = vmul.f32 %v7626, %v1035
        %v7655 = vmul.f32 %v7628, %v1035
        %v7656 = vmul.f32 %v7630, %v1035
        %v7657 = vmul.f32 %v7632, %v1035
        %v7658 = vmul.f32 %v7634, %v1035
        %v7659 = vmul.f32 %v7636, %v1035
        %v7660 = vmul.f32 %v7638, %v1035
        %v7661 = vmul.f32 %v7640, %v1035
        %v7662 = vmul.f32 %v7642, %v1035
        %v7663 = vmul.f32 %v7644, %v1035
        %v7664 = vmul.f32 %v7646, %v1035
        %v7665 = vmul.f32 %v7648, %v1035
        %v7666 = vmul.f32 %v7650, %v1035
        %v7667 = vadd.f32 %v7651, 1e-05
        %v7668 = vadd.f32 %v7652, 1e-05
        %v7669 = vadd.f32 %v7653, 1e-05
        %v7670 = vadd.f32 %v7654, 1e-05
        %v7671 = vadd.f32 %v7655, 1e-05
        %v7672 = vadd.f32 %v7656, 1e-05
        %v7673 = vadd.f32 %v7657, 1e-05
        %v7674 = vadd.f32 %v7658, 1e-05
        %v7675 = vadd.f32 %v7659, 1e-05
        %v7676 = vadd.f32 %v7660, 1e-05
        %v7677 = vadd.f32 %v7661, 1e-05
        %v7678 = vadd.f32 %v7662, 1e-05
        %v7679 = vadd.f32 %v7663, 1e-05
        %v7680 = vadd.f32 %v7664, 1e-05
        %v7681 = vadd.f32 %v7665, 1e-05
        %v7682 = vadd.f32 %v7666, 1e-05
        %v7683 = vrsqrt.pop %v7667
        %v7684 = vmul.f32 %v7683, %v7667
        %v7685 = vmul.f32 %v7684, %v7683
        %v7686 = vmul.f32 0.5, %v7685
        %v7687 = vsub.f32 1.5, %v7686
        %v7688 = vmul.f32 %v7683, %v7687
        %vm7689 = vweird.f32 %v7667
        %vm7690 = vweird.f32 %v7683
        %vm7691 = vmor %vm7689, %vm7690
        %v7692 = vsel %vm7691, %v7683, %v7688
        %v7693 = vrsqrt.pop %v7668
        %v7694 = vmul.f32 %v7693, %v7668
        %v7695 = vmul.f32 %v7694, %v7693
        %v7696 = vmul.f32 0.5, %v7695
        %v7697 = vsub.f32 1.5, %v7696
        %v7698 = vmul.f32 %v7693, %v7697
        %vm7699 = vweird.f32 %v7668
        %vm7700 = vweird.f32 %v7693
        %vm7701 = vmor %vm7699, %vm7700
        %v7702 = vsel %vm7701, %v7693, %v7698
        %v7703 = vrsqrt.pop %v7669
        %v7704 = vmul.f32 %v7703, %v7669
        %v7705 = vmul.f32 %v7704, %v7703
        %v7706 = vmul.f32 0.5, %v7705
        %v7707 = vsub.f32 1.5, %v7706
        %v7708 = vmul.f32 %v7703, %v7707
        %vm7709 = vweird.f32 %v7669
        %vm7710 = vweird.f32 %v7703
        %vm7711 = vmor %vm7709, %vm7710
        %v7712 = vsel %vm7711, %v7703, %v7708
        %v7713 = vrsqrt.pop %v7670
        %v7714 = vmul.f32 %v7713, %v7670
        %v7715 = vmul.f32 %v7714, %v7713
        %v7716 = vmul.f32 0.5, %v7715
        %v7717 = vsub.f32 1.5, %v7716
        %v7718 = vmul.f32 %v7713, %v7717
        %vm7719 = vweird.f32 %v7670
        %vm7720 = vweird.f32 %v7713
        %vm7721 = vmor %vm7719, %vm7720
        %v7722 = vsel %vm7721, %v7713, %v7718
        %v7723 = vrsqrt.pop %v7671
        %v7724 = vmul.f32 %v7723, %v7671
        %v7725 = vmul.f32 %v7724, %v7723
        %v7726 = vmul.f32 0.5, %v7725
        %v7727 = vsub.f32 1.5, %v7726
        %v7728 = vmul.f32 %v7723, %v7727
        %vm7729 = vweird.f32 %v7671
        %vm7730 = vweird.f32 %v7723
        %vm7731 = vmor %vm7729, %vm7730
        %v7732 = vsel %vm7731, %v7723, %v7728
        %v7733 = vrsqrt.pop %v7672
        %v7734 = vmul.f32 %v7733, %v7672
        %v7735 = vmul.f32 %v7734, %v7733
        %v7736 = vmul.f32 0.5, %v7735
        %v7737 = vsub.f32 1.5, %v7736
        %v7738 = vmul.f32 %v7733, %v7737
        %vm7739 = vweird.f32 %v7672
        %vm7740 = vweird.f32 %v7733
        %vm7741 = vmor %vm7739, %vm7740
        %v7742 = vsel %vm7741, %v7733, %v7738
        %v7743 = vrsqrt.pop %v7673
        %v7744 = vmul.f32 %v7743, %v7673
        %v7745 = vmul.f32 %v7744, %v7743
        %v7746 = vmul.f32 0.5, %v7745
        %v7747 = vsub.f32 1.5, %v7746
        %v7748 = vmul.f32 %v7743, %v7747
        %vm7749 = vweird.f32 %v7673
        %vm7750 = vweird.f32 %v7743
        %vm7751 = vmor %vm7749, %vm7750
        %v7752 = vsel %vm7751, %v7743, %v7748
        %v7753 = vrsqrt.pop %v7674
        %v7754 = vmul.f32 %v7753, %v7674
        %v7755 = vmul.f32 %v7754, %v7753
        %v7756 = vmul.f32 0.5, %v7755
        %v7757 = vsub.f32 1.5, %v7756
        %v7758 = vmul.f32 %v7753, %v7757
        %vm7759 = vweird.f32 %v7674
        %vm7760 = vweird.f32 %v7753
        %vm7761 = vmor %vm7759, %vm7760
        %v7762 = vsel %vm7761, %v7753, %v7758
        %v7763 = vrsqrt.pop %v7675
        %v7764 = vmul.f32 %v7763, %v7675
        %v7765 = vmul.f32 %v7764, %v7763
        %v7766 = vmul.f32 0.5, %v7765
        %v7767 = vsub.f32 1.5, %v7766
        %v7768 = vmul.f32 %v7763, %v7767
        %vm7769 = vweird.f32 %v7675
        %vm7770 = vweird.f32 %v7763
        %vm7771 = vmor %vm7769, %vm7770
        %v7772 = vsel %vm7771, %v7763, %v7768
        %v7773 = vrsqrt.pop %v7676
        %v7774 = vmul.f32 %v7773, %v7676
        %v7775 = vmul.f32 %v7774, %v7773
        %v7776 = vmul.f32 0.5, %v7775
        %v7777 = vsub.f32 1.5, %v7776
        %v7778 = vmul.f32 %v7773, %v7777
        %vm7779 = vweird.f32 %v7676
        %vm7780 = vweird.f32 %v7773
        %vm7781 = vmor %vm7779, %vm7780
        %v7782 = vsel %vm7781, %v7773, %v7778
        %v7783 = vrsqrt.pop %v7677
        %v7784 = vmul.f32 %v7783, %v7677
        %v7785 = vmul.f32 %v7784, %v7783
        %v7786 = vmul.f32 0.5, %v7785
        %v7787 = vsub.f32 1.5, %v7786
        %v7788 = vmul.f32 %v7783, %v7787
        %vm7789 = vweird.f32 %v7677
        %vm7790 = vweird.f32 %v7783
        %vm7791 = vmor %vm7789, %vm7790
        %v7792 = vsel %vm7791, %v7783, %v7788
        %v7793 = vrsqrt.pop %v7678
        %v7794 = vmul.f32 %v7793, %v7678
        %v7795 = vmul.f32 %v7794, %v7793
        %v7796 = vmul.f32 0.5, %v7795
        %v7797 = vsub.f32 1.5, %v7796
        %v7798 = vmul.f32 %v7793, %v7797
        %vm7799 = vweird.f32 %v7678
        %vm7800 = vweird.f32 %v7793
        %vm7801 = vmor %vm7799, %vm7800
        %v7802 = vsel %vm7801, %v7793, %v7798
        %v7803 = vrsqrt.pop %v7679
        %v7804 = vmul.f32 %v7803, %v7679
        %v7805 = vmul.f32 %v7804, %v7803
        %v7806 = vmul.f32 0.5, %v7805
        %v7807 = vsub.f32 1.5, %v7806
        %v7808 = vmul.f32 %v7803, %v7807
        %vm7809 = vweird.f32 %v7679
        %vm7810 = vweird.f32 %v7803
        %vm7811 = vmor %vm7809, %vm7810
        %v7812 = vsel %vm7811, %v7803, %v7808
        %v7813 = vrsqrt.pop %v7680
        %v7814 = vmul.f32 %v7813, %v7680
        %v7815 = vmul.f32 %v7814, %v7813
        %v7816 = vmul.f32 0.5, %v7815
        %v7817 = vsub.f32 1.5, %v7816
        %v7818 = vmul.f32 %v7813, %v7817
        %vm7819 = vweird.f32 %v7680
        %vm7820 = vweird.f32 %v7813
        %vm7821 = vmor %vm7819, %vm7820
        %v7822 = vsel %vm7821, %v7813, %v7818
        %v7823 = vrsqrt.pop %v7681
        %v7824 = vmul.f32 %v7823, %v7681
        %v7825 = vmul.f32 %v7824, %v7823
        %v7826 = vmul.f32 0.5, %v7825
        %v7827 = vsub.f32 1.5, %v7826
        %v7828 = vmul.f32 %v7823, %v7827
        %vm7829 = vweird.f32 %v7681
        %vm7830 = vweird.f32 %v7823
        %vm7831 = vmor %vm7829, %vm7830
        %v7832 = vsel %vm7831, %v7823, %v7828
        %v7833 = vrsqrt.pop %v7682
        %v7834 = vmul.f32 %v7833, %v7682
        %v7835 = vmul.f32 %v7834, %v7833
        %v7836 = vmul.f32 0.5, %v7835
        %v7837 = vsub.f32 1.5, %v7836
        %v7838 = vmul.f32 %v7833, %v7837
        %vm7839 = vweird.f32 %v7682
        %vm7840 = vweird.f32 %v7833
        %vm7841 = vmor %vm7839, %vm7840
        %v7842 = vsel %vm7841, %v7833, %v7838
        %v7843 = vmul.f32 %v7587, %v7692
        %v7844 = vmul.f32 %v7588, %v7702
        %v7845 = vmul.f32 %v7589, %v7712
        %v7846 = vmul.f32 %v7590, %v7722
        %v7847 = vmul.f32 %v7591, %v7732
        %v7848 = vmul.f32 %v7592, %v7742
        %v7849 = vmul.f32 %v7593, %v7752
        %v7850 = vmul.f32 %v7594, %v7762
        %v7851 = vmul.f32 %v7595, %v7772
        %v7852 = vmul.f32 %v7596, %v7782
        %v7853 = vmul.f32 %v7597, %v7792
        %v7854 = vmul.f32 %v7598, %v7802
        %v7855 = vmul.f32 %v7599, %v7812
        %v7856 = vmul.f32 %v7600, %v7822
        %v7857 = vmul.f32 %v7601, %v7832
        %v7858 = vmul.f32 %v7602, %v7842
        %v7860 = vperm.slane %v7536, 0
        %v7862 = vmul.f32 %v7843, %v7860
        %v7863 = vmul.f32 %v7844, %v7860
        %v7864 = vmul.f32 %v7845, %v7860
        %v7865 = vmul.f32 %v7846, %v7860
        %v7866 = vmul.f32 %v7847, %v7860
        %v7867 = vmul.f32 %v7848, %v7860
        %v7868 = vmul.f32 %v7849, %v7860
        %v7869 = vmul.f32 %v7850, %v7860
        %v7870 = vmul.f32 %v7851, %v7860
        %v7871 = vmul.f32 %v7852, %v7860
        %v7872 = vmul.f32 %v7853, %v7860
        %v7873 = vmul.f32 %v7854, %v7860
        %v7874 = vmul.f32 %v7855, %v7860
        %v7875 = vmul.f32 %v7856, %v7860
        %v7876 = vmul.f32 %v7857, %v7860
        %v7877 = vmul.f32 %v7858, %v7860
        %v7879 = vperm.slane %v7538, 0
        %v7881 = vadd.f32 %v7862, %v7879
        %v7882 = vadd.f32 %v7863, %v7879
        %v7883 = vadd.f32 %v7864, %v7879
        %v7884 = vadd.f32 %v7865, %v7879
        %v7885 = vadd.f32 %v7866, %v7879
        %v7886 = vadd.f32 %v7867, %v7879
        %v7887 = vadd.f32 %v7868, %v7879
        %v7888 = vadd.f32 %v7869, %v7879
        %v7889 = vadd.f32 %v7870, %v7879
        %v7890 = vadd.f32 %v7871, %v7879
        %v7891 = vadd.f32 %v7872, %v7879
        %v7892 = vadd.f32 %v7873, %v7879
        %v7893 = vadd.f32 %v7874, %v7879
        %v7894 = vadd.f32 %v7875, %v7879
        %v7895 = vadd.f32 %v7876, %v7879
        %v7896 = vadd.f32 %v7877, %v7879
        %s7897 = scalar_lea.vmem [#allocation7], 256
        %v7898 = vld [vmem:[%s7897] sm:$0xff]
        %v7899 = vld [vmem:[%s7897 + $0x8] sm:$0xff]
        %v7900 = vld [vmem:[%s7897 + $0x10] sm:$0xff]
        %v7901 = vld [vmem:[%s7897 + $0x18] sm:$0xff]
        %v7902 = vld [vmem:[%s7897 + $0x20] sm:$0xff]
        %v7903 = vld [vmem:[%s7897 + $0x28] sm:$0xff]
        %v7904 = vld [vmem:[%s7897 + $0x30] sm:$0xff]
        %v7905 = vld [vmem:[%s7897 + $0x38] sm:$0xff]
        %v7906 = vld [vmem:[%s7897 + $0x40] sm:$0xff]
        %v7907 = vld [vmem:[%s7897 + $0x48] sm:$0xff]
        %v7908 = vld [vmem:[%s7897 + $0x50] sm:$0xff]
        %v7909 = vld [vmem:[%s7897 + $0x58] sm:$0xff]
        %v7910 = vld [vmem:[%s7897 + $0x60] sm:$0xff]
        %v7911 = vld [vmem:[%s7897 + $0x68] sm:$0xff]
        %v7912 = vld [vmem:[%s7897 + $0x70] sm:$0xff]
        %v7913 = vld [vmem:[%s7897 + $0x78] sm:$0xff]
        %v7914 = vld [vmem:[%s7897 + $0x80] sm:$0xff]
        %v7915 = vld [vmem:[%s7897 + $0x88] sm:$0xff]
        %v7916 = vld [vmem:[%s7897 + $0x90] sm:$0xff]
        %v7917 = vld [vmem:[%s7897 + $0x98] sm:$0xff]
        %v7918 = vld [vmem:[%s7897 + $0xa0] sm:$0xff]
        %v7919 = vld [vmem:[%s7897 + $0xa8] sm:$0xff]
        %v7920 = vld [vmem:[%s7897 + $0xb0] sm:$0xff]
        %v7921 = vld [vmem:[%s7897 + $0xb8] sm:$0xff]
        %v7922 = vld [vmem:[%s7897 + $0xc0] sm:$0xff]
        %v7923 = vld [vmem:[%s7897 + $0xc8] sm:$0xff]
        %v7924 = vld [vmem:[%s7897 + $0xd0] sm:$0xff]
        %v7925 = vld [vmem:[%s7897 + $0xd8] sm:$0xff]
        %v7926 = vld [vmem:[%s7897 + $0xe0] sm:$0xff]
        %v7927 = vld [vmem:[%s7897 + $0xe8] sm:$0xff]
        %v7928 = vld [vmem:[%s7897 + $0xf0] sm:$0xff]
        %v7929 = vld [vmem:[%s7897 + $0xf8] sm:$0xff]
        %v7930 = vpack.c.bf16 %v7882, %v7881
        %v7931 = vpack.c.bf16 %v7884, %v7883
        %v7932 = vpack.c.bf16 %v7886, %v7885
        %v7933 = vpack.c.bf16 %v7888, %v7887
        %v7934 = vpack.c.bf16 %v7890, %v7889
        %v7935 = vpack.c.bf16 %v7892, %v7891
        %v7936 = vpack.c.bf16 %v7894, %v7893
        %v7937 = vpack.c.bf16 %v7896, %v7895
        %s7938 = scalar_lea.vmem [#allocation9], 4
        %v7939 = vld [vmem:[%s7938] sm:$0xf]
        %v7941 = vperm.slane %v7939, 0
        %v7942 = vperm.slane %v7939, 1
        %v7943 = vperm.slane %v7939, 2
        %v7944 = vperm.slane %v7939, 3
        %v7981 = vunpack.c.l.b16 %v7898
        %v7982 = vunpack.c.h.b16 %v7898
        %v7983 = vunpack.c.l.b16 %v7899
        %v7984 = vunpack.c.h.b16 %v7899
        %v7985 = vunpack.c.l.b16 %v7900
        %v7986 = vunpack.c.h.b16 %v7900
        %v7987 = vunpack.c.l.b16 %v7901
        %v7988 = vunpack.c.h.b16 %v7901
        %v7989 = vunpack.c.l.b16 %v7902
        %v7990 = vunpack.c.h.b16 %v7902
        %v7991 = vunpack.c.l.b16 %v7903
        %v7992 = vunpack.c.h.b16 %v7903
        %v7993 = vunpack.c.l.b16 %v7904
        %v7994 = vunpack.c.h.b16 %v7904
        %v7995 = vunpack.c.l.b16 %v7905
        %v7996 = vunpack.c.h.b16 %v7905
        %v7997 = vunpack.c.l.b16 %v7906
        %v7998 = vunpack.c.h.b16 %v7906
        %v7999 = vunpack.c.l.b16 %v7907
        %v8000 = vunpack.c.h.b16 %v7907
        %v8001 = vunpack.c.l.b16 %v7908
        %v8002 = vunpack.c.h.b16 %v7908
        %v8003 = vunpack.c.l.b16 %v7909
        %v8004 = vunpack.c.h.b16 %v7909
        %v8005 = vunpack.c.l.b16 %v7910
        %v8006 = vunpack.c.h.b16 %v7910
        %v8007 = vunpack.c.l.b16 %v7911
        %v8008 = vunpack.c.h.b16 %v7911
        %v8009 = vunpack.c.l.b16 %v7912
        %v8010 = vunpack.c.h.b16 %v7912
        %v8011 = vunpack.c.l.b16 %v7913
        %v8012 = vunpack.c.h.b16 %v7913
        %v8013 = vunpack.c.l.b16 %v7914
        %v8014 = vunpack.c.h.b16 %v7914
        %v8015 = vunpack.c.l.b16 %v7915
        %v8016 = vunpack.c.h.b16 %v7915
        %v8017 = vunpack.c.l.b16 %v7916
        %v8018 = vunpack.c.h.b16 %v7916
        %v8019 = vunpack.c.l.b16 %v7917
        %v8020 = vunpack.c.h.b16 %v7917
        %v8021 = vunpack.c.l.b16 %v7918
        %v8022 = vunpack.c.h.b16 %v7918
        %v8023 = vunpack.c.l.b16 %v7919
        %v8024 = vunpack.c.h.b16 %v7919
        %v8025 = vunpack.c.l.b16 %v7920
        %v8026 = vunpack.c.h.b16 %v7920
        %v8027 = vunpack.c.l.b16 %v7921
        %v8028 = vunpack.c.h.b16 %v7921
        %v8029 = vunpack.c.l.b16 %v7922
        %v8030 = vunpack.c.h.b16 %v7922
        %v8031 = vunpack.c.l.b16 %v7923
        %v8032 = vunpack.c.h.b16 %v7923
        %v8033 = vunpack.c.l.b16 %v7924
        %v8034 = vunpack.c.h.b16 %v7924
        %v8035 = vunpack.c.l.b16 %v7925
        %v8036 = vunpack.c.h.b16 %v7925
        %v8037 = vunpack.c.l.b16 %v7926
        %v8038 = vunpack.c.h.b16 %v7926
        %v8039 = vunpack.c.l.b16 %v7927
        %v8040 = vunpack.c.h.b16 %v7927
        %v8041 = vunpack.c.l.b16 %v7928
        %v8042 = vunpack.c.h.b16 %v7928
        %v8043 = vunpack.c.l.b16 %v7929
        %v8044 = vunpack.c.h.b16 %v7929
        %v8045 = vpack.c.b16 %v7985, %v7981
        %v8046 = vpack.c.b16 %v7986, %v7982
        %v8047 = vpack.c.b16 %v7987, %v7983
        %v8048 = vpack.c.b16 %v7988, %v7984
        %v8049 = vpack.c.b16 %v7993, %v7989
        %v8050 = vpack.c.b16 %v7994, %v7990
        %v8051 = vpack.c.b16 %v7995, %v7991
        %v8052 = vpack.c.b16 %v7996, %v7992
        %v8053 = vpack.c.b16 %v8001, %v7997
        %v8054 = vpack.c.b16 %v8002, %v7998
        %v8055 = vpack.c.b16 %v8003, %v7999
        %v8056 = vpack.c.b16 %v8004, %v8000
        %v8057 = vpack.c.b16 %v8009, %v8005
        %v8058 = vpack.c.b16 %v8010, %v8006
        %v8059 = vpack.c.b16 %v8011, %v8007
        %v8060 = vpack.c.b16 %v8012, %v8008
        %v8061 = vpack.c.b16 %v8017, %v8013
        %v8062 = vpack.c.b16 %v8018, %v8014
        %v8063 = vpack.c.b16 %v8019, %v8015
        %v8064 = vpack.c.b16 %v8020, %v8016
        %v8065 = vpack.c.b16 %v8025, %v8021
        %v8066 = vpack.c.b16 %v8026, %v8022
        %v8067 = vpack.c.b16 %v8027, %v8023
        %v8068 = vpack.c.b16 %v8028, %v8024
        %v8069 = vpack.c.b16 %v8033, %v8029
        %v8070 = vpack.c.b16 %v8034, %v8030
        %v8071 = vpack.c.b16 %v8035, %v8031
        %v8072 = vpack.c.b16 %v8036, %v8032
        %v8073 = vpack.c.b16 %v8041, %v8037
        %v8074 = vpack.c.b16 %v8042, %v8038
        %v8075 = vpack.c.b16 %v8043, %v8039
        %v8076 = vpack.c.b16 %v8044, %v8040
        %8109 = vmatpush.bf16.msra.mxu0 %v8073
        %8110 = vmatpush.bf16.msra.mxu0 %v8069
        %8111 = vmatpush.bf16.msra.mxu0 %v8065
        %8112 = vmatpush.bf16.msra.mxu0 %v8061
        %8113 = vmatpush.bf16.msra.mxu0 %v8057
        %8114 = vmatpush.bf16.msra.mxu0 %v8053
        %8115 = vmatpush.bf16.msra.mxu0 %v8049
        %8116 = vmatpush.bf16.msra.mxu0 %v8045
        %8117 = vmatmul.bf16.gmra.mxu0 %v7930
        %v8118 = vpop.f32.mrf.mxu0
        %v8119 = vadd.f32 %v7941, %v8118
        %v8120 = vpop.f32.mrf.mxu0
        %v8121 = vadd.f32 %v7941, %v8120
        %8122 = vmatmul.bf16.gmra.mxu0 %v7931
        %v8123 = vpop.f32.mrf.mxu0
        %v8124 = vadd.f32 %v7941, %v8123
        %v8125 = vpop.f32.mrf.mxu0
        %v8126 = vadd.f32 %v7941, %v8125
        %8127 = vmatmul.bf16.gmra.mxu0 %v7932
        %v8128 = vpop.f32.mrf.mxu0
        %v8129 = vadd.f32 %v7941, %v8128
        %v8130 = vpop.f32.mrf.mxu0
        %v8131 = vadd.f32 %v7941, %v8130
        %8132 = vmatmul.bf16.gmra.mxu0 %v7933
        %v8133 = vpop.f32.mrf.mxu0
        %v8134 = vadd.f32 %v7941, %v8133
        %v8135 = vpop.f32.mrf.mxu0
        %v8136 = vadd.f32 %v7941, %v8135
        %8137 = vmatmul.bf16.gmra.mxu0 %v7934
        %v8138 = vpop.f32.mrf.mxu0
        %v8139 = vadd.f32 %v7941, %v8138
        %v8140 = vpop.f32.mrf.mxu0
        %v8141 = vadd.f32 %v7941, %v8140
        %8142 = vmatmul.bf16.gmra.mxu0 %v7935
        %v8143 = vpop.f32.mrf.mxu0
        %v8144 = vadd.f32 %v7941, %v8143
        %v8145 = vpop.f32.mrf.mxu0
        %v8146 = vadd.f32 %v7941, %v8145
        %8147 = vmatmul.bf16.gmra.mxu0 %v7936
        %v8148 = vpop.f32.mrf.mxu0
        %v8149 = vadd.f32 %v7941, %v8148
        %v8150 = vpop.f32.mrf.mxu0
        %v8151 = vadd.f32 %v7941, %v8150
        %8152 = vmatmul.bf16.gmra.mxu0 %v7937
        %v8153 = vpop.f32.mrf.mxu0
        %v8154 = vadd.f32 %v7941, %v8153
        %v8155 = vpop.f32.mrf.mxu0
        %v8156 = vadd.f32 %v7941, %v8155
        %8157 = vdwg.mxu0
        %8158 = vmatpush.bf16.msra.mxu0 %v8074
        %8159 = vmatpush.bf16.msra.mxu0 %v8070
        %8160 = vmatpush.bf16.msra.mxu0 %v8066
        %8161 = vmatpush.bf16.msra.mxu0 %v8062
        %8162 = vmatpush.bf16.msra.mxu0 %v8058
        %8163 = vmatpush.bf16.msra.mxu0 %v8054
        %8164 = vmatpush.bf16.msra.mxu0 %v8050
        %8165 = vmatpush.bf16.msra.mxu0 %v8046
        %8166 = vmatmul.bf16.gmra.mxu0 %v7930
        %v8167 = vpop.f32.mrf.mxu0
        %v8168 = vadd.f32 %v7942, %v8167
        %v8169 = vpop.f32.mrf.mxu0
        %v8170 = vadd.f32 %v7942, %v8169
        %8171 = vmatmul.bf16.gmra.mxu0 %v7931
        %v8172 = vpop.f32.mrf.mxu0
        %v8173 = vadd.f32 %v7942, %v8172
        %v8174 = vpop.f32.mrf.mxu0
        %v8175 = vadd.f32 %v7942, %v8174
        %8176 = vmatmul.bf16.gmra.mxu0 %v7932
        %v8177 = vpop.f32.mrf.mxu0
        %v8178 = vadd.f32 %v7942, %v8177
        %v8179 = vpop.f32.mrf.mxu0
        %v8180 = vadd.f32 %v7942, %v8179
        %8181 = vmatmul.bf16.gmra.mxu0 %v7933
        %v8182 = vpop.f32.mrf.mxu0
        %v8183 = vadd.f32 %v7942, %v8182
        %v8184 = vpop.f32.mrf.mxu0
        %v8185 = vadd.f32 %v7942, %v8184
        %8186 = vmatmul.bf16.gmra.mxu0 %v7934
        %v8187 = vpop.f32.mrf.mxu0
        %v8188 = vadd.f32 %v7942, %v8187
        %v8189 = vpop.f32.mrf.mxu0
        %v8190 = vadd.f32 %v7942, %v8189
        %8191 = vmatmul.bf16.gmra.mxu0 %v7935
        %v8192 = vpop.f32.mrf.mxu0
        %v8193 = vadd.f32 %v7942, %v8192
        %v8194 = vpop.f32.mrf.mxu0
        %v8195 = vadd.f32 %v7942, %v8194
        %8196 = vmatmul.bf16.gmra.mxu0 %v7936
        %v8197 = vpop.f32.mrf.mxu0
        %v8198 = vadd.f32 %v7942, %v8197
        %v8199 = vpop.f32.mrf.mxu0
        %v8200 = vadd.f32 %v7942, %v8199
        %8201 = vmatmul.bf16.gmra.mxu0 %v7937
        %v8202 = vpop.f32.mrf.mxu0
        %v8203 = vadd.f32 %v7942, %v8202
        %v8204 = vpop.f32.mrf.mxu0
        %v8205 = vadd.f32 %v7942, %v8204
        %8206 = vdwg.mxu0
        %8207 = vmatpush.bf16.msra.mxu0 %v8075
        %8208 = vmatpush.bf16.msra.mxu0 %v8071
        %8209 = vmatpush.bf16.msra.mxu0 %v8067
        %8210 = vmatpush.bf16.msra.mxu0 %v8063
        %8211 = vmatpush.bf16.msra.mxu0 %v8059
        %8212 = vmatpush.bf16.msra.mxu0 %v8055
        %8213 = vmatpush.bf16.msra.mxu0 %v8051
        %8214 = vmatpush.bf16.msra.mxu0 %v8047
        %8215 = vmatmul.bf16.gmra.mxu0 %v7930
        %v8216 = vpop.f32.mrf.mxu0
        %v8217 = vadd.f32 %v7943, %v8216
        %v8218 = vpop.f32.mrf.mxu0
        %v8219 = vadd.f32 %v7943, %v8218
        %8220 = vmatmul.bf16.gmra.mxu0 %v7931
        %v8221 = vpop.f32.mrf.mxu0
        %v8222 = vadd.f32 %v7943, %v8221
        %v8223 = vpop.f32.mrf.mxu0
        %v8224 = vadd.f32 %v7943, %v8223
        %8225 = vmatmul.bf16.gmra.mxu0 %v7932
        %v8226 = vpop.f32.mrf.mxu0
        %v8227 = vadd.f32 %v7943, %v8226
        %v8228 = vpop.f32.mrf.mxu0
        %v8229 = vadd.f32 %v7943, %v8228
        %8230 = vmatmul.bf16.gmra.mxu0 %v7933
        %v8231 = vpop.f32.mrf.mxu0
        %v8232 = vadd.f32 %v7943, %v8231
        %v8233 = vpop.f32.mrf.mxu0
        %v8234 = vadd.f32 %v7943, %v8233
        %8235 = vmatmul.bf16.gmra.mxu0 %v7934
        %v8236 = vpop.f32.mrf.mxu0
        %v8237 = vadd.f32 %v7943, %v8236
        %v8238 = vpop.f32.mrf.mxu0
        %v8239 = vadd.f32 %v7943, %v8238
        %8240 = vmatmul.bf16.gmra.mxu0 %v7935
        %v8241 = vpop.f32.mrf.mxu0
        %v8242 = vadd.f32 %v7943, %v8241
        %v8243 = vpop.f32.mrf.mxu0
        %v8244 = vadd.f32 %v7943, %v8243
        %8245 = vmatmul.bf16.gmra.mxu0 %v7936
        %v8246 = vpop.f32.mrf.mxu0
        %v8247 = vadd.f32 %v7943, %v8246
        %v8248 = vpop.f32.mrf.mxu0
        %v8249 = vadd.f32 %v7943, %v8248
        %8250 = vmatmul.bf16.gmra.mxu0 %v7937
        %v8251 = vpop.f32.mrf.mxu0
        %v8252 = vadd.f32 %v7943, %v8251
        %v8253 = vpop.f32.mrf.mxu0
        %v8254 = vadd.f32 %v7943, %v8253
        %8255 = vdwg.mxu0
        %8256 = vmatpush.bf16.msra.mxu0 %v8076
        %8257 = vmatpush.bf16.msra.mxu0 %v8072
        %8258 = vmatpush.bf16.msra.mxu0 %v8068
        %8259 = vmatpush.bf16.msra.mxu0 %v8064
        %8260 = vmatpush.bf16.msra.mxu0 %v8060
        %8261 = vmatpush.bf16.msra.mxu0 %v8056
        %8262 = vmatpush.bf16.msra.mxu0 %v8052
        %8263 = vmatpush.bf16.msra.mxu0 %v8048
        %8264 = vmatmul.bf16.gmra.mxu0 %v7930
        %v8265 = vpop.f32.mrf.mxu0
        %v8266 = vadd.f32 %v7944, %v8265
        %v8267 = vpop.f32.mrf.mxu0
        %v8268 = vadd.f32 %v7944, %v8267
        %8269 = vmatmul.bf16.gmra.mxu0 %v7931
        %v8270 = vpop.f32.mrf.mxu0
        %v8271 = vadd.f32 %v7944, %v8270
        %v8272 = vpop.f32.mrf.mxu0
        %v8273 = vadd.f32 %v7944, %v8272
        %8274 = vmatmul.bf16.gmra.mxu0 %v7932
        %v8275 = vpop.f32.mrf.mxu0
        %v8276 = vadd.f32 %v7944, %v8275
        %v8277 = vpop.f32.mrf.mxu0
        %v8278 = vadd.f32 %v7944, %v8277
        %8279 = vmatmul.bf16.gmra.mxu0 %v7933
        %v8280 = vpop.f32.mrf.mxu0
        %v8281 = vadd.f32 %v7944, %v8280
        %v8282 = vpop.f32.mrf.mxu0
        %v8283 = vadd.f32 %v7944, %v8282
        %8284 = vmatmul.bf16.gmra.mxu0 %v7934
        %v8285 = vpop.f32.mrf.mxu0
        %v8286 = vadd.f32 %v7944, %v8285
        %v8287 = vpop.f32.mrf.mxu0
        %v8288 = vadd.f32 %v7944, %v8287
        %8289 = vmatmul.bf16.gmra.mxu0 %v7935
        %v8290 = vpop.f32.mrf.mxu0
        %v8291 = vadd.f32 %v7944, %v8290
        %v8292 = vpop.f32.mrf.mxu0
        %v8293 = vadd.f32 %v7944, %v8292
        %8294 = vmatmul.bf16.gmra.mxu0 %v7936
        %v8295 = vpop.f32.mrf.mxu0
        %v8296 = vadd.f32 %v7944, %v8295
        %v8297 = vpop.f32.mrf.mxu0
        %v8298 = vadd.f32 %v7944, %v8297
        %8299 = vmatmul.bf16.gmra.mxu0 %v7937
        %v8300 = vpop.f32.mrf.mxu0
        %v8301 = vadd.f32 %v7944, %v8300
        %v8302 = vpop.f32.mrf.mxu0
        %v8303 = vadd.f32 %v7944, %v8302
        %8304 = vdwg.mxu0
        %v8305 = vmax.f32 %v8119, 0.0
        %v8306 = vmax.f32 %v8168, 0.0
        %v8307 = vmax.f32 %v8217, 0.0
        %v8308 = vmax.f32 %v8266, 0.0
        %v8309 = vmax.f32 %v8121, 0.0
        %v8310 = vmax.f32 %v8170, 0.0
        %v8311 = vmax.f32 %v8219, 0.0
        %v8312 = vmax.f32 %v8268, 0.0
        %v8313 = vmax.f32 %v8124, 0.0
        %v8314 = vmax.f32 %v8173, 0.0
        %v8315 = vmax.f32 %v8222, 0.0
        %v8316 = vmax.f32 %v8271, 0.0
        %v8317 = vmax.f32 %v8126, 0.0
        %v8318 = vmax.f32 %v8175, 0.0
        %v8319 = vmax.f32 %v8224, 0.0
        %v8320 = vmax.f32 %v8273, 0.0
        %v8321 = vmax.f32 %v8129, 0.0
        %v8322 = vmax.f32 %v8178, 0.0
        %v8323 = vmax.f32 %v8227, 0.0
        %v8324 = vmax.f32 %v8276, 0.0
        %v8325 = vmax.f32 %v8131, 0.0
        %v8326 = vmax.f32 %v8180, 0.0
        %v8327 = vmax.f32 %v8229, 0.0
        %v8328 = vmax.f32 %v8278, 0.0
        %v8329 = vmax.f32 %v8134, 0.0
        %v8330 = vmax.f32 %v8183, 0.0
        %v8331 = vmax.f32 %v8232, 0.0
        %v8332 = vmax.f32 %v8281, 0.0
        %v8333 = vmax.f32 %v8136, 0.0
        %v8334 = vmax.f32 %v8185, 0.0
        %v8335 = vmax.f32 %v8234, 0.0
        %v8336 = vmax.f32 %v8283, 0.0
        %v8337 = vmax.f32 %v8139, 0.0
        %v8338 = vmax.f32 %v8188, 0.0
        %v8339 = vmax.f32 %v8237, 0.0
        %v8340 = vmax.f32 %v8286, 0.0
        %v8341 = vmax.f32 %v8141, 0.0
        %v8342 = vmax.f32 %v8190, 0.0
        %v8343 = vmax.f32 %v8239, 0.0
        %v8344 = vmax.f32 %v8288, 0.0
        %v8345 = vmax.f32 %v8144, 0.0
        %v8346 = vmax.f32 %v8193, 0.0
        %v8347 = vmax.f32 %v8242, 0.0
        %v8348 = vmax.f32 %v8291, 0.0
        %v8349 = vmax.f32 %v8146, 0.0
        %v8350 = vmax.f32 %v8195, 0.0
        %v8351 = vmax.f32 %v8244, 0.0
        %v8352 = vmax.f32 %v8293, 0.0
        %v8353 = vmax.f32 %v8149, 0.0
        %v8354 = vmax.f32 %v8198, 0.0
        %v8355 = vmax.f32 %v8247, 0.0
        %v8356 = vmax.f32 %v8296, 0.0
        %v8357 = vmax.f32 %v8151, 0.0
        %v8358 = vmax.f32 %v8200, 0.0
        %v8359 = vmax.f32 %v8249, 0.0
        %v8360 = vmax.f32 %v8298, 0.0
        %v8361 = vmax.f32 %v8154, 0.0
        %v8362 = vmax.f32 %v8203, 0.0
        %v8363 = vmax.f32 %v8252, 0.0
        %v8364 = vmax.f32 %v8301, 0.0
        %v8365 = vmax.f32 %v8156, 0.0
        %v8366 = vmax.f32 %v8205, 0.0
        %v8367 = vmax.f32 %v8254, 0.0
        %v8368 = vmax.f32 %v8303, 0.0
        %s8369 = scalar_lea.vmem [#allocation10], 256
        %v8370 = vld [vmem:[%s8369] sm:$0xf]
        %v8371 = vld [vmem:[%s8369 + $0x4] sm:$0xf]
        %v8372 = vld [vmem:[%s8369 + $0x8] sm:$0xf]
        %v8373 = vld [vmem:[%s8369 + $0xc] sm:$0xf]
        %v8374 = vld [vmem:[%s8369 + $0x10] sm:$0xf]
        %v8375 = vld [vmem:[%s8369 + $0x14] sm:$0xf]
        %v8376 = vld [vmem:[%s8369 + $0x18] sm:$0xf]
        %v8377 = vld [vmem:[%s8369 + $0x1c] sm:$0xf]
        %v8378 = vld [vmem:[%s8369 + $0x20] sm:$0xf]
        %v8379 = vld [vmem:[%s8369 + $0x24] sm:$0xf]
        %v8380 = vld [vmem:[%s8369 + $0x28] sm:$0xf]
        %v8381 = vld [vmem:[%s8369 + $0x2c] sm:$0xf]
        %v8382 = vld [vmem:[%s8369 + $0x30] sm:$0xf]
        %v8383 = vld [vmem:[%s8369 + $0x34] sm:$0xf]
        %v8384 = vld [vmem:[%s8369 + $0x38] sm:$0xf]
        %v8385 = vld [vmem:[%s8369 + $0x3c] sm:$0xf]
        %v8386 = vld [vmem:[%s8369 + $0x40] sm:$0xf]
        %v8387 = vld [vmem:[%s8369 + $0x44] sm:$0xf]
        %v8388 = vld [vmem:[%s8369 + $0x48] sm:$0xf]
        %v8389 = vld [vmem:[%s8369 + $0x4c] sm:$0xf]
        %v8390 = vld [vmem:[%s8369 + $0x50] sm:$0xf]
        %v8391 = vld [vmem:[%s8369 + $0x54] sm:$0xf]
        %v8392 = vld [vmem:[%s8369 + $0x58] sm:$0xf]
        %v8393 = vld [vmem:[%s8369 + $0x5c] sm:$0xf]
        %v8394 = vld [vmem:[%s8369 + $0x60] sm:$0xf]
        %v8395 = vld [vmem:[%s8369 + $0x64] sm:$0xf]
        %v8396 = vld [vmem:[%s8369 + $0x68] sm:$0xf]
        %v8397 = vld [vmem:[%s8369 + $0x6c] sm:$0xf]
        %v8398 = vld [vmem:[%s8369 + $0x70] sm:$0xf]
        %v8399 = vld [vmem:[%s8369 + $0x74] sm:$0xf]
        %v8400 = vld [vmem:[%s8369 + $0x78] sm:$0xf]
        %v8401 = vld [vmem:[%s8369 + $0x7c] sm:$0xf]
        %v8402 = vld [vmem:[%s8369 + $0x80] sm:$0xf]
        %v8403 = vld [vmem:[%s8369 + $0x84] sm:$0xf]
        %v8404 = vld [vmem:[%s8369 + $0x88] sm:$0xf]
        %v8405 = vld [vmem:[%s8369 + $0x8c] sm:$0xf]
        %v8406 = vld [vmem:[%s8369 + $0x90] sm:$0xf]
        %v8407 = vld [vmem:[%s8369 + $0x94] sm:$0xf]
        %v8408 = vld [vmem:[%s8369 + $0x98] sm:$0xf]
        %v8409 = vld [vmem:[%s8369 + $0x9c] sm:$0xf]
        %v8410 = vld [vmem:[%s8369 + $0xa0] sm:$0xf]
        %v8411 = vld [vmem:[%s8369 + $0xa4] sm:$0xf]
        %v8412 = vld [vmem:[%s8369 + $0xa8] sm:$0xf]
        %v8413 = vld [vmem:[%s8369 + $0xac] sm:$0xf]
        %v8414 = vld [vmem:[%s8369 + $0xb0] sm:$0xf]
        %v8415 = vld [vmem:[%s8369 + $0xb4] sm:$0xf]
        %v8416 = vld [vmem:[%s8369 + $0xb8] sm:$0xf]
        %v8417 = vld [vmem:[%s8369 + $0xbc] sm:$0xf]
        %v8418 = vld [vmem:[%s8369 + $0xc0] sm:$0xf]
        %v8419 = vld [vmem:[%s8369 + $0xc4] sm:$0xf]
        %v8420 = vld [vmem:[%s8369 + $0xc8] sm:$0xf]
        %v8421 = vld [vmem:[%s8369 + $0xcc] sm:$0xf]
        %v8422 = vld [vmem:[%s8369 + $0xd0] sm:$0xf]
        %v8423 = vld [vmem:[%s8369 + $0xd4] sm:$0xf]
        %v8424 = vld [vmem:[%s8369 + $0xd8] sm:$0xf]
        %v8425 = vld [vmem:[%s8369 + $0xdc] sm:$0xf]
        %v8426 = vld [vmem:[%s8369 + $0xe0] sm:$0xf]
        %v8427 = vld [vmem:[%s8369 + $0xe4] sm:$0xf]
        %v8428 = vld [vmem:[%s8369 + $0xe8] sm:$0xf]
        %v8429 = vld [vmem:[%s8369 + $0xec] sm:$0xf]
        %v8430 = vld [vmem:[%s8369 + $0xf0] sm:$0xf]
        %v8431 = vld [vmem:[%s8369 + $0xf4] sm:$0xf]
        %v8432 = vld [vmem:[%s8369 + $0xf8] sm:$0xf]
        %v8433 = vld [vmem:[%s8369 + $0xfc] sm:$0xf]
        %v8434 = vpack.c.bf16 %v8309, %v8305
        %v8435 = vpack.c.bf16 %v8310, %v8306
        %v8436 = vpack.c.bf16 %v8311, %v8307
        %v8437 = vpack.c.bf16 %v8312, %v8308
        %v8438 = vpack.c.bf16 %v8317, %v8313
        %v8439 = vpack.c.bf16 %v8318, %v8314
        %v8440 = vpack.c.bf16 %v8319, %v8315
        %v8441 = vpack.c.bf16 %v8320, %v8316
        %v8442 = vpack.c.bf16 %v8325, %v8321
        %v8443 = vpack.c.bf16 %v8326, %v8322
        %v8444 = vpack.c.bf16 %v8327, %v8323
        %v8445 = vpack.c.bf16 %v8328, %v8324
        %v8446 = vpack.c.bf16 %v8333, %v8329
        %v8447 = vpack.c.bf16 %v8334, %v8330
        %v8448 = vpack.c.bf16 %v8335, %v8331
        %v8449 = vpack.c.bf16 %v8336, %v8332
        %v8450 = vpack.c.bf16 %v8341, %v8337
        %v8451 = vpack.c.bf16 %v8342, %v8338
        %v8452 = vpack.c.bf16 %v8343, %v8339
        %v8453 = vpack.c.bf16 %v8344, %v8340
        %v8454 = vpack.c.bf16 %v8349, %v8345
        %v8455 = vpack.c.bf16 %v8350, %v8346
        %v8456 = vpack.c.bf16 %v8351, %v8347
        %v8457 = vpack.c.bf16 %v8352, %v8348
        %v8458 = vpack.c.bf16 %v8357, %v8353
        %v8459 = vpack.c.bf16 %v8358, %v8354
        %v8460 = vpack.c.bf16 %v8359, %v8355
        %v8461 = vpack.c.bf16 %v8360, %v8356
        %v8462 = vpack.c.bf16 %v8365, %v8361
        %v8463 = vpack.c.bf16 %v8366, %v8362
        %v8464 = vpack.c.bf16 %v8367, %v8363
        %v8465 = vpack.c.bf16 %v8368, %v8364
        %v8530 = vunpack.c.l.b16 %v8370
        %v8531 = vunpack.c.l.b16 %v8371
        %v8532 = vunpack.c.l.b16 %v8372
        %v8533 = vunpack.c.l.b16 %v8373
        %v8534 = vunpack.c.l.b16 %v8374
        %v8535 = vunpack.c.l.b16 %v8375
        %v8536 = vunpack.c.l.b16 %v8376
        %v8537 = vunpack.c.l.b16 %v8377
        %v8538 = vunpack.c.l.b16 %v8378
        %v8539 = vunpack.c.l.b16 %v8379
        %v8540 = vunpack.c.l.b16 %v8380
        %v8541 = vunpack.c.l.b16 %v8381
        %v8542 = vunpack.c.l.b16 %v8382
        %v8543 = vunpack.c.l.b16 %v8383
        %v8544 = vunpack.c.l.b16 %v8384
        %v8545 = vunpack.c.l.b16 %v8385
        %v8546 = vunpack.c.l.b16 %v8386
        %v8547 = vunpack.c.l.b16 %v8387
        %v8548 = vunpack.c.l.b16 %v8388
        %v8549 = vunpack.c.l.b16 %v8389
        %v8550 = vunpack.c.l.b16 %v8390
        %v8551 = vunpack.c.l.b16 %v8391
        %v8552 = vunpack.c.l.b16 %v8392
        %v8553 = vunpack.c.l.b16 %v8393
        %v8554 = vunpack.c.l.b16 %v8394
        %v8555 = vunpack.c.l.b16 %v8395
        %v8556 = vunpack.c.l.b16 %v8396
        %v8557 = vunpack.c.l.b16 %v8397
        %v8558 = vunpack.c.l.b16 %v8398
        %v8559 = vunpack.c.l.b16 %v8399
        %v8560 = vunpack.c.l.b16 %v8400
        %v8561 = vunpack.c.l.b16 %v8401
        %v8562 = vunpack.c.l.b16 %v8402
        %v8563 = vunpack.c.l.b16 %v8403
        %v8564 = vunpack.c.l.b16 %v8404
        %v8565 = vunpack.c.l.b16 %v8405
        %v8566 = vunpack.c.l.b16 %v8406
        %v8567 = vunpack.c.l.b16 %v8407
        %v8568 = vunpack.c.l.b16 %v8408
        %v8569 = vunpack.c.l.b16 %v8409
        %v8570 = vunpack.c.l.b16 %v8410
        %v8571 = vunpack.c.l.b16 %v8411
        %v8572 = vunpack.c.l.b16 %v8412
        %v8573 = vunpack.c.l.b16 %v8413
        %v8574 = vunpack.c.l.b16 %v8414
        %v8575 = vunpack.c.l.b16 %v8415
        %v8576 = vunpack.c.l.b16 %v8416
        %v8577 = vunpack.c.l.b16 %v8417
        %v8578 = vunpack.c.l.b16 %v8418
        %v8579 = vunpack.c.l.b16 %v8419
        %v8580 = vunpack.c.l.b16 %v8420
        %v8581 = vunpack.c.l.b16 %v8421
        %v8582 = vunpack.c.l.b16 %v8422
        %v8583 = vunpack.c.l.b16 %v8423
        %v8584 = vunpack.c.l.b16 %v8424
        %v8585 = vunpack.c.l.b16 %v8425
        %v8586 = vunpack.c.l.b16 %v8426
        %v8587 = vunpack.c.l.b16 %v8427
        %v8588 = vunpack.c.l.b16 %v8428
        %v8589 = vunpack.c.l.b16 %v8429
        %v8590 = vunpack.c.l.b16 %v8430
        %v8591 = vunpack.c.l.b16 %v8431
        %v8592 = vunpack.c.l.b16 %v8432
        %v8593 = vunpack.c.l.b16 %v8433
        %v8594 = vpack.c.b16 %v8531, %v8530
        %v8595 = vpack.c.b16 %v8533, %v8532
        %v8596 = vpack.c.b16 %v8535, %v8534
        %v8597 = vpack.c.b16 %v8537, %v8536
        %v8598 = vpack.c.b16 %v8539, %v8538
        %v8599 = vpack.c.b16 %v8541, %v8540
        %v8600 = vpack.c.b16 %v8543, %v8542
        %v8601 = vpack.c.b16 %v8545, %v8544
        %v8602 = vpack.c.b16 %v8547, %v8546
        %v8603 = vpack.c.b16 %v8549, %v8548
        %v8604 = vpack.c.b16 %v8551, %v8550
        %v8605 = vpack.c.b16 %v8553, %v8552
        %v8606 = vpack.c.b16 %v8555, %v8554
        %v8607 = vpack.c.b16 %v8557, %v8556
        %v8608 = vpack.c.b16 %v8559, %v8558
        %v8609 = vpack.c.b16 %v8561, %v8560
        %v8610 = vpack.c.b16 %v8563, %v8562
        %v8611 = vpack.c.b16 %v8565, %v8564
        %v8612 = vpack.c.b16 %v8567, %v8566
        %v8613 = vpack.c.b16 %v8569, %v8568
        %v8614 = vpack.c.b16 %v8571, %v8570
        %v8615 = vpack.c.b16 %v8573, %v8572
        %v8616 = vpack.c.b16 %v8575, %v8574
        %v8617 = vpack.c.b16 %v8577, %v8576
        %v8618 = vpack.c.b16 %v8579, %v8578
        %v8619 = vpack.c.b16 %v8581, %v8580
        %v8620 = vpack.c.b16 %v8583, %v8582
        %v8621 = vpack.c.b16 %v8585, %v8584
        %v8622 = vpack.c.b16 %v8587, %v8586
        %v8623 = vpack.c.b16 %v8589, %v8588
        %v8624 = vpack.c.b16 %v8591, %v8590
        %v8625 = vpack.c.b16 %v8593, %v8592
        %8658 = vmatpush.bf16.msra.mxu0 %v8601
        %8659 = vmatpush.bf16.msra.mxu0 %v8600
        %8660 = vmatpush.bf16.msra.mxu0 %v8599
        %8661 = vmatpush.bf16.msra.mxu0 %v8598
        %8662 = vmatpush.bf16.msra.mxu0 %v8597
        %8663 = vmatpush.bf16.msra.mxu0 %v8596
        %8664 = vmatpush.bf16.msra.mxu0 %v8595
        %8665 = vmatpush.bf16.msra.mxu0 %v8594
        %8666 = vmatmul.bf16.gmra.mxu0 %v8434
        %v8667 = vpop.f32.mrf.mxu0
        %v8668 = vadd.f32 0.0, %v8667
        %v8669 = vpop.f32.mrf.mxu0
        %v8670 = vadd.f32 0.0, %v8669
        %8671 = vmatmul.bf16.gmra.mxu0 %v8438
        %v8672 = vpop.f32.mrf.mxu0
        %v8673 = vadd.f32 0.0, %v8672
        %v8674 = vpop.f32.mrf.mxu0
        %v8675 = vadd.f32 0.0, %v8674
        %8676 = vmatmul.bf16.gmra.mxu0 %v8442
        %v8677 = vpop.f32.mrf.mxu0
        %v8678 = vadd.f32 0.0, %v8677
        %v8679 = vpop.f32.mrf.mxu0
        %v8680 = vadd.f32 0.0, %v8679
        %8681 = vmatmul.bf16.gmra.mxu0 %v8446
        %v8682 = vpop.f32.mrf.mxu0
        %v8683 = vadd.f32 0.0, %v8682
        %v8684 = vpop.f32.mrf.mxu0
        %v8685 = vadd.f32 0.0, %v8684
        %8686 = vmatmul.bf16.gmra.mxu0 %v8450
        %v8687 = vpop.f32.mrf.mxu0
        %v8688 = vadd.f32 0.0, %v8687
        %v8689 = vpop.f32.mrf.mxu0
        %v8690 = vadd.f32 0.0, %v8689
        %8691 = vmatmul.bf16.gmra.mxu0 %v8454
        %v8692 = vpop.f32.mrf.mxu0
        %v8693 = vadd.f32 0.0, %v8692
        %v8694 = vpop.f32.mrf.mxu0
        %v8695 = vadd.f32 0.0, %v8694
        %8696 = vmatmul.bf16.gmra.mxu0 %v8458
        %v8697 = vpop.f32.mrf.mxu0
        %v8698 = vadd.f32 0.0, %v8697
        %v8699 = vpop.f32.mrf.mxu0
        %v8700 = vadd.f32 0.0, %v8699
        %8701 = vmatmul.bf16.gmra.mxu0 %v8462
        %v8702 = vpop.f32.mrf.mxu0
        %v8703 = vadd.f32 0.0, %v8702
        %v8704 = vpop.f32.mrf.mxu0
        %v8705 = vadd.f32 0.0, %v8704
        %8706 = vdwg.mxu0
        %8707 = vmatpush.bf16.msra.mxu0 %v8609
        %8708 = vmatpush.bf16.msra.mxu0 %v8608
        %8709 = vmatpush.bf16.msra.mxu0 %v8607
        %8710 = vmatpush.bf16.msra.mxu0 %v8606
        %8711 = vmatpush.bf16.msra.mxu0 %v8605
        %8712 = vmatpush.bf16.msra.mxu0 %v8604
        %8713 = vmatpush.bf16.msra.mxu0 %v8603
        %8714 = vmatpush.bf16.msra.mxu0 %v8602
        %8715 = vmatmul.bf16.gmra.mxu0 %v8435
        %v8716 = vpop.f32.mrf.mxu0
        %v8717 = vadd.f32 %v8668, %v8716
        %v8718 = vpop.f32.mrf.mxu0
        %v8719 = vadd.f32 %v8670, %v8718
        %8720 = vmatmul.bf16.gmra.mxu0 %v8439
        %v8721 = vpop.f32.mrf.mxu0
        %v8722 = vadd.f32 %v8673, %v8721
        %v8723 = vpop.f32.mrf.mxu0
        %v8724 = vadd.f32 %v8675, %v8723
        %8725 = vmatmul.bf16.gmra.mxu0 %v8443
        %v8726 = vpop.f32.mrf.mxu0
        %v8727 = vadd.f32 %v8678, %v8726
        %v8728 = vpop.f32.mrf.mxu0
        %v8729 = vadd.f32 %v8680, %v8728
        %8730 = vmatmul.bf16.gmra.mxu0 %v8447
        %v8731 = vpop.f32.mrf.mxu0
        %v8732 = vadd.f32 %v8683, %v8731
        %v8733 = vpop.f32.mrf.mxu0
        %v8734 = vadd.f32 %v8685, %v8733
        %8735 = vmatmul.bf16.gmra.mxu0 %v8451
        %v8736 = vpop.f32.mrf.mxu0
        %v8737 = vadd.f32 %v8688, %v8736
        %v8738 = vpop.f32.mrf.mxu0
        %v8739 = vadd.f32 %v8690, %v8738
        %8740 = vmatmul.bf16.gmra.mxu0 %v8455
        %v8741 = vpop.f32.mrf.mxu0
        %v8742 = vadd.f32 %v8693, %v8741
        %v8743 = vpop.f32.mrf.mxu0
        %v8744 = vadd.f32 %v8695, %v8743
        %8745 = vmatmul.bf16.gmra.mxu0 %v8459
        %v8746 = vpop.f32.mrf.mxu0
        %v8747 = vadd.f32 %v8698, %v8746
        %v8748 = vpop.f32.mrf.mxu0
        %v8749 = vadd.f32 %v8700, %v8748
        %8750 = vmatmul.bf16.gmra.mxu0 %v8463
        %v8751 = vpop.f32.mrf.mxu0
        %v8752 = vadd.f32 %v8703, %v8751
        %v8753 = vpop.f32.mrf.mxu0
        %v8754 = vadd.f32 %v8705, %v8753
        %8755 = vdwg.mxu0
        %8756 = vmatpush.bf16.msra.mxu0 %v8617
        %8757 = vmatpush.bf16.msra.mxu0 %v8616
        %8758 = vmatpush.bf16.msra.mxu0 %v8615
        %8759 = vmatpush.bf16.msra.mxu0 %v8614
        %8760 = vmatpush.bf16.msra.mxu0 %v8613
        %8761 = vmatpush.bf16.msra.mxu0 %v8612
        %8762 = vmatpush.bf16.msra.mxu0 %v8611
        %8763 = vmatpush.bf16.msra.mxu0 %v8610
        %8764 = vmatmul.bf16.gmra.mxu0 %v8436
        %v8765 = vpop.f32.mrf.mxu0
        %v8766 = vadd.f32 %v8717, %v8765
        %v8767 = vpop.f32.mrf.mxu0
        %v8768 = vadd.f32 %v8719, %v8767
        %8769 = vmatmul.bf16.gmra.mxu0 %v8440
        %v8770 = vpop.f32.mrf.mxu0
        %v8771 = vadd.f32 %v8722, %v8770
        %v8772 = vpop.f32.mrf.mxu0
        %v8773 = vadd.f32 %v8724, %v8772
        %8774 = vmatmul.bf16.gmra.mxu0 %v8444
        %v8775 = vpop.f32.mrf.mxu0
        %v8776 = vadd.f32 %v8727, %v8775
        %v8777 = vpop.f32.mrf.mxu0
        %v8778 = vadd.f32 %v8729, %v8777
        %8779 = vmatmul.bf16.gmra.mxu0 %v8448
        %v8780 = vpop.f32.mrf.mxu0
        %v8781 = vadd.f32 %v8732, %v8780
        %v8782 = vpop.f32.mrf.mxu0
        %v8783 = vadd.f32 %v8734, %v8782
        %8784 = vmatmul.bf16.gmra.mxu0 %v8452
        %v8785 = vpop.f32.mrf.mxu0
        %v8786 = vadd.f32 %v8737, %v8785
        %v8787 = vpop.f32.mrf.mxu0
        %v8788 = vadd.f32 %v8739, %v8787
        %8789 = vmatmul.bf16.gmra.mxu0 %v8456
        %v8790 = vpop.f32.mrf.mxu0
        %v8791 = vadd.f32 %v8742, %v8790
        %v8792 = vpop.f32.mrf.mxu0
        %v8793 = vadd.f32 %v8744, %v8792
        %8794 = vmatmul.bf16.gmra.mxu0 %v8460
        %v8795 = vpop.f32.mrf.mxu0
        %v8796 = vadd.f32 %v8747, %v8795
        %v8797 = vpop.f32.mrf.mxu0
        %v8798 = vadd.f32 %v8749, %v8797
        %8799 = vmatmul.bf16.gmra.mxu0 %v8464
        %v8800 = vpop.f32.mrf.mxu0
        %v8801 = vadd.f32 %v8752, %v8800
        %v8802 = vpop.f32.mrf.mxu0
        %v8803 = vadd.f32 %v8754, %v8802
        %8804 = vdwg.mxu0
        %8805 = vmatpush.bf16.msra.mxu0 %v8625
        %8806 = vmatpush.bf16.msra.mxu0 %v8624
        %8807 = vmatpush.bf16.msra.mxu0 %v8623
        %8808 = vmatpush.bf16.msra.mxu0 %v8622
        %8809 = vmatpush.bf16.msra.mxu0 %v8621
        %8810 = vmatpush.bf16.msra.mxu0 %v8620
        %8811 = vmatpush.bf16.msra.mxu0 %v8619
        %8812 = vmatpush.bf16.msra.mxu0 %v8618
        %8813 = vmatmul.bf16.gmra.mxu0 %v8437
        %v8814 = vpop.f32.mrf.mxu0
        %v8815 = vadd.f32 %v8766, %v8814
        %v8816 = vpop.f32.mrf.mxu0
        %v8817 = vadd.f32 %v8768, %v8816
        %8818 = vmatmul.bf16.gmra.mxu0 %v8441
        %v8819 = vpop.f32.mrf.mxu0
        %v8820 = vadd.f32 %v8771, %v8819
        %v8821 = vpop.f32.mrf.mxu0
        %v8822 = vadd.f32 %v8773, %v8821
        %8823 = vmatmul.bf16.gmra.mxu0 %v8445
        %v8824 = vpop.f32.mrf.mxu0
        %v8825 = vadd.f32 %v8776, %v8824
        %v8826 = vpop.f32.mrf.mxu0
        %v8827 = vadd.f32 %v8778, %v8826
        %8828 = vmatmul.bf16.gmra.mxu0 %v8449
        %v8829 = vpop.f32.mrf.mxu0
        %v8830 = vadd.f32 %v8781, %v8829
        %v8831 = vpop.f32.mrf.mxu0
        %v8832 = vadd.f32 %v8783, %v8831
        %8833 = vmatmul.bf16.gmra.mxu0 %v8453
        %v8834 = vpop.f32.mrf.mxu0
        %v8835 = vadd.f32 %v8786, %v8834
        %v8836 = vpop.f32.mrf.mxu0
        %v8837 = vadd.f32 %v8788, %v8836
        %8838 = vmatmul.bf16.gmra.mxu0 %v8457
        %v8839 = vpop.f32.mrf.mxu0
        %v8840 = vadd.f32 %v8791, %v8839
        %v8841 = vpop.f32.mrf.mxu0
        %v8842 = vadd.f32 %v8793, %v8841
        %8843 = vmatmul.bf16.gmra.mxu0 %v8461
        %v8844 = vpop.f32.mrf.mxu0
        %v8845 = vadd.f32 %v8796, %v8844
        %v8846 = vpop.f32.mrf.mxu0
        %v8847 = vadd.f32 %v8798, %v8846
        %8848 = vmatmul.bf16.gmra.mxu0 %v8465
        %v8849 = vpop.f32.mrf.mxu0
        %v8850 = vadd.f32 %v8801, %v8849
        %v8851 = vpop.f32.mrf.mxu0
        %v8852 = vadd.f32 %v8803, %v8851
        %8853 = vdwg.mxu0
        %v8854 = vadd.f32 %v7519, %v8815
        %v8855 = vadd.f32 %v7520, %v8817
        %v8856 = vadd.f32 %v7521, %v8820
        %v8857 = vadd.f32 %v7522, %v8822
        %v8858 = vadd.f32 %v7523, %v8825
        %v8859 = vadd.f32 %v7524, %v8827
        %v8860 = vadd.f32 %v7525, %v8830
        %v8861 = vadd.f32 %v7526, %v8832
        %v8862 = vadd.f32 %v7527, %v8835
        %v8863 = vadd.f32 %v7528, %v8837
        %v8864 = vadd.f32 %v7529, %v8840
        %v8865 = vadd.f32 %v7530, %v8842
        %v8866 = vadd.f32 %v7531, %v8845
        %v8867 = vadd.f32 %v7532, %v8847
        %v8868 = vadd.f32 %v7533, %v8850
        %v8869 = vadd.f32 %v7534, %v8852
        %s8870 = scalar_lea.vmem [#allocation12], 1
        %v8871 = vld [vmem:[%s8870] sm:$0x1]
        %v8873 = vperm.slane %v8871, 0
        %v8875 = vadd.f32 %v8854, %v8873
        %v8876 = vadd.f32 %v8855, %v8873
        %v8877 = vadd.f32 %v8856, %v8873
        %v8878 = vadd.f32 %v8857, %v8873
        %v8879 = vadd.f32 %v8858, %v8873
        %v8880 = vadd.f32 %v8859, %v8873
        %v8881 = vadd.f32 %v8860, %v8873
        %v8882 = vadd.f32 %v8861, %v8873
        %v8883 = vadd.f32 %v8862, %v8873
        %v8884 = vadd.f32 %v8863, %v8873
        %v8885 = vadd.f32 %v8864, %v8873
        %v8886 = vadd.f32 %v8865, %v8873
        %v8887 = vadd.f32 %v8866, %v8873
        %v8888 = vadd.f32 %v8867, %v8873
        %v8889 = vadd.f32 %v8868, %v8873
        %v8890 = vadd.f32 %v8869, %v8873
        %v8891 = vld [vmem:[%s13] sm:$0x1]
        %v8892 = vld [vmem:[#allocation13] sm:$0x1]
        %8893 = vadd.xlane.f32.xlu0 %v8875
        %v8894 = vpop.xlane.xlu0 %8893
        %8895 = vadd.xlane.f32.xlu0 %v8876
        %v8896 = vpop.xlane.xlu0 %8895
        %8897 = vadd.xlane.f32.xlu0 %v8877
        %v8898 = vpop.xlane.xlu0 %8897
        %8899 = vadd.xlane.f32.xlu0 %v8878
        %v8900 = vpop.xlane.xlu0 %8899
        %8901 = vadd.xlane.f32.xlu0 %v8879
        %v8902 = vpop.xlane.xlu0 %8901
        %8903 = vadd.xlane.f32.xlu0 %v8880
        %v8904 = vpop.xlane.xlu0 %8903
        %8905 = vadd.xlane.f32.xlu0 %v8881
        %v8906 = vpop.xlane.xlu0 %8905
        %8907 = vadd.xlane.f32.xlu0 %v8882
        %v8908 = vpop.xlane.xlu0 %8907
        %8909 = vadd.xlane.f32.xlu0 %v8883
        %v8910 = vpop.xlane.xlu0 %8909
        %8911 = vadd.xlane.f32.xlu0 %v8884
        %v8912 = vpop.xlane.xlu0 %8911
        %8913 = vadd.xlane.f32.xlu0 %v8885
        %v8914 = vpop.xlane.xlu0 %8913
        %8915 = vadd.xlane.f32.xlu0 %v8886
        %v8916 = vpop.xlane.xlu0 %8915
        %8917 = vadd.xlane.f32.xlu0 %v8887
        %v8918 = vpop.xlane.xlu0 %8917
        %8919 = vadd.xlane.f32.xlu0 %v8888
        %v8920 = vpop.xlane.xlu0 %8919
        %8921 = vadd.xlane.f32.xlu0 %v8889
        %v8922 = vpop.xlane.xlu0 %8921
        %8923 = vadd.xlane.f32.xlu0 %v8890
        %v8924 = vpop.xlane.xlu0 %8923
        %v8925 = vmul.f32 %v8894, %v1035
        %v8926 = vmul.f32 %v8896, %v1035
        %v8927 = vmul.f32 %v8898, %v1035
        %v8928 = vmul.f32 %v8900, %v1035
        %v8929 = vmul.f32 %v8902, %v1035
        %v8930 = vmul.f32 %v8904, %v1035
        %v8931 = vmul.f32 %v8906, %v1035
        %v8932 = vmul.f32 %v8908, %v1035
        %v8933 = vmul.f32 %v8910, %v1035
        %v8934 = vmul.f32 %v8912, %v1035
        %v8935 = vmul.f32 %v8914, %v1035
        %v8936 = vmul.f32 %v8916, %v1035
        %v8937 = vmul.f32 %v8918, %v1035
        %v8938 = vmul.f32 %v8920, %v1035
        %v8939 = vmul.f32 %v8922, %v1035
        %v8940 = vmul.f32 %v8924, %v1035
        %v8941 = vsub.f32 %v8875, %v8925
        %v8942 = vsub.f32 %v8876, %v8926
        %v8943 = vsub.f32 %v8877, %v8927
        %v8944 = vsub.f32 %v8878, %v8928
        %v8945 = vsub.f32 %v8879, %v8929
        %v8946 = vsub.f32 %v8880, %v8930
        %v8947 = vsub.f32 %v8881, %v8931
        %v8948 = vsub.f32 %v8882, %v8932
        %v8949 = vsub.f32 %v8883, %v8933
        %v8950 = vsub.f32 %v8884, %v8934
        %v8951 = vsub.f32 %v8885, %v8935
        %v8952 = vsub.f32 %v8886, %v8936
        %v8953 = vsub.f32 %v8887, %v8937
        %v8954 = vsub.f32 %v8888, %v8938
        %v8955 = vsub.f32 %v8889, %v8939
        %v8956 = vsub.f32 %v8890, %v8940
        %v8957 = vmul.f32 %v8941, %v8941
        %v8958 = vmul.f32 %v8942, %v8942
        %v8959 = vmul.f32 %v8943, %v8943
        %v8960 = vmul.f32 %v8944, %v8944
        %v8961 = vmul.f32 %v8945, %v8945
        %v8962 = vmul.f32 %v8946, %v8946
        %v8963 = vmul.f32 %v8947, %v8947
        %v8964 = vmul.f32 %v8948, %v8948
        %v8965 = vmul.f32 %v8949, %v8949
        %v8966 = vmul.f32 %v8950, %v8950
        %v8967 = vmul.f32 %v8951, %v8951
        %v8968 = vmul.f32 %v8952, %v8952
        %v8969 = vmul.f32 %v8953, %v8953
        %v8970 = vmul.f32 %v8954, %v8954
        %v8971 = vmul.f32 %v8955, %v8955
        %v8972 = vmul.f32 %v8956, %v8956
        %8973 = vadd.xlane.f32.xlu0 %v8957
        %v8974 = vpop.xlane.xlu0 %8973
        %8975 = vadd.xlane.f32.xlu0 %v8958
        %v8976 = vpop.xlane.xlu0 %8975
        %8977 = vadd.xlane.f32.xlu0 %v8959
        %v8978 = vpop.xlane.xlu0 %8977
        %8979 = vadd.xlane.f32.xlu0 %v8960
        %v8980 = vpop.xlane.xlu0 %8979
        %8981 = vadd.xlane.f32.xlu0 %v8961
        %v8982 = vpop.xlane.xlu0 %8981
        %8983 = vadd.xlane.f32.xlu0 %v8962
        %v8984 = vpop.xlane.xlu0 %8983
        %8985 = vadd.xlane.f32.xlu0 %v8963
        %v8986 = vpop.xlane.xlu0 %8985
        %8987 = vadd.xlane.f32.xlu0 %v8964
        %v8988 = vpop.xlane.xlu0 %8987
        %8989 = vadd.xlane.f32.xlu0 %v8965
        %v8990 = vpop.xlane.xlu0 %8989
        %8991 = vadd.xlane.f32.xlu0 %v8966
        %v8992 = vpop.xlane.xlu0 %8991
        %8993 = vadd.xlane.f32.xlu0 %v8967
        %v8994 = vpop.xlane.xlu0 %8993
        %8995 = vadd.xlane.f32.xlu0 %v8968
        %v8996 = vpop.xlane.xlu0 %8995
        %8997 = vadd.xlane.f32.xlu0 %v8969
        %v8998 = vpop.xlane.xlu0 %8997
        %8999 = vadd.xlane.f32.xlu0 %v8970
        %v9000 = vpop.xlane.xlu0 %8999
        %9001 = vadd.xlane.f32.xlu0 %v8971
        %v9002 = vpop.xlane.xlu0 %9001
        %9003 = vadd.xlane.f32.xlu0 %v8972
        %v9004 = vpop.xlane.xlu0 %9003
        %v9005 = vmul.f32 %v8974, %v1035
        %v9006 = vmul.f32 %v8976, %v1035
        %v9007 = vmul.f32 %v8978, %v1035
        %v9008 = vmul.f32 %v8980, %v1035
        %v9009 = vmul.f32 %v8982, %v1035
        %v9010 = vmul.f32 %v8984, %v1035
        %v9011 = vmul.f32 %v8986, %v1035
        %v9012 = vmul.f32 %v8988, %v1035
        %v9013 = vmul.f32 %v8990, %v1035
        %v9014 = vmul.f32 %v8992, %v1035
        %v9015 = vmul.f32 %v8994, %v1035
        %v9016 = vmul.f32 %v8996, %v1035
        %v9017 = vmul.f32 %v8998, %v1035
        %v9018 = vmul.f32 %v9000, %v1035
        %v9019 = vmul.f32 %v9002, %v1035
        %v9020 = vmul.f32 %v9004, %v1035
        %v9021 = vadd.f32 %v9005, 1e-05
        %v9022 = vadd.f32 %v9006, 1e-05
        %v9023 = vadd.f32 %v9007, 1e-05
        %v9024 = vadd.f32 %v9008, 1e-05
        %v9025 = vadd.f32 %v9009, 1e-05
        %v9026 = vadd.f32 %v9010, 1e-05
        %v9027 = vadd.f32 %v9011, 1e-05
        %v9028 = vadd.f32 %v9012, 1e-05
        %v9029 = vadd.f32 %v9013, 1e-05
        %v9030 = vadd.f32 %v9014, 1e-05
        %v9031 = vadd.f32 %v9015, 1e-05
        %v9032 = vadd.f32 %v9016, 1e-05
        %v9033 = vadd.f32 %v9017, 1e-05
        %v9034 = vadd.f32 %v9018, 1e-05
        %v9035 = vadd.f32 %v9019, 1e-05
        %v9036 = vadd.f32 %v9020, 1e-05
        %v9037 = vrsqrt.pop %v9021
        %v9038 = vmul.f32 %v9037, %v9021
        %v9039 = vmul.f32 %v9038, %v9037
        %v9040 = vmul.f32 0.5, %v9039
        %v9041 = vsub.f32 1.5, %v9040
        %v9042 = vmul.f32 %v9037, %v9041
        %vm9043 = vweird.f32 %v9021
        %vm9044 = vweird.f32 %v9037
        %vm9045 = vmor %vm9043, %vm9044
        %v9046 = vsel %vm9045, %v9037, %v9042
        %v9047 = vrsqrt.pop %v9022
        %v9048 = vmul.f32 %v9047, %v9022
        %v9049 = vmul.f32 %v9048, %v9047
        %v9050 = vmul.f32 0.5, %v9049
        %v9051 = vsub.f32 1.5, %v9050
        %v9052 = vmul.f32 %v9047, %v9051
        %vm9053 = vweird.f32 %v9022
        %vm9054 = vweird.f32 %v9047
        %vm9055 = vmor %vm9053, %vm9054
        %v9056 = vsel %vm9055, %v9047, %v9052
        %v9057 = vrsqrt.pop %v9023
        %v9058 = vmul.f32 %v9057, %v9023
        %v9059 = vmul.f32 %v9058, %v9057
        %v9060 = vmul.f32 0.5, %v9059
        %v9061 = vsub.f32 1.5, %v9060
        %v9062 = vmul.f32 %v9057, %v9061
        %vm9063 = vweird.f32 %v9023
        %vm9064 = vweird.f32 %v9057
        %vm9065 = vmor %vm9063, %vm9064
        %v9066 = vsel %vm9065, %v9057, %v9062
        %v9067 = vrsqrt.pop %v9024
        %v9068 = vmul.f32 %v9067, %v9024
        %v9069 = vmul.f32 %v9068, %v9067
        %v9070 = vmul.f32 0.5, %v9069
        %v9071 = vsub.f32 1.5, %v9070
        %v9072 = vmul.f32 %v9067, %v9071
        %vm9073 = vweird.f32 %v9024
        %vm9074 = vweird.f32 %v9067
        %vm9075 = vmor %vm9073, %vm9074
        %v9076 = vsel %vm9075, %v9067, %v9072
        %v9077 = vrsqrt.pop %v9025
        %v9078 = vmul.f32 %v9077, %v9025
        %v9079 = vmul.f32 %v9078, %v9077
        %v9080 = vmul.f32 0.5, %v9079
        %v9081 = vsub.f32 1.5, %v9080
        %v9082 = vmul.f32 %v9077, %v9081
        %vm9083 = vweird.f32 %v9025
        %vm9084 = vweird.f32 %v9077
        %vm9085 = vmor %vm9083, %vm9084
        %v9086 = vsel %vm9085, %v9077, %v9082
        %v9087 = vrsqrt.pop %v9026
        %v9088 = vmul.f32 %v9087, %v9026
        %v9089 = vmul.f32 %v9088, %v9087
        %v9090 = vmul.f32 0.5, %v9089
        %v9091 = vsub.f32 1.5, %v9090
        %v9092 = vmul.f32 %v9087, %v9091
        %vm9093 = vweird.f32 %v9026
        %vm9094 = vweird.f32 %v9087
        %vm9095 = vmor %vm9093, %vm9094
        %v9096 = vsel %vm9095, %v9087, %v9092
        %v9097 = vrsqrt.pop %v9027
        %v9098 = vmul.f32 %v9097, %v9027
        %v9099 = vmul.f32 %v9098, %v9097
        %v9100 = vmul.f32 0.5, %v9099
        %v9101 = vsub.f32 1.5, %v9100
        %v9102 = vmul.f32 %v9097, %v9101
        %vm9103 = vweird.f32 %v9027
        %vm9104 = vweird.f32 %v9097
        %vm9105 = vmor %vm9103, %vm9104
        %v9106 = vsel %vm9105, %v9097, %v9102
        %v9107 = vrsqrt.pop %v9028
        %v9108 = vmul.f32 %v9107, %v9028
        %v9109 = vmul.f32 %v9108, %v9107
        %v9110 = vmul.f32 0.5, %v9109
        %v9111 = vsub.f32 1.5, %v9110
        %v9112 = vmul.f32 %v9107, %v9111
        %vm9113 = vweird.f32 %v9028
        %vm9114 = vweird.f32 %v9107
        %vm9115 = vmor %vm9113, %vm9114
        %v9116 = vsel %vm9115, %v9107, %v9112
        %v9117 = vrsqrt.pop %v9029
        %v9118 = vmul.f32 %v9117, %v9029
        %v9119 = vmul.f32 %v9118, %v9117
        %v9120 = vmul.f32 0.5, %v9119
        %v9121 = vsub.f32 1.5, %v9120
        %v9122 = vmul.f32 %v9117, %v9121
        %vm9123 = vweird.f32 %v9029
        %vm9124 = vweird.f32 %v9117
        %vm9125 = vmor %vm9123, %vm9124
        %v9126 = vsel %vm9125, %v9117, %v9122
        %v9127 = vrsqrt.pop %v9030
        %v9128 = vmul.f32 %v9127, %v9030
        %v9129 = vmul.f32 %v9128, %v9127
        %v9130 = vmul.f32 0.5, %v9129
        %v9131 = vsub.f32 1.5, %v9130
        %v9132 = vmul.f32 %v9127, %v9131
        %vm9133 = vweird.f32 %v9030
        %vm9134 = vweird.f32 %v9127
        %vm9135 = vmor %vm9133, %vm9134
        %v9136 = vsel %vm9135, %v9127, %v9132
        %v9137 = vrsqrt.pop %v9031
        %v9138 = vmul.f32 %v9137, %v9031
        %v9139 = vmul.f32 %v9138, %v9137
        %v9140 = vmul.f32 0.5, %v9139
        %v9141 = vsub.f32 1.5, %v9140
        %v9142 = vmul.f32 %v9137, %v9141
        %vm9143 = vweird.f32 %v9031
        %vm9144 = vweird.f32 %v9137
        %vm9145 = vmor %vm9143, %vm9144
        %v9146 = vsel %vm9145, %v9137, %v9142
        %v9147 = vrsqrt.pop %v9032
        %v9148 = vmul.f32 %v9147, %v9032
        %v9149 = vmul.f32 %v9148, %v9147
        %v9150 = vmul.f32 0.5, %v9149
        %v9151 = vsub.f32 1.5, %v9150
        %v9152 = vmul.f32 %v9147, %v9151
        %vm9153 = vweird.f32 %v9032
        %vm9154 = vweird.f32 %v9147
        %vm9155 = vmor %vm9153, %vm9154
        %v9156 = vsel %vm9155, %v9147, %v9152
        %v9157 = vrsqrt.pop %v9033
        %v9158 = vmul.f32 %v9157, %v9033
        %v9159 = vmul.f32 %v9158, %v9157
        %v9160 = vmul.f32 0.5, %v9159
        %v9161 = vsub.f32 1.5, %v9160
        %v9162 = vmul.f32 %v9157, %v9161
        %vm9163 = vweird.f32 %v9033
        %vm9164 = vweird.f32 %v9157
        %vm9165 = vmor %vm9163, %vm9164
        %v9166 = vsel %vm9165, %v9157, %v9162
        %v9167 = vrsqrt.pop %v9034
        %v9168 = vmul.f32 %v9167, %v9034
        %v9169 = vmul.f32 %v9168, %v9167
        %v9170 = vmul.f32 0.5, %v9169
        %v9171 = vsub.f32 1.5, %v9170
        %v9172 = vmul.f32 %v9167, %v9171
        %vm9173 = vweird.f32 %v9034
        %vm9174 = vweird.f32 %v9167
        %vm9175 = vmor %vm9173, %vm9174
        %v9176 = vsel %vm9175, %v9167, %v9172
        %v9177 = vrsqrt.pop %v9035
        %v9178 = vmul.f32 %v9177, %v9035
        %v9179 = vmul.f32 %v9178, %v9177
        %v9180 = vmul.f32 0.5, %v9179
        %v9181 = vsub.f32 1.5, %v9180
        %v9182 = vmul.f32 %v9177, %v9181
        %vm9183 = vweird.f32 %v9035
        %vm9184 = vweird.f32 %v9177
        %vm9185 = vmor %vm9183, %vm9184
        %v9186 = vsel %vm9185, %v9177, %v9182
        %v9187 = vrsqrt.pop %v9036
        %v9188 = vmul.f32 %v9187, %v9036
        %v9189 = vmul.f32 %v9188, %v9187
        %v9190 = vmul.f32 0.5, %v9189
        %v9191 = vsub.f32 1.5, %v9190
        %v9192 = vmul.f32 %v9187, %v9191
        %vm9193 = vweird.f32 %v9036
        %vm9194 = vweird.f32 %v9187
        %vm9195 = vmor %vm9193, %vm9194
        %v9196 = vsel %vm9195, %v9187, %v9192
        %v9197 = vmul.f32 %v8941, %v9046
        %v9198 = vmul.f32 %v8942, %v9056
        %v9199 = vmul.f32 %v8943, %v9066
        %v9200 = vmul.f32 %v8944, %v9076
        %v9201 = vmul.f32 %v8945, %v9086
        %v9202 = vmul.f32 %v8946, %v9096
        %v9203 = vmul.f32 %v8947, %v9106
        %v9204 = vmul.f32 %v8948, %v9116
        %v9205 = vmul.f32 %v8949, %v9126
        %v9206 = vmul.f32 %v8950, %v9136
        %v9207 = vmul.f32 %v8951, %v9146
        %v9208 = vmul.f32 %v8952, %v9156
        %v9209 = vmul.f32 %v8953, %v9166
        %v9210 = vmul.f32 %v8954, %v9176
        %v9211 = vmul.f32 %v8955, %v9186
        %v9212 = vmul.f32 %v8956, %v9196
        %v9214 = vperm.slane %v8891, 0
        %v9216 = vmul.f32 %v9197, %v9214
        %v9217 = vmul.f32 %v9198, %v9214
        %v9218 = vmul.f32 %v9199, %v9214
        %v9219 = vmul.f32 %v9200, %v9214
        %v9220 = vmul.f32 %v9201, %v9214
        %v9221 = vmul.f32 %v9202, %v9214
        %v9222 = vmul.f32 %v9203, %v9214
        %v9223 = vmul.f32 %v9204, %v9214
        %v9224 = vmul.f32 %v9205, %v9214
        %v9225 = vmul.f32 %v9206, %v9214
        %v9226 = vmul.f32 %v9207, %v9214
        %v9227 = vmul.f32 %v9208, %v9214
        %v9228 = vmul.f32 %v9209, %v9214
        %v9229 = vmul.f32 %v9210, %v9214
        %v9230 = vmul.f32 %v9211, %v9214
        %v9231 = vmul.f32 %v9212, %v9214
        %v9233 = vperm.slane %v8892, 0
        %v9235 = vadd.f32 %v9216, %v9233
        %v9236 = vadd.f32 %v9217, %v9233
        %v9237 = vadd.f32 %v9218, %v9233
        %v9238 = vadd.f32 %v9219, %v9233
        %v9239 = vadd.f32 %v9220, %v9233
        %v9240 = vadd.f32 %v9221, %v9233
        %v9241 = vadd.f32 %v9222, %v9233
        %v9242 = vadd.f32 %v9223, %v9233
        %v9243 = vadd.f32 %v9224, %v9233
        %v9244 = vadd.f32 %v9225, %v9233
        %v9245 = vadd.f32 %v9226, %v9233
        %v9246 = vadd.f32 %v9227, %v9233
        %v9247 = vadd.f32 %v9228, %v9233
        %v9248 = vadd.f32 %v9229, %v9233
        %v9249 = vadd.f32 %v9230, %v9233
        %v9250 = vadd.f32 %v9231, %v9233
        %v9251 = vld [vmem:[#allocation15] sm:$0xf]
        %v9252 = vld [vmem:[#allocation15 + $0x4] sm:$0xf]
        %v9253 = vld [vmem:[#allocation15 + $0x8] sm:$0xf]
        %v9254 = vld [vmem:[#allocation15 + $0xc] sm:$0xf]
        %v9255 = vld [vmem:[#allocation15 + $0x10] sm:$0xf]
        %v9256 = vld [vmem:[#allocation15 + $0x14] sm:$0xf]
        %v9257 = vld [vmem:[#allocation15 + $0x18] sm:$0xf]
        %v9258 = vld [vmem:[#allocation15 + $0x1c] sm:$0xf]
        %v9259 = vld [vmem:[#allocation15 + $0x20] sm:$0xf]
        %v9260 = vld [vmem:[#allocation15 + $0x24] sm:$0xf]
        %v9261 = vld [vmem:[#allocation15 + $0x28] sm:$0xf]
        %v9262 = vld [vmem:[#allocation15 + $0x2c] sm:$0xf]
        %v9263 = vld [vmem:[#allocation15 + $0x30] sm:$0xf]
        %v9264 = vld [vmem:[#allocation15 + $0x34] sm:$0xf]
        %v9265 = vld [vmem:[#allocation15 + $0x38] sm:$0xf]
        %v9266 = vld [vmem:[#allocation15 + $0x3c] sm:$0xf]
        %v9267 = vpack.c.bf16 %v9236, %v9235
        %v9268 = vpack.c.bf16 %v9238, %v9237
        %v9269 = vpack.c.bf16 %v9240, %v9239
        %v9270 = vpack.c.bf16 %v9242, %v9241
        %v9271 = vpack.c.bf16 %v9244, %v9243
        %v9272 = vpack.c.bf16 %v9246, %v9245
        %v9273 = vpack.c.bf16 %v9248, %v9247
        %v9274 = vpack.c.bf16 %v9250, %v9249
        %v9275 = vld [vmem:[#allocation16] sm:$0x1]
        %v9277 = vperm.slane %v9275, 0
        %v9295 = vunpack.c.l.b16 %v9251
        %v9296 = vunpack.c.l.b16 %v9252
        %v9297 = vunpack.c.l.b16 %v9253
        %v9298 = vunpack.c.l.b16 %v9254
        %v9299 = vunpack.c.l.b16 %v9255
        %v9300 = vunpack.c.l.b16 %v9256
        %v9301 = vunpack.c.l.b16 %v9257
        %v9302 = vunpack.c.l.b16 %v9258
        %v9303 = vunpack.c.l.b16 %v9259
        %v9304 = vunpack.c.l.b16 %v9260
        %v9305 = vunpack.c.l.b16 %v9261
        %v9306 = vunpack.c.l.b16 %v9262
        %v9307 = vunpack.c.l.b16 %v9263
        %v9308 = vunpack.c.l.b16 %v9264
        %v9309 = vunpack.c.l.b16 %v9265
        %v9310 = vunpack.c.l.b16 %v9266
        %v9311 = vpack.c.b16 %v9296, %v9295
        %v9312 = vpack.c.b16 %v9298, %v9297
        %v9313 = vpack.c.b16 %v9300, %v9299
        %v9314 = vpack.c.b16 %v9302, %v9301
        %v9315 = vpack.c.b16 %v9304, %v9303
        %v9316 = vpack.c.b16 %v9306, %v9305
        %v9317 = vpack.c.b16 %v9308, %v9307
        %v9318 = vpack.c.b16 %v9310, %v9309
        %9327 = vmatpush.bf16.msra.mxu0 %v9318
        %9328 = vmatpush.bf16.msra.mxu0 %v9317
        %9329 = vmatpush.bf16.msra.mxu0 %v9316
        %9330 = vmatpush.bf16.msra.mxu0 %v9315
        %9331 = vmatpush.bf16.msra.mxu0 %v9314
        %9332 = vmatpush.bf16.msra.mxu0 %v9313
        %9333 = vmatpush.bf16.msra.mxu0 %v9312
        %9334 = vmatpush.bf16.msra.mxu0 %v9311
        %9335 = vmatmul.bf16.gmra.mxu0 %v9267
        %v9336 = vpop.f32.mrf.mxu0
        %v9337 = vadd.f32 %v9277, %v9336
        %v9338 = vpop.f32.mrf.mxu0
        %v9339 = vadd.f32 %v9277, %v9338
        %9340 = vmatmul.bf16.gmra.mxu0 %v9268
        %v9341 = vpop.f32.mrf.mxu0
        %v9342 = vadd.f32 %v9277, %v9341
        %v9343 = vpop.f32.mrf.mxu0
        %v9344 = vadd.f32 %v9277, %v9343
        %9345 = vmatmul.bf16.gmra.mxu0 %v9269
        %v9346 = vpop.f32.mrf.mxu0
        %v9347 = vadd.f32 %v9277, %v9346
        %v9348 = vpop.f32.mrf.mxu0
        %v9349 = vadd.f32 %v9277, %v9348
        %9350 = vmatmul.bf16.gmra.mxu0 %v9270
        %v9351 = vpop.f32.mrf.mxu0
        %v9352 = vadd.f32 %v9277, %v9351
        %v9353 = vpop.f32.mrf.mxu0
        %v9354 = vadd.f32 %v9277, %v9353
        %9355 = vmatmul.bf16.gmra.mxu0 %v9271
        %v9356 = vpop.f32.mrf.mxu0
        %v9357 = vadd.f32 %v9277, %v9356
        %v9358 = vpop.f32.mrf.mxu0
        %v9359 = vadd.f32 %v9277, %v9358
        %9360 = vmatmul.bf16.gmra.mxu0 %v9272
        %v9361 = vpop.f32.mrf.mxu0
        %v9362 = vadd.f32 %v9277, %v9361
        %v9363 = vpop.f32.mrf.mxu0
        %v9364 = vadd.f32 %v9277, %v9363
        %9365 = vmatmul.bf16.gmra.mxu0 %v9273
        %v9366 = vpop.f32.mrf.mxu0
        %v9367 = vadd.f32 %v9277, %v9366
        %v9368 = vpop.f32.mrf.mxu0
        %v9369 = vadd.f32 %v9277, %v9368
        %9370 = vmatmul.bf16.gmra.mxu0 %v9274
        %v9371 = vpop.f32.mrf.mxu0
        %v9372 = vadd.f32 %v9277, %v9371
        %v9373 = vpop.f32.mrf.mxu0
        %v9374 = vadd.f32 %v9277, %v9373
        %9375 = vdwg.mxu0
        %9376 = vst [vmem:[%s710] sm:$0xff] %v9337
        %9377 = vst [vmem:[%s710 + $0x8] sm:$0xff] %v9339
        %9378 = vst [vmem:[%s710 + $0x10] sm:$0xff] %v9342
        %9379 = vst [vmem:[%s710 + $0x18] sm:$0xff] %v9344
        %9380 = vst [vmem:[%s710 + $0x20] sm:$0xff] %v9347
        %9381 = vst [vmem:[%s710 + $0x28] sm:$0xff] %v9349
        %9382 = vst [vmem:[%s710 + $0x30] sm:$0xff] %v9352
        %9383 = vst [vmem:[%s710 + $0x38] sm:$0xff] %v9354
        %9384 = vst [vmem:[%s710 + $0x40] sm:$0xff] %v9357
        %9385 = vst [vmem:[%s710 + $0x48] sm:$0xff] %v9359
        %9386 = vst [vmem:[%s710 + $0x50] sm:$0xff] %v9362
        %9387 = vst [vmem:[%s710 + $0x58] sm:$0xff] %v9364
        %9388 = vst [vmem:[%s710 + $0x60] sm:$0xff] %v9367
        %9389 = vst [vmem:[%s710 + $0x68] sm:$0xff] %v9369
        %9390 = vst [vmem:[%s710 + $0x70] sm:$0xff] %v9372
        %9391 = vst [vmem:[%s710 + $0x78] sm:$0xff] %v9374
        %p9392 = scmp.lt.s32.totalorder %s34, 1
        %s9393 = scalar_select %p9392, %s34, 1
        %s9394 = smul.addr %s9393, 16
        %s9395 = smul.addr %s9394, 8
        %s9396 = scalar_lea.vmem %s17, %s9395
        // Predicated region
        $region129: #{_lambda_.1} parent=87 // pred_check
          %p9397 = pneg %p414
        $region130: #{_lambda_.1} parent=87 // pred_check_branch
          %9399 = sbr.rel (%p9397) target = $region132
        $region131: #{_lambda_.1} parent=87 // pred_region
          _
        $region132: #{_lambda_.1} parent=87 // pred_fallthru
          _
      $region88: #{_lambda_.1} parent=5 // pred_fallthru
        _
      %p9400 = scmp.le.s32.totalorder 2, %s29
      // Predicated region
      $region133: #{_lambda_.1} parent=5 // pred_check
        %p9401 = pneg %p9400
      $region134: #{_lambda_.1} parent=5 // pred_check_branch
        %9403 = sbr.rel (%p9401) target = $region136
      $region135: #{_lambda_.1} parent=5 // pred_region
        %s9404 = ssub.s32 %s29, 2
        // Predicated region
        $region137: #{_lambda_.1} parent=135 // pred_check
          %p9405 = pneg %p420
        $region138: #{_lambda_.1} parent=135 // pred_check_branch
          %9407 = sbr.rel (%p9405) target = $region140
        $region139: #{_lambda_.1} parent=135 // pred_region
          %p9408 = scmp.lt.s32.totalorder %s35, 1
          %s9409 = scalar_select %p9408, %s35, 1
          %s9410 = smul.addr %s9409, 16
          %s9411 = smul.addr %s9410, 8
          %s9412 = scalar_lea.vmem %s17, %s9411
        $region140: #{_lambda_.1} parent=135 // pred_fallthru
          _
      $region136: #{_lambda_.1} parent=5 // pred_fallthru
        _
    $region6: #{_lambda_.1} parent=1 // loop_footer
      %s33 = sadd.s32 1, %s29
    $region7: #{_lambda_.1} parent=1 // loop_footer_branch
      %28 = sbr.rel target = $region3
    $region8: #{_lambda_.1} parent=1 // loop_exit
      _
    %9413 = vsyncpa [#allocation3], 1
    %s9414 = scalar_lea.sflag [#allocation3], 1
    %9415 = vsyncpa %s9414, 1
    %9416 = vsyncpa [#allocation5], 1
    %9417 = vsyncpa [#allocation8], 1
    %9418 = vsyncpa [#allocation11], 1
    %9419 = vsyncpa [#allocation14], 1
    %9420 = vsyncpa [#allocation17], 1

</llo_original>
